<compile_context>
chip_gen: v7x
topology: tpu7x:2x2x1
jax: 0.10.0
libtpu: 0.0.40
codegen_flags: <defaults>
</compile_context>

<pallas_src>
import math
import functools

import jax
import jax.numpy as jnp
from jax import lax
from jax.experimental import pallas as pl
from jax.experimental.pallas import tpu as pltpu


_COMPUTE_DTYPE = jnp.bfloat16   # MXU operand dtype; accumulation stays f32.


# ----------------------------- small helpers ---------------------------------

def _supports_single_buffering():
    # pipeline_mode=pl.Buffered(1): "fetch once, no double buffer" for weights
    # whose index_map is constant over the grid (perf-review item).
    try:
        pl.BlockSpec((8, 128), lambda i: (0, 0), pipeline_mode=pl.Buffered(1))
        return True
    except Exception:
        return False


_SINGLE_BUFFER_OK = _supports_single_buffering()


def _const_spec(shape, grid_rank):
    """BlockSpec for a grid-invariant (weight) operand; single-buffered if possible."""
    zeros = (0,) * len(shape)
    imap = {1: (lambda i: zeros),
            2: (lambda i, j: zeros),
            3: (lambda i, j, k: zeros)}[grid_rank]
    if _SINGLE_BUFFER_OK:
        return pl.BlockSpec(shape, imap, pipeline_mode=pl.Buffered(1))
    return pl.BlockSpec(shape, imap)


def _vmem_limit_bytes(frac=0.82, fallback=64 << 20):
    """Per-generation VMEM budget instead of a blanket clamp."""
    try:
        cap = int(pltpu.get_tpu_info().vmem_capacity_bytes)
    except Exception:
        cap = fallback
    return max(32 << 20, int(frac * cap))


# ----------------------------- in-kernel math ---------------------------------

def _layernorm(x, w, b, eps=1e-5):
    # F.layer_norm over the last dim (biased variance); w/b broadcast (1, C).
    mu = jnp.mean(x, axis=-1, keepdims=True)
    var = jnp.mean((x - mu) ** 2, axis=-1, keepdims=True)
    return (x - mu) * lax.rsqrt(var + eps) * w + b


def _gelu_exact(x):
    # nn.GELU() default = exact erf GELU.  erf via Abramowitz & Stegun 7.1.26
    # polynomial (|err| <= 1.5e-7); only needs exp (EUP-friendly), f32 math.
    z = x * 0.7071067811865476
    s = jnp.sign(z)
    az = jnp.abs(z)
    t = 1.0 / (1.0 + 0.3275911 * az)
    poly = t * (0.254829592 + t * (-0.284496736 + t * (1.421413741 +
             t * (-1.453152027 + t * 1.061405429))))
    erf = s * (1.0 - poly * jnp.exp(-az * az))
    return 0.5 * x * (1.0 + erf)


# ------------------------- kernel A: ln_1 + qkv projection --------------------

def _qkv_kernel(n_head, x_ref, ln1w_ref, ln1b_ref, wqkv_ref, bqkv_ref,
                q_ref, k_ref, v_ref):
    x = x_ref[0]                                           # (TT, C) f32
    tt, c = x.shape
    hd = c // n_head

    h = _layernorm(x, ln1w_ref[...], ln1b_ref[...])
    qkv = jnp.dot(h.astype(wqkv_ref.dtype), wqkv_ref[...],
                  preferred_element_type=jnp.float32) + bqkv_ref[...]   # (TT, 3C)

    def to_heads(m, out_ref):
        # (TT, C) -> (H, TT, hd): relayout done once here so the flash inner
        # loop in kernel B never reshapes / transposes.
        out_ref[0] = jnp.transpose(m.reshape(tt, n_head, hd),
                                   (1, 0, 2)).astype(out_ref.dtype)

    to_heads(qkv[:, 0 * c:1 * c], q_ref)   # 1/sqrt(hd) already folded into Q cols
    to_heads(qkv[:, 1 * c:2 * c], k_ref)
    to_heads(qkv[:, 2 * c:3 * c], v_ref)


# --------------- kernel B: flash attention + out-proj + residual --------------

def _attn_kernel(x_ref, q_ref, k_ref, v_ref, wpr_ref, bpr_ref,
                 o_ref, m_sc, l_sc, acc_sc):
    qi = pl.program_id(1)
    ki = pl.program_id(2)

    @pl.when(ki == 0)
    def _init():
        m_sc[...] = jnp.full_like(m_sc, -jnp.inf)
        l_sc[...] = jnp.zeros_like(l_sc)
        acc_sc[...] = jnp.zeros_like(acc_sc)

    @pl.when(ki <= qi)                    # causal tile pruning (tq == tkv)
    def _update():
        q = q_ref[0]                      # (H, TQ, hd) bf16, pre-scaled
        k = k_ref[0]                      # (H, TKV, hd) bf16
        tq, tkv = q.shape[1], k.shape[1]

        s = jnp.einsum('hqd,hkd->hqk', q, k,
                       preferred_element_type=jnp.float32)          # (H,TQ,TKV)

        row = qi * tq + lax.broadcasted_iota(jnp.int32, (tq, tkv), 0)
        col = ki * tkv + lax.broadcasted_iota(jnp.int32, (tq, tkv), 1)
        s = jnp.where((col <= row)[None, :, :], s, -jnp.inf)

        m_prev = m_sc[...]
        m_new = jnp.maximum(m_prev, jnp.max(s, axis=-1, keepdims=True))
        alpha = jnp.exp(m_prev - m_new)
        p = jnp.exp(s - m_new)

        l_sc[...] = alpha * l_sc[...] + jnp.sum(p, axis=-1, keepdims=True)
        acc_sc[...] = alpha * acc_sc[...] + jnp.einsum(
            'hqk,hkd->hqd', p.astype(v_ref.dtype), v_ref[0],
            preferred_element_type=jnp.float32)
        m_sc[...] = m_new

    @pl.when(ki == pl.num_programs(2) - 1)
    def _finalize():
        o = acc_sc[...] * pl.reciprocal(l_sc[...], approx=True)     # (H, TQ, hd)
        nh, tq, hd = o.shape
        y = jnp.transpose(o, (1, 0, 2)).reshape(tq, nh * hd)        # merge heads
        yp = jnp.dot(y.astype(wpr_ref.dtype), wpr_ref[...],
                     preferred_element_type=jnp.float32) + bpr_ref[...]
        o_ref[0] = x_ref[0] + yp                                    # residual 1


# ------------------- kernel C: ln_2 + MLP (hidden-tiled) + residual -----------

def _mlp_kernel(x1_ref, ln2w_ref, ln2b_ref, wfc_ref, bfc_ref, wmp_ref, bmp_ref,
                o_ref, h2_sc, acc_sc):
    n = pl.program_id(2)

    @pl.when(n == 0)
    def _init():
        h2_sc[...] = _layernorm(x1_ref[0], ln2w_ref[...],
                                ln2b_ref[...]).astype(h2_sc.dtype)
        acc_sc[...] = jnp.zeros_like(acc_sc)

    # One hidden tile of the MLP: fc slice -> GELU -> proj slice, accumulated.
    fc = jnp.dot(h2_sc[...], wfc_ref[...],
                 preferred_element_type=jnp.float32) + bfc_ref[...]   # (TT, TH)
    g = _gelu_exact(fc)
    acc_sc[...] += jnp.dot(g.astype(wmp_ref.dtype), wmp_ref[...],
                           preferred_element_type=jnp.float32)

    @pl.when(n == pl.num_programs(2) - 1)
    def _finalize():
        o_ref[0] = x1_ref[0] + acc_sc[...] + bmp_ref[...]            # residual 2


# --------------------------------- wrappers -----------------------------------

def prepare_block_params(params, n_head, *, compute_dtype=_COMPUTE_DTYPE):
    """One-time host-side transform (hoisted out of the per-call path):
       * LoRA fold W_eff = W + A @ B (bias unchanged),
       * softmax scale 1/sqrt(hd) folded into the Q columns of W_qkv / b_qkv,
       * matmul weights cast to the MXU compute dtype (bf16).
    NOTE: casting W + A@B to bf16 can swallow tiny LoRA deltas on real
    checkpoints; the fold itself is done in f32."""
    f32 = jnp.float32

    def fold(w, a, b):
        return (params[w].astype(f32)
                + params[a].astype(f32) @ params[b].astype(f32))

    c = params["w_proj"].shape[0]
    scale = 1.0 / math.sqrt(c // n_head)

    w_qkv = fold("w_attn", "a_attn", "blo_attn")           # (C, 3C) f32
    b_qkv = params["b_attn"].astype(f32)                   # (1, 3C)
    w_qkv = w_qkv.at[:, :c].multiply(scale)                # fold scale into Q
    b_qkv = b_qkv.at[:, :c].multiply(scale)

    return {
        "ln1_w": params["ln1_w"].astype(f32),
        "ln1_b": params["ln1_b"].astype(f32),
        "w_qkv": w_qkv.astype(compute_dtype),
        "b_qkv": b_qkv,
        "w_proj": fold("w_proj", "a_proj", "blo_proj").astype(compute_dtype),
        "b_proj": params["b_proj"].astype(f32),
        "ln2_w": params["ln2_w"].astype(f32),
        "ln2_b": params["ln2_b"].astype(f32),
        "w_fc": fold("w_fc", "a_fc", "blo_fc").astype(compute_dtype),
        "b_fc": params["b_fc"].astype(f32),
        "w_mp": fold("w_mp", "a_mp", "blo_mp").astype(compute_dtype),
        "b_mp": params["b_mp"].astype(f32),
    }


def block_forward(x, wp, n_head, *, tile_t=128, tile_hidden=512):
    """x: (B, T, C) f32; wp: output of prepare_block_params; returns (B, T, C) f32."""
    B, T, C = x.shape
    H = n_head
    hd = C // H
    cdt = wp["w_qkv"].dtype

    TT = min(tile_t, T)                      # row / query / kv tile (all equal)
    assert T % TT == 0, "T must be divisible by the row tile"
    NT = T // TT

    H4 = 4 * C
    TH = min(tile_hidden, H4)                # MLP hidden tile (streams w_fc/w_mp)
    assert H4 % TH == 0, "4*C must be divisible by tile_hidden"
    NH = H4 // TH

    vmem_limit = _vmem_limit_bytes()

    # ---------------- kernel A: ln_1 + qkv projection -------------------------
    def head_spec():
        return pl.BlockSpec((1, H, TT, hd), lambda b, t: (b, 0, t, 0))

    q, k, v = pl.pallas_call(
        functools.partial(_qkv_kernel, H),
        out_shape=tuple(jax.ShapeDtypeStruct((B, H, T, hd), cdt) for _ in range(3)),
        grid_spec=pltpu.PrefetchScalarGridSpec(
            num_scalar_prefetch=0,
            grid=(B, NT),
            in_specs=[
                pl.BlockSpec((1, TT, C), lambda b, t: (b, t, 0)),
                _const_spec((1, C), 2), _const_spec((1, C), 2),
                _const_spec((C, 3 * C), 2), _const_spec((1, 3 * C), 2),
            ],
            out_specs=(head_spec(), head_spec(), head_spec())),
        compiler_params=pltpu.CompilerParams(
            dimension_semantics=("parallel", "parallel"),
            vmem_limit_bytes=vmem_limit),
    )(x, wp["ln1_w"], wp["ln1_b"], wp["w_qkv"], wp["b_qkv"])

    # ---------- kernel B: flash attention + out-proj + residual ----------------
    x1 = pl.pallas_call(
        _attn_kernel,
        out_shape=jax.ShapeDtypeStruct((B, T, C), jnp.float32),
        grid_spec=pltpu.PrefetchScalarGridSpec(
            num_scalar_prefetch=0,
            grid=(B, NT, NT),                         # (batch, q tiles, kv tiles)
            in_specs=[
                pl.BlockSpec((1, TT, C), lambda b, qi, ki: (b, qi, 0)),
                pl.BlockSpec((1, H, TT, hd), lambda b, qi, ki: (b, 0, qi, 0)),
                pl.BlockSpec((1, H, TT, hd), lambda b, qi, ki: (b, 0, ki, 0)),
                pl.BlockSpec((1, H, TT, hd), lambda b, qi, ki: (b, 0, ki, 0)),
                _const_spec((C, C), 3), _const_spec((1, C), 3),
            ],
            out_specs=pl.BlockSpec((1, TT, C), lambda b, qi, ki: (b, qi, 0)),
            scratch_shapes=[
                pltpu.VMEM((H, TT, 1), jnp.float32),      # running max
                pltpu.VMEM((H, TT, 1), jnp.float32),      # running denominator
                pltpu.VMEM((H, TT, hd), jnp.float32),     # output accumulator
            ]),
        compiler_params=pltpu.CompilerParams(
            dimension_semantics=("parallel", "parallel", "arbitrary"),
            vmem_limit_bytes=vmem_limit),
    )(x, q, k, v, wp["w_proj"], wp["b_proj"])

    # --------------- kernel C: ln_2 + MLP + residual ---------------------------
    out = pl.pallas_call(
        _mlp_kernel,
        out_shape=jax.ShapeDtypeStruct((B, T, C), jnp.float32),
        grid_spec=pltpu.PrefetchScalarGridSpec(
            num_scalar_prefetch=0,
            grid=(B, NT, NH),                         # (batch, row tiles, hidden tiles)
            in_specs=[
                pl.BlockSpec((1, TT, C), lambda b, t, n: (b, t, 0)),
                _const_spec((1, C), 3), _const_spec((1, C), 3),
                pl.BlockSpec((C, TH), lambda b, t, n: (0, n)),
                pl.BlockSpec((1, TH), lambda b, t, n: (0, n)),
                pl.BlockSpec((TH, C), lambda b, t, n: (n, 0)),
                _const_spec((1, C), 3),
            ],
            out_specs=pl.BlockSpec((1, TT, C), lambda b, t, n: (b, t, 0)),
            scratch_shapes=[
                pltpu.VMEM((TT, C), cdt),                 # ln_2(x1) stash
                pltpu.VMEM((TT, C), jnp.float32),         # MLP accumulator
            ]),
        compiler_params=pltpu.CompilerParams(
            dimension_semantics=("parallel", "parallel", "arbitrary"),
            vmem_limit_bytes=vmem_limit),
    )(x1, wp["ln2_w"], wp["ln2_b"], wp["w_fc"], wp["b_fc"], wp["w_mp"], wp["b_mp"])

    return out


# ------------------------------ plain-JAX reference ---------------------------

def ref_block(x, p, n_head):
    def ln(t, w, b):
        mu = t.mean(-1, keepdims=True)
        var = ((t - mu) ** 2).mean(-1, keepdims=True)
        return (t - mu) / jnp.sqrt(var + 1e-5) * w + b

    B, T, C = x.shape
    hd = C // n_head

    h = ln(x, p["ln1_w"], p["ln1_b"])
    qkv = h @ p["w_attn"] + p["b_attn"] + (h @ p["a_attn"]) @ p["blo_attn"]
    q, k, v = jnp.split(qkv, 3, axis=-1)
    q = q.reshape(B, T, n_head, hd).transpose(0, 2, 1, 3)
    k = k.reshape(B, T, n_head, hd).transpose(0, 2, 1, 3)
    v = v.reshape(B, T, n_head, hd).transpose(0, 2, 1, 3)
    att = (q @ k.transpose(0, 1, 3, 2)) / math.sqrt(hd)
    mask = jnp.tril(jnp.ones((T, T), dtype=bool))
    att = jnp.where(mask, att, -jnp.inf)
    att = jax.nn.softmax(att, axis=-1)
    y = (att @ v).transpose(0, 2, 1, 3).reshape(B, T, C)
    y = y @ p["w_proj"] + p["b_proj"] + (y @ p["a_proj"]) @ p["blo_proj"]
    x1 = x + y

    h2 = ln(x1, p["ln2_w"], p["ln2_b"])
    fc = h2 @ p["w_fc"] + p["b_fc"] + (h2 @ p["a_fc"]) @ p["blo_fc"]
    g = jax.nn.gelu(fc, approximate=False)
    mp = g @ p["w_mp"] + p["b_mp"] + (g @ p["a_mp"]) @ p["blo_mp"]
    return x1 + mp


# ----------------------------------- main --------------------------------------

if __name__ == "__main__":
    # Small but lane-aligned shapes (review item): C, hd, 4C multiples of 128,
    # T a multiple of the 128 tile so the flash (2x2 q/kv tiles) and hidden
    # (2 tiles) accumulation paths are actually exercised.
    B, T, C = 2, 256, 256
    N_HEAD, RANK = 2, 4

    key = jax.random.PRNGKey(0)
    ks = jax.random.split(key, 20)

    def rn(k, shape, scale=0.02):
        return (scale * jax.random.normal(k, shape)).astype(jnp.float32)

    # Deterministic synthetic init (shapes match the module __init__).  LoRA B
    # matrices get small nonzero values so the LoRA path is exercised.
    params = {
        "ln1_w": jnp.ones((1, C), jnp.float32),
        "ln1_b": jnp.zeros((1, C), jnp.float32),
        "w_attn": rn(ks[0], (C, 3 * C)),
        "b_attn": rn(ks[1], (1, 3 * C)),
        "a_attn": (jax.random.normal(ks[2], (C, RANK)) / math.sqrt(RANK)).astype(jnp.float32),
        "blo_attn": rn(ks[3], (RANK, 3 * C), 0.01),
        "w_proj": rn(ks[4], (C, C)),
        "b_proj": rn(ks[5], (1, C)),
        "a_proj": (jax.random.normal(ks[6], (C, RANK)) / math.sqrt(RANK)).astype(jnp.float32),
        "blo_proj": rn(ks[7], (RANK, C), 0.01),
        "ln2_w": jnp.ones((1, C), jnp.float32),
        "ln2_b": jnp.zeros((1, C), jnp.float32),
        "w_fc": rn(ks[8], (C, 4 * C)),
        "b_fc": rn(ks[9], (1, 4 * C)),
        "a_fc": (jax.random.normal(ks[10], (C, RANK)) / math.sqrt(RANK)).astype(jnp.float32),
        "blo_fc": rn(ks[11], (RANK, 4 * C), 0.01),
        "w_mp": rn(ks[12], (4 * C, C)),
        "b_mp": rn(ks[13], (1, C)),
        "a_mp": (jax.random.normal(ks[14], (4 * C, RANK)) / math.sqrt(RANK)).astype(jnp.float32),
        "blo_mp": rn(ks[15], (RANK, C), 0.01),
    }

    x = jax.random.normal(ks[16], (B, T, C), dtype=jnp.float32)

    wp = prepare_block_params(params, N_HEAD)       # one-time LoRA / scale fold
    out = jax.block_until_ready(block_forward(x, wp, N_HEAD))

    ref = ref_block(x, params, N_HEAD)
    assert out.shape == (B, T, C)
    err = jnp.max(jnp.abs(out - ref))
    # bf16 MXU operands / bf16 Q,K,V storage (f32 accumulation) -> slightly
    # looser tolerance than the pure-f32 reference.
    assert jnp.allclose(out, ref, atol=1e-2, rtol=1e-2), f"max abs err {err}"

    print("KERNEL_OK")
</pallas_src>

<mosaic_0001>
module attributes {stable_mosaic.version = 11 : i64} {
  func.func @_qkv_kernel(%arg0: i32, %arg1: i32, %arg2: memref<1x128x256xf32, #tpu.memory_space<vmem>>, %arg3: memref<1x256xf32, #tpu.memory_space<vmem>>, %arg4: memref<1x256xf32, #tpu.memory_space<vmem>>, %arg5: memref<256x768xbf16, #tpu.memory_space<vmem>>, %arg6: memref<1x768xf32, #tpu.memory_space<vmem>>, %arg7: memref<1x2x128x128xbf16, #tpu.memory_space<vmem>>, %arg8: memref<1x2x128x128xbf16, #tpu.memory_space<vmem>>, %arg9: memref<1x2x128x128xbf16, #tpu.memory_space<vmem>>) attributes {dimension_semantics = [#tpu.dimension_semantics<parallel>, #tpu.dimension_semantics<parallel>], iteration_bounds = array<i64: 2, 2>, scalar_prefetch = 0 : i64, scratch_operands = 0 : i64, tpu.core_type = #tpu.core_type<tc>, window_params = [{transform_indices = @transform_0, window_bounds = array<i64: 1, 128, 256>}, {pipeline_mode = #tpu.pipeline_mode<synchronous>, transform_indices = @transform_1, window_bounds = array<i64: 1, 256>}, {pipeline_mode = #tpu.pipeline_mode<synchronous>, transform_indices = @transform_2, window_bounds = array<i64: 1, 256>}, {pipeline_mode = #tpu.pipeline_mode<synchronous>, transform_indices = @transform_3, window_bounds = array<i64: 256, 768>}, {pipeline_mode = #tpu.pipeline_mode<synchronous>, transform_indices = @transform_4, window_bounds = array<i64: 1, 768>}, {transform_indices = @transform_5, window_bounds = array<i64: 1, 2, 128, 128>}, {transform_indices = @transform_6, window_bounds = array<i64: 1, 2, 128, 128>}, {transform_indices = @transform_7, window_bounds = array<i64: 1, 2, 128, 128>}]} {
    %c0 = arith.constant 0 : index
    %c0_0 = arith.constant 0 : index
    %c0_1 = arith.constant 0 : index
    %0 = vector.load %arg2[%c0, %c0_0, %c0_1] : memref<1x128x256xf32, #tpu.memory_space<vmem>>, vector<1x128x256xf32>
    %1 = vector.shape_cast %0 : vector<1x128x256xf32> to vector<128x256xf32>
    %c0_2 = arith.constant 0 : index
    %c0_3 = arith.constant 0 : index
    %2 = vector.load %arg3[%c0_2, %c0_3] : memref<1x256xf32, #tpu.memory_space<vmem>>, vector<1x256xf32>
    %c0_4 = arith.constant 0 : index
    %c0_5 = arith.constant 0 : index
    %3 = vector.load %arg4[%c0_4, %c0_5] : memref<1x256xf32, #tpu.memory_space<vmem>>, vector<1x256xf32>
    %cst = arith.constant dense<0.000000e+00> : vector<128xf32>
    %4 = vector.multi_reduction <add>, %1, %cst [1] : vector<128x256xf32> to vector<128xf32>
    %5 = vector.shape_cast %4 : vector<128xf32> to vector<128x1xf32>
    %cst_6 = arith.constant 2.560000e+02 : f32
    %6 = vector.broadcast %cst_6 : f32 to vector<128x1xf32>
    %7 = arith.divf %5, %6 : vector<128x1xf32>
    %8 = vector.broadcast %7 : vector<128x1xf32> to vector<128x256xf32>
    %9 = arith.subf %1, %8 : vector<128x256xf32>
    %10 = arith.mulf %9, %9 : vector<128x256xf32>
    %cst_7 = arith.constant dense<0.000000e+00> : vector<128xf32>
    %11 = vector.multi_reduction <add>, %10, %cst_7 [1] : vector<128x256xf32> to vector<128xf32>
    %12 = vector.shape_cast %11 : vector<128xf32> to vector<128x1xf32>
    %cst_8 = arith.constant 2.560000e+02 : f32
    %13 = vector.broadcast %cst_8 : f32 to vector<128x1xf32>
    %14 = arith.divf %12, %13 : vector<128x1xf32>
    %15 = vector.broadcast %7 : vector<128x1xf32> to vector<128x256xf32>
    %16 = arith.subf %1, %15 : vector<128x256xf32>
    %cst_9 = arith.constant 9.99999974E-6 : f32
    %17 = vector.broadcast %cst_9 : f32 to vector<128x1xf32>
    %18 = arith.addf %14, %17 : vector<128x1xf32>
    %19 = math.rsqrt %18 : vector<128x1xf32>
    %20 = vector.broadcast %19 : vector<128x1xf32> to vector<128x256xf32>
    %21 = arith.mulf %16, %20 : vector<128x256xf32>
    %22 = vector.broadcast %2 : vector<1x256xf32> to vector<128x256xf32>
    %23 = arith.mulf %21, %22 : vector<128x256xf32>
    %24 = vector.broadcast %3 : vector<1x256xf32> to vector<128x256xf32>
    %25 = arith.addf %23, %24 : vector<128x256xf32>
    %26 = arith.truncf %25 : vector<128x256xf32> to vector<128x256xbf16>
    %c0_10 = arith.constant 0 : index
    %c0_11 = arith.constant 0 : index
    %27 = vector.load %arg5[%c0_10, %c0_11] : memref<256x768xbf16, #tpu.memory_space<vmem>>, vector<256x768xbf16>
    %cst_12 = arith.constant dense<0.000000e+00> : vector<128x768xf32>
    %28 = tpu.matmul %26, %27, %cst_12 {dimension_numbers = #tpu.dot_dimension_numbers<[1], [0], [0], [1], [0, 0, 1, 1], [], []>} : vector<128x256xbf16>, vector<256x768xbf16>, vector<128x768xf32> -> vector<128x768xf32>
    %c0_13 = arith.constant 0 : index
    %c0_14 = arith.constant 0 : index
    %29 = vector.load %arg6[%c0_13, %c0_14] : memref<1x768xf32, #tpu.memory_space<vmem>>, vector<1x768xf32>
    %30 = vector.broadcast %29 : vector<1x768xf32> to vector<128x768xf32>
    %31 = arith.addf %28, %30 : vector<128x768xf32>
    %32 = vector.extract_strided_slice %31 {offsets = [0, 0], sizes = [128, 256], strides = [1, 1]} : vector<128x768xf32> to vector<128x256xf32>
    %33 = vector.shape_cast %32 : vector<128x256xf32> to vector<128x2x128xf32>
    %34 = tpu.transpose %33, [1, 0, 2] : vector<128x2x128xf32> -> vector<2x128x128xf32>
    %35 = arith.truncf %34 : vector<2x128x128xf32> to vector<2x128x128xbf16>
    %c0_15 = arith.constant 0 : index
    %c0_16 = arith.constant 0 : index
    %c0_17 = arith.constant 0 : index
    %c0_18 = arith.constant 0 : index
    %36 = vector.load %arg7[%c0_15, %c0_16, %c0_17, %c0_18] : memref<1x2x128x128xbf16, #tpu.memory_space<vmem>>, vector<1x2x128x128xbf16>
    %37 = vector.shape_cast %36 : vector<1x2x128x128xbf16> to vector<2x128x128xbf16>
    %38 = vector.shape_cast %35 : vector<2x128x128xbf16> to vector<1x2x128x128xbf16>
    tpu.vector_store %arg7[%c0_15, %c0_16, %c0_17, %c0_18], %38 {strides = array<i32>} : memref<1x2x128x128xbf16, #tpu.memory_space<vmem>>, vector<1x2x128x128xbf16>,
    %39 = vector.extract_strided_slice %31 {offsets = [0, 256], sizes = [128, 256], strides = [1, 1]} : vector<128x768xf32> to vector<128x256xf32>
    %40 = vector.shape_cast %39 : vector<128x256xf32> to vector<128x2x128xf32>
    %41 = tpu.transpose %40, [1, 0, 2] : vector<128x2x128xf32> -> vector<2x128x128xf32>
    %42 = arith.truncf %41 : vector<2x128x128xf32> to vector<2x128x128xbf16>
    %c0_19 = arith.constant 0 : index
    %c0_20 = arith.constant 0 : index
    %c0_21 = arith.constant 0 : index
    %c0_22 = arith.constant 0 : index
    %43 = vector.load %arg8[%c0_19, %c0_20, %c0_21, %c0_22] : memref<1x2x128x128xbf16, #tpu.memory_space<vmem>>, vector<1x2x128x128xbf16>
    %44 = vector.shape_cast %43 : vector<1x2x128x128xbf16> to vector<2x128x128xbf16>
    %45 = vector.shape_cast %42 : vector<2x128x128xbf16> to vector<1x2x128x128xbf16>
    tpu.vector_store %arg8[%c0_19, %c0_20, %c0_21, %c0_22], %45 {strides = array<i32>} : memref<1x2x128x128xbf16, #tpu.memory_space<vmem>>, vector<1x2x128x128xbf16>,
    %46 = vector.extract_strided_slice %31 {offsets = [0, 512], sizes = [128, 256], strides = [1, 1]} : vector<128x768xf32> to vector<128x256xf32>
    %47 = vector.shape_cast %46 : vector<128x256xf32> to vector<128x2x128xf32>
    %48 = tpu.transpose %47, [1, 0, 2] : vector<128x2x128xf32> -> vector<2x128x128xf32>
    %49 = arith.truncf %48 : vector<2x128x128xf32> to vector<2x128x128xbf16>
    %c0_23 = arith.constant 0 : index
    %c0_24 = arith.constant 0 : index
    %c0_25 = arith.constant 0 : index
    %c0_26 = arith.constant 0 : index
    %50 = vector.load %arg9[%c0_23, %c0_24, %c0_25, %c0_26] : memref<1x2x128x128xbf16, #tpu.memory_space<vmem>>, vector<1x2x128x128xbf16>
    %51 = vector.shape_cast %50 : vector<1x2x128x128xbf16> to vector<2x128x128xbf16>
    %52 = vector.shape_cast %49 : vector<2x128x128xbf16> to vector<1x2x128x128xbf16>
    tpu.vector_store %arg9[%c0_23, %c0_24, %c0_25, %c0_26], %52 {strides = array<i32>} : memref<1x2x128x128xbf16, #tpu.memory_space<vmem>>, vector<1x2x128x128xbf16>,
    return
  }
  func.func @transform_0(%arg0: i32, %arg1: i32) -> (i32, i32, i32) {
    %c0_i32 = arith.constant 0 : i32
    %c0_i32_0 = arith.constant 0 : i32
    return %arg0, %arg1, %c0_i32 : i32, i32, i32
  }
  func.func @transform_1(%arg0: i32, %arg1: i32) -> (i32, i32) {
    %c0_i32 = arith.constant 0 : i32
    %c0_i32_0 = arith.constant 0 : i32
    %c0_i32_1 = arith.constant 0 : i32
    return %c0_i32, %c0_i32_0 : i32, i32
  }
  func.func @transform_2(%arg0: i32, %arg1: i32) -> (i32, i32) {
    %c0_i32 = arith.constant 0 : i32
    %c0_i32_0 = arith.constant 0 : i32
    %c0_i32_1 = arith.constant 0 : i32
    return %c0_i32, %c0_i32_0 : i32, i32
  }
  func.func @transform_3(%arg0: i32, %arg1: i32) -> (i32, i32) {
    %c0_i32 = arith.constant 0 : i32
    %c0_i32_0 = arith.constant 0 : i32
    %c0_i32_1 = arith.constant 0 : i32
    return %c0_i32, %c0_i32_0 : i32, i32
  }
  func.func @transform_4(%arg0: i32, %arg1: i32) -> (i32, i32) {
    %c0_i32 = arith.constant 0 : i32
    %c0_i32_0 = arith.constant 0 : i32
    %c0_i32_1 = arith.constant 0 : i32
    return %c0_i32, %c0_i32_0 : i32, i32
  }
  func.func @transform_5(%arg0: i32, %arg1: i32) -> (i32, i32, i32, i32) {
    %c0_i32 = arith.constant 0 : i32
    %c0_i32_0 = arith.constant 0 : i32
    %c0_i32_1 = arith.constant 0 : i32
    return %arg0, %c0_i32, %arg1, %c0_i32_0 : i32, i32, i32, i32
  }
  func.func @transform_6(%arg0: i32, %arg1: i32) -> (i32, i32, i32, i32) {
    %c0_i32 = arith.constant 0 : i32
    %c0_i32_0 = arith.constant 0 : i32
    %c0_i32_1 = arith.constant 0 : i32
    return %arg0, %c0_i32, %arg1, %c0_i32_0 : i32, i32, i32, i32
  }
  func.func @transform_7(%arg0: i32, %arg1: i32) -> (i32, i32, i32, i32) {
    %c0_i32 = arith.constant 0 : i32
    %c0_i32_0 = arith.constant 0 : i32
    %c0_i32_1 = arith.constant 0 : i32
    return %arg0, %c0_i32, %arg1, %c0_i32_0 : i32, i32, i32, i32
  }
}

</mosaic_0001>

<llo_original>
// kernel: tpu_custom_call.1
$region0: #{tpu_custom_call.1}
  #allocation0 [shape = 'u32[]', space=smem, size = 0x4, offset = 0x4, fixed_abs, tag = 'smem constant byte address 0x4 - core index']
  #allocation1 [shape = 'u32[144,128]{1,0:T(1,128)}', space=vmem, size = 0x12000, scoped, tag = 'internal scratch']
  #allocation11 [shape = 's32[]', space=sflag, size = 0x4, offset = 0, fixed_abs, tag = 'sflag constant byte address 0x0 - dummy sync flag']
  #allocation13 [shape = 's32[]', space=sflag, size = 0x4, offset = 0, fixed_abs, tag = 'sflag constant byte address 0x0 - dummy sync flag']
  #allocation15 [shape = 's32[]', space=sflag, size = 0x4, offset = 0, fixed_abs, tag = 'sflag constant byte address 0x0 - dummy sync flag']
  %s0 = inlined_call_operand.hbm [shape: f32[2,256,256], index: 0, kind: input, shape index: {}]
  %s1 = inlined_call_operand.vmem [shape: f32[1,256], index: 1, kind: input, shape index: {}]
  %s2 = inlined_call_operand.vmem [shape: f32[1,256], index: 2, kind: input, shape index: {}]
  %s3 = inlined_call_operand.hbm [shape: bf16[256,768], index: 3, kind: input, shape index: {}]
  %s4 = inlined_call_operand.vmem [shape: f32[1,768], index: 4, kind: input, shape index: {}]
  %s5 = inlined_call_operand.hbm [shape: bf16[2,2,256,128], index: 5, kind: output, shape index: {0}]
  %s6 = inlined_call_operand.hbm [shape: bf16[2,2,256,128], index: 6, kind: output, shape index: {1}]
  %s7 = inlined_call_operand.hbm [shape: bf16[2,2,256,128], index: 7, kind: output, shape index: {2}]
  %8 = xla_tuple %s5, %s6, %s7
  %s9 = sld [smem:[#allocation0]]
  $region77: #{tpu_custom_call.1} parent=0
    _
  %s11 = ssub.s32 1, %s9
  %s12 = scalar_select 0, %s11, %s9
  $region1: #{tpu_custom_call.1} parent=0
    #allocation2 [shape = 'u8[262144]{0}', space=vmem, size = 0x40000, scoped, tag = 'input window, operand 0']
    #allocation3 [shape = 's32[2]{0}', space=sflag, size = 0x8, scoped, tag = 'scoped memory for tpu_custom_call.1']
    #allocation4 [shape = 's32[2]{0}', space=sflag, size = 0x8, scoped, tag = 'scoped memory for tpu_custom_call.1']
    #allocation5 [shape = 'u8[393216]{0}', space=vmem, size = 0x60000, scoped, tag = 'input window, operand 3, single buffered']
    #allocation6 [shape = 's32[1]{0}', space=sflag, size = 0x4, scoped, tag = 'scoped memory for tpu_custom_call.1']
    #allocation7 [shape = 'u8[131072]{0}', space=vmem, size = 0x20000, scoped, tag = 'output window, operand 0']
    #allocation8 [shape = 'u8[131072]{0}', space=vmem, size = 0x20000, scoped, tag = 'output window, operand 1']
    #allocation9 [shape = 's32[2]{0}', space=sflag, size = 0x8, scoped, tag = 'scoped memory for tpu_custom_call.1']
    #allocation10 [shape = 'u8[131072]{0}', space=vmem, size = 0x20000, scoped, tag = 'output window, operand 2']
    %13 = vsyncpa [#allocation3], 0
    %s14 = scalar_lea.sflag [#allocation3], 1
    %15 = vsyncpa %s14, 0
    %16 = vsyncpa [#allocation6], 0
    %17 = vsyncpa [#allocation4], 0
    %s18 = scalar_lea.sflag [#allocation4], 1
    %19 = vsyncpa %s18, 0
    %20 = vsyncpa [#allocation9], 0
    %s21 = scalar_lea.sflag [#allocation9], 1
    %22 = vsyncpa %s21, 0
    loop: start=0, step=1, limit=6
    $region2: #{tpu_custom_call.1} parent=1 // loop_pre_header
      _
    $region3: #{tpu_custom_call.1} parent=1 // loop_header
      %s24 = sphi 0, %s28
      %p25 = scmp.ge.s32.totalorder %s24, 6
      %s31 = sphi 0, %s43
      %s32 = sphi 0, %s39
      %s33 = sphi 0, %s31
      %s34 = sphi 0, %s32
      %s35 = sphi 0, %s33
      %s36 = sphi 0, %s34
      %s48 = sphi 0, %s50
      %s51 = sphi 0, %s48
      %s52 = sphi 0, %s51
      %s68 = sphi 0, %s52
      %s72 = sphi 0, %s72
      %s74 = sphi 0, %s72
      %s75 = sphi 0, %s74
      %s89 = sphi 0, %s75
      %s93 = sphi 0, %s93
      %s95 = sphi 0, %s93
      %s96 = sphi 0, %s95
      %s110 = sphi 0, %s96
      %s114 = sphi 0, %s114
      %s116 = sphi 0, %s114
      %s117 = sphi 0, %s116
      %s131 = sphi 0, %s117
      %s135 = sphi 0, %s135
      %s137 = sphi 0, %s135
      %s138 = sphi 0, %s137
      %s152 = sphi 0, %s138
      %s160 = sphi 0, %s162
      %s163 = sphi 0, %s160
      %s164 = sphi 0, %s163
      %s180 = sphi 0, %s164
      %s188 = sphi 0, %s190
      %s191 = sphi 0, %s188
      %s192 = sphi 0, %s191
      %s208 = sphi 0, %s192
      %s216 = sphi 0, %s218
      %s219 = sphi 0, %s216
      %s220 = sphi 0, %s219
      %s236 = sphi 0, %s220
    $region4: #{tpu_custom_call.1} parent=1 // loop_header_branch
      %27 = sbr.rel (%p25) target = $region8
    $region5: #{tpu_custom_call.1} parent=1 // loop_body
      %s29 = ssub.s32 %s24, 1
      %s30 = ssub.s32 %s24, 2
      %s37 = sadd.s32 1, %s32
      %p38 = scmp.ge.s32.totalorder %s37, 2
      %s39 = scalar_select %p38, 0, %s37
      %s40 = sadd.s32 1, %s31
      %s41 = scalar_select %p38, %s40, %s31
      %p42 = scmp.ge.s32.totalorder %s41, 2
      %s43 = scalar_select %p42, 0, %s41
      %s44 = ssub.s32 %s31, %s43
      %s45 = ssub.s32 %s32, %s39
      %s46 = sor.u32 %s44, %s45
      %p47 = scmp.eq.s32.totalorder %s46, 0
      %s49 = sadd.s32 %s48, 1
      %s50 = scalar_select %p47, %s48, %s49
      %p53 = pneg %p47
      %p54 = scmp.eq.s32.totalorder %s24, 3
      %p55 = por %p53, %p54
      %p56 = scmp.ne.s32.totalorder %s48, %s51
      %p57 = scmp.eq.s32.totalorder %s24, 0
      %p58 = por %p56, %p57
      %p59 = scmp.ne.s32.totalorder %s48, %s51
      %p60 = scmp.eq.s32.totalorder %s29, 3
      %p61 = por %p59, %p60
      %p62 = scmp.ne.s32.totalorder %s51, %s52
      %p63 = scmp.eq.s32.totalorder %s29, 0
      %p64 = por %p62, %p63
      %p65 = scmp.ne.s32.totalorder %s51, %s52
      %p66 = scmp.eq.s32.totalorder %s30, 3
      %p67 = por %p65, %p66
      %p69 = scmp.ne.s32.totalorder %s52, %s68
      %p70 = scmp.eq.s32.totalorder %s30, 0
      %p71 = por %p69, %p70
      %s73 = sadd.s32 %s72, 1
      %p76 = scmp.eq.s32.totalorder %s24, 3
      %p77 = scmp.ne.s32.totalorder %s72, %s74
      %p78 = scmp.eq.s32.totalorder %s24, 0
      %p79 = por %p77, %p78
      %p80 = scmp.ne.s32.totalorder %s72, %s74
      %p81 = scmp.eq.s32.totalorder %s29, 3
      %p82 = por %p80, %p81
      %p83 = scmp.ne.s32.totalorder %s74, %s75
      %p84 = scmp.eq.s32.totalorder %s29, 0
      %p85 = por %p83, %p84
      %p86 = scmp.ne.s32.totalorder %s74, %s75
      %p87 = scmp.eq.s32.totalorder %s30, 3
      %p88 = por %p86, %p87
      %p90 = scmp.ne.s32.totalorder %s75, %s89
      %p91 = scmp.eq.s32.totalorder %s30, 0
      %p92 = por %p90, %p91
      %s94 = sadd.s32 %s93, 1
      %p97 = scmp.eq.s32.totalorder %s24, 3
      %p98 = scmp.ne.s32.totalorder %s93, %s95
      %p99 = scmp.eq.s32.totalorder %s24, 0
      %p100 = por %p98, %p99
      %p101 = scmp.ne.s32.totalorder %s93, %s95
      %p102 = scmp.eq.s32.totalorder %s29, 3
      %p103 = por %p101, %p102
      %p104 = scmp.ne.s32.totalorder %s95, %s96
      %p105 = scmp.eq.s32.totalorder %s29, 0
      %p106 = por %p104, %p105
      %p107 = scmp.ne.s32.totalorder %s95, %s96
      %p108 = scmp.eq.s32.totalorder %s30, 3
      %p109 = por %p107, %p108
      %p111 = scmp.ne.s32.totalorder %s96, %s110
      %p112 = scmp.eq.s32.totalorder %s30, 0
      %p113 = por %p111, %p112
      %s115 = sadd.s32 %s114, 1
      %p118 = scmp.eq.s32.totalorder %s24, 3
      %p119 = scmp.ne.s32.totalorder %s114, %s116
      %p120 = scmp.eq.s32.totalorder %s24, 0
      %p121 = por %p119, %p120
      %p122 = scmp.ne.s32.totalorder %s114, %s116
      %p123 = scmp.eq.s32.totalorder %s29, 3
      %p124 = por %p122, %p123
      %p125 = scmp.ne.s32.totalorder %s116, %s117
      %p126 = scmp.eq.s32.totalorder %s29, 0
      %p127 = por %p125, %p126
      %p128 = scmp.ne.s32.totalorder %s116, %s117
      %p129 = scmp.eq.s32.totalorder %s30, 3
      %p130 = por %p128, %p129
      %p132 = scmp.ne.s32.totalorder %s117, %s131
      %p133 = scmp.eq.s32.totalorder %s30, 0
      %p134 = por %p132, %p133
      %s136 = sadd.s32 %s135, 1
      %p139 = scmp.eq.s32.totalorder %s24, 3
      %p140 = scmp.ne.s32.totalorder %s135, %s137
      %p141 = scmp.eq.s32.totalorder %s24, 0
      %p142 = por %p140, %p141
      %p143 = scmp.ne.s32.totalorder %s135, %s137
      %p144 = scmp.eq.s32.totalorder %s29, 3
      %p145 = por %p143, %p144
      %p146 = scmp.ne.s32.totalorder %s137, %s138
      %p147 = scmp.eq.s32.totalorder %s29, 0
      %p148 = por %p146, %p147
      %p149 = scmp.ne.s32.totalorder %s137, %s138
      %p150 = scmp.eq.s32.totalorder %s30, 3
      %p151 = por %p149, %p150
      %p153 = scmp.ne.s32.totalorder %s138, %s152
      %p154 = scmp.eq.s32.totalorder %s30, 0
      %p155 = por %p153, %p154
      %s156 = ssub.s32 %s31, %s43
      %s157 = ssub.s32 %s32, %s39
      %s158 = sor.u32 %s156, %s157
      %p159 = scmp.eq.s32.totalorder %s158, 0
      %s161 = sadd.s32 %s160, 1
      %s162 = scalar_select %p159, %s160, %s161
      %p165 = pneg %p159
      %p166 = scmp.eq.s32.totalorder %s24, 3
      %p167 = por %p165, %p166
      %p168 = scmp.ne.s32.totalorder %s160, %s163
      %p169 = scmp.eq.s32.totalorder %s24, 0
      %p170 = por %p168, %p169
      %p171 = scmp.ne.s32.totalorder %s160, %s163
      %p172 = scmp.eq.s32.totalorder %s29, 3
      %p173 = por %p171, %p172
      %p174 = scmp.ne.s32.totalorder %s163, %s164
      %p175 = scmp.eq.s32.totalorder %s29, 0
      %p176 = por %p174, %p175
      %p177 = scmp.ne.s32.totalorder %s163, %s164
      %p178 = scmp.eq.s32.totalorder %s30, 3
      %p179 = por %p177, %p178
      %p181 = scmp.ne.s32.totalorder %s164, %s180
      %p182 = scmp.eq.s32.totalorder %s30, 0
      %p183 = por %p181, %p182
      %s184 = ssub.s32 %s31, %s43
      %s185 = ssub.s32 %s32, %s39
      %s186 = sor.u32 %s184, %s185
      %p187 = scmp.eq.s32.totalorder %s186, 0
      %s189 = sadd.s32 %s188, 1
      %s190 = scalar_select %p187, %s188, %s189
      %p193 = pneg %p187
      %p194 = scmp.eq.s32.totalorder %s24, 3
      %p195 = por %p193, %p194
      %p196 = scmp.ne.s32.totalorder %s188, %s191
      %p197 = scmp.eq.s32.totalorder %s24, 0
      %p198 = por %p196, %p197
      %p199 = scmp.ne.s32.totalorder %s188, %s191
      %p200 = scmp.eq.s32.totalorder %s29, 3
      %p201 = por %p199, %p200
      %p202 = scmp.ne.s32.totalorder %s191, %s192
      %p203 = scmp.eq.s32.totalorder %s29, 0
      %p204 = por %p202, %p203
      %p205 = scmp.ne.s32.totalorder %s191, %s192
      %p206 = scmp.eq.s32.totalorder %s30, 3
      %p207 = por %p205, %p206
      %p209 = scmp.ne.s32.totalorder %s192, %s208
      %p210 = scmp.eq.s32.totalorder %s30, 0
      %p211 = por %p209, %p210
      %s212 = ssub.s32 %s31, %s43
      %s213 = ssub.s32 %s32, %s39
      %s214 = sor.u32 %s212, %s213
      %p215 = scmp.eq.s32.totalorder %s214, 0
      %s217 = sadd.s32 %s216, 1
      %s218 = scalar_select %p215, %s216, %s217
      %p221 = pneg %p215
      %p222 = scmp.eq.s32.totalorder %s24, 3
      %p223 = por %p221, %p222
      %p224 = scmp.ne.s32.totalorder %s216, %s219
      %p225 = scmp.eq.s32.totalorder %s24, 0
      %p226 = por %p224, %p225
      %p227 = scmp.ne.s32.totalorder %s216, %s219
      %p228 = scmp.eq.s32.totalorder %s29, 3
      %p229 = por %p227, %p228
      %p230 = scmp.ne.s32.totalorder %s219, %s220
      %p231 = scmp.eq.s32.totalorder %s29, 0
      %p232 = por %p230, %p231
      %p233 = scmp.ne.s32.totalorder %s219, %s220
      %p234 = scmp.eq.s32.totalorder %s30, 3
      %p235 = por %p233, %p234
      %p237 = scmp.ne.s32.totalorder %s220, %s236
      %p238 = scmp.eq.s32.totalorder %s30, 0
      %p239 = por %p237, %p238
      %p240 = scmp.le.s32.totalorder 1, %s24
      %p241 = scmp.lt.s32.totalorder %s24, 5
      %p242 = pnand %p240, %p241
      %p243 = pneg %p242
      // Predicated region
      $region9: #{tpu_custom_call.1} parent=5 // pred_check
        _
      $region10: #{tpu_custom_call.1} parent=5 // pred_check_branch
        %245 = sbr.rel (%p242) target = $region12
      $region11: #{tpu_custom_call.1} parent=5 // pred_region
        %s246 = ssub.s32 %s24, 1
        // Predicated region
        $region13: #{tpu_custom_call.1} parent=11 // pred_check
          %p247 = pneg %p85
        $region14: #{tpu_custom_call.1} parent=11 // pred_check_branch
          %249 = sbr.rel (%p247) target = $region16
        $region15: #{tpu_custom_call.1} parent=11 // pred_region
          _
        $region16: #{tpu_custom_call.1} parent=11 // pred_fallthru
          _
        // Predicated region
        $region17: #{tpu_custom_call.1} parent=11 // pred_check
          %p250 = pneg %p106
        $region18: #{tpu_custom_call.1} parent=11 // pred_check_branch
          %252 = sbr.rel (%p250) target = $region20
        $region19: #{tpu_custom_call.1} parent=11 // pred_region
          _
        $region20: #{tpu_custom_call.1} parent=11 // pred_fallthru
          _
        // Predicated region
        $region21: #{tpu_custom_call.1} parent=11 // pred_check
          %p253 = pneg %p127
        $region22: #{tpu_custom_call.1} parent=11 // pred_check_branch
          %255 = sbr.rel (%p253) target = $region24
        $region23: #{tpu_custom_call.1} parent=11 // pred_region
          %s257 = ssub.s32 12288, 12288
          %258 = vsyncadd [#allocation6], %s257
          %s259 = sshll.u32 [#allocation5], 4
          %s260 = int_to_ptr.vmem [resolvable:$true] %s259
          %265 = dma.hbm_to_vmem [thread:$0]  %s3, 12288, %s260, [#allocation6], 384, 384, 24
        $region24: #{tpu_custom_call.1} parent=11 // pred_fallthru
          _
        // Predicated region
        $region25: #{tpu_custom_call.1} parent=11 // pred_check
          %p266 = pneg %p148
        $region26: #{tpu_custom_call.1} parent=11 // pred_check_branch
          %268 = sbr.rel (%p266) target = $region28
        $region27: #{tpu_custom_call.1} parent=11 // pred_region
          _
        $region28: #{tpu_custom_call.1} parent=11 // pred_fallthru
          _
      $region12: #{tpu_custom_call.1} parent=5 // pred_fallthru
        _
      %p269 = scmp.lt.s32.totalorder %s24, 4
      // Predicated region
      $region29: #{tpu_custom_call.1} parent=5 // pred_check
        %p270 = pneg %p269
      $region30: #{tpu_custom_call.1} parent=5 // pred_check_branch
        %272 = sbr.rel (%p270) target = $region32
      $region31: #{tpu_custom_call.1} parent=5 // pred_region
        // Predicated region
        $region33: #{tpu_custom_call.1} parent=31 // pred_check
          %p273 = pneg %p58
        $region34: #{tpu_custom_call.1} parent=31 // pred_check_branch
          %275 = sbr.rel (%p273) target = $region36
        $region35: #{tpu_custom_call.1} parent=31 // pred_region
          %s276 = sand.u32 %s48, 1
          %s277 = scalar_lea.sflag [#allocation3], %s276
          %s278 = sand.u32 %s48, 1
          %s279 = smul.addr %s278, 256
          %s280 = scalar_lea.vmem [#allocation2], %s279
          %s281 = smul.u32 16, %s32
          %s283 = ssub.s32 4096, 4096
          %284 = vsyncadd %s277, %s283
          %s285 = smul.addr %s281, 2
          %s286 = smul.addr %s31, 64
          %s287 = sadd.s32 %s285, %s286
          %s288 = smul.addr %s287, 128
          %s289 = scalar_lea.hbm %s0, %s288
          %s290 = sshll.u32 %s280, 4
          %s291 = int_to_ptr.vmem [resolvable:$true] %s290
          %296 = dma.hbm_to_vmem [thread:$0]  %s289, 4096, %s291, %s277, 256, 256, 16
        $region36: #{tpu_custom_call.1} parent=31 // pred_fallthru
          _
      $region32: #{tpu_custom_call.1} parent=5 // pred_fallthru
        _
      %p297 = scmp.le.s32.totalorder 1, %s24
      %p298 = scmp.lt.s32.totalorder %s24, 5
      %p299 = pnand %p297, %p298
      %p300 = pneg %p299
      // Predicated region
      $region37: #{tpu_custom_call.1} parent=5 // pred_check
        _
      $region38: #{tpu_custom_call.1} parent=5 // pred_check_branch
        %302 = sbr.rel (%p299) target = $region40
      $region39: #{tpu_custom_call.1} parent=5 // pred_region
        %s303 = ssub.s32 %s24, 1
        %s304 = sand.u32 %s51, 1
        %s305 = scalar_lea.sflag [#allocation3], %s304
        %s306 = sand.u32 %s51, 1
        %s307 = smul.addr %s306, 256
        %s308 = scalar_lea.vmem [#allocation2], %s307
        // Predicated region
        $region41: #{tpu_custom_call.1} parent=39 // pred_check
          %p309 = pneg %p64
        $region42: #{tpu_custom_call.1} parent=39 // pred_check_branch
          %311 = sbr.rel (%p309) target = $region44
        $region43: #{tpu_custom_call.1} parent=39 // pred_region
          %312 = dma.done %s305, 4096
        $region44: #{tpu_custom_call.1} parent=39 // pred_fallthru
          _
        // Predicated region
        $region45: #{tpu_custom_call.1} parent=39 // pred_check
          %p313 = pneg %p127
        $region46: #{tpu_custom_call.1} parent=39 // pred_check_branch
          %315 = sbr.rel (%p313) target = $region48
        $region47: #{tpu_custom_call.1} parent=39 // pred_region
          %316 = dma.done [#allocation6], 12288
        $region48: #{tpu_custom_call.1} parent=39 // pred_fallthru
          _
        %s317 = sand.u32 %s51, 1
        %s318 = scalar_lea.sflag [#allocation3], %s317
        %s319 = sand.u32 %s51, 1
        %s320 = smul.addr %s319, 256
        %s321 = scalar_lea.vmem [#allocation2], %s320
        %p322 = pneg %p64
        %p323 = pneg %p61
        %p324 = pneg %p85
        %p325 = pneg %p82
        %p326 = pneg %p106
        %p327 = pneg %p103
        %p328 = pneg %p127
        %p329 = pneg %p124
        %p330 = pneg %p148
        %p331 = pneg %p145
        %p332 = pneg %p176
        %p333 = pneg %p173
        %s334 = sand.u32 %s163, 1
        %s335 = scalar_lea.sflag [#allocation4], %s334
        %s336 = sand.u32 %s163, 1
        %s337 = smul.addr %s336, 128
        %s338 = scalar_lea.vmem [#allocation7], %s337
        %p339 = pneg %p204
        %p340 = pneg %p201
        %s341 = sand.u32 %s29, 1
        %s342 = scalar_lea.sflag [#allocation9], %s341
        %s343 = sand.u32 %s191, 1
        %s344 = smul.addr %s343, 128
        %s345 = scalar_lea.vmem [#allocation8], %s344
        %p346 = pneg %p232
        %p347 = pneg %p229
        %s348 = sand.u32 %s29, 1
        %s349 = scalar_lea.sflag [#allocation9], %s348
        %s350 = sand.u32 %s219, 1
        %s351 = smul.addr %s350, 128
        %s352 = scalar_lea.vmem [#allocation10], %s351
        %s353 = smul.u32 16, %s34
        %s354 = smul.u32 16, %s34
        %s355 = smul.u32 16, %s34
        %s356 = smul.u32 16, %s34
        %v357 = vld [vmem:[%s308] sm:$0xff]
        %v358 = vld [vmem:[%s308 + $0x8] sm:$0xff]
        %v359 = vld [vmem:[%s308 + $0x10] sm:$0xff]
        %v360 = vld [vmem:[%s308 + $0x18] sm:$0xff]
        %v361 = vld [vmem:[%s308 + $0x20] sm:$0xff]
        %v362 = vld [vmem:[%s308 + $0x28] sm:$0xff]
        %v363 = vld [vmem:[%s308 + $0x30] sm:$0xff]
        %v364 = vld [vmem:[%s308 + $0x38] sm:$0xff]
        %v365 = vld [vmem:[%s308 + $0x40] sm:$0xff]
        %v366 = vld [vmem:[%s308 + $0x48] sm:$0xff]
        %v367 = vld [vmem:[%s308 + $0x50] sm:$0xff]
        %v368 = vld [vmem:[%s308 + $0x58] sm:$0xff]
        %v369 = vld [vmem:[%s308 + $0x60] sm:$0xff]
        %v370 = vld [vmem:[%s308 + $0x68] sm:$0xff]
        %v371 = vld [vmem:[%s308 + $0x70] sm:$0xff]
        %v372 = vld [vmem:[%s308 + $0x78] sm:$0xff]
        %v373 = vld [vmem:[%s308 + $0x80] sm:$0xff]
        %v374 = vld [vmem:[%s308 + $0x88] sm:$0xff]
        %v375 = vld [vmem:[%s308 + $0x90] sm:$0xff]
        %v376 = vld [vmem:[%s308 + $0x98] sm:$0xff]
        %v377 = vld [vmem:[%s308 + $0xa0] sm:$0xff]
        %v378 = vld [vmem:[%s308 + $0xa8] sm:$0xff]
        %v379 = vld [vmem:[%s308 + $0xb0] sm:$0xff]
        %v380 = vld [vmem:[%s308 + $0xb8] sm:$0xff]
        %v381 = vld [vmem:[%s308 + $0xc0] sm:$0xff]
        %v382 = vld [vmem:[%s308 + $0xc8] sm:$0xff]
        %v383 = vld [vmem:[%s308 + $0xd0] sm:$0xff]
        %v384 = vld [vmem:[%s308 + $0xd8] sm:$0xff]
        %v385 = vld [vmem:[%s308 + $0xe0] sm:$0xff]
        %v386 = vld [vmem:[%s308 + $0xe8] sm:$0xff]
        %v387 = vld [vmem:[%s308 + $0xf0] sm:$0xff]
        %v388 = vld [vmem:[%s308 + $0xf8] sm:$0xff]
        %v389 = vld [vmem:[%s1] sm:$0x3]
        %v390 = vld [vmem:[%s2] sm:$0x3]
        %v391 = vadd.f32 %v357, %v358
        %392 = vadd.xlane.f32.xlu0 %v391
        %v393 = vpop.xlane.xlu0 %392
        %v394 = vadd.f32 %v359, %v360
        %395 = vadd.xlane.f32.xlu0 %v394
        %v396 = vpop.xlane.xlu0 %395
        %v397 = vadd.f32 %v361, %v362
        %398 = vadd.xlane.f32.xlu0 %v397
        %v399 = vpop.xlane.xlu0 %398
        %v400 = vadd.f32 %v363, %v364
        %401 = vadd.xlane.f32.xlu0 %v400
        %v402 = vpop.xlane.xlu0 %401
        %v403 = vadd.f32 %v365, %v366
        %404 = vadd.xlane.f32.xlu0 %v403
        %v405 = vpop.xlane.xlu0 %404
        %v406 = vadd.f32 %v367, %v368
        %407 = vadd.xlane.f32.xlu0 %v406
        %v408 = vpop.xlane.xlu0 %407
        %v409 = vadd.f32 %v369, %v370
        %410 = vadd.xlane.f32.xlu0 %v409
        %v411 = vpop.xlane.xlu0 %410
        %v412 = vadd.f32 %v371, %v372
        %413 = vadd.xlane.f32.xlu0 %v412
        %v414 = vpop.xlane.xlu0 %413
        %v415 = vadd.f32 %v373, %v374
        %416 = vadd.xlane.f32.xlu0 %v415
        %v417 = vpop.xlane.xlu0 %416
        %v418 = vadd.f32 %v375, %v376
        %419 = vadd.xlane.f32.xlu0 %v418
        %v420 = vpop.xlane.xlu0 %419
        %v421 = vadd.f32 %v377, %v378
        %422 = vadd.xlane.f32.xlu0 %v421
        %v423 = vpop.xlane.xlu0 %422
        %v424 = vadd.f32 %v379, %v380
        %425 = vadd.xlane.f32.xlu0 %v424
        %v426 = vpop.xlane.xlu0 %425
        %v427 = vadd.f32 %v381, %v382
        %428 = vadd.xlane.f32.xlu0 %v427
        %v429 = vpop.xlane.xlu0 %428
        %v430 = vadd.f32 %v383, %v384
        %431 = vadd.xlane.f32.xlu0 %v430
        %v432 = vpop.xlane.xlu0 %431
        %v433 = vadd.f32 %v385, %v386
        %434 = vadd.xlane.f32.xlu0 %v433
        %v435 = vpop.xlane.xlu0 %434
        %v436 = vadd.f32 %v387, %v388
        %437 = vadd.xlane.f32.xlu0 %v436
        %v438 = vpop.xlane.xlu0 %437
        %v439 = vrcp.pop 256.0
        %v440 = vmul.f32 %v393, %v439
        %v441 = vmul.f32 %v396, %v439
        %v442 = vmul.f32 %v399, %v439
        %v443 = vmul.f32 %v402, %v439
        %v444 = vmul.f32 %v405, %v439
        %v445 = vmul.f32 %v408, %v439
        %v446 = vmul.f32 %v411, %v439
        %v447 = vmul.f32 %v414, %v439
        %v448 = vmul.f32 %v417, %v439
        %v449 = vmul.f32 %v420, %v439
        %v450 = vmul.f32 %v423, %v439
        %v451 = vmul.f32 %v426, %v439
        %v452 = vmul.f32 %v429, %v439
        %v453 = vmul.f32 %v432, %v439
        %v454 = vmul.f32 %v435, %v439
        %v455 = vmul.f32 %v438, %v439
        %v456 = vsub.f32 %v357, %v440
        %v457 = vsub.f32 %v358, %v440
        %v458 = vsub.f32 %v359, %v441
        %v459 = vsub.f32 %v360, %v441
        %v460 = vsub.f32 %v361, %v442
        %v461 = vsub.f32 %v362, %v442
        %v462 = vsub.f32 %v363, %v443
        %v463 = vsub.f32 %v364, %v443
        %v464 = vsub.f32 %v365, %v444
        %v465 = vsub.f32 %v366, %v444
        %v466 = vsub.f32 %v367, %v445
        %v467 = vsub.f32 %v368, %v445
        %v468 = vsub.f32 %v369, %v446
        %v469 = vsub.f32 %v370, %v446
        %v470 = vsub.f32 %v371, %v447
        %v471 = vsub.f32 %v372, %v447
        %v472 = vsub.f32 %v373, %v448
        %v473 = vsub.f32 %v374, %v448
        %v474 = vsub.f32 %v375, %v449
        %v475 = vsub.f32 %v376, %v449
        %v476 = vsub.f32 %v377, %v450
        %v477 = vsub.f32 %v378, %v450
        %v478 = vsub.f32 %v379, %v451
        %v479 = vsub.f32 %v380, %v451
        %v480 = vsub.f32 %v381, %v452
        %v481 = vsub.f32 %v382, %v452
        %v482 = vsub.f32 %v383, %v453
        %v483 = vsub.f32 %v384, %v453
        %v484 = vsub.f32 %v385, %v454
        %v485 = vsub.f32 %v386, %v454
        %v486 = vsub.f32 %v387, %v455
        %v487 = vsub.f32 %v388, %v455
        %v488 = vmul.f32 %v456, %v456
        %v489 = vmul.f32 %v457, %v457
        %v490 = vmul.f32 %v458, %v458
        %v491 = vmul.f32 %v459, %v459
        %v492 = vmul.f32 %v460, %v460
        %v493 = vmul.f32 %v461, %v461
        %v494 = vmul.f32 %v462, %v462
        %v495 = vmul.f32 %v463, %v463
        %v496 = vmul.f32 %v464, %v464
        %v497 = vmul.f32 %v465, %v465
        %v498 = vmul.f32 %v466, %v466
        %v499 = vmul.f32 %v467, %v467
        %v500 = vmul.f32 %v468, %v468
        %v501 = vmul.f32 %v469, %v469
        %v502 = vmul.f32 %v470, %v470
        %v503 = vmul.f32 %v471, %v471
        %v504 = vmul.f32 %v472, %v472
        %v505 = vmul.f32 %v473, %v473
        %v506 = vmul.f32 %v474, %v474
        %v507 = vmul.f32 %v475, %v475
        %v508 = vmul.f32 %v476, %v476
        %v509 = vmul.f32 %v477, %v477
        %v510 = vmul.f32 %v478, %v478
        %v511 = vmul.f32 %v479, %v479
        %v512 = vmul.f32 %v480, %v480
        %v513 = vmul.f32 %v481, %v481
        %v514 = vmul.f32 %v482, %v482
        %v515 = vmul.f32 %v483, %v483
        %v516 = vmul.f32 %v484, %v484
        %v517 = vmul.f32 %v485, %v485
        %v518 = vmul.f32 %v486, %v486
        %v519 = vmul.f32 %v487, %v487
        %v520 = vadd.f32 %v488, %v489
        %521 = vadd.xlane.f32.xlu0 %v520
        %v522 = vpop.xlane.xlu0 %521
        %v523 = vadd.f32 %v490, %v491
        %524 = vadd.xlane.f32.xlu0 %v523
        %v525 = vpop.xlane.xlu0 %524
        %v526 = vadd.f32 %v492, %v493
        %527 = vadd.xlane.f32.xlu0 %v526
        %v528 = vpop.xlane.xlu0 %527
        %v529 = vadd.f32 %v494, %v495
        %530 = vadd.xlane.f32.xlu0 %v529
        %v531 = vpop.xlane.xlu0 %530
        %v532 = vadd.f32 %v496, %v497
        %533 = vadd.xlane.f32.xlu0 %v532
        %v534 = vpop.xlane.xlu0 %533
        %v535 = vadd.f32 %v498, %v499
        %536 = vadd.xlane.f32.xlu0 %v535
        %v537 = vpop.xlane.xlu0 %536
        %v538 = vadd.f32 %v500, %v501
        %539 = vadd.xlane.f32.xlu0 %v538
        %v540 = vpop.xlane.xlu0 %539
        %v541 = vadd.f32 %v502, %v503
        %542 = vadd.xlane.f32.xlu0 %v541
        %v543 = vpop.xlane.xlu0 %542
        %v544 = vadd.f32 %v504, %v505
        %545 = vadd.xlane.f32.xlu0 %v544
        %v546 = vpop.xlane.xlu0 %545
        %v547 = vadd.f32 %v506, %v507
        %548 = vadd.xlane.f32.xlu0 %v547
        %v549 = vpop.xlane.xlu0 %548
        %v550 = vadd.f32 %v508, %v509
        %551 = vadd.xlane.f32.xlu0 %v550
        %v552 = vpop.xlane.xlu0 %551
        %v553 = vadd.f32 %v510, %v511
        %554 = vadd.xlane.f32.xlu0 %v553
        %v555 = vpop.xlane.xlu0 %554
        %v556 = vadd.f32 %v512, %v513
        %557 = vadd.xlane.f32.xlu0 %v556
        %v558 = vpop.xlane.xlu0 %557
        %v559 = vadd.f32 %v514, %v515
        %560 = vadd.xlane.f32.xlu0 %v559
        %v561 = vpop.xlane.xlu0 %560
        %v562 = vadd.f32 %v516, %v517
        %563 = vadd.xlane.f32.xlu0 %v562
        %v564 = vpop.xlane.xlu0 %563
        %v565 = vadd.f32 %v518, %v519
        %566 = vadd.xlane.f32.xlu0 %v565
        %v567 = vpop.xlane.xlu0 %566
        %v568 = vmul.f32 %v522, %v439
        %v569 = vmul.f32 %v525, %v439
        %v570 = vmul.f32 %v528, %v439
        %v571 = vmul.f32 %v531, %v439
        %v572 = vmul.f32 %v534, %v439
        %v573 = vmul.f32 %v537, %v439
        %v574 = vmul.f32 %v540, %v439
        %v575 = vmul.f32 %v543, %v439
        %v576 = vmul.f32 %v546, %v439
        %v577 = vmul.f32 %v549, %v439
        %v578 = vmul.f32 %v552, %v439
        %v579 = vmul.f32 %v555, %v439
        %v580 = vmul.f32 %v558, %v439
        %v581 = vmul.f32 %v561, %v439
        %v582 = vmul.f32 %v564, %v439
        %v583 = vmul.f32 %v567, %v439
        %v584 = vadd.f32 %v568, 1e-05
        %v585 = vadd.f32 %v569, 1e-05
        %v586 = vadd.f32 %v570, 1e-05
        %v587 = vadd.f32 %v571, 1e-05
        %v588 = vadd.f32 %v572, 1e-05
        %v589 = vadd.f32 %v573, 1e-05
        %v590 = vadd.f32 %v574, 1e-05
        %v591 = vadd.f32 %v575, 1e-05
        %v592 = vadd.f32 %v576, 1e-05
        %v593 = vadd.f32 %v577, 1e-05
        %v594 = vadd.f32 %v578, 1e-05
        %v595 = vadd.f32 %v579, 1e-05
        %v596 = vadd.f32 %v580, 1e-05
        %v597 = vadd.f32 %v581, 1e-05
        %v598 = vadd.f32 %v582, 1e-05
        %v599 = vadd.f32 %v583, 1e-05
        %v600 = vrsqrt.pop %v584
        %v601 = vrsqrt.pop %v585
        %v602 = vrsqrt.pop %v586
        %v603 = vrsqrt.pop %v587
        %v604 = vrsqrt.pop %v588
        %v605 = vrsqrt.pop %v589
        %v606 = vrsqrt.pop %v590
        %v607 = vrsqrt.pop %v591
        %v608 = vrsqrt.pop %v592
        %v609 = vrsqrt.pop %v593
        %v610 = vrsqrt.pop %v594
        %v611 = vrsqrt.pop %v595
        %v612 = vrsqrt.pop %v596
        %v613 = vrsqrt.pop %v597
        %v614 = vrsqrt.pop %v598
        %v615 = vrsqrt.pop %v599
        %v616 = vmul.f32 %v456, %v600
        %v617 = vmul.f32 %v457, %v600
        %v618 = vmul.f32 %v458, %v601
        %v619 = vmul.f32 %v459, %v601
        %v620 = vmul.f32 %v460, %v602
        %v621 = vmul.f32 %v461, %v602
        %v622 = vmul.f32 %v462, %v603
        %v623 = vmul.f32 %v463, %v603
        %v624 = vmul.f32 %v464, %v604
        %v625 = vmul.f32 %v465, %v604
        %v626 = vmul.f32 %v466, %v605
        %v627 = vmul.f32 %v467, %v605
        %v628 = vmul.f32 %v468, %v606
        %v629 = vmul.f32 %v469, %v606
        %v630 = vmul.f32 %v470, %v607
        %v631 = vmul.f32 %v471, %v607
        %v632 = vmul.f32 %v472, %v608
        %v633 = vmul.f32 %v473, %v608
        %v634 = vmul.f32 %v474, %v609
        %v635 = vmul.f32 %v475, %v609
        %v636 = vmul.f32 %v476, %v610
        %v637 = vmul.f32 %v477, %v610
        %v638 = vmul.f32 %v478, %v611
        %v639 = vmul.f32 %v479, %v611
        %v640 = vmul.f32 %v480, %v612
        %v641 = vmul.f32 %v481, %v612
        %v642 = vmul.f32 %v482, %v613
        %v643 = vmul.f32 %v483, %v613
        %v644 = vmul.f32 %v484, %v614
        %v645 = vmul.f32 %v485, %v614
        %v646 = vmul.f32 %v486, %v615
        %v647 = vmul.f32 %v487, %v615
        %v649 = vlaneseq
        %v650 = vshrl.u32 %v649, 7
        %v651 = vsub.s32 0, %v650
        %v652 = vrot.slane %v389, %v651
        %v653 = vlaneseq
        %v654 = vshrl.u32 %v653, 7
        %v655 = vsub.s32 1, %v654
        %v656 = vrot.slane %v389, %v655
        %v659 = vmul.f32 %v616, %v652
        %v660 = vmul.f32 %v617, %v656
        %v661 = vmul.f32 %v618, %v652
        %v662 = vmul.f32 %v619, %v656
        %v663 = vmul.f32 %v620, %v652
        %v664 = vmul.f32 %v621, %v656
        %v665 = vmul.f32 %v622, %v652
        %v666 = vmul.f32 %v623, %v656
        %v667 = vmul.f32 %v624, %v652
        %v668 = vmul.f32 %v625, %v656
        %v669 = vmul.f32 %v626, %v652
        %v670 = vmul.f32 %v627, %v656
        %v671 = vmul.f32 %v628, %v652
        %v672 = vmul.f32 %v629, %v656
        %v673 = vmul.f32 %v630, %v652
        %v674 = vmul.f32 %v631, %v656
        %v675 = vmul.f32 %v632, %v652
        %v676 = vmul.f32 %v633, %v656
        %v677 = vmul.f32 %v634, %v652
        %v678 = vmul.f32 %v635, %v656
        %v679 = vmul.f32 %v636, %v652
        %v680 = vmul.f32 %v637, %v656
        %v681 = vmul.f32 %v638, %v652
        %v682 = vmul.f32 %v639, %v656
        %v683 = vmul.f32 %v640, %v652
        %v684 = vmul.f32 %v641, %v656
        %v685 = vmul.f32 %v642, %v652
        %v686 = vmul.f32 %v643, %v656
        %v687 = vmul.f32 %v644, %v652
        %v688 = vmul.f32 %v645, %v656
        %v689 = vmul.f32 %v646, %v652
        %v690 = vmul.f32 %v647, %v656
        %v692 = vlaneseq
        %v693 = vshrl.u32 %v692, 7
        %v694 = vsub.s32 0, %v693
        %v695 = vrot.slane %v390, %v694
        %v696 = vlaneseq
        %v697 = vshrl.u32 %v696, 7
        %v698 = vsub.s32 1, %v697
        %v699 = vrot.slane %v390, %v698
        %v702 = vadd.f32 %v659, %v695
        %v703 = vadd.f32 %v660, %v699
        %v704 = vadd.f32 %v661, %v695
        %v705 = vadd.f32 %v662, %v699
        %v706 = vadd.f32 %v663, %v695
        %v707 = vadd.f32 %v664, %v699
        %v708 = vadd.f32 %v665, %v695
        %v709 = vadd.f32 %v666, %v699
        %v710 = vadd.f32 %v667, %v695
        %v711 = vadd.f32 %v668, %v699
        %v712 = vadd.f32 %v669, %v695
        %v713 = vadd.f32 %v670, %v699
        %v714 = vadd.f32 %v671, %v695
        %v715 = vadd.f32 %v672, %v699
        %v716 = vadd.f32 %v673, %v695
        %v717 = vadd.f32 %v674, %v699
        %v718 = vadd.f32 %v675, %v695
        %v719 = vadd.f32 %v676, %v699
        %v720 = vadd.f32 %v677, %v695
        %v721 = vadd.f32 %v678, %v699
        %v722 = vadd.f32 %v679, %v695
        %v723 = vadd.f32 %v680, %v699
        %v724 = vadd.f32 %v681, %v695
        %v725 = vadd.f32 %v682, %v699
        %v726 = vadd.f32 %v683, %v695
        %v727 = vadd.f32 %v684, %v699
        %v728 = vadd.f32 %v685, %v695
        %v729 = vadd.f32 %v686, %v699
        %v730 = vadd.f32 %v687, %v695
        %v731 = vadd.f32 %v688, %v699
        %v732 = vadd.f32 %v689, %v695
        %v733 = vadd.f32 %v690, %v699
        %v734 = vpack.c.bf16 %v704, %v702
        %v735 = vpack.c.bf16 %v705, %v703
        %v736 = vpack.c.bf16 %v708, %v706
        %v737 = vpack.c.bf16 %v709, %v707
        %v738 = vpack.c.bf16 %v712, %v710
        %v739 = vpack.c.bf16 %v713, %v711
        %v740 = vpack.c.bf16 %v716, %v714
        %v741 = vpack.c.bf16 %v717, %v715
        %v742 = vpack.c.bf16 %v720, %v718
        %v743 = vpack.c.bf16 %v721, %v719
        %v744 = vpack.c.bf16 %v724, %v722
        %v745 = vpack.c.bf16 %v725, %v723
        %v746 = vpack.c.bf16 %v728, %v726
        %v747 = vpack.c.bf16 %v729, %v727
        %v748 = vpack.c.bf16 %v732, %v730
        %v749 = vpack.c.bf16 %v733, %v731
        %v750 = vld [vmem:[#allocation5] sm:$0xff]
        %v751 = vld [vmem:[#allocation5 + $0x8] sm:$0xff]
        %v752 = vld [vmem:[#allocation5 + $0x10] sm:$0xff]
        %v753 = vld [vmem:[#allocation5 + $0x18] sm:$0xff]
        %v754 = vld [vmem:[#allocation5 + $0x20] sm:$0xff]
        %v755 = vld [vmem:[#allocation5 + $0x28] sm:$0xff]
        %v756 = vld [vmem:[#allocation5 + $0x30] sm:$0xff]
        %v757 = vld [vmem:[#allocation5 + $0x38] sm:$0xff]
        %v758 = vld [vmem:[#allocation5 + $0x40] sm:$0xff]
        %v759 = vld [vmem:[#allocation5 + $0x48] sm:$0xff]
        %v760 = vld [vmem:[#allocation5 + $0x50] sm:$0xff]
        %v761 = vld [vmem:[#allocation5 + $0x58] sm:$0xff]
        %v762 = vld [vmem:[#allocation5 + $0x60] sm:$0xff]
        %v763 = vld [vmem:[#allocation5 + $0x68] sm:$0xff]
        %v764 = vld [vmem:[#allocation5 + $0x70] sm:$0xff]
        %v765 = vld [vmem:[#allocation5 + $0x78] sm:$0xff]
        %v766 = vld [vmem:[#allocation5 + $0x80] sm:$0xff]
        %v767 = vld [vmem:[#allocation5 + $0x88] sm:$0xff]
        %v768 = vld [vmem:[#allocation5 + $0x90] sm:$0xff]
        %v769 = vld [vmem:[#allocation5 + $0x98] sm:$0xff]
        %v770 = vld [vmem:[#allocation5 + $0xa0] sm:$0xff]
        %v771 = vld [vmem:[#allocation5 + $0xa8] sm:$0xff]
        %v772 = vld [vmem:[#allocation5 + $0xb0] sm:$0xff]
        %v773 = vld [vmem:[#allocation5 + $0xb8] sm:$0xff]
        %v774 = vld [vmem:[#allocation5 + $0xc0] sm:$0xff]
        %v775 = vld [vmem:[#allocation5 + $0xc8] sm:$0xff]
        %v776 = vld [vmem:[#allocation5 + $0xd0] sm:$0xff]
        %v777 = vld [vmem:[#allocation5 + $0xd8] sm:$0xff]
        %v778 = vld [vmem:[#allocation5 + $0xe0] sm:$0xff]
        %v779 = vld [vmem:[#allocation5 + $0xe8] sm:$0xff]
        %v780 = vld [vmem:[#allocation5 + $0xf0] sm:$0xff]
        %v781 = vld [vmem:[#allocation5 + $0xf8] sm:$0xff]
        %v782 = vld [vmem:[#allocation5 + $0x100] sm:$0xff]
        %v783 = vld [vmem:[#allocation5 + $0x108] sm:$0xff]
        %v784 = vld [vmem:[#allocation5 + $0x110] sm:$0xff]
        %v785 = vld [vmem:[#allocation5 + $0x118] sm:$0xff]
        %v786 = vld [vmem:[#allocation5 + $0x120] sm:$0xff]
        %v787 = vld [vmem:[#allocation5 + $0x128] sm:$0xff]
        %v788 = vld [vmem:[#allocation5 + $0x130] sm:$0xff]
        %v789 = vld [vmem:[#allocation5 + $0x138] sm:$0xff]
        %v790 = vld [vmem:[#allocation5 + $0x140] sm:$0xff]
        %v791 = vld [vmem:[#allocation5 + $0x148] sm:$0xff]
        %v792 = vld [vmem:[#allocation5 + $0x150] sm:$0xff]
        %v793 = vld [vmem:[#allocation5 + $0x158] sm:$0xff]
        %v794 = vld [vmem:[#allocation5 + $0x160] sm:$0xff]
        %v795 = vld [vmem:[#allocation5 + $0x168] sm:$0xff]
        %v796 = vld [vmem:[#allocation5 + $0x170] sm:$0xff]
        %v797 = vld [vmem:[#allocation5 + $0x178] sm:$0xff]
        %v798 = vld [vmem:[#allocation5 + $0x180] sm:$0xff]
        %v799 = vld [vmem:[#allocation5 + $0x188] sm:$0xff]
        %v800 = vld [vmem:[#allocation5 + $0x190] sm:$0xff]
        %v801 = vld [vmem:[#allocation5 + $0x198] sm:$0xff]
        %v802 = vld [vmem:[#allocation5 + $0x1a0] sm:$0xff]
        %v803 = vld [vmem:[#allocation5 + $0x1a8] sm:$0xff]
        %v804 = vld [vmem:[#allocation5 + $0x1b0] sm:$0xff]
        %v805 = vld [vmem:[#allocation5 + $0x1b8] sm:$0xff]
        %v806 = vld [vmem:[#allocation5 + $0x1c0] sm:$0xff]
        %v807 = vld [vmem:[#allocation5 + $0x1c8] sm:$0xff]
        %v808 = vld [vmem:[#allocation5 + $0x1d0] sm:$0xff]
        %v809 = vld [vmem:[#allocation5 + $0x1d8] sm:$0xff]
        %v810 = vld [vmem:[#allocation5 + $0x1e0] sm:$0xff]
        %v811 = vld [vmem:[#allocation5 + $0x1e8] sm:$0xff]
        %v812 = vld [vmem:[#allocation5 + $0x1f0] sm:$0xff]
        %v813 = vld [vmem:[#allocation5 + $0x1f8] sm:$0xff]
        %v814 = vld [vmem:[#allocation5 + $0x200] sm:$0xff]
        %v815 = vld [vmem:[#allocation5 + $0x208] sm:$0xff]
        %v816 = vld [vmem:[#allocation5 + $0x210] sm:$0xff]
        %v817 = vld [vmem:[#allocation5 + $0x218] sm:$0xff]
        %v818 = vld [vmem:[#allocation5 + $0x220] sm:$0xff]
        %v819 = vld [vmem:[#allocation5 + $0x228] sm:$0xff]
        %v820 = vld [vmem:[#allocation5 + $0x230] sm:$0xff]
        %v821 = vld [vmem:[#allocation5 + $0x238] sm:$0xff]
        %v822 = vld [vmem:[#allocation5 + $0x240] sm:$0xff]
        %v823 = vld [vmem:[#allocation5 + $0x248] sm:$0xff]
        %v824 = vld [vmem:[#allocation5 + $0x250] sm:$0xff]
        %v825 = vld [vmem:[#allocation5 + $0x258] sm:$0xff]
        %v826 = vld [vmem:[#allocation5 + $0x260] sm:$0xff]
        %v827 = vld [vmem:[#allocation5 + $0x268] sm:$0xff]
        %v828 = vld [vmem:[#allocation5 + $0x270] sm:$0xff]
        %v829 = vld [vmem:[#allocation5 + $0x278] sm:$0xff]
        %v830 = vld [vmem:[#allocation5 + $0x280] sm:$0xff]
        %v831 = vld [vmem:[#allocation5 + $0x288] sm:$0xff]
        %v832 = vld [vmem:[#allocation5 + $0x290] sm:$0xff]
        %v833 = vld [vmem:[#allocation5 + $0x298] sm:$0xff]
        %v834 = vld [vmem:[#allocation5 + $0x2a0] sm:$0xff]
        %v835 = vld [vmem:[#allocation5 + $0x2a8] sm:$0xff]
        %v836 = vld [vmem:[#allocation5 + $0x2b0] sm:$0xff]
        %v837 = vld [vmem:[#allocation5 + $0x2b8] sm:$0xff]
        %v838 = vld [vmem:[#allocation5 + $0x2c0] sm:$0xff]
        %v839 = vld [vmem:[#allocation5 + $0x2c8] sm:$0xff]
        %v840 = vld [vmem:[#allocation5 + $0x2d0] sm:$0xff]
        %v841 = vld [vmem:[#allocation5 + $0x2d8] sm:$0xff]
        %v842 = vld [vmem:[#allocation5 + $0x2e0] sm:$0xff]
        %v843 = vld [vmem:[#allocation5 + $0x2e8] sm:$0xff]
        %v844 = vld [vmem:[#allocation5 + $0x2f0] sm:$0xff]
        %v845 = vld [vmem:[#allocation5 + $0x2f8] sm:$0xff]
        %v846 = vld [vmem:[%s4] sm:$0x3f]
        %v848 = vlaneseq
        %v849 = vshrl.u32 %v848, 7
        %v850 = vsub.s32 0, %v849
        %v851 = vrot.slane %v846, %v850
        %v852 = vlaneseq
        %v853 = vshrl.u32 %v852, 7
        %v854 = vsub.s32 1, %v853
        %v855 = vrot.slane %v846, %v854
        %v856 = vlaneseq
        %v857 = vshrl.u32 %v856, 7
        %v858 = vsub.s32 2, %v857
        %v859 = vrot.slane %v846, %v858
        %v860 = vlaneseq
        %v861 = vshrl.u32 %v860, 7
        %v862 = vsub.s32 3, %v861
        %v863 = vrot.slane %v846, %v862
        %v864 = vlaneseq
        %v865 = vshrl.u32 %v864, 7
        %v866 = vsub.s32 4, %v865
        %v867 = vrot.slane %v846, %v866
        %v868 = vlaneseq
        %v869 = vshrl.u32 %v868, 7
        %v870 = vsub.s32 5, %v869
        %v871 = vrot.slane %v846, %v870
        %v974 = vunpack.c.l.b16 %v750
        %v975 = vunpack.c.h.b16 %v750
        %v976 = vunpack.c.l.b16 %v751
        %v977 = vunpack.c.h.b16 %v751
        %v978 = vunpack.c.l.b16 %v752
        %v979 = vunpack.c.h.b16 %v752
        %v980 = vunpack.c.l.b16 %v753
        %v981 = vunpack.c.h.b16 %v753
        %v982 = vunpack.c.l.b16 %v754
        %v983 = vunpack.c.h.b16 %v754
        %v984 = vunpack.c.l.b16 %v755
        %v985 = vunpack.c.h.b16 %v755
        %v986 = vunpack.c.l.b16 %v756
        %v987 = vunpack.c.h.b16 %v756
        %v988 = vunpack.c.l.b16 %v757
        %v989 = vunpack.c.h.b16 %v757
        %v990 = vunpack.c.l.b16 %v758
        %v991 = vunpack.c.h.b16 %v758
        %v992 = vunpack.c.l.b16 %v759
        %v993 = vunpack.c.h.b16 %v759
        %v994 = vunpack.c.l.b16 %v760
        %v995 = vunpack.c.h.b16 %v760
        %v996 = vunpack.c.l.b16 %v761
        %v997 = vunpack.c.h.b16 %v761
        %v998 = vunpack.c.l.b16 %v762
        %v999 = vunpack.c.h.b16 %v762
        %v1000 = vunpack.c.l.b16 %v763
        %v1001 = vunpack.c.h.b16 %v763
        %v1002 = vunpack.c.l.b16 %v764
        %v1003 = vunpack.c.h.b16 %v764
        %v1004 = vunpack.c.l.b16 %v765
        %v1005 = vunpack.c.h.b16 %v765
        %v1006 = vunpack.c.l.b16 %v766
        %v1007 = vunpack.c.h.b16 %v766
        %v1008 = vunpack.c.l.b16 %v767
        %v1009 = vunpack.c.h.b16 %v767
        %v1010 = vunpack.c.l.b16 %v768
        %v1011 = vunpack.c.h.b16 %v768
        %v1012 = vunpack.c.l.b16 %v769
        %v1013 = vunpack.c.h.b16 %v769
        %v1014 = vunpack.c.l.b16 %v770
        %v1015 = vunpack.c.h.b16 %v770
        %v1016 = vunpack.c.l.b16 %v771
        %v1017 = vunpack.c.h.b16 %v771
        %v1018 = vunpack.c.l.b16 %v772
        %v1019 = vunpack.c.h.b16 %v772
        %v1020 = vunpack.c.l.b16 %v773
        %v1021 = vunpack.c.h.b16 %v773
        %v1022 = vunpack.c.l.b16 %v774
        %v1023 = vunpack.c.h.b16 %v774
        %v1024 = vunpack.c.l.b16 %v775
        %v1025 = vunpack.c.h.b16 %v775
        %v1026 = vunpack.c.l.b16 %v776
        %v1027 = vunpack.c.h.b16 %v776
        %v1028 = vunpack.c.l.b16 %v777
        %v1029 = vunpack.c.h.b16 %v777
        %v1030 = vunpack.c.l.b16 %v778
        %v1031 = vunpack.c.h.b16 %v778
        %v1032 = vunpack.c.l.b16 %v779
        %v1033 = vunpack.c.h.b16 %v779
        %v1034 = vunpack.c.l.b16 %v780
        %v1035 = vunpack.c.h.b16 %v780
        %v1036 = vunpack.c.l.b16 %v781
        %v1037 = vunpack.c.h.b16 %v781
        %v1038 = vunpack.c.l.b16 %v782
        %v1039 = vunpack.c.h.b16 %v782
        %v1040 = vunpack.c.l.b16 %v783
        %v1041 = vunpack.c.h.b16 %v783
        %v1042 = vunpack.c.l.b16 %v784
        %v1043 = vunpack.c.h.b16 %v784
        %v1044 = vunpack.c.l.b16 %v785
        %v1045 = vunpack.c.h.b16 %v785
        %v1046 = vunpack.c.l.b16 %v786
        %v1047 = vunpack.c.h.b16 %v786
        %v1048 = vunpack.c.l.b16 %v787
        %v1049 = vunpack.c.h.b16 %v787
        %v1050 = vunpack.c.l.b16 %v788
        %v1051 = vunpack.c.h.b16 %v788
        %v1052 = vunpack.c.l.b16 %v789
        %v1053 = vunpack.c.h.b16 %v789
        %v1054 = vunpack.c.l.b16 %v790
        %v1055 = vunpack.c.h.b16 %v790
        %v1056 = vunpack.c.l.b16 %v791
        %v1057 = vunpack.c.h.b16 %v791
        %v1058 = vunpack.c.l.b16 %v792
        %v1059 = vunpack.c.h.b16 %v792
        %v1060 = vunpack.c.l.b16 %v793
        %v1061 = vunpack.c.h.b16 %v793
        %v1062 = vunpack.c.l.b16 %v794
        %v1063 = vunpack.c.h.b16 %v794
        %v1064 = vunpack.c.l.b16 %v795
        %v1065 = vunpack.c.h.b16 %v795
        %v1066 = vunpack.c.l.b16 %v796
        %v1067 = vunpack.c.h.b16 %v796
        %v1068 = vunpack.c.l.b16 %v797
        %v1069 = vunpack.c.h.b16 %v797
        %v1070 = vunpack.c.l.b16 %v798
        %v1071 = vunpack.c.h.b16 %v798
        %v1072 = vunpack.c.l.b16 %v799
        %v1073 = vunpack.c.h.b16 %v799
        %v1074 = vunpack.c.l.b16 %v800
        %v1075 = vunpack.c.h.b16 %v800
        %v1076 = vunpack.c.l.b16 %v801
        %v1077 = vunpack.c.h.b16 %v801
        %v1078 = vunpack.c.l.b16 %v802
        %v1079 = vunpack.c.h.b16 %v802
        %v1080 = vunpack.c.l.b16 %v803
        %v1081 = vunpack.c.h.b16 %v803
        %v1082 = vunpack.c.l.b16 %v804
        %v1083 = vunpack.c.h.b16 %v804
        %v1084 = vunpack.c.l.b16 %v805
        %v1085 = vunpack.c.h.b16 %v805
        %v1086 = vunpack.c.l.b16 %v806
        %v1087 = vunpack.c.h.b16 %v806
        %v1088 = vunpack.c.l.b16 %v807
        %v1089 = vunpack.c.h.b16 %v807
        %v1090 = vunpack.c.l.b16 %v808
        %v1091 = vunpack.c.h.b16 %v808
        %v1092 = vunpack.c.l.b16 %v809
        %v1093 = vunpack.c.h.b16 %v809
        %v1094 = vunpack.c.l.b16 %v810
        %v1095 = vunpack.c.h.b16 %v810
        %v1096 = vunpack.c.l.b16 %v811
        %v1097 = vunpack.c.h.b16 %v811
        %v1098 = vunpack.c.l.b16 %v812
        %v1099 = vunpack.c.h.b16 %v812
        %v1100 = vunpack.c.l.b16 %v813
        %v1101 = vunpack.c.h.b16 %v813
        %v1102 = vunpack.c.l.b16 %v814
        %v1103 = vunpack.c.h.b16 %v814
        %v1104 = vunpack.c.l.b16 %v815
        %v1105 = vunpack.c.h.b16 %v815
        %v1106 = vunpack.c.l.b16 %v816
        %v1107 = vunpack.c.h.b16 %v816
        %v1108 = vunpack.c.l.b16 %v817
        %v1109 = vunpack.c.h.b16 %v817
        %v1110 = vunpack.c.l.b16 %v818
        %v1111 = vunpack.c.h.b16 %v818
        %v1112 = vunpack.c.l.b16 %v819
        %v1113 = vunpack.c.h.b16 %v819
        %v1114 = vunpack.c.l.b16 %v820
        %v1115 = vunpack.c.h.b16 %v820
        %v1116 = vunpack.c.l.b16 %v821
        %v1117 = vunpack.c.h.b16 %v821
        %v1118 = vunpack.c.l.b16 %v822
        %v1119 = vunpack.c.h.b16 %v822
        %v1120 = vunpack.c.l.b16 %v823
        %v1121 = vunpack.c.h.b16 %v823
        %v1122 = vunpack.c.l.b16 %v824
        %v1123 = vunpack.c.h.b16 %v824
        %v1124 = vunpack.c.l.b16 %v825
        %v1125 = vunpack.c.h.b16 %v825
        %v1126 = vunpack.c.l.b16 %v826
        %v1127 = vunpack.c.h.b16 %v826
        %v1128 = vunpack.c.l.b16 %v827
        %v1129 = vunpack.c.h.b16 %v827
        %v1130 = vunpack.c.l.b16 %v828
        %v1131 = vunpack.c.h.b16 %v828
        %v1132 = vunpack.c.l.b16 %v829
        %v1133 = vunpack.c.h.b16 %v829
        %v1134 = vunpack.c.l.b16 %v830
        %v1135 = vunpack.c.h.b16 %v830
        %v1136 = vunpack.c.l.b16 %v831
        %v1137 = vunpack.c.h.b16 %v831
        %v1138 = vunpack.c.l.b16 %v832
        %v1139 = vunpack.c.h.b16 %v832
        %v1140 = vunpack.c.l.b16 %v833
        %v1141 = vunpack.c.h.b16 %v833
        %v1142 = vunpack.c.l.b16 %v834
        %v1143 = vunpack.c.h.b16 %v834
        %v1144 = vunpack.c.l.b16 %v835
        %v1145 = vunpack.c.h.b16 %v835
        %v1146 = vunpack.c.l.b16 %v836
        %v1147 = vunpack.c.h.b16 %v836
        %v1148 = vunpack.c.l.b16 %v837
        %v1149 = vunpack.c.h.b16 %v837
        %v1150 = vunpack.c.l.b16 %v838
        %v1151 = vunpack.c.h.b16 %v838
        %v1152 = vunpack.c.l.b16 %v839
        %v1153 = vunpack.c.h.b16 %v839
        %v1154 = vunpack.c.l.b16 %v840
        %v1155 = vunpack.c.h.b16 %v840
        %v1156 = vunpack.c.l.b16 %v841
        %v1157 = vunpack.c.h.b16 %v841
        %v1158 = vunpack.c.l.b16 %v842
        %v1159 = vunpack.c.h.b16 %v842
        %v1160 = vunpack.c.l.b16 %v843
        %v1161 = vunpack.c.h.b16 %v843
        %v1162 = vunpack.c.l.b16 %v844
        %v1163 = vunpack.c.h.b16 %v844
        %v1164 = vunpack.c.l.b16 %v845
        %v1165 = vunpack.c.h.b16 %v845
        %v1166 = vpack.c.b16 %v980, %v974
        %v1167 = vpack.c.b16 %v981, %v975
        %v1168 = vpack.c.b16 %v982, %v976
        %v1169 = vpack.c.b16 %v983, %v977
        %v1170 = vpack.c.b16 %v984, %v978
        %v1171 = vpack.c.b16 %v985, %v979
        %v1172 = vpack.c.b16 %v992, %v986
        %v1173 = vpack.c.b16 %v993, %v987
        %v1174 = vpack.c.b16 %v994, %v988
        %v1175 = vpack.c.b16 %v995, %v989
        %v1176 = vpack.c.b16 %v996, %v990
        %v1177 = vpack.c.b16 %v997, %v991
        %v1178 = vpack.c.b16 %v1004, %v998
        %v1179 = vpack.c.b16 %v1005, %v999
        %v1180 = vpack.c.b16 %v1006, %v1000
        %v1181 = vpack.c.b16 %v1007, %v1001
        %v1182 = vpack.c.b16 %v1008, %v1002
        %v1183 = vpack.c.b16 %v1009, %v1003
        %v1184 = vpack.c.b16 %v1016, %v1010
        %v1185 = vpack.c.b16 %v1017, %v1011
        %v1186 = vpack.c.b16 %v1018, %v1012
        %v1187 = vpack.c.b16 %v1019, %v1013
        %v1188 = vpack.c.b16 %v1020, %v1014
        %v1189 = vpack.c.b16 %v1021, %v1015
        %v1190 = vpack.c.b16 %v1028, %v1022
        %v1191 = vpack.c.b16 %v1029, %v1023
        %v1192 = vpack.c.b16 %v1030, %v1024
        %v1193 = vpack.c.b16 %v1031, %v1025
        %v1194 = vpack.c.b16 %v1032, %v1026
        %v1195 = vpack.c.b16 %v1033, %v1027
        %v1196 = vpack.c.b16 %v1040, %v1034
        %v1197 = vpack.c.b16 %v1041, %v1035
        %v1198 = vpack.c.b16 %v1042, %v1036
        %v1199 = vpack.c.b16 %v1043, %v1037
        %v1200 = vpack.c.b16 %v1044, %v1038
        %v1201 = vpack.c.b16 %v1045, %v1039
        %v1202 = vpack.c.b16 %v1052, %v1046
        %v1203 = vpack.c.b16 %v1053, %v1047
        %v1204 = vpack.c.b16 %v1054, %v1048
        %v1205 = vpack.c.b16 %v1055, %v1049
        %v1206 = vpack.c.b16 %v1056, %v1050
        %v1207 = vpack.c.b16 %v1057, %v1051
        %v1208 = vpack.c.b16 %v1064, %v1058
        %v1209 = vpack.c.b16 %v1065, %v1059
        %v1210 = vpack.c.b16 %v1066, %v1060
        %v1211 = vpack.c.b16 %v1067, %v1061
        %v1212 = vpack.c.b16 %v1068, %v1062
        %v1213 = vpack.c.b16 %v1069, %v1063
        %v1214 = vpack.c.b16 %v1076, %v1070
        %v1215 = vpack.c.b16 %v1077, %v1071
        %v1216 = vpack.c.b16 %v1078, %v1072
        %v1217 = vpack.c.b16 %v1079, %v1073
        %v1218 = vpack.c.b16 %v1080, %v1074
        %v1219 = vpack.c.b16 %v1081, %v1075
        %v1220 = vpack.c.b16 %v1088, %v1082
        %v1221 = vpack.c.b16 %v1089, %v1083
        %v1222 = vpack.c.b16 %v1090, %v1084
        %v1223 = vpack.c.b16 %v1091, %v1085
        %v1224 = vpack.c.b16 %v1092, %v1086
        %v1225 = vpack.c.b16 %v1093, %v1087
        %v1226 = vpack.c.b16 %v1100, %v1094
        %v1227 = vpack.c.b16 %v1101, %v1095
        %v1228 = vpack.c.b16 %v1102, %v1096
        %v1229 = vpack.c.b16 %v1103, %v1097
        %v1230 = vpack.c.b16 %v1104, %v1098
        %v1231 = vpack.c.b16 %v1105, %v1099
        %v1232 = vpack.c.b16 %v1112, %v1106
        %v1233 = vpack.c.b16 %v1113, %v1107
        %v1234 = vpack.c.b16 %v1114, %v1108
        %v1235 = vpack.c.b16 %v1115, %v1109
        %v1236 = vpack.c.b16 %v1116, %v1110
        %v1237 = vpack.c.b16 %v1117, %v1111
        %v1238 = vpack.c.b16 %v1124, %v1118
        %v1239 = vpack.c.b16 %v1125, %v1119
        %v1240 = vpack.c.b16 %v1126, %v1120
        %v1241 = vpack.c.b16 %v1127, %v1121
        %v1242 = vpack.c.b16 %v1128, %v1122
        %v1243 = vpack.c.b16 %v1129, %v1123
        %v1244 = vpack.c.b16 %v1136, %v1130
        %v1245 = vpack.c.b16 %v1137, %v1131
        %v1246 = vpack.c.b16 %v1138, %v1132
        %v1247 = vpack.c.b16 %v1139, %v1133
        %v1248 = vpack.c.b16 %v1140, %v1134
        %v1249 = vpack.c.b16 %v1141, %v1135
        %v1250 = vpack.c.b16 %v1148, %v1142
        %v1251 = vpack.c.b16 %v1149, %v1143
        %v1252 = vpack.c.b16 %v1150, %v1144
        %v1253 = vpack.c.b16 %v1151, %v1145
        %v1254 = vpack.c.b16 %v1152, %v1146
        %v1255 = vpack.c.b16 %v1153, %v1147
        %v1256 = vpack.c.b16 %v1160, %v1154
        %v1257 = vpack.c.b16 %v1161, %v1155
        %v1258 = vpack.c.b16 %v1162, %v1156
        %v1259 = vpack.c.b16 %v1163, %v1157
        %v1260 = vpack.c.b16 %v1164, %v1158
        %v1261 = vpack.c.b16 %v1165, %v1159
        %1358 = vmatprep.subr.bf16.mxu0 %v1167
        %1359 = vmatpush1.bf16.msra.mxu0 %v1166
        %1360 = vmatprep.subr.bf16.mxu0 %v1173
        %1361 = vmatpush1.bf16.msra.mxu0 %v1172
        %1362 = vmatprep.subr.bf16.mxu0 %v1179
        %1363 = vmatpush1.bf16.msra.mxu0 %v1178
        %1364 = vmatprep.subr.bf16.mxu0 %v1185
        %1365 = vmatpush1.bf16.msra.mxu0 %v1184
        %1366 = vmatprep.subr.bf16.mxu0 %v1191
        %1367 = vmatpush1.bf16.msra.mxu0 %v1190
        %1368 = vmatprep.subr.bf16.mxu0 %v1197
        %1369 = vmatpush1.bf16.msra.mxu0 %v1196
        %1370 = vmatprep.subr.bf16.mxu0 %v1203
        %1371 = vmatpush1.bf16.msra.mxu0 %v1202
        %1372 = vmatprep.subr.bf16.mxu0 %v1209
        %1373 = vmatpush1.bf16.msra.mxu0 %v1208
        %1374 = vmatprep.subr.bf16.mxu0 %v1215
        %1375 = vmatpush1.bf16.msra.mxu0 %v1214
        %1376 = vmatprep.subr.bf16.mxu0 %v1221
        %1377 = vmatpush1.bf16.msra.mxu0 %v1220
        %1378 = vmatprep.subr.bf16.mxu0 %v1227
        %1379 = vmatpush1.bf16.msra.mxu0 %v1226
        %1380 = vmatprep.subr.bf16.mxu0 %v1233
        %1381 = vmatpush1.bf16.msra.mxu0 %v1232
        %1382 = vmatprep.subr.bf16.mxu0 %v1239
        %1383 = vmatpush1.bf16.msra.mxu0 %v1238
        %1384 = vmatprep.subr.bf16.mxu0 %v1245
        %1385 = vmatpush1.bf16.msra.mxu0 %v1244
        %1386 = vmatprep.subr.bf16.mxu0 %v1251
        %1387 = vmatpush1.bf16.msra.mxu0 %v1250
        %1388 = vmatprep.subr.bf16.mxu0 %v1257
        %1389 = vmatpush1.bf16.msra.mxu0 %v1256
        %1390 = vmatprep.mubr.bf16.mxu0 %v735
        %1391 = vmatmul.mubr.bf16.gmra.mrb[0].mxu0 %v734
        %v1392 = vpop.f32.mrb[0].mxu0
        %v1393 = vadd.f32 %v851, %v1392
        %v1394 = vpop.f32.mrb[0].mxu0
        %v1395 = vadd.f32 %v855, %v1394
        %v1396 = vpop.f32.mrb[0].mxu0
        %v1397 = vadd.f32 %v851, %v1396
        %v1398 = vpop.f32.mrb[0].mxu0
        %v1399 = vadd.f32 %v855, %v1398
        %1400 = vmatprep.mubr.bf16.mxu0 %v737
        %1401 = vmatmul.mubr.bf16.gmra.mrb[0].mxu0 %v736
        %v1402 = vpop.f32.mrb[0].mxu0
        %v1403 = vadd.f32 %v851, %v1402
        %v1404 = vpop.f32.mrb[0].mxu0
        %v1405 = vadd.f32 %v855, %v1404
        %v1406 = vpop.f32.mrb[0].mxu0
        %v1407 = vadd.f32 %v851, %v1406
        %v1408 = vpop.f32.mrb[0].mxu0
        %v1409 = vadd.f32 %v855, %v1408
        %1410 = vmatprep.mubr.bf16.mxu0 %v739
        %1411 = vmatmul.mubr.bf16.gmra.mrb[0].mxu0 %v738
        %v1412 = vpop.f32.mrb[0].mxu0
        %v1413 = vadd.f32 %v851, %v1412
        %v1414 = vpop.f32.mrb[0].mxu0
        %v1415 = vadd.f32 %v855, %v1414
        %v1416 = vpop.f32.mrb[0].mxu0
        %v1417 = vadd.f32 %v851, %v1416
        %v1418 = vpop.f32.mrb[0].mxu0
        %v1419 = vadd.f32 %v855, %v1418
        %1420 = vmatprep.mubr.bf16.mxu0 %v741
        %1421 = vmatmul.mubr.bf16.gmra.mrb[0].mxu0 %v740
        %v1422 = vpop.f32.mrb[0].mxu0
        %v1423 = vadd.f32 %v851, %v1422
        %v1424 = vpop.f32.mrb[0].mxu0
        %v1425 = vadd.f32 %v855, %v1424
        %v1426 = vpop.f32.mrb[0].mxu0
        %v1427 = vadd.f32 %v851, %v1426
        %v1428 = vpop.f32.mrb[0].mxu0
        %v1429 = vadd.f32 %v855, %v1428
        %1430 = vmatprep.mubr.bf16.mxu0 %v743
        %1431 = vmatmul.mubr.bf16.gmra.mrb[0].mxu0 %v742
        %v1432 = vpop.f32.mrb[0].mxu0
        %v1433 = vadd.f32 %v851, %v1432
        %v1434 = vpop.f32.mrb[0].mxu0
        %v1435 = vadd.f32 %v855, %v1434
        %v1436 = vpop.f32.mrb[0].mxu0
        %v1437 = vadd.f32 %v851, %v1436
        %v1438 = vpop.f32.mrb[0].mxu0
        %v1439 = vadd.f32 %v855, %v1438
        %1440 = vmatprep.mubr.bf16.mxu0 %v745
        %1441 = vmatmul.mubr.bf16.gmra.mrb[0].mxu0 %v744
        %v1442 = vpop.f32.mrb[0].mxu0
        %v1443 = vadd.f32 %v851, %v1442
        %v1444 = vpop.f32.mrb[0].mxu0
        %v1445 = vadd.f32 %v855, %v1444
        %v1446 = vpop.f32.mrb[0].mxu0
        %v1447 = vadd.f32 %v851, %v1446
        %v1448 = vpop.f32.mrb[0].mxu0
        %v1449 = vadd.f32 %v855, %v1448
        %1450 = vmatprep.mubr.bf16.mxu0 %v747
        %1451 = vmatmul.mubr.bf16.gmra.mrb[0].mxu0 %v746
        %v1452 = vpop.f32.mrb[0].mxu0
        %v1453 = vadd.f32 %v851, %v1452
        %v1454 = vpop.f32.mrb[0].mxu0
        %v1455 = vadd.f32 %v855, %v1454
        %v1456 = vpop.f32.mrb[0].mxu0
        %v1457 = vadd.f32 %v851, %v1456
        %v1458 = vpop.f32.mrb[0].mxu0
        %v1459 = vadd.f32 %v855, %v1458
        %1460 = vmatprep.mubr.bf16.mxu0 %v749
        %1461 = vmatmul.mubr.bf16.gmra.mrb[0].mxu0 %v748
        %v1462 = vpop.f32.mrb[0].mxu0
        %v1463 = vadd.f32 %v851, %v1462
        %v1464 = vpop.f32.mrb[0].mxu0
        %v1465 = vadd.f32 %v855, %v1464
        %v1466 = vpop.f32.mrb[0].mxu0
        %v1467 = vadd.f32 %v851, %v1466
        %v1468 = vpop.f32.mrb[0].mxu0
        %v1469 = vadd.f32 %v855, %v1468
        %1470 = vdwg.mxu0
        %1471 = vmatprep.subr.bf16.mxu0 %v1169
        %1472 = vmatpush1.bf16.msra.mxu0 %v1168
        %1473 = vmatprep.subr.bf16.mxu0 %v1175
        %1474 = vmatpush1.bf16.msra.mxu0 %v1174
        %1475 = vmatprep.subr.bf16.mxu0 %v1181
        %1476 = vmatpush1.bf16.msra.mxu0 %v1180
        %1477 = vmatprep.subr.bf16.mxu0 %v1187
        %1478 = vmatpush1.bf16.msra.mxu0 %v1186
        %1479 = vmatprep.subr.bf16.mxu0 %v1193
        %1480 = vmatpush1.bf16.msra.mxu0 %v1192
        %1481 = vmatprep.subr.bf16.mxu0 %v1199
        %1482 = vmatpush1.bf16.msra.mxu0 %v1198
        %1483 = vmatprep.subr.bf16.mxu0 %v1205
        %1484 = vmatpush1.bf16.msra.mxu0 %v1204
        %1485 = vmatprep.subr.bf16.mxu0 %v1211
        %1486 = vmatpush1.bf16.msra.mxu0 %v1210
        %1487 = vmatprep.subr.bf16.mxu0 %v1217
        %1488 = vmatpush1.bf16.msra.mxu0 %v1216
        %1489 = vmatprep.subr.bf16.mxu0 %v1223
        %1490 = vmatpush1.bf16.msra.mxu0 %v1222
        %1491 = vmatprep.subr.bf16.mxu0 %v1229
        %1492 = vmatpush1.bf16.msra.mxu0 %v1228
        %1493 = vmatprep.subr.bf16.mxu0 %v1235
        %1494 = vmatpush1.bf16.msra.mxu0 %v1234
        %1495 = vmatprep.subr.bf16.mxu0 %v1241
        %1496 = vmatpush1.bf16.msra.mxu0 %v1240
        %1497 = vmatprep.subr.bf16.mxu0 %v1247
        %1498 = vmatpush1.bf16.msra.mxu0 %v1246
        %1499 = vmatprep.subr.bf16.mxu0 %v1253
        %1500 = vmatpush1.bf16.msra.mxu0 %v1252
        %1501 = vmatprep.subr.bf16.mxu0 %v1259
        %1502 = vmatpush1.bf16.msra.mxu0 %v1258
        %1503 = vmatprep.mubr.bf16.mxu0 %v735
        %1504 = vmatmul.mubr.bf16.gmra.mrb[0].mxu0 %v734
        %v1505 = vpop.f32.mrb[0].mxu0
        %v1506 = vadd.f32 %v859, %v1505
        %v1507 = vpop.f32.mrb[0].mxu0
        %v1508 = vadd.f32 %v863, %v1507
        %v1509 = vpop.f32.mrb[0].mxu0
        %v1510 = vadd.f32 %v859, %v1509
        %v1511 = vpop.f32.mrb[0].mxu0
        %v1512 = vadd.f32 %v863, %v1511
        %1513 = vmatprep.mubr.bf16.mxu0 %v737
        %1514 = vmatmul.mubr.bf16.gmra.mrb[0].mxu0 %v736
        %v1515 = vpop.f32.mrb[0].mxu0
        %v1516 = vadd.f32 %v859, %v1515
        %v1517 = vpop.f32.mrb[0].mxu0
        %v1518 = vadd.f32 %v863, %v1517
        %v1519 = vpop.f32.mrb[0].mxu0
        %v1520 = vadd.f32 %v859, %v1519
        %v1521 = vpop.f32.mrb[0].mxu0
        %v1522 = vadd.f32 %v863, %v1521
        %1523 = vmatprep.mubr.bf16.mxu0 %v739
        %1524 = vmatmul.mubr.bf16.gmra.mrb[0].mxu0 %v738
        %v1525 = vpop.f32.mrb[0].mxu0
        %v1526 = vadd.f32 %v859, %v1525
        %v1527 = vpop.f32.mrb[0].mxu0
        %v1528 = vadd.f32 %v863, %v1527
        %v1529 = vpop.f32.mrb[0].mxu0
        %v1530 = vadd.f32 %v859, %v1529
        %v1531 = vpop.f32.mrb[0].mxu0
        %v1532 = vadd.f32 %v863, %v1531
        %1533 = vmatprep.mubr.bf16.mxu0 %v741
        %1534 = vmatmul.mubr.bf16.gmra.mrb[0].mxu0 %v740
        %v1535 = vpop.f32.mrb[0].mxu0
        %v1536 = vadd.f32 %v859, %v1535
        %v1537 = vpop.f32.mrb[0].mxu0
        %v1538 = vadd.f32 %v863, %v1537
        %v1539 = vpop.f32.mrb[0].mxu0
        %v1540 = vadd.f32 %v859, %v1539
        %v1541 = vpop.f32.mrb[0].mxu0
        %v1542 = vadd.f32 %v863, %v1541
        %1543 = vmatprep.mubr.bf16.mxu0 %v743
        %1544 = vmatmul.mubr.bf16.gmra.mrb[0].mxu0 %v742
        %v1545 = vpop.f32.mrb[0].mxu0
        %v1546 = vadd.f32 %v859, %v1545
        %v1547 = vpop.f32.mrb[0].mxu0
        %v1548 = vadd.f32 %v863, %v1547
        %v1549 = vpop.f32.mrb[0].mxu0
        %v1550 = vadd.f32 %v859, %v1549
        %v1551 = vpop.f32.mrb[0].mxu0
        %v1552 = vadd.f32 %v863, %v1551
        %1553 = vmatprep.mubr.bf16.mxu0 %v745
        %1554 = vmatmul.mubr.bf16.gmra.mrb[0].mxu0 %v744
        %v1555 = vpop.f32.mrb[0].mxu0
        %v1556 = vadd.f32 %v859, %v1555
        %v1557 = vpop.f32.mrb[0].mxu0
        %v1558 = vadd.f32 %v863, %v1557
        %v1559 = vpop.f32.mrb[0].mxu0
        %v1560 = vadd.f32 %v859, %v1559
        %v1561 = vpop.f32.mrb[0].mxu0
        %v1562 = vadd.f32 %v863, %v1561
        %1563 = vmatprep.mubr.bf16.mxu0 %v747
        %1564 = vmatmul.mubr.bf16.gmra.mrb[0].mxu0 %v746
        %v1565 = vpop.f32.mrb[0].mxu0
        %v1566 = vadd.f32 %v859, %v1565
        %v1567 = vpop.f32.mrb[0].mxu0
        %v1568 = vadd.f32 %v863, %v1567
        %v1569 = vpop.f32.mrb[0].mxu0
        %v1570 = vadd.f32 %v859, %v1569
        %v1571 = vpop.f32.mrb[0].mxu0
        %v1572 = vadd.f32 %v863, %v1571
        %1573 = vmatprep.mubr.bf16.mxu0 %v749
        %1574 = vmatmul.mubr.bf16.gmra.mrb[0].mxu0 %v748
        %v1575 = vpop.f32.mrb[0].mxu0
        %v1576 = vadd.f32 %v859, %v1575
        %v1577 = vpop.f32.mrb[0].mxu0
        %v1578 = vadd.f32 %v863, %v1577
        %v1579 = vpop.f32.mrb[0].mxu0
        %v1580 = vadd.f32 %v859, %v1579
        %v1581 = vpop.f32.mrb[0].mxu0
        %v1582 = vadd.f32 %v863, %v1581
        %1583 = vdwg.mxu0
        %1584 = vmatprep.subr.bf16.mxu0 %v1171
        %1585 = vmatpush1.bf16.msra.mxu0 %v1170
        %1586 = vmatprep.subr.bf16.mxu0 %v1177
        %1587 = vmatpush1.bf16.msra.mxu0 %v1176
        %1588 = vmatprep.subr.bf16.mxu0 %v1183
        %1589 = vmatpush1.bf16.msra.mxu0 %v1182
        %1590 = vmatprep.subr.bf16.mxu0 %v1189
        %1591 = vmatpush1.bf16.msra.mxu0 %v1188
        %1592 = vmatprep.subr.bf16.mxu0 %v1195
        %1593 = vmatpush1.bf16.msra.mxu0 %v1194
        %1594 = vmatprep.subr.bf16.mxu0 %v1201
        %1595 = vmatpush1.bf16.msra.mxu0 %v1200
        %1596 = vmatprep.subr.bf16.mxu0 %v1207
        %1597 = vmatpush1.bf16.msra.mxu0 %v1206
        %1598 = vmatprep.subr.bf16.mxu0 %v1213
        %1599 = vmatpush1.bf16.msra.mxu0 %v1212
        %1600 = vmatprep.subr.bf16.mxu0 %v1219
        %1601 = vmatpush1.bf16.msra.mxu0 %v1218
        %1602 = vmatprep.subr.bf16.mxu0 %v1225
        %1603 = vmatpush1.bf16.msra.mxu0 %v1224
        %1604 = vmatprep.subr.bf16.mxu0 %v1231
        %1605 = vmatpush1.bf16.msra.mxu0 %v1230
        %1606 = vmatprep.subr.bf16.mxu0 %v1237
        %1607 = vmatpush1.bf16.msra.mxu0 %v1236
        %1608 = vmatprep.subr.bf16.mxu0 %v1243
        %1609 = vmatpush1.bf16.msra.mxu0 %v1242
        %1610 = vmatprep.subr.bf16.mxu0 %v1249
        %1611 = vmatpush1.bf16.msra.mxu0 %v1248
        %1612 = vmatprep.subr.bf16.mxu0 %v1255
        %1613 = vmatpush1.bf16.msra.mxu0 %v1254
        %1614 = vmatprep.subr.bf16.mxu0 %v1261
        %1615 = vmatpush1.bf16.msra.mxu0 %v1260
        %1616 = vmatprep.mubr.bf16.mxu0 %v735
        %1617 = vmatmul.mubr.bf16.gmra.mrb[0].mxu0 %v734
        %v1618 = vpop.f32.mrb[0].mxu0
        %v1619 = vadd.f32 %v867, %v1618
        %v1620 = vpop.f32.mrb[0].mxu0
        %v1621 = vadd.f32 %v871, %v1620
        %v1622 = vpop.f32.mrb[0].mxu0
        %v1623 = vadd.f32 %v867, %v1622
        %v1624 = vpop.f32.mrb[0].mxu0
        %v1625 = vadd.f32 %v871, %v1624
        %1626 = vmatprep.mubr.bf16.mxu0 %v737
        %1627 = vmatmul.mubr.bf16.gmra.mrb[0].mxu0 %v736
        %v1628 = vpop.f32.mrb[0].mxu0
        %v1629 = vadd.f32 %v867, %v1628
        %v1630 = vpop.f32.mrb[0].mxu0
        %v1631 = vadd.f32 %v871, %v1630
        %v1632 = vpop.f32.mrb[0].mxu0
        %v1633 = vadd.f32 %v867, %v1632
        %v1634 = vpop.f32.mrb[0].mxu0
        %v1635 = vadd.f32 %v871, %v1634
        %1636 = vmatprep.mubr.bf16.mxu0 %v739
        %1637 = vmatmul.mubr.bf16.gmra.mrb[0].mxu0 %v738
        %v1638 = vpop.f32.mrb[0].mxu0
        %v1639 = vadd.f32 %v867, %v1638
        %v1640 = vpop.f32.mrb[0].mxu0
        %v1641 = vadd.f32 %v871, %v1640
        %v1642 = vpop.f32.mrb[0].mxu0
        %v1643 = vadd.f32 %v867, %v1642
        %v1644 = vpop.f32.mrb[0].mxu0
        %v1645 = vadd.f32 %v871, %v1644
        %1646 = vmatprep.mubr.bf16.mxu0 %v741
        %1647 = vmatmul.mubr.bf16.gmra.mrb[0].mxu0 %v740
        %v1648 = vpop.f32.mrb[0].mxu0
        %v1649 = vadd.f32 %v867, %v1648
        %v1650 = vpop.f32.mrb[0].mxu0
        %v1651 = vadd.f32 %v871, %v1650
        %v1652 = vpop.f32.mrb[0].mxu0
        %v1653 = vadd.f32 %v867, %v1652
        %v1654 = vpop.f32.mrb[0].mxu0
        %v1655 = vadd.f32 %v871, %v1654
        %1656 = vmatprep.mubr.bf16.mxu0 %v743
        %1657 = vmatmul.mubr.bf16.gmra.mrb[0].mxu0 %v742
        %v1658 = vpop.f32.mrb[0].mxu0
        %v1659 = vadd.f32 %v867, %v1658
        %v1660 = vpop.f32.mrb[0].mxu0
        %v1661 = vadd.f32 %v871, %v1660
        %v1662 = vpop.f32.mrb[0].mxu0
        %v1663 = vadd.f32 %v867, %v1662
        %v1664 = vpop.f32.mrb[0].mxu0
        %v1665 = vadd.f32 %v871, %v1664
        %1666 = vmatprep.mubr.bf16.mxu0 %v745
        %1667 = vmatmul.mubr.bf16.gmra.mrb[0].mxu0 %v744
        %v1668 = vpop.f32.mrb[0].mxu0
        %v1669 = vadd.f32 %v867, %v1668
        %v1670 = vpop.f32.mrb[0].mxu0
        %v1671 = vadd.f32 %v871, %v1670
        %v1672 = vpop.f32.mrb[0].mxu0
        %v1673 = vadd.f32 %v867, %v1672
        %v1674 = vpop.f32.mrb[0].mxu0
        %v1675 = vadd.f32 %v871, %v1674
        %1676 = vmatprep.mubr.bf16.mxu0 %v747
        %1677 = vmatmul.mubr.bf16.gmra.mrb[0].mxu0 %v746
        %v1678 = vpop.f32.mrb[0].mxu0
        %v1679 = vadd.f32 %v867, %v1678
        %v1680 = vpop.f32.mrb[0].mxu0
        %v1681 = vadd.f32 %v871, %v1680
        %v1682 = vpop.f32.mrb[0].mxu0
        %v1683 = vadd.f32 %v867, %v1682
        %v1684 = vpop.f32.mrb[0].mxu0
        %v1685 = vadd.f32 %v871, %v1684
        %1686 = vmatprep.mubr.bf16.mxu0 %v749
        %1687 = vmatmul.mubr.bf16.gmra.mrb[0].mxu0 %v748
        %v1688 = vpop.f32.mrb[0].mxu0
        %v1689 = vadd.f32 %v867, %v1688
        %v1690 = vpop.f32.mrb[0].mxu0
        %v1691 = vadd.f32 %v871, %v1690
        %v1692 = vpop.f32.mrb[0].mxu0
        %v1693 = vadd.f32 %v867, %v1692
        %v1694 = vpop.f32.mrb[0].mxu0
        %v1695 = vadd.f32 %v871, %v1694
        %1696 = vdwg.mxu0
        %v1697 = vcombine.high %v1393, 0.0
        %v1699 = vunpack.c.l.s4 1983009808
        %v1700 = vunpack.c.0.s8 %v1699
        %v1701 = vlaneseq
        %v1702 = vshrl.u32 %v1701, 7
        %v1703 = vsub.s32 %v1700, %v1702
        %v1704 = vrot.slane %v1393, %v1703
        %v1706 = vunpack.c.l.s4 1983009808
        %v1707 = vunpack.c.0.s8 %v1706
        %v1708 = vlaneseq
        %v1709 = vshrl.u32 %v1708, 7
        %v1710 = vsub.s32 %v1707, %v1709
        %v1711 = vrot.slane %v1697, %v1710
        %v1712 = vcombine.high %v1395, 0.0
        %v1714 = vunpack.c.l.s4 1983009808
        %v1715 = vunpack.c.0.s8 %v1714
        %v1716 = vlaneseq
        %v1717 = vshrl.u32 %v1716, 7
        %v1718 = vsub.s32 %v1715, %v1717
        %v1719 = vrot.slane %v1395, %v1718
        %v1721 = vunpack.c.l.s4 1983009808
        %v1722 = vunpack.c.0.s8 %v1721
        %v1723 = vlaneseq
        %v1724 = vshrl.u32 %v1723, 7
        %v1725 = vsub.s32 %v1722, %v1724
        %v1726 = vrot.slane %v1712, %v1725
        %v1727 = vcombine.low %v1704, %v1719
        %v1728 = vcombine.high %v1704, %v1719
        %v1730 = vunpack.c.l.s4 1934713408
        %v1731 = vunpack.c.0.s8 %v1730
        %v1732 = vlaneseq
        %v1733 = vshrl.u32 %v1732, 7
        %v1734 = vsub.s32 %v1731, %v1733
        %v1735 = vrot.slane %v1727, %v1734
        %v1737 = vunpack.c.l.s4 1934713408
        %v1738 = vunpack.c.0.s8 %v1737
        %v1739 = vlaneseq
        %v1740 = vshrl.u32 %v1739, 7
        %v1741 = vsub.s32 %v1738, %v1740
        %v1742 = vrot.slane %v1728, %v1741
        %v1743 = vcombine.low %v1711, %v1726
        %v1744 = vcombine.high %v1711, %v1726
        %v1746 = vunpack.c.l.s4 1934713408
        %v1747 = vunpack.c.0.s8 %v1746
        %v1748 = vlaneseq
        %v1749 = vshrl.u32 %v1748, 7
        %v1750 = vsub.s32 %v1747, %v1749
        %v1751 = vrot.slane %v1743, %v1750
        %v1753 = vunpack.c.l.s4 1934713408
        %v1754 = vunpack.c.0.s8 %v1753
        %v1755 = vlaneseq
        %v1756 = vshrl.u32 %v1755, 7
        %v1757 = vsub.s32 %v1754, %v1756
        %v1758 = vrot.slane %v1744, %v1757
        %v1759 = vcombine.high %v1735, 0.0
        %v1760 = vcombine.high %v1742, 0.0
        %v1761 = vcombine.high %v1751, 0.0
        %v1762 = vcombine.high %v1758, 0.0
        %v1763 = vcombine.high %v1397, 0.0
        %v1765 = vunpack.c.l.s4 1983009808
        %v1766 = vunpack.c.0.s8 %v1765
        %v1767 = vlaneseq
        %v1768 = vshrl.u32 %v1767, 7
        %v1769 = vsub.s32 %v1766, %v1768
        %v1770 = vrot.slane %v1397, %v1769
        %v1772 = vunpack.c.l.s4 1983009808
        %v1773 = vunpack.c.0.s8 %v1772
        %v1774 = vlaneseq
        %v1775 = vshrl.u32 %v1774, 7
        %v1776 = vsub.s32 %v1773, %v1775
        %v1777 = vrot.slane %v1763, %v1776
        %v1778 = vcombine.high %v1399, 0.0
        %v1780 = vunpack.c.l.s4 1983009808
        %v1781 = vunpack.c.0.s8 %v1780
        %v1782 = vlaneseq
        %v1783 = vshrl.u32 %v1782, 7
        %v1784 = vsub.s32 %v1781, %v1783
        %v1785 = vrot.slane %v1399, %v1784
        %v1787 = vunpack.c.l.s4 1983009808
        %v1788 = vunpack.c.0.s8 %v1787
        %v1789 = vlaneseq
        %v1790 = vshrl.u32 %v1789, 7
        %v1791 = vsub.s32 %v1788, %v1790
        %v1792 = vrot.slane %v1778, %v1791
        %v1793 = vcombine.low %v1770, %v1785
        %v1794 = vcombine.high %v1770, %v1785
        %v1796 = vunpack.c.l.s4 1934713408
        %v1797 = vunpack.c.0.s8 %v1796
        %v1798 = vlaneseq
        %v1799 = vshrl.u32 %v1798, 7
        %v1800 = vsub.s32 %v1797, %v1799
        %v1801 = vrot.slane %v1793, %v1800
        %v1803 = vunpack.c.l.s4 1934713408
        %v1804 = vunpack.c.0.s8 %v1803
        %v1805 = vlaneseq
        %v1806 = vshrl.u32 %v1805, 7
        %v1807 = vsub.s32 %v1804, %v1806
        %v1808 = vrot.slane %v1794, %v1807
        %v1809 = vcombine.low %v1777, %v1792
        %v1810 = vcombine.high %v1777, %v1792
        %v1812 = vunpack.c.l.s4 1934713408
        %v1813 = vunpack.c.0.s8 %v1812
        %v1814 = vlaneseq
        %v1815 = vshrl.u32 %v1814, 7
        %v1816 = vsub.s32 %v1813, %v1815
        %v1817 = vrot.slane %v1809, %v1816
        %v1819 = vunpack.c.l.s4 1934713408
        %v1820 = vunpack.c.0.s8 %v1819
        %v1821 = vlaneseq
        %v1822 = vshrl.u32 %v1821, 7
        %v1823 = vsub.s32 %v1820, %v1822
        %v1824 = vrot.slane %v1810, %v1823
        %v1825 = vcombine.high %v1801, 0.0
        %v1826 = vcombine.high %v1808, 0.0
        %v1827 = vcombine.high %v1817, 0.0
        %v1828 = vcombine.high %v1824, 0.0
        %v1829 = vcombine.high %v1403, 0.0
        %v1831 = vunpack.c.l.s4 1983009808
        %v1832 = vunpack.c.0.s8 %v1831
        %v1833 = vlaneseq
        %v1834 = vshrl.u32 %v1833, 7
        %v1835 = vsub.s32 %v1832, %v1834
        %v1836 = vrot.slane %v1403, %v1835
        %v1838 = vunpack.c.l.s4 1983009808
        %v1839 = vunpack.c.0.s8 %v1838
        %v1840 = vlaneseq
        %v1841 = vshrl.u32 %v1840, 7
        %v1842 = vsub.s32 %v1839, %v1841
        %v1843 = vrot.slane %v1829, %v1842
        %v1844 = vcombine.high %v1405, 0.0
        %v1846 = vunpack.c.l.s4 1983009808
        %v1847 = vunpack.c.0.s8 %v1846
        %v1848 = vlaneseq
        %v1849 = vshrl.u32 %v1848, 7
        %v1850 = vsub.s32 %v1847, %v1849
        %v1851 = vrot.slane %v1405, %v1850
        %v1853 = vunpack.c.l.s4 1983009808
        %v1854 = vunpack.c.0.s8 %v1853
        %v1855 = vlaneseq
        %v1856 = vshrl.u32 %v1855, 7
        %v1857 = vsub.s32 %v1854, %v1856
        %v1858 = vrot.slane %v1844, %v1857
        %v1859 = vcombine.low %v1836, %v1851
        %v1860 = vcombine.high %v1836, %v1851
        %v1862 = vunpack.c.l.s4 1934713408
        %v1863 = vunpack.c.0.s8 %v1862
        %v1864 = vlaneseq
        %v1865 = vshrl.u32 %v1864, 7
        %v1866 = vsub.s32 %v1863, %v1865
        %v1867 = vrot.slane %v1859, %v1866
        %v1869 = vunpack.c.l.s4 1934713408
        %v1870 = vunpack.c.0.s8 %v1869
        %v1871 = vlaneseq
        %v1872 = vshrl.u32 %v1871, 7
        %v1873 = vsub.s32 %v1870, %v1872
        %v1874 = vrot.slane %v1860, %v1873
        %v1875 = vcombine.low %v1843, %v1858
        %v1876 = vcombine.high %v1843, %v1858
        %v1878 = vunpack.c.l.s4 1934713408
        %v1879 = vunpack.c.0.s8 %v1878
        %v1880 = vlaneseq
        %v1881 = vshrl.u32 %v1880, 7
        %v1882 = vsub.s32 %v1879, %v1881
        %v1883 = vrot.slane %v1875, %v1882
        %v1885 = vunpack.c.l.s4 1934713408
        %v1886 = vunpack.c.0.s8 %v1885
        %v1887 = vlaneseq
        %v1888 = vshrl.u32 %v1887, 7
        %v1889 = vsub.s32 %v1886, %v1888
        %v1890 = vrot.slane %v1876, %v1889
        %v1891 = vcombine.high %v1867, 0.0
        %v1892 = vcombine.high %v1874, 0.0
        %v1893 = vcombine.high %v1883, 0.0
        %v1894 = vcombine.high %v1890, 0.0
        %v1895 = vcombine.high %v1407, 0.0
        %v1897 = vunpack.c.l.s4 1983009808
        %v1898 = vunpack.c.0.s8 %v1897
        %v1899 = vlaneseq
        %v1900 = vshrl.u32 %v1899, 7
        %v1901 = vsub.s32 %v1898, %v1900
        %v1902 = vrot.slane %v1407, %v1901
        %v1904 = vunpack.c.l.s4 1983009808
        %v1905 = vunpack.c.0.s8 %v1904
        %v1906 = vlaneseq
        %v1907 = vshrl.u32 %v1906, 7
        %v1908 = vsub.s32 %v1905, %v1907
        %v1909 = vrot.slane %v1895, %v1908
        %v1910 = vcombine.high %v1409, 0.0
        %v1912 = vunpack.c.l.s4 1983009808
        %v1913 = vunpack.c.0.s8 %v1912
        %v1914 = vlaneseq
        %v1915 = vshrl.u32 %v1914, 7
        %v1916 = vsub.s32 %v1913, %v1915
        %v1917 = vrot.slane %v1409, %v1916
        %v1919 = vunpack.c.l.s4 1983009808
        %v1920 = vunpack.c.0.s8 %v1919
        %v1921 = vlaneseq
        %v1922 = vshrl.u32 %v1921, 7
        %v1923 = vsub.s32 %v1920, %v1922
        %v1924 = vrot.slane %v1910, %v1923
        %v1925 = vcombine.low %v1902, %v1917
        %v1926 = vcombine.high %v1902, %v1917
        %v1928 = vunpack.c.l.s4 1934713408
        %v1929 = vunpack.c.0.s8 %v1928
        %v1930 = vlaneseq
        %v1931 = vshrl.u32 %v1930, 7
        %v1932 = vsub.s32 %v1929, %v1931
        %v1933 = vrot.slane %v1925, %v1932
        %v1935 = vunpack.c.l.s4 1934713408
        %v1936 = vunpack.c.0.s8 %v1935
        %v1937 = vlaneseq
        %v1938 = vshrl.u32 %v1937, 7
        %v1939 = vsub.s32 %v1936, %v1938
        %v1940 = vrot.slane %v1926, %v1939
        %v1941 = vcombine.low %v1909, %v1924
        %v1942 = vcombine.high %v1909, %v1924
        %v1944 = vunpack.c.l.s4 1934713408
        %v1945 = vunpack.c.0.s8 %v1944
        %v1946 = vlaneseq
        %v1947 = vshrl.u32 %v1946, 7
        %v1948 = vsub.s32 %v1945, %v1947
        %v1949 = vrot.slane %v1941, %v1948
        %v1951 = vunpack.c.l.s4 1934713408
        %v1952 = vunpack.c.0.s8 %v1951
        %v1953 = vlaneseq
        %v1954 = vshrl.u32 %v1953, 7
        %v1955 = vsub.s32 %v1952, %v1954
        %v1956 = vrot.slane %v1942, %v1955
        %v1957 = vcombine.high %v1933, 0.0
        %v1958 = vcombine.high %v1940, 0.0
        %v1959 = vcombine.high %v1949, 0.0
        %v1960 = vcombine.high %v1956, 0.0
        %v1961 = vcombine.high %v1413, 0.0
        %v1963 = vunpack.c.l.s4 1983009808
        %v1964 = vunpack.c.0.s8 %v1963
        %v1965 = vlaneseq
        %v1966 = vshrl.u32 %v1965, 7
        %v1967 = vsub.s32 %v1964, %v1966
        %v1968 = vrot.slane %v1413, %v1967
        %v1970 = vunpack.c.l.s4 1983009808
        %v1971 = vunpack.c.0.s8 %v1970
        %v1972 = vlaneseq
        %v1973 = vshrl.u32 %v1972, 7
        %v1974 = vsub.s32 %v1971, %v1973
        %v1975 = vrot.slane %v1961, %v1974
        %v1976 = vcombine.high %v1415, 0.0
        %v1978 = vunpack.c.l.s4 1983009808
        %v1979 = vunpack.c.0.s8 %v1978
        %v1980 = vlaneseq
        %v1981 = vshrl.u32 %v1980, 7
        %v1982 = vsub.s32 %v1979, %v1981
        %v1983 = vrot.slane %v1415, %v1982
        %v1985 = vunpack.c.l.s4 1983009808
        %v1986 = vunpack.c.0.s8 %v1985
        %v1987 = vlaneseq
        %v1988 = vshrl.u32 %v1987, 7
        %v1989 = vsub.s32 %v1986, %v1988
        %v1990 = vrot.slane %v1976, %v1989
        %v1991 = vcombine.low %v1968, %v1983
        %v1992 = vcombine.high %v1968, %v1983
        %v1994 = vunpack.c.l.s4 1934713408
        %v1995 = vunpack.c.0.s8 %v1994
        %v1996 = vlaneseq
        %v1997 = vshrl.u32 %v1996, 7
        %v1998 = vsub.s32 %v1995, %v1997
        %v1999 = vrot.slane %v1991, %v1998
        %v2001 = vunpack.c.l.s4 1934713408
        %v2002 = vunpack.c.0.s8 %v2001
        %v2003 = vlaneseq
        %v2004 = vshrl.u32 %v2003, 7
        %v2005 = vsub.s32 %v2002, %v2004
        %v2006 = vrot.slane %v1992, %v2005
        %v2007 = vcombine.low %v1975, %v1990
        %v2008 = vcombine.high %v1975, %v1990
        %v2010 = vunpack.c.l.s4 1934713408
        %v2011 = vunpack.c.0.s8 %v2010
        %v2012 = vlaneseq
        %v2013 = vshrl.u32 %v2012, 7
        %v2014 = vsub.s32 %v2011, %v2013
        %v2015 = vrot.slane %v2007, %v2014
        %v2017 = vunpack.c.l.s4 1934713408
        %v2018 = vunpack.c.0.s8 %v2017
        %v2019 = vlaneseq
        %v2020 = vshrl.u32 %v2019, 7
        %v2021 = vsub.s32 %v2018, %v2020
        %v2022 = vrot.slane %v2008, %v2021
        %v2023 = vcombine.high %v1999, 0.0
        %v2024 = vcombine.high %v2006, 0.0
        %v2025 = vcombine.high %v2015, 0.0
        %v2026 = vcombine.high %v2022, 0.0
        %v2027 = vcombine.high %v1417, 0.0
        %v2029 = vunpack.c.l.s4 1983009808
        %v2030 = vunpack.c.0.s8 %v2029
        %v2031 = vlaneseq
        %v2032 = vshrl.u32 %v2031, 7
        %v2033 = vsub.s32 %v2030, %v2032
        %v2034 = vrot.slane %v1417, %v2033
        %v2036 = vunpack.c.l.s4 1983009808
        %v2037 = vunpack.c.0.s8 %v2036
        %v2038 = vlaneseq
        %v2039 = vshrl.u32 %v2038, 7
        %v2040 = vsub.s32 %v2037, %v2039
        %v2041 = vrot.slane %v2027, %v2040
        %v2042 = vcombine.high %v1419, 0.0
        %v2044 = vunpack.c.l.s4 1983009808
        %v2045 = vunpack.c.0.s8 %v2044
        %v2046 = vlaneseq
        %v2047 = vshrl.u32 %v2046, 7
        %v2048 = vsub.s32 %v2045, %v2047
        %v2049 = vrot.slane %v1419, %v2048
        %v2051 = vunpack.c.l.s4 1983009808
        %v2052 = vunpack.c.0.s8 %v2051
        %v2053 = vlaneseq
        %v2054 = vshrl.u32 %v2053, 7
        %v2055 = vsub.s32 %v2052, %v2054
        %v2056 = vrot.slane %v2042, %v2055
        %v2057 = vcombine.low %v2034, %v2049
        %v2058 = vcombine.high %v2034, %v2049
        %v2060 = vunpack.c.l.s4 1934713408
        %v2061 = vunpack.c.0.s8 %v2060
        %v2062 = vlaneseq
        %v2063 = vshrl.u32 %v2062, 7
        %v2064 = vsub.s32 %v2061, %v2063
        %v2065 = vrot.slane %v2057, %v2064
        %v2067 = vunpack.c.l.s4 1934713408
        %v2068 = vunpack.c.0.s8 %v2067
        %v2069 = vlaneseq
        %v2070 = vshrl.u32 %v2069, 7
        %v2071 = vsub.s32 %v2068, %v2070
        %v2072 = vrot.slane %v2058, %v2071
        %v2073 = vcombine.low %v2041, %v2056
        %v2074 = vcombine.high %v2041, %v2056
        %v2076 = vunpack.c.l.s4 1934713408
        %v2077 = vunpack.c.0.s8 %v2076
        %v2078 = vlaneseq
        %v2079 = vshrl.u32 %v2078, 7
        %v2080 = vsub.s32 %v2077, %v2079
        %v2081 = vrot.slane %v2073, %v2080
        %v2083 = vunpack.c.l.s4 1934713408
        %v2084 = vunpack.c.0.s8 %v2083
        %v2085 = vlaneseq
        %v2086 = vshrl.u32 %v2085, 7
        %v2087 = vsub.s32 %v2084, %v2086
        %v2088 = vrot.slane %v2074, %v2087
        %v2089 = vcombine.high %v2065, 0.0
        %v2090 = vcombine.high %v2072, 0.0
        %v2091 = vcombine.high %v2081, 0.0
        %v2092 = vcombine.high %v2088, 0.0
        %v2093 = vcombine.high %v1423, 0.0
        %v2095 = vunpack.c.l.s4 1983009808
        %v2096 = vunpack.c.0.s8 %v2095
        %v2097 = vlaneseq
        %v2098 = vshrl.u32 %v2097, 7
        %v2099 = vsub.s32 %v2096, %v2098
        %v2100 = vrot.slane %v1423, %v2099
        %v2102 = vunpack.c.l.s4 1983009808
        %v2103 = vunpack.c.0.s8 %v2102
        %v2104 = vlaneseq
        %v2105 = vshrl.u32 %v2104, 7
        %v2106 = vsub.s32 %v2103, %v2105
        %v2107 = vrot.slane %v2093, %v2106
        %v2108 = vcombine.high %v1425, 0.0
        %v2110 = vunpack.c.l.s4 1983009808
        %v2111 = vunpack.c.0.s8 %v2110
        %v2112 = vlaneseq
        %v2113 = vshrl.u32 %v2112, 7
        %v2114 = vsub.s32 %v2111, %v2113
        %v2115 = vrot.slane %v1425, %v2114
        %v2117 = vunpack.c.l.s4 1983009808
        %v2118 = vunpack.c.0.s8 %v2117
        %v2119 = vlaneseq
        %v2120 = vshrl.u32 %v2119, 7
        %v2121 = vsub.s32 %v2118, %v2120
        %v2122 = vrot.slane %v2108, %v2121
        %v2123 = vcombine.low %v2100, %v2115
        %v2124 = vcombine.high %v2100, %v2115
        %v2126 = vunpack.c.l.s4 1934713408
        %v2127 = vunpack.c.0.s8 %v2126
        %v2128 = vlaneseq
        %v2129 = vshrl.u32 %v2128, 7
        %v2130 = vsub.s32 %v2127, %v2129
        %v2131 = vrot.slane %v2123, %v2130
        %v2133 = vunpack.c.l.s4 1934713408
        %v2134 = vunpack.c.0.s8 %v2133
        %v2135 = vlaneseq
        %v2136 = vshrl.u32 %v2135, 7
        %v2137 = vsub.s32 %v2134, %v2136
        %v2138 = vrot.slane %v2124, %v2137
        %v2139 = vcombine.low %v2107, %v2122
        %v2140 = vcombine.high %v2107, %v2122
        %v2142 = vunpack.c.l.s4 1934713408
        %v2143 = vunpack.c.0.s8 %v2142
        %v2144 = vlaneseq
        %v2145 = vshrl.u32 %v2144, 7
        %v2146 = vsub.s32 %v2143, %v2145
        %v2147 = vrot.slane %v2139, %v2146
        %v2149 = vunpack.c.l.s4 1934713408
        %v2150 = vunpack.c.0.s8 %v2149
        %v2151 = vlaneseq
        %v2152 = vshrl.u32 %v2151, 7
        %v2153 = vsub.s32 %v2150, %v2152
        %v2154 = vrot.slane %v2140, %v2153
        %v2155 = vcombine.high %v2131, 0.0
        %v2156 = vcombine.high %v2138, 0.0
        %v2157 = vcombine.high %v2147, 0.0
        %v2158 = vcombine.high %v2154, 0.0
        %v2159 = vcombine.high %v1427, 0.0
        %v2161 = vunpack.c.l.s4 1983009808
        %v2162 = vunpack.c.0.s8 %v2161
        %v2163 = vlaneseq
        %v2164 = vshrl.u32 %v2163, 7
        %v2165 = vsub.s32 %v2162, %v2164
        %v2166 = vrot.slane %v1427, %v2165
        %v2168 = vunpack.c.l.s4 1983009808
        %v2169 = vunpack.c.0.s8 %v2168
        %v2170 = vlaneseq
        %v2171 = vshrl.u32 %v2170, 7
        %v2172 = vsub.s32 %v2169, %v2171
        %v2173 = vrot.slane %v2159, %v2172
        %v2174 = vcombine.high %v1429, 0.0
        %v2176 = vunpack.c.l.s4 1983009808
        %v2177 = vunpack.c.0.s8 %v2176
        %v2178 = vlaneseq
        %v2179 = vshrl.u32 %v2178, 7
        %v2180 = vsub.s32 %v2177, %v2179
        %v2181 = vrot.slane %v1429, %v2180
        %v2183 = vunpack.c.l.s4 1983009808
        %v2184 = vunpack.c.0.s8 %v2183
        %v2185 = vlaneseq
        %v2186 = vshrl.u32 %v2185, 7
        %v2187 = vsub.s32 %v2184, %v2186
        %v2188 = vrot.slane %v2174, %v2187
        %v2189 = vcombine.low %v2166, %v2181
        %v2190 = vcombine.high %v2166, %v2181
        %v2192 = vunpack.c.l.s4 1934713408
        %v2193 = vunpack.c.0.s8 %v2192
        %v2194 = vlaneseq
        %v2195 = vshrl.u32 %v2194, 7
        %v2196 = vsub.s32 %v2193, %v2195
        %v2197 = vrot.slane %v2189, %v2196
        %v2199 = vunpack.c.l.s4 1934713408
        %v2200 = vunpack.c.0.s8 %v2199
        %v2201 = vlaneseq
        %v2202 = vshrl.u32 %v2201, 7
        %v2203 = vsub.s32 %v2200, %v2202
        %v2204 = vrot.slane %v2190, %v2203
        %v2205 = vcombine.low %v2173, %v2188
        %v2206 = vcombine.high %v2173, %v2188
        %v2208 = vunpack.c.l.s4 1934713408
        %v2209 = vunpack.c.0.s8 %v2208
        %v2210 = vlaneseq
        %v2211 = vshrl.u32 %v2210, 7
        %v2212 = vsub.s32 %v2209, %v2211
        %v2213 = vrot.slane %v2205, %v2212
        %v2215 = vunpack.c.l.s4 1934713408
        %v2216 = vunpack.c.0.s8 %v2215
        %v2217 = vlaneseq
        %v2218 = vshrl.u32 %v2217, 7
        %v2219 = vsub.s32 %v2216, %v2218
        %v2220 = vrot.slane %v2206, %v2219
        %v2221 = vcombine.high %v2197, 0.0
        %v2222 = vcombine.high %v2204, 0.0
        %v2223 = vcombine.high %v2213, 0.0
        %v2224 = vcombine.high %v2220, 0.0
        %v2225 = vcombine.high %v1433, 0.0
        %v2227 = vunpack.c.l.s4 1983009808
        %v2228 = vunpack.c.0.s8 %v2227
        %v2229 = vlaneseq
        %v2230 = vshrl.u32 %v2229, 7
        %v2231 = vsub.s32 %v2228, %v2230
        %v2232 = vrot.slane %v1433, %v2231
        %v2234 = vunpack.c.l.s4 1983009808
        %v2235 = vunpack.c.0.s8 %v2234
        %v2236 = vlaneseq
        %v2237 = vshrl.u32 %v2236, 7
        %v2238 = vsub.s32 %v2235, %v2237
        %v2239 = vrot.slane %v2225, %v2238
        %v2240 = vcombine.high %v1435, 0.0
        %v2242 = vunpack.c.l.s4 1983009808
        %v2243 = vunpack.c.0.s8 %v2242
        %v2244 = vlaneseq
        %v2245 = vshrl.u32 %v2244, 7
        %v2246 = vsub.s32 %v2243, %v2245
        %v2247 = vrot.slane %v1435, %v2246
        %v2249 = vunpack.c.l.s4 1983009808
        %v2250 = vunpack.c.0.s8 %v2249
        %v2251 = vlaneseq
        %v2252 = vshrl.u32 %v2251, 7
        %v2253 = vsub.s32 %v2250, %v2252
        %v2254 = vrot.slane %v2240, %v2253
        %v2255 = vcombine.low %v2232, %v2247
        %v2256 = vcombine.high %v2232, %v2247
        %v2258 = vunpack.c.l.s4 1934713408
        %v2259 = vunpack.c.0.s8 %v2258
        %v2260 = vlaneseq
        %v2261 = vshrl.u32 %v2260, 7
        %v2262 = vsub.s32 %v2259, %v2261
        %v2263 = vrot.slane %v2255, %v2262
        %v2265 = vunpack.c.l.s4 1934713408
        %v2266 = vunpack.c.0.s8 %v2265
        %v2267 = vlaneseq
        %v2268 = vshrl.u32 %v2267, 7
        %v2269 = vsub.s32 %v2266, %v2268
        %v2270 = vrot.slane %v2256, %v2269
        %v2271 = vcombine.low %v2239, %v2254
        %v2272 = vcombine.high %v2239, %v2254
        %v2274 = vunpack.c.l.s4 1934713408
        %v2275 = vunpack.c.0.s8 %v2274
        %v2276 = vlaneseq
        %v2277 = vshrl.u32 %v2276, 7
        %v2278 = vsub.s32 %v2275, %v2277
        %v2279 = vrot.slane %v2271, %v2278
        %v2281 = vunpack.c.l.s4 1934713408
        %v2282 = vunpack.c.0.s8 %v2281
        %v2283 = vlaneseq
        %v2284 = vshrl.u32 %v2283, 7
        %v2285 = vsub.s32 %v2282, %v2284
        %v2286 = vrot.slane %v2272, %v2285
        %v2287 = vcombine.high %v2263, 0.0
        %v2288 = vcombine.high %v2270, 0.0
        %v2289 = vcombine.high %v2279, 0.0
        %v2290 = vcombine.high %v2286, 0.0
        %v2291 = vcombine.high %v1437, 0.0
        %v2293 = vunpack.c.l.s4 1983009808
        %v2294 = vunpack.c.0.s8 %v2293
        %v2295 = vlaneseq
        %v2296 = vshrl.u32 %v2295, 7
        %v2297 = vsub.s32 %v2294, %v2296
        %v2298 = vrot.slane %v1437, %v2297
        %v2300 = vunpack.c.l.s4 1983009808
        %v2301 = vunpack.c.0.s8 %v2300
        %v2302 = vlaneseq
        %v2303 = vshrl.u32 %v2302, 7
        %v2304 = vsub.s32 %v2301, %v2303
        %v2305 = vrot.slane %v2291, %v2304
        %v2306 = vcombine.high %v1439, 0.0
        %v2308 = vunpack.c.l.s4 1983009808
        %v2309 = vunpack.c.0.s8 %v2308
        %v2310 = vlaneseq
        %v2311 = vshrl.u32 %v2310, 7
        %v2312 = vsub.s32 %v2309, %v2311
        %v2313 = vrot.slane %v1439, %v2312
        %v2315 = vunpack.c.l.s4 1983009808
        %v2316 = vunpack.c.0.s8 %v2315
        %v2317 = vlaneseq
        %v2318 = vshrl.u32 %v2317, 7
        %v2319 = vsub.s32 %v2316, %v2318
        %v2320 = vrot.slane %v2306, %v2319
        %v2321 = vcombine.low %v2298, %v2313
        %v2322 = vcombine.high %v2298, %v2313
        %v2324 = vunpack.c.l.s4 1934713408
        %v2325 = vunpack.c.0.s8 %v2324
        %v2326 = vlaneseq
        %v2327 = vshrl.u32 %v2326, 7
        %v2328 = vsub.s32 %v2325, %v2327
        %v2329 = vrot.slane %v2321, %v2328
        %v2331 = vunpack.c.l.s4 1934713408
        %v2332 = vunpack.c.0.s8 %v2331
        %v2333 = vlaneseq
        %v2334 = vshrl.u32 %v2333, 7
        %v2335 = vsub.s32 %v2332, %v2334
        %v2336 = vrot.slane %v2322, %v2335
        %v2337 = vcombine.low %v2305, %v2320
        %v2338 = vcombine.high %v2305, %v2320
        %v2340 = vunpack.c.l.s4 1934713408
        %v2341 = vunpack.c.0.s8 %v2340
        %v2342 = vlaneseq
        %v2343 = vshrl.u32 %v2342, 7
        %v2344 = vsub.s32 %v2341, %v2343
        %v2345 = vrot.slane %v2337, %v2344
        %v2347 = vunpack.c.l.s4 1934713408
        %v2348 = vunpack.c.0.s8 %v2347
        %v2349 = vlaneseq
        %v2350 = vshrl.u32 %v2349, 7
        %v2351 = vsub.s32 %v2348, %v2350
        %v2352 = vrot.slane %v2338, %v2351
        %v2353 = vcombine.high %v2329, 0.0
        %v2354 = vcombine.high %v2336, 0.0
        %v2355 = vcombine.high %v2345, 0.0
        %v2356 = vcombine.high %v2352, 0.0
        %v2357 = vcombine.high %v1443, 0.0
        %v2359 = vunpack.c.l.s4 1983009808
        %v2360 = vunpack.c.0.s8 %v2359
        %v2361 = vlaneseq
        %v2362 = vshrl.u32 %v2361, 7
        %v2363 = vsub.s32 %v2360, %v2362
        %v2364 = vrot.slane %v1443, %v2363
        %v2366 = vunpack.c.l.s4 1983009808
        %v2367 = vunpack.c.0.s8 %v2366
        %v2368 = vlaneseq
        %v2369 = vshrl.u32 %v2368, 7
        %v2370 = vsub.s32 %v2367, %v2369
        %v2371 = vrot.slane %v2357, %v2370
        %v2372 = vcombine.high %v1445, 0.0
        %v2374 = vunpack.c.l.s4 1983009808
        %v2375 = vunpack.c.0.s8 %v2374
        %v2376 = vlaneseq
        %v2377 = vshrl.u32 %v2376, 7
        %v2378 = vsub.s32 %v2375, %v2377
        %v2379 = vrot.slane %v1445, %v2378
        %v2381 = vunpack.c.l.s4 1983009808
        %v2382 = vunpack.c.0.s8 %v2381
        %v2383 = vlaneseq
        %v2384 = vshrl.u32 %v2383, 7
        %v2385 = vsub.s32 %v2382, %v2384
        %v2386 = vrot.slane %v2372, %v2385
        %v2387 = vcombine.low %v2364, %v2379
        %v2388 = vcombine.high %v2364, %v2379
        %v2390 = vunpack.c.l.s4 1934713408
        %v2391 = vunpack.c.0.s8 %v2390
        %v2392 = vlaneseq
        %v2393 = vshrl.u32 %v2392, 7
        %v2394 = vsub.s32 %v2391, %v2393
        %v2395 = vrot.slane %v2387, %v2394
        %v2397 = vunpack.c.l.s4 1934713408
        %v2398 = vunpack.c.0.s8 %v2397
        %v2399 = vlaneseq
        %v2400 = vshrl.u32 %v2399, 7
        %v2401 = vsub.s32 %v2398, %v2400
        %v2402 = vrot.slane %v2388, %v2401
        %v2403 = vcombine.low %v2371, %v2386
        %v2404 = vcombine.high %v2371, %v2386
        %v2406 = vunpack.c.l.s4 1934713408
        %v2407 = vunpack.c.0.s8 %v2406
        %v2408 = vlaneseq
        %v2409 = vshrl.u32 %v2408, 7
        %v2410 = vsub.s32 %v2407, %v2409
        %v2411 = vrot.slane %v2403, %v2410
        %v2413 = vunpack.c.l.s4 1934713408
        %v2414 = vunpack.c.0.s8 %v2413
        %v2415 = vlaneseq
        %v2416 = vshrl.u32 %v2415, 7
        %v2417 = vsub.s32 %v2414, %v2416
        %v2418 = vrot.slane %v2404, %v2417
        %v2419 = vcombine.high %v2395, 0.0
        %v2420 = vcombine.high %v2402, 0.0
        %v2421 = vcombine.high %v2411, 0.0
        %v2422 = vcombine.high %v2418, 0.0
        %v2423 = vcombine.high %v1447, 0.0
        %v2425 = vunpack.c.l.s4 1983009808
        %v2426 = vunpack.c.0.s8 %v2425
        %v2427 = vlaneseq
        %v2428 = vshrl.u32 %v2427, 7
        %v2429 = vsub.s32 %v2426, %v2428
        %v2430 = vrot.slane %v1447, %v2429
        %v2432 = vunpack.c.l.s4 1983009808
        %v2433 = vunpack.c.0.s8 %v2432
        %v2434 = vlaneseq
        %v2435 = vshrl.u32 %v2434, 7
        %v2436 = vsub.s32 %v2433, %v2435
        %v2437 = vrot.slane %v2423, %v2436
        %v2438 = vcombine.high %v1449, 0.0
        %v2440 = vunpack.c.l.s4 1983009808
        %v2441 = vunpack.c.0.s8 %v2440
        %v2442 = vlaneseq
        %v2443 = vshrl.u32 %v2442, 7
        %v2444 = vsub.s32 %v2441, %v2443
        %v2445 = vrot.slane %v1449, %v2444
        %v2447 = vunpack.c.l.s4 1983009808
        %v2448 = vunpack.c.0.s8 %v2447
        %v2449 = vlaneseq
        %v2450 = vshrl.u32 %v2449, 7
        %v2451 = vsub.s32 %v2448, %v2450
        %v2452 = vrot.slane %v2438, %v2451
        %v2453 = vcombine.low %v2430, %v2445
        %v2454 = vcombine.high %v2430, %v2445
        %v2456 = vunpack.c.l.s4 1934713408
        %v2457 = vunpack.c.0.s8 %v2456
        %v2458 = vlaneseq
        %v2459 = vshrl.u32 %v2458, 7
        %v2460 = vsub.s32 %v2457, %v2459
        %v2461 = vrot.slane %v2453, %v2460
        %v2463 = vunpack.c.l.s4 1934713408
        %v2464 = vunpack.c.0.s8 %v2463
        %v2465 = vlaneseq
        %v2466 = vshrl.u32 %v2465, 7
        %v2467 = vsub.s32 %v2464, %v2466
        %v2468 = vrot.slane %v2454, %v2467
        %v2469 = vcombine.low %v2437, %v2452
        %v2470 = vcombine.high %v2437, %v2452
        %v2472 = vunpack.c.l.s4 1934713408
        %v2473 = vunpack.c.0.s8 %v2472
        %v2474 = vlaneseq
        %v2475 = vshrl.u32 %v2474, 7
        %v2476 = vsub.s32 %v2473, %v2475
        %v2477 = vrot.slane %v2469, %v2476
        %v2479 = vunpack.c.l.s4 1934713408
        %v2480 = vunpack.c.0.s8 %v2479
        %v2481 = vlaneseq
        %v2482 = vshrl.u32 %v2481, 7
        %v2483 = vsub.s32 %v2480, %v2482
        %v2484 = vrot.slane %v2470, %v2483
        %v2485 = vcombine.high %v2461, 0.0
        %v2486 = vcombine.high %v2468, 0.0
        %v2487 = vcombine.high %v2477, 0.0
        %v2488 = vcombine.high %v2484, 0.0
        %v2489 = vcombine.high %v1453, 0.0
        %v2491 = vunpack.c.l.s4 1983009808
        %v2492 = vunpack.c.0.s8 %v2491
        %v2493 = vlaneseq
        %v2494 = vshrl.u32 %v2493, 7
        %v2495 = vsub.s32 %v2492, %v2494
        %v2496 = vrot.slane %v1453, %v2495
        %v2498 = vunpack.c.l.s4 1983009808
        %v2499 = vunpack.c.0.s8 %v2498
        %v2500 = vlaneseq
        %v2501 = vshrl.u32 %v2500, 7
        %v2502 = vsub.s32 %v2499, %v2501
        %v2503 = vrot.slane %v2489, %v2502
        %v2504 = vcombine.high %v1455, 0.0
        %v2506 = vunpack.c.l.s4 1983009808
        %v2507 = vunpack.c.0.s8 %v2506
        %v2508 = vlaneseq
        %v2509 = vshrl.u32 %v2508, 7
        %v2510 = vsub.s32 %v2507, %v2509
        %v2511 = vrot.slane %v1455, %v2510
        %v2513 = vunpack.c.l.s4 1983009808
        %v2514 = vunpack.c.0.s8 %v2513
        %v2515 = vlaneseq
        %v2516 = vshrl.u32 %v2515, 7
        %v2517 = vsub.s32 %v2514, %v2516
        %v2518 = vrot.slane %v2504, %v2517
        %v2519 = vcombine.low %v2496, %v2511
        %v2520 = vcombine.high %v2496, %v2511
        %v2522 = vunpack.c.l.s4 1934713408
        %v2523 = vunpack.c.0.s8 %v2522
        %v2524 = vlaneseq
        %v2525 = vshrl.u32 %v2524, 7
        %v2526 = vsub.s32 %v2523, %v2525
        %v2527 = vrot.slane %v2519, %v2526
        %v2529 = vunpack.c.l.s4 1934713408
        %v2530 = vunpack.c.0.s8 %v2529
        %v2531 = vlaneseq
        %v2532 = vshrl.u32 %v2531, 7
        %v2533 = vsub.s32 %v2530, %v2532
        %v2534 = vrot.slane %v2520, %v2533
        %v2535 = vcombine.low %v2503, %v2518
        %v2536 = vcombine.high %v2503, %v2518
        %v2538 = vunpack.c.l.s4 1934713408
        %v2539 = vunpack.c.0.s8 %v2538
        %v2540 = vlaneseq
        %v2541 = vshrl.u32 %v2540, 7
        %v2542 = vsub.s32 %v2539, %v2541
        %v2543 = vrot.slane %v2535, %v2542
        %v2545 = vunpack.c.l.s4 1934713408
        %v2546 = vunpack.c.0.s8 %v2545
        %v2547 = vlaneseq
        %v2548 = vshrl.u32 %v2547, 7
        %v2549 = vsub.s32 %v2546, %v2548
        %v2550 = vrot.slane %v2536, %v2549
        %v2551 = vcombine.high %v2527, 0.0
        %v2552 = vcombine.high %v2534, 0.0
        %v2553 = vcombine.high %v2543, 0.0
        %v2554 = vcombine.high %v2550, 0.0
        %v2555 = vcombine.high %v1457, 0.0
        %v2557 = vunpack.c.l.s4 1983009808
        %v2558 = vunpack.c.0.s8 %v2557
        %v2559 = vlaneseq
        %v2560 = vshrl.u32 %v2559, 7
        %v2561 = vsub.s32 %v2558, %v2560
        %v2562 = vrot.slane %v1457, %v2561
        %v2564 = vunpack.c.l.s4 1983009808
        %v2565 = vunpack.c.0.s8 %v2564
        %v2566 = vlaneseq
        %v2567 = vshrl.u32 %v2566, 7
        %v2568 = vsub.s32 %v2565, %v2567
        %v2569 = vrot.slane %v2555, %v2568
        %v2570 = vcombine.high %v1459, 0.0
        %v2572 = vunpack.c.l.s4 1983009808
        %v2573 = vunpack.c.0.s8 %v2572
        %v2574 = vlaneseq
        %v2575 = vshrl.u32 %v2574, 7
        %v2576 = vsub.s32 %v2573, %v2575
        %v2577 = vrot.slane %v1459, %v2576
        %v2579 = vunpack.c.l.s4 1983009808
        %v2580 = vunpack.c.0.s8 %v2579
        %v2581 = vlaneseq
        %v2582 = vshrl.u32 %v2581, 7
        %v2583 = vsub.s32 %v2580, %v2582
        %v2584 = vrot.slane %v2570, %v2583
        %v2585 = vcombine.low %v2562, %v2577
        %v2586 = vcombine.high %v2562, %v2577
        %v2588 = vunpack.c.l.s4 1934713408
        %v2589 = vunpack.c.0.s8 %v2588
        %v2590 = vlaneseq
        %v2591 = vshrl.u32 %v2590, 7
        %v2592 = vsub.s32 %v2589, %v2591
        %v2593 = vrot.slane %v2585, %v2592
        %v2595 = vunpack.c.l.s4 1934713408
        %v2596 = vunpack.c.0.s8 %v2595
        %v2597 = vlaneseq
        %v2598 = vshrl.u32 %v2597, 7
        %v2599 = vsub.s32 %v2596, %v2598
        %v2600 = vrot.slane %v2586, %v2599
        %v2601 = vcombine.low %v2569, %v2584
        %v2602 = vcombine.high %v2569, %v2584
        %v2604 = vunpack.c.l.s4 1934713408
        %v2605 = vunpack.c.0.s8 %v2604
        %v2606 = vlaneseq
        %v2607 = vshrl.u32 %v2606, 7
        %v2608 = vsub.s32 %v2605, %v2607
        %v2609 = vrot.slane %v2601, %v2608
        %v2611 = vunpack.c.l.s4 1934713408
        %v2612 = vunpack.c.0.s8 %v2611
        %v2613 = vlaneseq
        %v2614 = vshrl.u32 %v2613, 7
        %v2615 = vsub.s32 %v2612, %v2614
        %v2616 = vrot.slane %v2602, %v2615
        %v2617 = vcombine.high %v2593, 0.0
        %v2618 = vcombine.high %v2600, 0.0
        %v2619 = vcombine.high %v2609, 0.0
        %v2620 = vcombine.high %v2616, 0.0
        %v2621 = vcombine.high %v1463, 0.0
        %v2623 = vunpack.c.l.s4 1983009808
        %v2624 = vunpack.c.0.s8 %v2623
        %v2625 = vlaneseq
        %v2626 = vshrl.u32 %v2625, 7
        %v2627 = vsub.s32 %v2624, %v2626
        %v2628 = vrot.slane %v1463, %v2627
        %v2630 = vunpack.c.l.s4 1983009808
        %v2631 = vunpack.c.0.s8 %v2630
        %v2632 = vlaneseq
        %v2633 = vshrl.u32 %v2632, 7
        %v2634 = vsub.s32 %v2631, %v2633
        %v2635 = vrot.slane %v2621, %v2634
        %v2636 = vcombine.high %v1465, 0.0
        %v2638 = vunpack.c.l.s4 1983009808
        %v2639 = vunpack.c.0.s8 %v2638
        %v2640 = vlaneseq
        %v2641 = vshrl.u32 %v2640, 7
        %v2642 = vsub.s32 %v2639, %v2641
        %v2643 = vrot.slane %v1465, %v2642
        %v2645 = vunpack.c.l.s4 1983009808
        %v2646 = vunpack.c.0.s8 %v2645
        %v2647 = vlaneseq
        %v2648 = vshrl.u32 %v2647, 7
        %v2649 = vsub.s32 %v2646, %v2648
        %v2650 = vrot.slane %v2636, %v2649
        %v2651 = vcombine.low %v2628, %v2643
        %v2652 = vcombine.high %v2628, %v2643
        %v2654 = vunpack.c.l.s4 1934713408
        %v2655 = vunpack.c.0.s8 %v2654
        %v2656 = vlaneseq
        %v2657 = vshrl.u32 %v2656, 7
        %v2658 = vsub.s32 %v2655, %v2657
        %v2659 = vrot.slane %v2651, %v2658
        %v2661 = vunpack.c.l.s4 1934713408
        %v2662 = vunpack.c.0.s8 %v2661
        %v2663 = vlaneseq
        %v2664 = vshrl.u32 %v2663, 7
        %v2665 = vsub.s32 %v2662, %v2664
        %v2666 = vrot.slane %v2652, %v2665
        %v2667 = vcombine.low %v2635, %v2650
        %v2668 = vcombine.high %v2635, %v2650
        %v2670 = vunpack.c.l.s4 1934713408
        %v2671 = vunpack.c.0.s8 %v2670
        %v2672 = vlaneseq
        %v2673 = vshrl.u32 %v2672, 7
        %v2674 = vsub.s32 %v2671, %v2673
        %v2675 = vrot.slane %v2667, %v2674
        %v2677 = vunpack.c.l.s4 1934713408
        %v2678 = vunpack.c.0.s8 %v2677
        %v2679 = vlaneseq
        %v2680 = vshrl.u32 %v2679, 7
        %v2681 = vsub.s32 %v2678, %v2680
        %v2682 = vrot.slane %v2668, %v2681
        %v2683 = vcombine.high %v2659, 0.0
        %v2684 = vcombine.high %v2666, 0.0
        %v2685 = vcombine.high %v2675, 0.0
        %v2686 = vcombine.high %v2682, 0.0
        %v2687 = vcombine.high %v1467, 0.0
        %v2689 = vunpack.c.l.s4 1983009808
        %v2690 = vunpack.c.0.s8 %v2689
        %v2691 = vlaneseq
        %v2692 = vshrl.u32 %v2691, 7
        %v2693 = vsub.s32 %v2690, %v2692
        %v2694 = vrot.slane %v1467, %v2693
        %v2696 = vunpack.c.l.s4 1983009808
        %v2697 = vunpack.c.0.s8 %v2696
        %v2698 = vlaneseq
        %v2699 = vshrl.u32 %v2698, 7
        %v2700 = vsub.s32 %v2697, %v2699
        %v2701 = vrot.slane %v2687, %v2700
        %v2702 = vcombine.high %v1469, 0.0
        %v2704 = vunpack.c.l.s4 1983009808
        %v2705 = vunpack.c.0.s8 %v2704
        %v2706 = vlaneseq
        %v2707 = vshrl.u32 %v2706, 7
        %v2708 = vsub.s32 %v2705, %v2707
        %v2709 = vrot.slane %v1469, %v2708
        %v2711 = vunpack.c.l.s4 1983009808
        %v2712 = vunpack.c.0.s8 %v2711
        %v2713 = vlaneseq
        %v2714 = vshrl.u32 %v2713, 7
        %v2715 = vsub.s32 %v2712, %v2714
        %v2716 = vrot.slane %v2702, %v2715
        %v2717 = vcombine.low %v2694, %v2709
        %v2718 = vcombine.high %v2694, %v2709
        %v2720 = vunpack.c.l.s4 1934713408
        %v2721 = vunpack.c.0.s8 %v2720
        %v2722 = vlaneseq
        %v2723 = vshrl.u32 %v2722, 7
        %v2724 = vsub.s32 %v2721, %v2723
        %v2725 = vrot.slane %v2717, %v2724
        %v2727 = vunpack.c.l.s4 1934713408
        %v2728 = vunpack.c.0.s8 %v2727
        %v2729 = vlaneseq
        %v2730 = vshrl.u32 %v2729, 7
        %v2731 = vsub.s32 %v2728, %v2730
        %v2732 = vrot.slane %v2718, %v2731
        %v2733 = vcombine.low %v2701, %v2716
        %v2734 = vcombine.high %v2701, %v2716
        %v2736 = vunpack.c.l.s4 1934713408
        %v2737 = vunpack.c.0.s8 %v2736
        %v2738 = vlaneseq
        %v2739 = vshrl.u32 %v2738, 7
        %v2740 = vsub.s32 %v2737, %v2739
        %v2741 = vrot.slane %v2733, %v2740
        %v2743 = vunpack.c.l.s4 1934713408
        %v2744 = vunpack.c.0.s8 %v2743
        %v2745 = vlaneseq
        %v2746 = vshrl.u32 %v2745, 7
        %v2747 = vsub.s32 %v2744, %v2746
        %v2748 = vrot.slane %v2734, %v2747
        %v2749 = vcombine.high %v2725, 0.0
        %v2750 = vcombine.high %v2732, 0.0
        %v2751 = vcombine.high %v2741, 0.0
        %v2752 = vcombine.high %v2748, 0.0
        %v2753 = vcombine.low %v1735, %v1742
        %v2755 = vunpack.c.l.s4 1983009808
        %v2756 = vunpack.c.0.s8 %v2755
        %v2757 = vlaneseq
        %v2758 = vshrl.u32 %v2757, 7
        %v2759 = vsub.s32 %v2756, %v2758
        %v2760 = vrot.slane %v2753, %v2759
        %v2761 = vcombine.low %v1759, %v1760
        %v2763 = vunpack.c.l.s4 1983009808
        %v2764 = vunpack.c.0.s8 %v2763
        %v2765 = vlaneseq
        %v2766 = vshrl.u32 %v2765, 7
        %v2767 = vsub.s32 %v2764, %v2766
        %v2768 = vrot.slane %v2761, %v2767
        %v2769 = vcombine.low %v1751, %v1758
        %v2771 = vunpack.c.l.s4 1983009808
        %v2772 = vunpack.c.0.s8 %v2771
        %v2773 = vlaneseq
        %v2774 = vshrl.u32 %v2773, 7
        %v2775 = vsub.s32 %v2772, %v2774
        %v2776 = vrot.slane %v2769, %v2775
        %v2777 = vcombine.low %v1761, %v1762
        %v2779 = vunpack.c.l.s4 1983009808
        %v2780 = vunpack.c.0.s8 %v2779
        %v2781 = vlaneseq
        %v2782 = vshrl.u32 %v2781, 7
        %v2783 = vsub.s32 %v2780, %v2782
        %v2784 = vrot.slane %v2777, %v2783
        %v2785 = vcombine.low %v2760, %v2768
        %v2787 = vunpack.c.l.s4 1934713408
        %v2788 = vunpack.c.0.s8 %v2787
        %v2789 = vlaneseq
        %v2790 = vshrl.u32 %v2789, 7
        %v2791 = vsub.s32 %v2788, %v2790
        %v2792 = vrot.slane %v2785, %v2791
        %v2793 = vcombine.low %v2776, %v2784
        %v2795 = vunpack.c.l.s4 1934713408
        %v2796 = vunpack.c.0.s8 %v2795
        %v2797 = vlaneseq
        %v2798 = vshrl.u32 %v2797, 7
        %v2799 = vsub.s32 %v2796, %v2798
        %v2800 = vrot.slane %v2793, %v2799
        %v2801 = vcombine.low %v2792, %v2800
        %v2802 = vcombine.high %v2792, %v2800
        %v2803 = vcombine.low %v1801, %v1808
        %v2805 = vunpack.c.l.s4 1983009808
        %v2806 = vunpack.c.0.s8 %v2805
        %v2807 = vlaneseq
        %v2808 = vshrl.u32 %v2807, 7
        %v2809 = vsub.s32 %v2806, %v2808
        %v2810 = vrot.slane %v2803, %v2809
        %v2811 = vcombine.low %v1825, %v1826
        %v2813 = vunpack.c.l.s4 1983009808
        %v2814 = vunpack.c.0.s8 %v2813
        %v2815 = vlaneseq
        %v2816 = vshrl.u32 %v2815, 7
        %v2817 = vsub.s32 %v2814, %v2816
        %v2818 = vrot.slane %v2811, %v2817
        %v2819 = vcombine.low %v1817, %v1824
        %v2821 = vunpack.c.l.s4 1983009808
        %v2822 = vunpack.c.0.s8 %v2821
        %v2823 = vlaneseq
        %v2824 = vshrl.u32 %v2823, 7
        %v2825 = vsub.s32 %v2822, %v2824
        %v2826 = vrot.slane %v2819, %v2825
        %v2827 = vcombine.low %v1827, %v1828
        %v2829 = vunpack.c.l.s4 1983009808
        %v2830 = vunpack.c.0.s8 %v2829
        %v2831 = vlaneseq
        %v2832 = vshrl.u32 %v2831, 7
        %v2833 = vsub.s32 %v2830, %v2832
        %v2834 = vrot.slane %v2827, %v2833
        %v2835 = vcombine.low %v2810, %v2818
        %v2837 = vunpack.c.l.s4 1934713408
        %v2838 = vunpack.c.0.s8 %v2837
        %v2839 = vlaneseq
        %v2840 = vshrl.u32 %v2839, 7
        %v2841 = vsub.s32 %v2838, %v2840
        %v2842 = vrot.slane %v2835, %v2841
        %v2843 = vcombine.low %v2826, %v2834
        %v2845 = vunpack.c.l.s4 1934713408
        %v2846 = vunpack.c.0.s8 %v2845
        %v2847 = vlaneseq
        %v2848 = vshrl.u32 %v2847, 7
        %v2849 = vsub.s32 %v2846, %v2848
        %v2850 = vrot.slane %v2843, %v2849
        %v2851 = vcombine.low %v2842, %v2850
        %v2852 = vcombine.high %v2842, %v2850
        %v2853 = vcombine.low %v1867, %v1874
        %v2855 = vunpack.c.l.s4 1983009808
        %v2856 = vunpack.c.0.s8 %v2855
        %v2857 = vlaneseq
        %v2858 = vshrl.u32 %v2857, 7
        %v2859 = vsub.s32 %v2856, %v2858
        %v2860 = vrot.slane %v2853, %v2859
        %v2861 = vcombine.low %v1891, %v1892
        %v2863 = vunpack.c.l.s4 1983009808
        %v2864 = vunpack.c.0.s8 %v2863
        %v2865 = vlaneseq
        %v2866 = vshrl.u32 %v2865, 7
        %v2867 = vsub.s32 %v2864, %v2866
        %v2868 = vrot.slane %v2861, %v2867
        %v2869 = vcombine.low %v1883, %v1890
        %v2871 = vunpack.c.l.s4 1983009808
        %v2872 = vunpack.c.0.s8 %v2871
        %v2873 = vlaneseq
        %v2874 = vshrl.u32 %v2873, 7
        %v2875 = vsub.s32 %v2872, %v2874
        %v2876 = vrot.slane %v2869, %v2875
        %v2877 = vcombine.low %v1893, %v1894
        %v2879 = vunpack.c.l.s4 1983009808
        %v2880 = vunpack.c.0.s8 %v2879
        %v2881 = vlaneseq
        %v2882 = vshrl.u32 %v2881, 7
        %v2883 = vsub.s32 %v2880, %v2882
        %v2884 = vrot.slane %v2877, %v2883
        %v2885 = vcombine.low %v2860, %v2868
        %v2887 = vunpack.c.l.s4 1934713408
        %v2888 = vunpack.c.0.s8 %v2887
        %v2889 = vlaneseq
        %v2890 = vshrl.u32 %v2889, 7
        %v2891 = vsub.s32 %v2888, %v2890
        %v2892 = vrot.slane %v2885, %v2891
        %v2893 = vcombine.low %v2876, %v2884
        %v2895 = vunpack.c.l.s4 1934713408
        %v2896 = vunpack.c.0.s8 %v2895
        %v2897 = vlaneseq
        %v2898 = vshrl.u32 %v2897, 7
        %v2899 = vsub.s32 %v2896, %v2898
        %v2900 = vrot.slane %v2893, %v2899
        %v2901 = vcombine.low %v2892, %v2900
        %v2902 = vcombine.high %v2892, %v2900
        %v2903 = vcombine.low %v1933, %v1940
        %v2905 = vunpack.c.l.s4 1983009808
        %v2906 = vunpack.c.0.s8 %v2905
        %v2907 = vlaneseq
        %v2908 = vshrl.u32 %v2907, 7
        %v2909 = vsub.s32 %v2906, %v2908
        %v2910 = vrot.slane %v2903, %v2909
        %v2911 = vcombine.low %v1957, %v1958
        %v2913 = vunpack.c.l.s4 1983009808
        %v2914 = vunpack.c.0.s8 %v2913
        %v2915 = vlaneseq
        %v2916 = vshrl.u32 %v2915, 7
        %v2917 = vsub.s32 %v2914, %v2916
        %v2918 = vrot.slane %v2911, %v2917
        %v2919 = vcombine.low %v1949, %v1956
        %v2921 = vunpack.c.l.s4 1983009808
        %v2922 = vunpack.c.0.s8 %v2921
        %v2923 = vlaneseq
        %v2924 = vshrl.u32 %v2923, 7
        %v2925 = vsub.s32 %v2922, %v2924
        %v2926 = vrot.slane %v2919, %v2925
        %v2927 = vcombine.low %v1959, %v1960
        %v2929 = vunpack.c.l.s4 1983009808
        %v2930 = vunpack.c.0.s8 %v2929
        %v2931 = vlaneseq
        %v2932 = vshrl.u32 %v2931, 7
        %v2933 = vsub.s32 %v2930, %v2932
        %v2934 = vrot.slane %v2927, %v2933
        %v2935 = vcombine.low %v2910, %v2918
        %v2937 = vunpack.c.l.s4 1934713408
        %v2938 = vunpack.c.0.s8 %v2937
        %v2939 = vlaneseq
        %v2940 = vshrl.u32 %v2939, 7
        %v2941 = vsub.s32 %v2938, %v2940
        %v2942 = vrot.slane %v2935, %v2941
        %v2943 = vcombine.low %v2926, %v2934
        %v2945 = vunpack.c.l.s4 1934713408
        %v2946 = vunpack.c.0.s8 %v2945
        %v2947 = vlaneseq
        %v2948 = vshrl.u32 %v2947, 7
        %v2949 = vsub.s32 %v2946, %v2948
        %v2950 = vrot.slane %v2943, %v2949
        %v2951 = vcombine.low %v2942, %v2950
        %v2952 = vcombine.high %v2942, %v2950
        %v2953 = vcombine.low %v1999, %v2006
        %v2955 = vunpack.c.l.s4 1983009808
        %v2956 = vunpack.c.0.s8 %v2955
        %v2957 = vlaneseq
        %v2958 = vshrl.u32 %v2957, 7
        %v2959 = vsub.s32 %v2956, %v2958
        %v2960 = vrot.slane %v2953, %v2959
        %v2961 = vcombine.low %v2023, %v2024
        %v2963 = vunpack.c.l.s4 1983009808
        %v2964 = vunpack.c.0.s8 %v2963
        %v2965 = vlaneseq
        %v2966 = vshrl.u32 %v2965, 7
        %v2967 = vsub.s32 %v2964, %v2966
        %v2968 = vrot.slane %v2961, %v2967
        %v2969 = vcombine.low %v2015, %v2022
        %v2971 = vunpack.c.l.s4 1983009808
        %v2972 = vunpack.c.0.s8 %v2971
        %v2973 = vlaneseq
        %v2974 = vshrl.u32 %v2973, 7
        %v2975 = vsub.s32 %v2972, %v2974
        %v2976 = vrot.slane %v2969, %v2975
        %v2977 = vcombine.low %v2025, %v2026
        %v2979 = vunpack.c.l.s4 1983009808
        %v2980 = vunpack.c.0.s8 %v2979
        %v2981 = vlaneseq
        %v2982 = vshrl.u32 %v2981, 7
        %v2983 = vsub.s32 %v2980, %v2982
        %v2984 = vrot.slane %v2977, %v2983
        %v2985 = vcombine.low %v2960, %v2968
        %v2987 = vunpack.c.l.s4 1934713408
        %v2988 = vunpack.c.0.s8 %v2987
        %v2989 = vlaneseq
        %v2990 = vshrl.u32 %v2989, 7
        %v2991 = vsub.s32 %v2988, %v2990
        %v2992 = vrot.slane %v2985, %v2991
        %v2993 = vcombine.low %v2976, %v2984
        %v2995 = vunpack.c.l.s4 1934713408
        %v2996 = vunpack.c.0.s8 %v2995
        %v2997 = vlaneseq
        %v2998 = vshrl.u32 %v2997, 7
        %v2999 = vsub.s32 %v2996, %v2998
        %v3000 = vrot.slane %v2993, %v2999
        %v3001 = vcombine.low %v2992, %v3000
        %v3002 = vcombine.high %v2992, %v3000
        %v3003 = vcombine.low %v2065, %v2072
        %v3005 = vunpack.c.l.s4 1983009808
        %v3006 = vunpack.c.0.s8 %v3005
        %v3007 = vlaneseq
        %v3008 = vshrl.u32 %v3007, 7
        %v3009 = vsub.s32 %v3006, %v3008
        %v3010 = vrot.slane %v3003, %v3009
        %v3011 = vcombine.low %v2089, %v2090
        %v3013 = vunpack.c.l.s4 1983009808
        %v3014 = vunpack.c.0.s8 %v3013
        %v3015 = vlaneseq
        %v3016 = vshrl.u32 %v3015, 7
        %v3017 = vsub.s32 %v3014, %v3016
        %v3018 = vrot.slane %v3011, %v3017
        %v3019 = vcombine.low %v2081, %v2088
        %v3021 = vunpack.c.l.s4 1983009808
        %v3022 = vunpack.c.0.s8 %v3021
        %v3023 = vlaneseq
        %v3024 = vshrl.u32 %v3023, 7
        %v3025 = vsub.s32 %v3022, %v3024
        %v3026 = vrot.slane %v3019, %v3025
        %v3027 = vcombine.low %v2091, %v2092
        %v3029 = vunpack.c.l.s4 1983009808
        %v3030 = vunpack.c.0.s8 %v3029
        %v3031 = vlaneseq
        %v3032 = vshrl.u32 %v3031, 7
        %v3033 = vsub.s32 %v3030, %v3032
        %v3034 = vrot.slane %v3027, %v3033
        %v3035 = vcombine.low %v3010, %v3018
        %v3037 = vunpack.c.l.s4 1934713408
        %v3038 = vunpack.c.0.s8 %v3037
        %v3039 = vlaneseq
        %v3040 = vshrl.u32 %v3039, 7
        %v3041 = vsub.s32 %v3038, %v3040
        %v3042 = vrot.slane %v3035, %v3041
        %v3043 = vcombine.low %v3026, %v3034
        %v3045 = vunpack.c.l.s4 1934713408
        %v3046 = vunpack.c.0.s8 %v3045
        %v3047 = vlaneseq
        %v3048 = vshrl.u32 %v3047, 7
        %v3049 = vsub.s32 %v3046, %v3048
        %v3050 = vrot.slane %v3043, %v3049
        %v3051 = vcombine.low %v3042, %v3050
        %v3052 = vcombine.high %v3042, %v3050
        %v3053 = vcombine.low %v2131, %v2138
        %v3055 = vunpack.c.l.s4 1983009808
        %v3056 = vunpack.c.0.s8 %v3055
        %v3057 = vlaneseq
        %v3058 = vshrl.u32 %v3057, 7
        %v3059 = vsub.s32 %v3056, %v3058
        %v3060 = vrot.slane %v3053, %v3059
        %v3061 = vcombine.low %v2155, %v2156
        %v3063 = vunpack.c.l.s4 1983009808
        %v3064 = vunpack.c.0.s8 %v3063
        %v3065 = vlaneseq
        %v3066 = vshrl.u32 %v3065, 7
        %v3067 = vsub.s32 %v3064, %v3066
        %v3068 = vrot.slane %v3061, %v3067
        %v3069 = vcombine.low %v2147, %v2154
        %v3071 = vunpack.c.l.s4 1983009808
        %v3072 = vunpack.c.0.s8 %v3071
        %v3073 = vlaneseq
        %v3074 = vshrl.u32 %v3073, 7
        %v3075 = vsub.s32 %v3072, %v3074
        %v3076 = vrot.slane %v3069, %v3075
        %v3077 = vcombine.low %v2157, %v2158
        %v3079 = vunpack.c.l.s4 1983009808
        %v3080 = vunpack.c.0.s8 %v3079
        %v3081 = vlaneseq
        %v3082 = vshrl.u32 %v3081, 7
        %v3083 = vsub.s32 %v3080, %v3082
        %v3084 = vrot.slane %v3077, %v3083
        %v3085 = vcombine.low %v3060, %v3068
        %v3087 = vunpack.c.l.s4 1934713408
        %v3088 = vunpack.c.0.s8 %v3087
        %v3089 = vlaneseq
        %v3090 = vshrl.u32 %v3089, 7
        %v3091 = vsub.s32 %v3088, %v3090
        %v3092 = vrot.slane %v3085, %v3091
        %v3093 = vcombine.low %v3076, %v3084
        %v3095 = vunpack.c.l.s4 1934713408
        %v3096 = vunpack.c.0.s8 %v3095
        %v3097 = vlaneseq
        %v3098 = vshrl.u32 %v3097, 7
        %v3099 = vsub.s32 %v3096, %v3098
        %v3100 = vrot.slane %v3093, %v3099
        %v3101 = vcombine.low %v3092, %v3100
        %v3102 = vcombine.high %v3092, %v3100
        %v3103 = vcombine.low %v2197, %v2204
        %v3105 = vunpack.c.l.s4 1983009808
        %v3106 = vunpack.c.0.s8 %v3105
        %v3107 = vlaneseq
        %v3108 = vshrl.u32 %v3107, 7
        %v3109 = vsub.s32 %v3106, %v3108
        %v3110 = vrot.slane %v3103, %v3109
        %v3111 = vcombine.low %v2221, %v2222
        %v3113 = vunpack.c.l.s4 1983009808
        %v3114 = vunpack.c.0.s8 %v3113
        %v3115 = vlaneseq
        %v3116 = vshrl.u32 %v3115, 7
        %v3117 = vsub.s32 %v3114, %v3116
        %v3118 = vrot.slane %v3111, %v3117
        %v3119 = vcombine.low %v2213, %v2220
        %v3121 = vunpack.c.l.s4 1983009808
        %v3122 = vunpack.c.0.s8 %v3121
        %v3123 = vlaneseq
        %v3124 = vshrl.u32 %v3123, 7
        %v3125 = vsub.s32 %v3122, %v3124
        %v3126 = vrot.slane %v3119, %v3125
        %v3127 = vcombine.low %v2223, %v2224
        %v3129 = vunpack.c.l.s4 1983009808
        %v3130 = vunpack.c.0.s8 %v3129
        %v3131 = vlaneseq
        %v3132 = vshrl.u32 %v3131, 7
        %v3133 = vsub.s32 %v3130, %v3132
        %v3134 = vrot.slane %v3127, %v3133
        %v3135 = vcombine.low %v3110, %v3118
        %v3137 = vunpack.c.l.s4 1934713408
        %v3138 = vunpack.c.0.s8 %v3137
        %v3139 = vlaneseq
        %v3140 = vshrl.u32 %v3139, 7
        %v3141 = vsub.s32 %v3138, %v3140
        %v3142 = vrot.slane %v3135, %v3141
        %v3143 = vcombine.low %v3126, %v3134
        %v3145 = vunpack.c.l.s4 1934713408
        %v3146 = vunpack.c.0.s8 %v3145
        %v3147 = vlaneseq
        %v3148 = vshrl.u32 %v3147, 7
        %v3149 = vsub.s32 %v3146, %v3148
        %v3150 = vrot.slane %v3143, %v3149
        %v3151 = vcombine.low %v3142, %v3150
        %v3152 = vcombine.high %v3142, %v3150
        %v3153 = vcombine.low %v2263, %v2270
        %v3155 = vunpack.c.l.s4 1983009808
        %v3156 = vunpack.c.0.s8 %v3155
        %v3157 = vlaneseq
        %v3158 = vshrl.u32 %v3157, 7
        %v3159 = vsub.s32 %v3156, %v3158
        %v3160 = vrot.slane %v3153, %v3159
        %v3161 = vcombine.low %v2287, %v2288
        %v3163 = vunpack.c.l.s4 1983009808
        %v3164 = vunpack.c.0.s8 %v3163
        %v3165 = vlaneseq
        %v3166 = vshrl.u32 %v3165, 7
        %v3167 = vsub.s32 %v3164, %v3166
        %v3168 = vrot.slane %v3161, %v3167
        %v3169 = vcombine.low %v2279, %v2286
        %v3171 = vunpack.c.l.s4 1983009808
        %v3172 = vunpack.c.0.s8 %v3171
        %v3173 = vlaneseq
        %v3174 = vshrl.u32 %v3173, 7
        %v3175 = vsub.s32 %v3172, %v3174
        %v3176 = vrot.slane %v3169, %v3175
        %v3177 = vcombine.low %v2289, %v2290
        %v3179 = vunpack.c.l.s4 1983009808
        %v3180 = vunpack.c.0.s8 %v3179
        %v3181 = vlaneseq
        %v3182 = vshrl.u32 %v3181, 7
        %v3183 = vsub.s32 %v3180, %v3182
        %v3184 = vrot.slane %v3177, %v3183
        %v3185 = vcombine.low %v3160, %v3168
        %v3187 = vunpack.c.l.s4 1934713408
        %v3188 = vunpack.c.0.s8 %v3187
        %v3189 = vlaneseq
        %v3190 = vshrl.u32 %v3189, 7
        %v3191 = vsub.s32 %v3188, %v3190
        %v3192 = vrot.slane %v3185, %v3191
        %v3193 = vcombine.low %v3176, %v3184
        %v3195 = vunpack.c.l.s4 1934713408
        %v3196 = vunpack.c.0.s8 %v3195
        %v3197 = vlaneseq
        %v3198 = vshrl.u32 %v3197, 7
        %v3199 = vsub.s32 %v3196, %v3198
        %v3200 = vrot.slane %v3193, %v3199
        %v3201 = vcombine.low %v3192, %v3200
        %v3202 = vcombine.high %v3192, %v3200
        %v3203 = vcombine.low %v2329, %v2336
        %v3205 = vunpack.c.l.s4 1983009808
        %v3206 = vunpack.c.0.s8 %v3205
        %v3207 = vlaneseq
        %v3208 = vshrl.u32 %v3207, 7
        %v3209 = vsub.s32 %v3206, %v3208
        %v3210 = vrot.slane %v3203, %v3209
        %v3211 = vcombine.low %v2353, %v2354
        %v3213 = vunpack.c.l.s4 1983009808
        %v3214 = vunpack.c.0.s8 %v3213
        %v3215 = vlaneseq
        %v3216 = vshrl.u32 %v3215, 7
        %v3217 = vsub.s32 %v3214, %v3216
        %v3218 = vrot.slane %v3211, %v3217
        %v3219 = vcombine.low %v2345, %v2352
        %v3221 = vunpack.c.l.s4 1983009808
        %v3222 = vunpack.c.0.s8 %v3221
        %v3223 = vlaneseq
        %v3224 = vshrl.u32 %v3223, 7
        %v3225 = vsub.s32 %v3222, %v3224
        %v3226 = vrot.slane %v3219, %v3225
        %v3227 = vcombine.low %v2355, %v2356
        %v3229 = vunpack.c.l.s4 1983009808
        %v3230 = vunpack.c.0.s8 %v3229
        %v3231 = vlaneseq
        %v3232 = vshrl.u32 %v3231, 7
        %v3233 = vsub.s32 %v3230, %v3232
        %v3234 = vrot.slane %v3227, %v3233
        %v3235 = vcombine.low %v3210, %v3218
        %v3237 = vunpack.c.l.s4 1934713408
        %v3238 = vunpack.c.0.s8 %v3237
        %v3239 = vlaneseq
        %v3240 = vshrl.u32 %v3239, 7
        %v3241 = vsub.s32 %v3238, %v3240
        %v3242 = vrot.slane %v3235, %v3241
        %v3243 = vcombine.low %v3226, %v3234
        %v3245 = vunpack.c.l.s4 1934713408
        %v3246 = vunpack.c.0.s8 %v3245
        %v3247 = vlaneseq
        %v3248 = vshrl.u32 %v3247, 7
        %v3249 = vsub.s32 %v3246, %v3248
        %v3250 = vrot.slane %v3243, %v3249
        %v3251 = vcombine.low %v3242, %v3250
        %v3252 = vcombine.high %v3242, %v3250
        %v3253 = vcombine.low %v2395, %v2402
        %v3255 = vunpack.c.l.s4 1983009808
        %v3256 = vunpack.c.0.s8 %v3255
        %v3257 = vlaneseq
        %v3258 = vshrl.u32 %v3257, 7
        %v3259 = vsub.s32 %v3256, %v3258
        %v3260 = vrot.slane %v3253, %v3259
        %v3261 = vcombine.low %v2419, %v2420
        %v3263 = vunpack.c.l.s4 1983009808
        %v3264 = vunpack.c.0.s8 %v3263
        %v3265 = vlaneseq
        %v3266 = vshrl.u32 %v3265, 7
        %v3267 = vsub.s32 %v3264, %v3266
        %v3268 = vrot.slane %v3261, %v3267
        %v3269 = vcombine.low %v2411, %v2418
        %v3271 = vunpack.c.l.s4 1983009808
        %v3272 = vunpack.c.0.s8 %v3271
        %v3273 = vlaneseq
        %v3274 = vshrl.u32 %v3273, 7
        %v3275 = vsub.s32 %v3272, %v3274
        %v3276 = vrot.slane %v3269, %v3275
        %v3277 = vcombine.low %v2421, %v2422
        %v3279 = vunpack.c.l.s4 1983009808
        %v3280 = vunpack.c.0.s8 %v3279
        %v3281 = vlaneseq
        %v3282 = vshrl.u32 %v3281, 7
        %v3283 = vsub.s32 %v3280, %v3282
        %v3284 = vrot.slane %v3277, %v3283
        %v3285 = vcombine.low %v3260, %v3268
        %v3287 = vunpack.c.l.s4 1934713408
        %v3288 = vunpack.c.0.s8 %v3287
        %v3289 = vlaneseq
        %v3290 = vshrl.u32 %v3289, 7
        %v3291 = vsub.s32 %v3288, %v3290
        %v3292 = vrot.slane %v3285, %v3291
        %v3293 = vcombine.low %v3276, %v3284
        %v3295 = vunpack.c.l.s4 1934713408
        %v3296 = vunpack.c.0.s8 %v3295
        %v3297 = vlaneseq
        %v3298 = vshrl.u32 %v3297, 7
        %v3299 = vsub.s32 %v3296, %v3298
        %v3300 = vrot.slane %v3293, %v3299
        %v3301 = vcombine.low %v3292, %v3300
        %v3302 = vcombine.high %v3292, %v3300
        %v3303 = vcombine.low %v2461, %v2468
        %v3305 = vunpack.c.l.s4 1983009808
        %v3306 = vunpack.c.0.s8 %v3305
        %v3307 = vlaneseq
        %v3308 = vshrl.u32 %v3307, 7
        %v3309 = vsub.s32 %v3306, %v3308
        %v3310 = vrot.slane %v3303, %v3309
        %v3311 = vcombine.low %v2485, %v2486
        %v3313 = vunpack.c.l.s4 1983009808
        %v3314 = vunpack.c.0.s8 %v3313
        %v3315 = vlaneseq
        %v3316 = vshrl.u32 %v3315, 7
        %v3317 = vsub.s32 %v3314, %v3316
        %v3318 = vrot.slane %v3311, %v3317
        %v3319 = vcombine.low %v2477, %v2484
        %v3321 = vunpack.c.l.s4 1983009808
        %v3322 = vunpack.c.0.s8 %v3321
        %v3323 = vlaneseq
        %v3324 = vshrl.u32 %v3323, 7
        %v3325 = vsub.s32 %v3322, %v3324
        %v3326 = vrot.slane %v3319, %v3325
        %v3327 = vcombine.low %v2487, %v2488
        %v3329 = vunpack.c.l.s4 1983009808
        %v3330 = vunpack.c.0.s8 %v3329
        %v3331 = vlaneseq
        %v3332 = vshrl.u32 %v3331, 7
        %v3333 = vsub.s32 %v3330, %v3332
        %v3334 = vrot.slane %v3327, %v3333
        %v3335 = vcombine.low %v3310, %v3318
        %v3337 = vunpack.c.l.s4 1934713408
        %v3338 = vunpack.c.0.s8 %v3337
        %v3339 = vlaneseq
        %v3340 = vshrl.u32 %v3339, 7
        %v3341 = vsub.s32 %v3338, %v3340
        %v3342 = vrot.slane %v3335, %v3341
        %v3343 = vcombine.low %v3326, %v3334
        %v3345 = vunpack.c.l.s4 1934713408
        %v3346 = vunpack.c.0.s8 %v3345
        %v3347 = vlaneseq
        %v3348 = vshrl.u32 %v3347, 7
        %v3349 = vsub.s32 %v3346, %v3348
        %v3350 = vrot.slane %v3343, %v3349
        %v3351 = vcombine.low %v3342, %v3350
        %v3352 = vcombine.high %v3342, %v3350
        %v3353 = vcombine.low %v2527, %v2534
        %v3355 = vunpack.c.l.s4 1983009808
        %v3356 = vunpack.c.0.s8 %v3355
        %v3357 = vlaneseq
        %v3358 = vshrl.u32 %v3357, 7
        %v3359 = vsub.s32 %v3356, %v3358
        %v3360 = vrot.slane %v3353, %v3359
        %v3361 = vcombine.low %v2551, %v2552
        %v3363 = vunpack.c.l.s4 1983009808
        %v3364 = vunpack.c.0.s8 %v3363
        %v3365 = vlaneseq
        %v3366 = vshrl.u32 %v3365, 7
        %v3367 = vsub.s32 %v3364, %v3366
        %v3368 = vrot.slane %v3361, %v3367
        %v3369 = vcombine.low %v2543, %v2550
        %v3371 = vunpack.c.l.s4 1983009808
        %v3372 = vunpack.c.0.s8 %v3371
        %v3373 = vlaneseq
        %v3374 = vshrl.u32 %v3373, 7
        %v3375 = vsub.s32 %v3372, %v3374
        %v3376 = vrot.slane %v3369, %v3375
        %v3377 = vcombine.low %v2553, %v2554
        %v3379 = vunpack.c.l.s4 1983009808
        %v3380 = vunpack.c.0.s8 %v3379
        %v3381 = vlaneseq
        %v3382 = vshrl.u32 %v3381, 7
        %v3383 = vsub.s32 %v3380, %v3382
        %v3384 = vrot.slane %v3377, %v3383
        %v3385 = vcombine.low %v3360, %v3368
        %v3387 = vunpack.c.l.s4 1934713408
        %v3388 = vunpack.c.0.s8 %v3387
        %v3389 = vlaneseq
        %v3390 = vshrl.u32 %v3389, 7
        %v3391 = vsub.s32 %v3388, %v3390
        %v3392 = vrot.slane %v3385, %v3391
        %v3393 = vcombine.low %v3376, %v3384
        %v3395 = vunpack.c.l.s4 1934713408
        %v3396 = vunpack.c.0.s8 %v3395
        %v3397 = vlaneseq
        %v3398 = vshrl.u32 %v3397, 7
        %v3399 = vsub.s32 %v3396, %v3398
        %v3400 = vrot.slane %v3393, %v3399
        %v3401 = vcombine.low %v3392, %v3400
        %v3402 = vcombine.high %v3392, %v3400
        %v3403 = vcombine.low %v2593, %v2600
        %v3405 = vunpack.c.l.s4 1983009808
        %v3406 = vunpack.c.0.s8 %v3405
        %v3407 = vlaneseq
        %v3408 = vshrl.u32 %v3407, 7
        %v3409 = vsub.s32 %v3406, %v3408
        %v3410 = vrot.slane %v3403, %v3409
        %v3411 = vcombine.low %v2617, %v2618
        %v3413 = vunpack.c.l.s4 1983009808
        %v3414 = vunpack.c.0.s8 %v3413
        %v3415 = vlaneseq
        %v3416 = vshrl.u32 %v3415, 7
        %v3417 = vsub.s32 %v3414, %v3416
        %v3418 = vrot.slane %v3411, %v3417
        %v3419 = vcombine.low %v2609, %v2616
        %v3421 = vunpack.c.l.s4 1983009808
        %v3422 = vunpack.c.0.s8 %v3421
        %v3423 = vlaneseq
        %v3424 = vshrl.u32 %v3423, 7
        %v3425 = vsub.s32 %v3422, %v3424
        %v3426 = vrot.slane %v3419, %v3425
        %v3427 = vcombine.low %v2619, %v2620
        %v3429 = vunpack.c.l.s4 1983009808
        %v3430 = vunpack.c.0.s8 %v3429
        %v3431 = vlaneseq
        %v3432 = vshrl.u32 %v3431, 7
        %v3433 = vsub.s32 %v3430, %v3432
        %v3434 = vrot.slane %v3427, %v3433
        %v3435 = vcombine.low %v3410, %v3418
        %v3437 = vunpack.c.l.s4 1934713408
        %v3438 = vunpack.c.0.s8 %v3437
        %v3439 = vlaneseq
        %v3440 = vshrl.u32 %v3439, 7
        %v3441 = vsub.s32 %v3438, %v3440
        %v3442 = vrot.slane %v3435, %v3441
        %v3443 = vcombine.low %v3426, %v3434
        %v3445 = vunpack.c.l.s4 1934713408
        %v3446 = vunpack.c.0.s8 %v3445
        %v3447 = vlaneseq
        %v3448 = vshrl.u32 %v3447, 7
        %v3449 = vsub.s32 %v3446, %v3448
        %v3450 = vrot.slane %v3443, %v3449
        %v3451 = vcombine.low %v3442, %v3450
        %v3452 = vcombine.high %v3442, %v3450
        %v3453 = vcombine.low %v2659, %v2666
        %v3455 = vunpack.c.l.s4 1983009808
        %v3456 = vunpack.c.0.s8 %v3455
        %v3457 = vlaneseq
        %v3458 = vshrl.u32 %v3457, 7
        %v3459 = vsub.s32 %v3456, %v3458
        %v3460 = vrot.slane %v3453, %v3459
        %v3461 = vcombine.low %v2683, %v2684
        %v3463 = vunpack.c.l.s4 1983009808
        %v3464 = vunpack.c.0.s8 %v3463
        %v3465 = vlaneseq
        %v3466 = vshrl.u32 %v3465, 7
        %v3467 = vsub.s32 %v3464, %v3466
        %v3468 = vrot.slane %v3461, %v3467
        %v3469 = vcombine.low %v2675, %v2682
        %v3471 = vunpack.c.l.s4 1983009808
        %v3472 = vunpack.c.0.s8 %v3471
        %v3473 = vlaneseq
        %v3474 = vshrl.u32 %v3473, 7
        %v3475 = vsub.s32 %v3472, %v3474
        %v3476 = vrot.slane %v3469, %v3475
        %v3477 = vcombine.low %v2685, %v2686
        %v3479 = vunpack.c.l.s4 1983009808
        %v3480 = vunpack.c.0.s8 %v3479
        %v3481 = vlaneseq
        %v3482 = vshrl.u32 %v3481, 7
        %v3483 = vsub.s32 %v3480, %v3482
        %v3484 = vrot.slane %v3477, %v3483
        %v3485 = vcombine.low %v3460, %v3468
        %v3487 = vunpack.c.l.s4 1934713408
        %v3488 = vunpack.c.0.s8 %v3487
        %v3489 = vlaneseq
        %v3490 = vshrl.u32 %v3489, 7
        %v3491 = vsub.s32 %v3488, %v3490
        %v3492 = vrot.slane %v3485, %v3491
        %v3493 = vcombine.low %v3476, %v3484
        %v3495 = vunpack.c.l.s4 1934713408
        %v3496 = vunpack.c.0.s8 %v3495
        %v3497 = vlaneseq
        %v3498 = vshrl.u32 %v3497, 7
        %v3499 = vsub.s32 %v3496, %v3498
        %v3500 = vrot.slane %v3493, %v3499
        %v3501 = vcombine.low %v3492, %v3500
        %v3502 = vcombine.high %v3492, %v3500
        %v3503 = vcombine.low %v2725, %v2732
        %v3505 = vunpack.c.l.s4 1983009808
        %v3506 = vunpack.c.0.s8 %v3505
        %v3507 = vlaneseq
        %v3508 = vshrl.u32 %v3507, 7
        %v3509 = vsub.s32 %v3506, %v3508
        %v3510 = vrot.slane %v3503, %v3509
        %v3511 = vcombine.low %v2749, %v2750
        %v3513 = vunpack.c.l.s4 1983009808
        %v3514 = vunpack.c.0.s8 %v3513
        %v3515 = vlaneseq
        %v3516 = vshrl.u32 %v3515, 7
        %v3517 = vsub.s32 %v3514, %v3516
        %v3518 = vrot.slane %v3511, %v3517
        %v3519 = vcombine.low %v2741, %v2748
        %v3521 = vunpack.c.l.s4 1983009808
        %v3522 = vunpack.c.0.s8 %v3521
        %v3523 = vlaneseq
        %v3524 = vshrl.u32 %v3523, 7
        %v3525 = vsub.s32 %v3522, %v3524
        %v3526 = vrot.slane %v3519, %v3525
        %v3527 = vcombine.low %v2751, %v2752
        %v3529 = vunpack.c.l.s4 1983009808
        %v3530 = vunpack.c.0.s8 %v3529
        %v3531 = vlaneseq
        %v3532 = vshrl.u32 %v3531, 7
        %v3533 = vsub.s32 %v3530, %v3532
        %v3534 = vrot.slane %v3527, %v3533
        %v3535 = vcombine.low %v3510, %v3518
        %v3537 = vunpack.c.l.s4 1934713408
        %v3538 = vunpack.c.0.s8 %v3537
        %v3539 = vlaneseq
        %v3540 = vshrl.u32 %v3539, 7
        %v3541 = vsub.s32 %v3538, %v3540
        %v3542 = vrot.slane %v3535, %v3541
        %v3543 = vcombine.low %v3526, %v3534
        %v3545 = vunpack.c.l.s4 1934713408
        %v3546 = vunpack.c.0.s8 %v3545
        %v3547 = vlaneseq
        %v3548 = vshrl.u32 %v3547, 7
        %v3549 = vsub.s32 %v3546, %v3548
        %v3550 = vrot.slane %v3543, %v3549
        %v3551 = vcombine.low %v3542, %v3550
        %v3552 = vcombine.high %v3542, %v3550
        %v3553 = vpack.c.bf16 %v2851, %v2801
        %v3554 = vpack.c.bf16 %v2951, %v2901
        %v3555 = vpack.c.bf16 %v3051, %v3001
        %v3556 = vpack.c.bf16 %v3151, %v3101
        %v3557 = vpack.c.bf16 %v3251, %v3201
        %v3558 = vpack.c.bf16 %v3351, %v3301
        %v3559 = vpack.c.bf16 %v3451, %v3401
        %v3560 = vpack.c.bf16 %v3551, %v3501
        %v3561 = vpack.c.bf16 %v2852, %v2802
        %v3562 = vpack.c.bf16 %v2952, %v2902
        %v3563 = vpack.c.bf16 %v3052, %v3002
        %v3564 = vpack.c.bf16 %v3152, %v3102
        %v3565 = vpack.c.bf16 %v3252, %v3202
        %v3566 = vpack.c.bf16 %v3352, %v3302
        %v3567 = vpack.c.bf16 %v3452, %v3402
        %v3568 = vpack.c.bf16 %v3552, %v3502
        %v3585 = vunpack.c.l.b16 %v3553
        %v3586 = vunpack.c.h.b16 %v3553
        %v3587 = vunpack.c.l.b16 %v3554
        %v3588 = vunpack.c.h.b16 %v3554
        %v3589 = vunpack.c.l.b16 %v3555
        %v3590 = vunpack.c.h.b16 %v3555
        %v3591 = vunpack.c.l.b16 %v3556
        %v3592 = vunpack.c.h.b16 %v3556
        %v3593 = vunpack.c.l.b16 %v3557
        %v3594 = vunpack.c.h.b16 %v3557
        %v3595 = vunpack.c.l.b16 %v3558
        %v3596 = vunpack.c.h.b16 %v3558
        %v3597 = vunpack.c.l.b16 %v3559
        %v3598 = vunpack.c.h.b16 %v3559
        %v3599 = vunpack.c.l.b16 %v3560
        %v3600 = vunpack.c.h.b16 %v3560
        %v3601 = vunpack.c.l.b16 %v3561
        %v3602 = vunpack.c.h.b16 %v3561
        %v3603 = vunpack.c.l.b16 %v3562
        %v3604 = vunpack.c.h.b16 %v3562
        %v3605 = vunpack.c.l.b16 %v3563
        %v3606 = vunpack.c.h.b16 %v3563
        %v3607 = vunpack.c.l.b16 %v3564
        %v3608 = vunpack.c.h.b16 %v3564
        %v3609 = vunpack.c.l.b16 %v3565
        %v3610 = vunpack.c.h.b16 %v3565
        %v3611 = vunpack.c.l.b16 %v3566
        %v3612 = vunpack.c.h.b16 %v3566
        %v3613 = vunpack.c.l.b16 %v3567
        %v3614 = vunpack.c.h.b16 %v3567
        %v3615 = vunpack.c.l.b16 %v3568
        %v3616 = vunpack.c.h.b16 %v3568
        %v3617 = vpack.c.b16 %v3585, %v3585
        %v3618 = vpack.c.b16 %v3586, %v3586
        %v3619 = vpack.c.b16 %v3587, %v3587
        %v3620 = vpack.c.b16 %v3588, %v3588
        %v3621 = vpack.c.b16 %v3589, %v3589
        %v3622 = vpack.c.b16 %v3590, %v3590
        %v3623 = vpack.c.b16 %v3591, %v3591
        %v3624 = vpack.c.b16 %v3592, %v3592
        %v3625 = vpack.c.b16 %v3593, %v3593
        %v3626 = vpack.c.b16 %v3594, %v3594
        %v3627 = vpack.c.b16 %v3595, %v3595
        %v3628 = vpack.c.b16 %v3596, %v3596
        %v3629 = vpack.c.b16 %v3597, %v3597
        %v3630 = vpack.c.b16 %v3598, %v3598
        %v3631 = vpack.c.b16 %v3599, %v3599
        %v3632 = vpack.c.b16 %v3600, %v3600
        %v3633 = vpack.c.b16 %v3601, %v3601
        %v3634 = vpack.c.b16 %v3602, %v3602
        %v3635 = vpack.c.b16 %v3603, %v3603
        %v3636 = vpack.c.b16 %v3604, %v3604
        %v3637 = vpack.c.b16 %v3605, %v3605
        %v3638 = vpack.c.b16 %v3606, %v3606
        %v3639 = vpack.c.b16 %v3607, %v3607
        %v3640 = vpack.c.b16 %v3608, %v3608
        %v3641 = vpack.c.b16 %v3609, %v3609
        %v3642 = vpack.c.b16 %v3610, %v3610
        %v3643 = vpack.c.b16 %v3611, %v3611
        %v3644 = vpack.c.b16 %v3612, %v3612
        %v3645 = vpack.c.b16 %v3613, %v3613
        %v3646 = vpack.c.b16 %v3614, %v3614
        %v3647 = vpack.c.b16 %v3615, %v3615
        %v3648 = vpack.c.b16 %v3616, %v3616
        %3681 = vst [vmem:[%s338] sm:$0xf] %v3617
        %3682 = vst [vmem:[%s338 + $0x4] sm:$0xf] %v3618
        %3683 = vst [vmem:[%s338 + $0x8] sm:$0xf] %v3619
        %3684 = vst [vmem:[%s338 + $0xc] sm:$0xf] %v3620
        %3685 = vst [vmem:[%s338 + $0x10] sm:$0xf] %v3621
        %3686 = vst [vmem:[%s338 + $0x14] sm:$0xf] %v3622
        %3687 = vst [vmem:[%s338 + $0x18] sm:$0xf] %v3623
        %3688 = vst [vmem:[%s338 + $0x1c] sm:$0xf] %v3624
        %3689 = vst [vmem:[%s338 + $0x20] sm:$0xf] %v3625
        %3690 = vst [vmem:[%s338 + $0x24] sm:$0xf] %v3626
        %3691 = vst [vmem:[%s338 + $0x28] sm:$0xf] %v3627
        %3692 = vst [vmem:[%s338 + $0x2c] sm:$0xf] %v3628
        %3693 = vst [vmem:[%s338 + $0x30] sm:$0xf] %v3629
        %3694 = vst [vmem:[%s338 + $0x34] sm:$0xf] %v3630
        %3695 = vst [vmem:[%s338 + $0x38] sm:$0xf] %v3631
        %3696 = vst [vmem:[%s338 + $0x3c] sm:$0xf] %v3632
        %3697 = vst [vmem:[%s338 + $0x40] sm:$0xf] %v3633
        %3698 = vst [vmem:[%s338 + $0x44] sm:$0xf] %v3634
        %3699 = vst [vmem:[%s338 + $0x48] sm:$0xf] %v3635
        %3700 = vst [vmem:[%s338 + $0x4c] sm:$0xf] %v3636
        %3701 = vst [vmem:[%s338 + $0x50] sm:$0xf] %v3637
        %3702 = vst [vmem:[%s338 + $0x54] sm:$0xf] %v3638
        %3703 = vst [vmem:[%s338 + $0x58] sm:$0xf] %v3639
        %3704 = vst [vmem:[%s338 + $0x5c] sm:$0xf] %v3640
        %3705 = vst [vmem:[%s338 + $0x60] sm:$0xf] %v3641
        %3706 = vst [vmem:[%s338 + $0x64] sm:$0xf] %v3642
        %3707 = vst [vmem:[%s338 + $0x68] sm:$0xf] %v3643
        %3708 = vst [vmem:[%s338 + $0x6c] sm:$0xf] %v3644
        %3709 = vst [vmem:[%s338 + $0x70] sm:$0xf] %v3645
        %3710 = vst [vmem:[%s338 + $0x74] sm:$0xf] %v3646
        %3711 = vst [vmem:[%s338 + $0x78] sm:$0xf] %v3647
        %3712 = vst [vmem:[%s338 + $0x7c] sm:$0xf] %v3648
        %v3713 = vcombine.high %v1506, 0.0
        %v3715 = vunpack.c.l.s4 1983009808
        %v3716 = vunpack.c.0.s8 %v3715
        %v3717 = vlaneseq
        %v3718 = vshrl.u32 %v3717, 7
        %v3719 = vsub.s32 %v3716, %v3718
        %v3720 = vrot.slane %v1506, %v3719
        %v3722 = vunpack.c.l.s4 1983009808
        %v3723 = vunpack.c.0.s8 %v3722
        %v3724 = vlaneseq
        %v3725 = vshrl.u32 %v3724, 7
        %v3726 = vsub.s32 %v3723, %v3725
        %v3727 = vrot.slane %v3713, %v3726
        %v3728 = vcombine.high %v1508, 0.0
        %v3730 = vunpack.c.l.s4 1983009808
        %v3731 = vunpack.c.0.s8 %v3730
        %v3732 = vlaneseq
        %v3733 = vshrl.u32 %v3732, 7
        %v3734 = vsub.s32 %v3731, %v3733
        %v3735 = vrot.slane %v1508, %v3734
        %v3737 = vunpack.c.l.s4 1983009808
        %v3738 = vunpack.c.0.s8 %v3737
        %v3739 = vlaneseq
        %v3740 = vshrl.u32 %v3739, 7
        %v3741 = vsub.s32 %v3738, %v3740
        %v3742 = vrot.slane %v3728, %v3741
        %v3743 = vcombine.low %v3720, %v3735
        %v3744 = vcombine.high %v3720, %v3735
        %v3746 = vunpack.c.l.s4 1934713408
        %v3747 = vunpack.c.0.s8 %v3746
        %v3748 = vlaneseq
        %v3749 = vshrl.u32 %v3748, 7
        %v3750 = vsub.s32 %v3747, %v3749
        %v3751 = vrot.slane %v3743, %v3750
        %v3753 = vunpack.c.l.s4 1934713408
        %v3754 = vunpack.c.0.s8 %v3753
        %v3755 = vlaneseq
        %v3756 = vshrl.u32 %v3755, 7
        %v3757 = vsub.s32 %v3754, %v3756
        %v3758 = vrot.slane %v3744, %v3757
        %v3759 = vcombine.low %v3727, %v3742
        %v3760 = vcombine.high %v3727, %v3742
        %v3762 = vunpack.c.l.s4 1934713408
        %v3763 = vunpack.c.0.s8 %v3762
        %v3764 = vlaneseq
        %v3765 = vshrl.u32 %v3764, 7
        %v3766 = vsub.s32 %v3763, %v3765
        %v3767 = vrot.slane %v3759, %v3766
        %v3769 = vunpack.c.l.s4 1934713408
        %v3770 = vunpack.c.0.s8 %v3769
        %v3771 = vlaneseq
        %v3772 = vshrl.u32 %v3771, 7
        %v3773 = vsub.s32 %v3770, %v3772
        %v3774 = vrot.slane %v3760, %v3773
        %v3775 = vcombine.high %v3751, 0.0
        %v3776 = vcombine.high %v3758, 0.0
        %v3777 = vcombine.high %v3767, 0.0
        %v3778 = vcombine.high %v3774, 0.0
        %v3779 = vcombine.high %v1510, 0.0
        %v3781 = vunpack.c.l.s4 1983009808
        %v3782 = vunpack.c.0.s8 %v3781
        %v3783 = vlaneseq
        %v3784 = vshrl.u32 %v3783, 7
        %v3785 = vsub.s32 %v3782, %v3784
        %v3786 = vrot.slane %v1510, %v3785
        %v3788 = vunpack.c.l.s4 1983009808
        %v3789 = vunpack.c.0.s8 %v3788
        %v3790 = vlaneseq
        %v3791 = vshrl.u32 %v3790, 7
        %v3792 = vsub.s32 %v3789, %v3791
        %v3793 = vrot.slane %v3779, %v3792
        %v3794 = vcombine.high %v1512, 0.0
        %v3796 = vunpack.c.l.s4 1983009808
        %v3797 = vunpack.c.0.s8 %v3796
        %v3798 = vlaneseq
        %v3799 = vshrl.u32 %v3798, 7
        %v3800 = vsub.s32 %v3797, %v3799
        %v3801 = vrot.slane %v1512, %v3800
        %v3803 = vunpack.c.l.s4 1983009808
        %v3804 = vunpack.c.0.s8 %v3803
        %v3805 = vlaneseq
        %v3806 = vshrl.u32 %v3805, 7
        %v3807 = vsub.s32 %v3804, %v3806
        %v3808 = vrot.slane %v3794, %v3807
        %v3809 = vcombine.low %v3786, %v3801
        %v3810 = vcombine.high %v3786, %v3801
        %v3812 = vunpack.c.l.s4 1934713408
        %v3813 = vunpack.c.0.s8 %v3812
        %v3814 = vlaneseq
        %v3815 = vshrl.u32 %v3814, 7
        %v3816 = vsub.s32 %v3813, %v3815
        %v3817 = vrot.slane %v3809, %v3816
        %v3819 = vunpack.c.l.s4 1934713408
        %v3820 = vunpack.c.0.s8 %v3819
        %v3821 = vlaneseq
        %v3822 = vshrl.u32 %v3821, 7
        %v3823 = vsub.s32 %v3820, %v3822
        %v3824 = vrot.slane %v3810, %v3823
        %v3825 = vcombine.low %v3793, %v3808
        %v3826 = vcombine.high %v3793, %v3808
        %v3828 = vunpack.c.l.s4 1934713408
        %v3829 = vunpack.c.0.s8 %v3828
        %v3830 = vlaneseq
        %v3831 = vshrl.u32 %v3830, 7
        %v3832 = vsub.s32 %v3829, %v3831
        %v3833 = vrot.slane %v3825, %v3832
        %v3835 = vunpack.c.l.s4 1934713408
        %v3836 = vunpack.c.0.s8 %v3835
        %v3837 = vlaneseq
        %v3838 = vshrl.u32 %v3837, 7
        %v3839 = vsub.s32 %v3836, %v3838
        %v3840 = vrot.slane %v3826, %v3839
        %v3841 = vcombine.high %v3817, 0.0
        %v3842 = vcombine.high %v3824, 0.0
        %v3843 = vcombine.high %v3833, 0.0
        %v3844 = vcombine.high %v3840, 0.0
        %v3845 = vcombine.high %v1516, 0.0
        %v3847 = vunpack.c.l.s4 1983009808
        %v3848 = vunpack.c.0.s8 %v3847
        %v3849 = vlaneseq
        %v3850 = vshrl.u32 %v3849, 7
        %v3851 = vsub.s32 %v3848, %v3850
        %v3852 = vrot.slane %v1516, %v3851
        %v3854 = vunpack.c.l.s4 1983009808
        %v3855 = vunpack.c.0.s8 %v3854
        %v3856 = vlaneseq
        %v3857 = vshrl.u32 %v3856, 7
        %v3858 = vsub.s32 %v3855, %v3857
        %v3859 = vrot.slane %v3845, %v3858
        %v3860 = vcombine.high %v1518, 0.0
        %v3862 = vunpack.c.l.s4 1983009808
        %v3863 = vunpack.c.0.s8 %v3862
        %v3864 = vlaneseq
        %v3865 = vshrl.u32 %v3864, 7
        %v3866 = vsub.s32 %v3863, %v3865
        %v3867 = vrot.slane %v1518, %v3866
        %v3869 = vunpack.c.l.s4 1983009808
        %v3870 = vunpack.c.0.s8 %v3869
        %v3871 = vlaneseq
        %v3872 = vshrl.u32 %v3871, 7
        %v3873 = vsub.s32 %v3870, %v3872
        %v3874 = vrot.slane %v3860, %v3873
        %v3875 = vcombine.low %v3852, %v3867
        %v3876 = vcombine.high %v3852, %v3867
        %v3878 = vunpack.c.l.s4 1934713408
        %v3879 = vunpack.c.0.s8 %v3878
        %v3880 = vlaneseq
        %v3881 = vshrl.u32 %v3880, 7
        %v3882 = vsub.s32 %v3879, %v3881
        %v3883 = vrot.slane %v3875, %v3882
        %v3885 = vunpack.c.l.s4 1934713408
        %v3886 = vunpack.c.0.s8 %v3885
        %v3887 = vlaneseq
        %v3888 = vshrl.u32 %v3887, 7
        %v3889 = vsub.s32 %v3886, %v3888
        %v3890 = vrot.slane %v3876, %v3889
        %v3891 = vcombine.low %v3859, %v3874
        %v3892 = vcombine.high %v3859, %v3874
        %v3894 = vunpack.c.l.s4 1934713408
        %v3895 = vunpack.c.0.s8 %v3894
        %v3896 = vlaneseq
        %v3897 = vshrl.u32 %v3896, 7
        %v3898 = vsub.s32 %v3895, %v3897
        %v3899 = vrot.slane %v3891, %v3898
        %v3901 = vunpack.c.l.s4 1934713408
        %v3902 = vunpack.c.0.s8 %v3901
        %v3903 = vlaneseq
        %v3904 = vshrl.u32 %v3903, 7
        %v3905 = vsub.s32 %v3902, %v3904
        %v3906 = vrot.slane %v3892, %v3905
        %v3907 = vcombine.high %v3883, 0.0
        %v3908 = vcombine.high %v3890, 0.0
        %v3909 = vcombine.high %v3899, 0.0
        %v3910 = vcombine.high %v3906, 0.0
        %v3911 = vcombine.high %v1520, 0.0
        %v3913 = vunpack.c.l.s4 1983009808
        %v3914 = vunpack.c.0.s8 %v3913
        %v3915 = vlaneseq
        %v3916 = vshrl.u32 %v3915, 7
        %v3917 = vsub.s32 %v3914, %v3916
        %v3918 = vrot.slane %v1520, %v3917
        %v3920 = vunpack.c.l.s4 1983009808
        %v3921 = vunpack.c.0.s8 %v3920
        %v3922 = vlaneseq
        %v3923 = vshrl.u32 %v3922, 7
        %v3924 = vsub.s32 %v3921, %v3923
        %v3925 = vrot.slane %v3911, %v3924
        %v3926 = vcombine.high %v1522, 0.0
        %v3928 = vunpack.c.l.s4 1983009808
        %v3929 = vunpack.c.0.s8 %v3928
        %v3930 = vlaneseq
        %v3931 = vshrl.u32 %v3930, 7
        %v3932 = vsub.s32 %v3929, %v3931
        %v3933 = vrot.slane %v1522, %v3932
        %v3935 = vunpack.c.l.s4 1983009808
        %v3936 = vunpack.c.0.s8 %v3935
        %v3937 = vlaneseq
        %v3938 = vshrl.u32 %v3937, 7
        %v3939 = vsub.s32 %v3936, %v3938
        %v3940 = vrot.slane %v3926, %v3939
        %v3941 = vcombine.low %v3918, %v3933
        %v3942 = vcombine.high %v3918, %v3933
        %v3944 = vunpack.c.l.s4 1934713408
        %v3945 = vunpack.c.0.s8 %v3944
        %v3946 = vlaneseq
        %v3947 = vshrl.u32 %v3946, 7
        %v3948 = vsub.s32 %v3945, %v3947
        %v3949 = vrot.slane %v3941, %v3948
        %v3951 = vunpack.c.l.s4 1934713408
        %v3952 = vunpack.c.0.s8 %v3951
        %v3953 = vlaneseq
        %v3954 = vshrl.u32 %v3953, 7
        %v3955 = vsub.s32 %v3952, %v3954
        %v3956 = vrot.slane %v3942, %v3955
        %v3957 = vcombine.low %v3925, %v3940
        %v3958 = vcombine.high %v3925, %v3940
        %v3960 = vunpack.c.l.s4 1934713408
        %v3961 = vunpack.c.0.s8 %v3960
        %v3962 = vlaneseq
        %v3963 = vshrl.u32 %v3962, 7
        %v3964 = vsub.s32 %v3961, %v3963
        %v3965 = vrot.slane %v3957, %v3964
        %v3967 = vunpack.c.l.s4 1934713408
        %v3968 = vunpack.c.0.s8 %v3967
        %v3969 = vlaneseq
        %v3970 = vshrl.u32 %v3969, 7
        %v3971 = vsub.s32 %v3968, %v3970
        %v3972 = vrot.slane %v3958, %v3971
        %v3973 = vcombine.high %v3949, 0.0
        %v3974 = vcombine.high %v3956, 0.0
        %v3975 = vcombine.high %v3965, 0.0
        %v3976 = vcombine.high %v3972, 0.0
        %v3977 = vcombine.high %v1526, 0.0
        %v3979 = vunpack.c.l.s4 1983009808
        %v3980 = vunpack.c.0.s8 %v3979
        %v3981 = vlaneseq
        %v3982 = vshrl.u32 %v3981, 7
        %v3983 = vsub.s32 %v3980, %v3982
        %v3984 = vrot.slane %v1526, %v3983
        %v3986 = vunpack.c.l.s4 1983009808
        %v3987 = vunpack.c.0.s8 %v3986
        %v3988 = vlaneseq
        %v3989 = vshrl.u32 %v3988, 7
        %v3990 = vsub.s32 %v3987, %v3989
        %v3991 = vrot.slane %v3977, %v3990
        %v3992 = vcombine.high %v1528, 0.0
        %v3994 = vunpack.c.l.s4 1983009808
        %v3995 = vunpack.c.0.s8 %v3994
        %v3996 = vlaneseq
        %v3997 = vshrl.u32 %v3996, 7
        %v3998 = vsub.s32 %v3995, %v3997
        %v3999 = vrot.slane %v1528, %v3998
        %v4001 = vunpack.c.l.s4 1983009808
        %v4002 = vunpack.c.0.s8 %v4001
        %v4003 = vlaneseq
        %v4004 = vshrl.u32 %v4003, 7
        %v4005 = vsub.s32 %v4002, %v4004
        %v4006 = vrot.slane %v3992, %v4005
        %v4007 = vcombine.low %v3984, %v3999
        %v4008 = vcombine.high %v3984, %v3999
        %v4010 = vunpack.c.l.s4 1934713408
        %v4011 = vunpack.c.0.s8 %v4010
        %v4012 = vlaneseq
        %v4013 = vshrl.u32 %v4012, 7
        %v4014 = vsub.s32 %v4011, %v4013
        %v4015 = vrot.slane %v4007, %v4014
        %v4017 = vunpack.c.l.s4 1934713408
        %v4018 = vunpack.c.0.s8 %v4017
        %v4019 = vlaneseq
        %v4020 = vshrl.u32 %v4019, 7
        %v4021 = vsub.s32 %v4018, %v4020
        %v4022 = vrot.slane %v4008, %v4021
        %v4023 = vcombine.low %v3991, %v4006
        %v4024 = vcombine.high %v3991, %v4006
        %v4026 = vunpack.c.l.s4 1934713408
        %v4027 = vunpack.c.0.s8 %v4026
        %v4028 = vlaneseq
        %v4029 = vshrl.u32 %v4028, 7
        %v4030 = vsub.s32 %v4027, %v4029
        %v4031 = vrot.slane %v4023, %v4030
        %v4033 = vunpack.c.l.s4 1934713408
        %v4034 = vunpack.c.0.s8 %v4033
        %v4035 = vlaneseq
        %v4036 = vshrl.u32 %v4035, 7
        %v4037 = vsub.s32 %v4034, %v4036
        %v4038 = vrot.slane %v4024, %v4037
        %v4039 = vcombine.high %v4015, 0.0
        %v4040 = vcombine.high %v4022, 0.0
        %v4041 = vcombine.high %v4031, 0.0
        %v4042 = vcombine.high %v4038, 0.0
        %v4043 = vcombine.high %v1530, 0.0
        %v4045 = vunpack.c.l.s4 1983009808
        %v4046 = vunpack.c.0.s8 %v4045
        %v4047 = vlaneseq
        %v4048 = vshrl.u32 %v4047, 7
        %v4049 = vsub.s32 %v4046, %v4048
        %v4050 = vrot.slane %v1530, %v4049
        %v4052 = vunpack.c.l.s4 1983009808
        %v4053 = vunpack.c.0.s8 %v4052
        %v4054 = vlaneseq
        %v4055 = vshrl.u32 %v4054, 7
        %v4056 = vsub.s32 %v4053, %v4055
        %v4057 = vrot.slane %v4043, %v4056
        %v4058 = vcombine.high %v1532, 0.0
        %v4060 = vunpack.c.l.s4 1983009808
        %v4061 = vunpack.c.0.s8 %v4060
        %v4062 = vlaneseq
        %v4063 = vshrl.u32 %v4062, 7
        %v4064 = vsub.s32 %v4061, %v4063
        %v4065 = vrot.slane %v1532, %v4064
        %v4067 = vunpack.c.l.s4 1983009808
        %v4068 = vunpack.c.0.s8 %v4067
        %v4069 = vlaneseq
        %v4070 = vshrl.u32 %v4069, 7
        %v4071 = vsub.s32 %v4068, %v4070
        %v4072 = vrot.slane %v4058, %v4071
        %v4073 = vcombine.low %v4050, %v4065
        %v4074 = vcombine.high %v4050, %v4065
        %v4076 = vunpack.c.l.s4 1934713408
        %v4077 = vunpack.c.0.s8 %v4076
        %v4078 = vlaneseq
        %v4079 = vshrl.u32 %v4078, 7
        %v4080 = vsub.s32 %v4077, %v4079
        %v4081 = vrot.slane %v4073, %v4080
        %v4083 = vunpack.c.l.s4 1934713408
        %v4084 = vunpack.c.0.s8 %v4083
        %v4085 = vlaneseq
        %v4086 = vshrl.u32 %v4085, 7
        %v4087 = vsub.s32 %v4084, %v4086
        %v4088 = vrot.slane %v4074, %v4087
        %v4089 = vcombine.low %v4057, %v4072
        %v4090 = vcombine.high %v4057, %v4072
        %v4092 = vunpack.c.l.s4 1934713408
        %v4093 = vunpack.c.0.s8 %v4092
        %v4094 = vlaneseq
        %v4095 = vshrl.u32 %v4094, 7
        %v4096 = vsub.s32 %v4093, %v4095
        %v4097 = vrot.slane %v4089, %v4096
        %v4099 = vunpack.c.l.s4 1934713408
        %v4100 = vunpack.c.0.s8 %v4099
        %v4101 = vlaneseq
        %v4102 = vshrl.u32 %v4101, 7
        %v4103 = vsub.s32 %v4100, %v4102
        %v4104 = vrot.slane %v4090, %v4103
        %v4105 = vcombine.high %v4081, 0.0
        %v4106 = vcombine.high %v4088, 0.0
        %v4107 = vcombine.high %v4097, 0.0
        %v4108 = vcombine.high %v4104, 0.0
        %v4109 = vcombine.high %v1536, 0.0
        %v4111 = vunpack.c.l.s4 1983009808
        %v4112 = vunpack.c.0.s8 %v4111
        %v4113 = vlaneseq
        %v4114 = vshrl.u32 %v4113, 7
        %v4115 = vsub.s32 %v4112, %v4114
        %v4116 = vrot.slane %v1536, %v4115
        %v4118 = vunpack.c.l.s4 1983009808
        %v4119 = vunpack.c.0.s8 %v4118
        %v4120 = vlaneseq
        %v4121 = vshrl.u32 %v4120, 7
        %v4122 = vsub.s32 %v4119, %v4121
        %v4123 = vrot.slane %v4109, %v4122
        %v4124 = vcombine.high %v1538, 0.0
        %v4126 = vunpack.c.l.s4 1983009808
        %v4127 = vunpack.c.0.s8 %v4126
        %v4128 = vlaneseq
        %v4129 = vshrl.u32 %v4128, 7
        %v4130 = vsub.s32 %v4127, %v4129
        %v4131 = vrot.slane %v1538, %v4130
        %v4133 = vunpack.c.l.s4 1983009808
        %v4134 = vunpack.c.0.s8 %v4133
        %v4135 = vlaneseq
        %v4136 = vshrl.u32 %v4135, 7
        %v4137 = vsub.s32 %v4134, %v4136
        %v4138 = vrot.slane %v4124, %v4137
        %v4139 = vcombine.low %v4116, %v4131
        %v4140 = vcombine.high %v4116, %v4131
        %v4142 = vunpack.c.l.s4 1934713408
        %v4143 = vunpack.c.0.s8 %v4142
        %v4144 = vlaneseq
        %v4145 = vshrl.u32 %v4144, 7
        %v4146 = vsub.s32 %v4143, %v4145
        %v4147 = vrot.slane %v4139, %v4146
        %v4149 = vunpack.c.l.s4 1934713408
        %v4150 = vunpack.c.0.s8 %v4149
        %v4151 = vlaneseq
        %v4152 = vshrl.u32 %v4151, 7
        %v4153 = vsub.s32 %v4150, %v4152
        %v4154 = vrot.slane %v4140, %v4153
        %v4155 = vcombine.low %v4123, %v4138
        %v4156 = vcombine.high %v4123, %v4138
        %v4158 = vunpack.c.l.s4 1934713408
        %v4159 = vunpack.c.0.s8 %v4158
        %v4160 = vlaneseq
        %v4161 = vshrl.u32 %v4160, 7
        %v4162 = vsub.s32 %v4159, %v4161
        %v4163 = vrot.slane %v4155, %v4162
        %v4165 = vunpack.c.l.s4 1934713408
        %v4166 = vunpack.c.0.s8 %v4165
        %v4167 = vlaneseq
        %v4168 = vshrl.u32 %v4167, 7
        %v4169 = vsub.s32 %v4166, %v4168
        %v4170 = vrot.slane %v4156, %v4169
        %v4171 = vcombine.high %v4147, 0.0
        %v4172 = vcombine.high %v4154, 0.0
        %v4173 = vcombine.high %v4163, 0.0
        %v4174 = vcombine.high %v4170, 0.0
        %v4175 = vcombine.high %v1540, 0.0
        %v4177 = vunpack.c.l.s4 1983009808
        %v4178 = vunpack.c.0.s8 %v4177
        %v4179 = vlaneseq
        %v4180 = vshrl.u32 %v4179, 7
        %v4181 = vsub.s32 %v4178, %v4180
        %v4182 = vrot.slane %v1540, %v4181
        %v4184 = vunpack.c.l.s4 1983009808
        %v4185 = vunpack.c.0.s8 %v4184
        %v4186 = vlaneseq
        %v4187 = vshrl.u32 %v4186, 7
        %v4188 = vsub.s32 %v4185, %v4187
        %v4189 = vrot.slane %v4175, %v4188
        %v4190 = vcombine.high %v1542, 0.0
        %v4192 = vunpack.c.l.s4 1983009808
        %v4193 = vunpack.c.0.s8 %v4192
        %v4194 = vlaneseq
        %v4195 = vshrl.u32 %v4194, 7
        %v4196 = vsub.s32 %v4193, %v4195
        %v4197 = vrot.slane %v1542, %v4196
        %v4199 = vunpack.c.l.s4 1983009808
        %v4200 = vunpack.c.0.s8 %v4199
        %v4201 = vlaneseq
        %v4202 = vshrl.u32 %v4201, 7
        %v4203 = vsub.s32 %v4200, %v4202
        %v4204 = vrot.slane %v4190, %v4203
        %v4205 = vcombine.low %v4182, %v4197
        %v4206 = vcombine.high %v4182, %v4197
        %v4208 = vunpack.c.l.s4 1934713408
        %v4209 = vunpack.c.0.s8 %v4208
        %v4210 = vlaneseq
        %v4211 = vshrl.u32 %v4210, 7
        %v4212 = vsub.s32 %v4209, %v4211
        %v4213 = vrot.slane %v4205, %v4212
        %v4215 = vunpack.c.l.s4 1934713408
        %v4216 = vunpack.c.0.s8 %v4215
        %v4217 = vlaneseq
        %v4218 = vshrl.u32 %v4217, 7
        %v4219 = vsub.s32 %v4216, %v4218
        %v4220 = vrot.slane %v4206, %v4219
        %v4221 = vcombine.low %v4189, %v4204
        %v4222 = vcombine.high %v4189, %v4204
        %v4224 = vunpack.c.l.s4 1934713408
        %v4225 = vunpack.c.0.s8 %v4224
        %v4226 = vlaneseq
        %v4227 = vshrl.u32 %v4226, 7
        %v4228 = vsub.s32 %v4225, %v4227
        %v4229 = vrot.slane %v4221, %v4228
        %v4231 = vunpack.c.l.s4 1934713408
        %v4232 = vunpack.c.0.s8 %v4231
        %v4233 = vlaneseq
        %v4234 = vshrl.u32 %v4233, 7
        %v4235 = vsub.s32 %v4232, %v4234
        %v4236 = vrot.slane %v4222, %v4235
        %v4237 = vcombine.high %v4213, 0.0
        %v4238 = vcombine.high %v4220, 0.0
        %v4239 = vcombine.high %v4229, 0.0
        %v4240 = vcombine.high %v4236, 0.0
        %v4241 = vcombine.high %v1546, 0.0
        %v4243 = vunpack.c.l.s4 1983009808
        %v4244 = vunpack.c.0.s8 %v4243
        %v4245 = vlaneseq
        %v4246 = vshrl.u32 %v4245, 7
        %v4247 = vsub.s32 %v4244, %v4246
        %v4248 = vrot.slane %v1546, %v4247
        %v4250 = vunpack.c.l.s4 1983009808
        %v4251 = vunpack.c.0.s8 %v4250
        %v4252 = vlaneseq
        %v4253 = vshrl.u32 %v4252, 7
        %v4254 = vsub.s32 %v4251, %v4253
        %v4255 = vrot.slane %v4241, %v4254
        %v4256 = vcombine.high %v1548, 0.0
        %v4258 = vunpack.c.l.s4 1983009808
        %v4259 = vunpack.c.0.s8 %v4258
        %v4260 = vlaneseq
        %v4261 = vshrl.u32 %v4260, 7
        %v4262 = vsub.s32 %v4259, %v4261
        %v4263 = vrot.slane %v1548, %v4262
        %v4265 = vunpack.c.l.s4 1983009808
        %v4266 = vunpack.c.0.s8 %v4265
        %v4267 = vlaneseq
        %v4268 = vshrl.u32 %v4267, 7
        %v4269 = vsub.s32 %v4266, %v4268
        %v4270 = vrot.slane %v4256, %v4269
        %v4271 = vcombine.low %v4248, %v4263
        %v4272 = vcombine.high %v4248, %v4263
        %v4274 = vunpack.c.l.s4 1934713408
        %v4275 = vunpack.c.0.s8 %v4274
        %v4276 = vlaneseq
        %v4277 = vshrl.u32 %v4276, 7
        %v4278 = vsub.s32 %v4275, %v4277
        %v4279 = vrot.slane %v4271, %v4278
        %v4281 = vunpack.c.l.s4 1934713408
        %v4282 = vunpack.c.0.s8 %v4281
        %v4283 = vlaneseq
        %v4284 = vshrl.u32 %v4283, 7
        %v4285 = vsub.s32 %v4282, %v4284
        %v4286 = vrot.slane %v4272, %v4285
        %v4287 = vcombine.low %v4255, %v4270
        %v4288 = vcombine.high %v4255, %v4270
        %v4290 = vunpack.c.l.s4 1934713408
        %v4291 = vunpack.c.0.s8 %v4290
        %v4292 = vlaneseq
        %v4293 = vshrl.u32 %v4292, 7
        %v4294 = vsub.s32 %v4291, %v4293
        %v4295 = vrot.slane %v4287, %v4294
        %v4297 = vunpack.c.l.s4 1934713408
        %v4298 = vunpack.c.0.s8 %v4297
        %v4299 = vlaneseq
        %v4300 = vshrl.u32 %v4299, 7
        %v4301 = vsub.s32 %v4298, %v4300
        %v4302 = vrot.slane %v4288, %v4301
        %v4303 = vcombine.high %v4279, 0.0
        %v4304 = vcombine.high %v4286, 0.0
        %v4305 = vcombine.high %v4295, 0.0
        %v4306 = vcombine.high %v4302, 0.0
        %v4307 = vcombine.high %v1550, 0.0
        %v4309 = vunpack.c.l.s4 1983009808
        %v4310 = vunpack.c.0.s8 %v4309
        %v4311 = vlaneseq
        %v4312 = vshrl.u32 %v4311, 7
        %v4313 = vsub.s32 %v4310, %v4312
        %v4314 = vrot.slane %v1550, %v4313
        %v4316 = vunpack.c.l.s4 1983009808
        %v4317 = vunpack.c.0.s8 %v4316
        %v4318 = vlaneseq
        %v4319 = vshrl.u32 %v4318, 7
        %v4320 = vsub.s32 %v4317, %v4319
        %v4321 = vrot.slane %v4307, %v4320
        %v4322 = vcombine.high %v1552, 0.0
        %v4324 = vunpack.c.l.s4 1983009808
        %v4325 = vunpack.c.0.s8 %v4324
        %v4326 = vlaneseq
        %v4327 = vshrl.u32 %v4326, 7
        %v4328 = vsub.s32 %v4325, %v4327
        %v4329 = vrot.slane %v1552, %v4328
        %v4331 = vunpack.c.l.s4 1983009808
        %v4332 = vunpack.c.0.s8 %v4331
        %v4333 = vlaneseq
        %v4334 = vshrl.u32 %v4333, 7
        %v4335 = vsub.s32 %v4332, %v4334
        %v4336 = vrot.slane %v4322, %v4335
        %v4337 = vcombine.low %v4314, %v4329
        %v4338 = vcombine.high %v4314, %v4329
        %v4340 = vunpack.c.l.s4 1934713408
        %v4341 = vunpack.c.0.s8 %v4340
        %v4342 = vlaneseq
        %v4343 = vshrl.u32 %v4342, 7
        %v4344 = vsub.s32 %v4341, %v4343
        %v4345 = vrot.slane %v4337, %v4344
        %v4347 = vunpack.c.l.s4 1934713408
        %v4348 = vunpack.c.0.s8 %v4347
        %v4349 = vlaneseq
        %v4350 = vshrl.u32 %v4349, 7
        %v4351 = vsub.s32 %v4348, %v4350
        %v4352 = vrot.slane %v4338, %v4351
        %v4353 = vcombine.low %v4321, %v4336
        %v4354 = vcombine.high %v4321, %v4336
        %v4356 = vunpack.c.l.s4 1934713408
        %v4357 = vunpack.c.0.s8 %v4356
        %v4358 = vlaneseq
        %v4359 = vshrl.u32 %v4358, 7
        %v4360 = vsub.s32 %v4357, %v4359
        %v4361 = vrot.slane %v4353, %v4360
        %v4363 = vunpack.c.l.s4 1934713408
        %v4364 = vunpack.c.0.s8 %v4363
        %v4365 = vlaneseq
        %v4366 = vshrl.u32 %v4365, 7
        %v4367 = vsub.s32 %v4364, %v4366
        %v4368 = vrot.slane %v4354, %v4367
        %v4369 = vcombine.high %v4345, 0.0
        %v4370 = vcombine.high %v4352, 0.0
        %v4371 = vcombine.high %v4361, 0.0
        %v4372 = vcombine.high %v4368, 0.0
        %v4373 = vcombine.high %v1556, 0.0
        %v4375 = vunpack.c.l.s4 1983009808
        %v4376 = vunpack.c.0.s8 %v4375
        %v4377 = vlaneseq
        %v4378 = vshrl.u32 %v4377, 7
        %v4379 = vsub.s32 %v4376, %v4378
        %v4380 = vrot.slane %v1556, %v4379
        %v4382 = vunpack.c.l.s4 1983009808
        %v4383 = vunpack.c.0.s8 %v4382
        %v4384 = vlaneseq
        %v4385 = vshrl.u32 %v4384, 7
        %v4386 = vsub.s32 %v4383, %v4385
        %v4387 = vrot.slane %v4373, %v4386
        %v4388 = vcombine.high %v1558, 0.0
        %v4390 = vunpack.c.l.s4 1983009808
        %v4391 = vunpack.c.0.s8 %v4390
        %v4392 = vlaneseq
        %v4393 = vshrl.u32 %v4392, 7
        %v4394 = vsub.s32 %v4391, %v4393
        %v4395 = vrot.slane %v1558, %v4394
        %v4397 = vunpack.c.l.s4 1983009808
        %v4398 = vunpack.c.0.s8 %v4397
        %v4399 = vlaneseq
        %v4400 = vshrl.u32 %v4399, 7
        %v4401 = vsub.s32 %v4398, %v4400
        %v4402 = vrot.slane %v4388, %v4401
        %v4403 = vcombine.low %v4380, %v4395
        %v4404 = vcombine.high %v4380, %v4395
        %v4406 = vunpack.c.l.s4 1934713408
        %v4407 = vunpack.c.0.s8 %v4406
        %v4408 = vlaneseq
        %v4409 = vshrl.u32 %v4408, 7
        %v4410 = vsub.s32 %v4407, %v4409
        %v4411 = vrot.slane %v4403, %v4410
        %v4413 = vunpack.c.l.s4 1934713408
        %v4414 = vunpack.c.0.s8 %v4413
        %v4415 = vlaneseq
        %v4416 = vshrl.u32 %v4415, 7
        %v4417 = vsub.s32 %v4414, %v4416
        %v4418 = vrot.slane %v4404, %v4417
        %v4419 = vcombine.low %v4387, %v4402
        %v4420 = vcombine.high %v4387, %v4402
        %v4422 = vunpack.c.l.s4 1934713408
        %v4423 = vunpack.c.0.s8 %v4422
        %v4424 = vlaneseq
        %v4425 = vshrl.u32 %v4424, 7
        %v4426 = vsub.s32 %v4423, %v4425
        %v4427 = vrot.slane %v4419, %v4426
        %v4429 = vunpack.c.l.s4 1934713408
        %v4430 = vunpack.c.0.s8 %v4429
        %v4431 = vlaneseq
        %v4432 = vshrl.u32 %v4431, 7
        %v4433 = vsub.s32 %v4430, %v4432
        %v4434 = vrot.slane %v4420, %v4433
        %v4435 = vcombine.high %v4411, 0.0
        %v4436 = vcombine.high %v4418, 0.0
        %v4437 = vcombine.high %v4427, 0.0
        %v4438 = vcombine.high %v4434, 0.0
        %v4439 = vcombine.high %v1560, 0.0
        %v4441 = vunpack.c.l.s4 1983009808
        %v4442 = vunpack.c.0.s8 %v4441
        %v4443 = vlaneseq
        %v4444 = vshrl.u32 %v4443, 7
        %v4445 = vsub.s32 %v4442, %v4444
        %v4446 = vrot.slane %v1560, %v4445
        %v4448 = vunpack.c.l.s4 1983009808
        %v4449 = vunpack.c.0.s8 %v4448
        %v4450 = vlaneseq
        %v4451 = vshrl.u32 %v4450, 7
        %v4452 = vsub.s32 %v4449, %v4451
        %v4453 = vrot.slane %v4439, %v4452
        %v4454 = vcombine.high %v1562, 0.0
        %v4456 = vunpack.c.l.s4 1983009808
        %v4457 = vunpack.c.0.s8 %v4456
        %v4458 = vlaneseq
        %v4459 = vshrl.u32 %v4458, 7
        %v4460 = vsub.s32 %v4457, %v4459
        %v4461 = vrot.slane %v1562, %v4460
        %v4463 = vunpack.c.l.s4 1983009808
        %v4464 = vunpack.c.0.s8 %v4463
        %v4465 = vlaneseq
        %v4466 = vshrl.u32 %v4465, 7
        %v4467 = vsub.s32 %v4464, %v4466
        %v4468 = vrot.slane %v4454, %v4467
        %v4469 = vcombine.low %v4446, %v4461
        %v4470 = vcombine.high %v4446, %v4461
        %v4472 = vunpack.c.l.s4 1934713408
        %v4473 = vunpack.c.0.s8 %v4472
        %v4474 = vlaneseq
        %v4475 = vshrl.u32 %v4474, 7
        %v4476 = vsub.s32 %v4473, %v4475
        %v4477 = vrot.slane %v4469, %v4476
        %v4479 = vunpack.c.l.s4 1934713408
        %v4480 = vunpack.c.0.s8 %v4479
        %v4481 = vlaneseq
        %v4482 = vshrl.u32 %v4481, 7
        %v4483 = vsub.s32 %v4480, %v4482
        %v4484 = vrot.slane %v4470, %v4483
        %v4485 = vcombine.low %v4453, %v4468
        %v4486 = vcombine.high %v4453, %v4468
        %v4488 = vunpack.c.l.s4 1934713408
        %v4489 = vunpack.c.0.s8 %v4488
        %v4490 = vlaneseq
        %v4491 = vshrl.u32 %v4490, 7
        %v4492 = vsub.s32 %v4489, %v4491
        %v4493 = vrot.slane %v4485, %v4492
        %v4495 = vunpack.c.l.s4 1934713408
        %v4496 = vunpack.c.0.s8 %v4495
        %v4497 = vlaneseq
        %v4498 = vshrl.u32 %v4497, 7
        %v4499 = vsub.s32 %v4496, %v4498
        %v4500 = vrot.slane %v4486, %v4499
        %v4501 = vcombine.high %v4477, 0.0
        %v4502 = vcombine.high %v4484, 0.0
        %v4503 = vcombine.high %v4493, 0.0
        %v4504 = vcombine.high %v4500, 0.0
        %v4505 = vcombine.high %v1566, 0.0
        %v4507 = vunpack.c.l.s4 1983009808
        %v4508 = vunpack.c.0.s8 %v4507
        %v4509 = vlaneseq
        %v4510 = vshrl.u32 %v4509, 7
        %v4511 = vsub.s32 %v4508, %v4510
        %v4512 = vrot.slane %v1566, %v4511
        %v4514 = vunpack.c.l.s4 1983009808
        %v4515 = vunpack.c.0.s8 %v4514
        %v4516 = vlaneseq
        %v4517 = vshrl.u32 %v4516, 7
        %v4518 = vsub.s32 %v4515, %v4517
        %v4519 = vrot.slane %v4505, %v4518
        %v4520 = vcombine.high %v1568, 0.0
        %v4522 = vunpack.c.l.s4 1983009808
        %v4523 = vunpack.c.0.s8 %v4522
        %v4524 = vlaneseq
        %v4525 = vshrl.u32 %v4524, 7
        %v4526 = vsub.s32 %v4523, %v4525
        %v4527 = vrot.slane %v1568, %v4526
        %v4529 = vunpack.c.l.s4 1983009808
        %v4530 = vunpack.c.0.s8 %v4529
        %v4531 = vlaneseq
        %v4532 = vshrl.u32 %v4531, 7
        %v4533 = vsub.s32 %v4530, %v4532
        %v4534 = vrot.slane %v4520, %v4533
        %v4535 = vcombine.low %v4512, %v4527
        %v4536 = vcombine.high %v4512, %v4527
        %v4538 = vunpack.c.l.s4 1934713408
        %v4539 = vunpack.c.0.s8 %v4538
        %v4540 = vlaneseq
        %v4541 = vshrl.u32 %v4540, 7
        %v4542 = vsub.s32 %v4539, %v4541
        %v4543 = vrot.slane %v4535, %v4542
        %v4545 = vunpack.c.l.s4 1934713408
        %v4546 = vunpack.c.0.s8 %v4545
        %v4547 = vlaneseq
        %v4548 = vshrl.u32 %v4547, 7
        %v4549 = vsub.s32 %v4546, %v4548
        %v4550 = vrot.slane %v4536, %v4549
        %v4551 = vcombine.low %v4519, %v4534
        %v4552 = vcombine.high %v4519, %v4534
        %v4554 = vunpack.c.l.s4 1934713408
        %v4555 = vunpack.c.0.s8 %v4554
        %v4556 = vlaneseq
        %v4557 = vshrl.u32 %v4556, 7
        %v4558 = vsub.s32 %v4555, %v4557
        %v4559 = vrot.slane %v4551, %v4558
        %v4561 = vunpack.c.l.s4 1934713408
        %v4562 = vunpack.c.0.s8 %v4561
        %v4563 = vlaneseq
        %v4564 = vshrl.u32 %v4563, 7
        %v4565 = vsub.s32 %v4562, %v4564
        %v4566 = vrot.slane %v4552, %v4565
        %v4567 = vcombine.high %v4543, 0.0
        %v4568 = vcombine.high %v4550, 0.0
        %v4569 = vcombine.high %v4559, 0.0
        %v4570 = vcombine.high %v4566, 0.0
        %v4571 = vcombine.high %v1570, 0.0
        %v4573 = vunpack.c.l.s4 1983009808
        %v4574 = vunpack.c.0.s8 %v4573
        %v4575 = vlaneseq
        %v4576 = vshrl.u32 %v4575, 7
        %v4577 = vsub.s32 %v4574, %v4576
        %v4578 = vrot.slane %v1570, %v4577
        %v4580 = vunpack.c.l.s4 1983009808
        %v4581 = vunpack.c.0.s8 %v4580
        %v4582 = vlaneseq
        %v4583 = vshrl.u32 %v4582, 7
        %v4584 = vsub.s32 %v4581, %v4583
        %v4585 = vrot.slane %v4571, %v4584
        %v4586 = vcombine.high %v1572, 0.0
        %v4588 = vunpack.c.l.s4 1983009808
        %v4589 = vunpack.c.0.s8 %v4588
        %v4590 = vlaneseq
        %v4591 = vshrl.u32 %v4590, 7
        %v4592 = vsub.s32 %v4589, %v4591
        %v4593 = vrot.slane %v1572, %v4592
        %v4595 = vunpack.c.l.s4 1983009808
        %v4596 = vunpack.c.0.s8 %v4595
        %v4597 = vlaneseq
        %v4598 = vshrl.u32 %v4597, 7
        %v4599 = vsub.s32 %v4596, %v4598
        %v4600 = vrot.slane %v4586, %v4599
        %v4601 = vcombine.low %v4578, %v4593
        %v4602 = vcombine.high %v4578, %v4593
        %v4604 = vunpack.c.l.s4 1934713408
        %v4605 = vunpack.c.0.s8 %v4604
        %v4606 = vlaneseq
        %v4607 = vshrl.u32 %v4606, 7
        %v4608 = vsub.s32 %v4605, %v4607
        %v4609 = vrot.slane %v4601, %v4608
        %v4611 = vunpack.c.l.s4 1934713408
        %v4612 = vunpack.c.0.s8 %v4611
        %v4613 = vlaneseq
        %v4614 = vshrl.u32 %v4613, 7
        %v4615 = vsub.s32 %v4612, %v4614
        %v4616 = vrot.slane %v4602, %v4615
        %v4617 = vcombine.low %v4585, %v4600
        %v4618 = vcombine.high %v4585, %v4600
        %v4620 = vunpack.c.l.s4 1934713408
        %v4621 = vunpack.c.0.s8 %v4620
        %v4622 = vlaneseq
        %v4623 = vshrl.u32 %v4622, 7
        %v4624 = vsub.s32 %v4621, %v4623
        %v4625 = vrot.slane %v4617, %v4624
        %v4627 = vunpack.c.l.s4 1934713408
        %v4628 = vunpack.c.0.s8 %v4627
        %v4629 = vlaneseq
        %v4630 = vshrl.u32 %v4629, 7
        %v4631 = vsub.s32 %v4628, %v4630
        %v4632 = vrot.slane %v4618, %v4631
        %v4633 = vcombine.high %v4609, 0.0
        %v4634 = vcombine.high %v4616, 0.0
        %v4635 = vcombine.high %v4625, 0.0
        %v4636 = vcombine.high %v4632, 0.0
        %v4637 = vcombine.high %v1576, 0.0
        %v4639 = vunpack.c.l.s4 1983009808
        %v4640 = vunpack.c.0.s8 %v4639
        %v4641 = vlaneseq
        %v4642 = vshrl.u32 %v4641, 7
        %v4643 = vsub.s32 %v4640, %v4642
        %v4644 = vrot.slane %v1576, %v4643
        %v4646 = vunpack.c.l.s4 1983009808
        %v4647 = vunpack.c.0.s8 %v4646
        %v4648 = vlaneseq
        %v4649 = vshrl.u32 %v4648, 7
        %v4650 = vsub.s32 %v4647, %v4649
        %v4651 = vrot.slane %v4637, %v4650
        %v4652 = vcombine.high %v1578, 0.0
        %v4654 = vunpack.c.l.s4 1983009808
        %v4655 = vunpack.c.0.s8 %v4654
        %v4656 = vlaneseq
        %v4657 = vshrl.u32 %v4656, 7
        %v4658 = vsub.s32 %v4655, %v4657
        %v4659 = vrot.slane %v1578, %v4658
        %v4661 = vunpack.c.l.s4 1983009808
        %v4662 = vunpack.c.0.s8 %v4661
        %v4663 = vlaneseq
        %v4664 = vshrl.u32 %v4663, 7
        %v4665 = vsub.s32 %v4662, %v4664
        %v4666 = vrot.slane %v4652, %v4665
        %v4667 = vcombine.low %v4644, %v4659
        %v4668 = vcombine.high %v4644, %v4659
        %v4670 = vunpack.c.l.s4 1934713408
        %v4671 = vunpack.c.0.s8 %v4670
        %v4672 = vlaneseq
        %v4673 = vshrl.u32 %v4672, 7
        %v4674 = vsub.s32 %v4671, %v4673
        %v4675 = vrot.slane %v4667, %v4674
        %v4677 = vunpack.c.l.s4 1934713408
        %v4678 = vunpack.c.0.s8 %v4677
        %v4679 = vlaneseq
        %v4680 = vshrl.u32 %v4679, 7
        %v4681 = vsub.s32 %v4678, %v4680
        %v4682 = vrot.slane %v4668, %v4681
        %v4683 = vcombine.low %v4651, %v4666
        %v4684 = vcombine.high %v4651, %v4666
        %v4686 = vunpack.c.l.s4 1934713408
        %v4687 = vunpack.c.0.s8 %v4686
        %v4688 = vlaneseq
        %v4689 = vshrl.u32 %v4688, 7
        %v4690 = vsub.s32 %v4687, %v4689
        %v4691 = vrot.slane %v4683, %v4690
        %v4693 = vunpack.c.l.s4 1934713408
        %v4694 = vunpack.c.0.s8 %v4693
        %v4695 = vlaneseq
        %v4696 = vshrl.u32 %v4695, 7
        %v4697 = vsub.s32 %v4694, %v4696
        %v4698 = vrot.slane %v4684, %v4697
        %v4699 = vcombine.high %v4675, 0.0
        %v4700 = vcombine.high %v4682, 0.0
        %v4701 = vcombine.high %v4691, 0.0
        %v4702 = vcombine.high %v4698, 0.0
        %v4703 = vcombine.high %v1580, 0.0
        %v4705 = vunpack.c.l.s4 1983009808
        %v4706 = vunpack.c.0.s8 %v4705
        %v4707 = vlaneseq
        %v4708 = vshrl.u32 %v4707, 7
        %v4709 = vsub.s32 %v4706, %v4708
        %v4710 = vrot.slane %v1580, %v4709
        %v4712 = vunpack.c.l.s4 1983009808
        %v4713 = vunpack.c.0.s8 %v4712
        %v4714 = vlaneseq
        %v4715 = vshrl.u32 %v4714, 7
        %v4716 = vsub.s32 %v4713, %v4715
        %v4717 = vrot.slane %v4703, %v4716
        %v4718 = vcombine.high %v1582, 0.0
        %v4720 = vunpack.c.l.s4 1983009808
        %v4721 = vunpack.c.0.s8 %v4720
        %v4722 = vlaneseq
        %v4723 = vshrl.u32 %v4722, 7
        %v4724 = vsub.s32 %v4721, %v4723
        %v4725 = vrot.slane %v1582, %v4724
        %v4727 = vunpack.c.l.s4 1983009808
        %v4728 = vunpack.c.0.s8 %v4727
        %v4729 = vlaneseq
        %v4730 = vshrl.u32 %v4729, 7
        %v4731 = vsub.s32 %v4728, %v4730
        %v4732 = vrot.slane %v4718, %v4731
        %v4733 = vcombine.low %v4710, %v4725
        %v4734 = vcombine.high %v4710, %v4725
        %v4736 = vunpack.c.l.s4 1934713408
        %v4737 = vunpack.c.0.s8 %v4736
        %v4738 = vlaneseq
        %v4739 = vshrl.u32 %v4738, 7
        %v4740 = vsub.s32 %v4737, %v4739
        %v4741 = vrot.slane %v4733, %v4740
        %v4743 = vunpack.c.l.s4 1934713408
        %v4744 = vunpack.c.0.s8 %v4743
        %v4745 = vlaneseq
        %v4746 = vshrl.u32 %v4745, 7
        %v4747 = vsub.s32 %v4744, %v4746
        %v4748 = vrot.slane %v4734, %v4747
        %v4749 = vcombine.low %v4717, %v4732
        %v4750 = vcombine.high %v4717, %v4732
        %v4752 = vunpack.c.l.s4 1934713408
        %v4753 = vunpack.c.0.s8 %v4752
        %v4754 = vlaneseq
        %v4755 = vshrl.u32 %v4754, 7
        %v4756 = vsub.s32 %v4753, %v4755
        %v4757 = vrot.slane %v4749, %v4756
        %v4759 = vunpack.c.l.s4 1934713408
        %v4760 = vunpack.c.0.s8 %v4759
        %v4761 = vlaneseq
        %v4762 = vshrl.u32 %v4761, 7
        %v4763 = vsub.s32 %v4760, %v4762
        %v4764 = vrot.slane %v4750, %v4763
        %v4765 = vcombine.high %v4741, 0.0
        %v4766 = vcombine.high %v4748, 0.0
        %v4767 = vcombine.high %v4757, 0.0
        %v4768 = vcombine.high %v4764, 0.0
        %v4769 = vcombine.low %v3751, %v3758
        %v4771 = vunpack.c.l.s4 1983009808
        %v4772 = vunpack.c.0.s8 %v4771
        %v4773 = vlaneseq
        %v4774 = vshrl.u32 %v4773, 7
        %v4775 = vsub.s32 %v4772, %v4774
        %v4776 = vrot.slane %v4769, %v4775
        %v4777 = vcombine.low %v3775, %v3776
        %v4779 = vunpack.c.l.s4 1983009808
        %v4780 = vunpack.c.0.s8 %v4779
        %v4781 = vlaneseq
        %v4782 = vshrl.u32 %v4781, 7
        %v4783 = vsub.s32 %v4780, %v4782
        %v4784 = vrot.slane %v4777, %v4783
        %v4785 = vcombine.low %v3767, %v3774
        %v4787 = vunpack.c.l.s4 1983009808
        %v4788 = vunpack.c.0.s8 %v4787
        %v4789 = vlaneseq
        %v4790 = vshrl.u32 %v4789, 7
        %v4791 = vsub.s32 %v4788, %v4790
        %v4792 = vrot.slane %v4785, %v4791
        %v4793 = vcombine.low %v3777, %v3778
        %v4795 = vunpack.c.l.s4 1983009808
        %v4796 = vunpack.c.0.s8 %v4795
        %v4797 = vlaneseq
        %v4798 = vshrl.u32 %v4797, 7
        %v4799 = vsub.s32 %v4796, %v4798
        %v4800 = vrot.slane %v4793, %v4799
        %v4801 = vcombine.low %v4776, %v4784
        %v4803 = vunpack.c.l.s4 1934713408
        %v4804 = vunpack.c.0.s8 %v4803
        %v4805 = vlaneseq
        %v4806 = vshrl.u32 %v4805, 7
        %v4807 = vsub.s32 %v4804, %v4806
        %v4808 = vrot.slane %v4801, %v4807
        %v4809 = vcombine.low %v4792, %v4800
        %v4811 = vunpack.c.l.s4 1934713408
        %v4812 = vunpack.c.0.s8 %v4811
        %v4813 = vlaneseq
        %v4814 = vshrl.u32 %v4813, 7
        %v4815 = vsub.s32 %v4812, %v4814
        %v4816 = vrot.slane %v4809, %v4815
        %v4817 = vcombine.low %v4808, %v4816
        %v4818 = vcombine.high %v4808, %v4816
        %v4819 = vcombine.low %v3817, %v3824
        %v4821 = vunpack.c.l.s4 1983009808
        %v4822 = vunpack.c.0.s8 %v4821
        %v4823 = vlaneseq
        %v4824 = vshrl.u32 %v4823, 7
        %v4825 = vsub.s32 %v4822, %v4824
        %v4826 = vrot.slane %v4819, %v4825
        %v4827 = vcombine.low %v3841, %v3842
        %v4829 = vunpack.c.l.s4 1983009808
        %v4830 = vunpack.c.0.s8 %v4829
        %v4831 = vlaneseq
        %v4832 = vshrl.u32 %v4831, 7
        %v4833 = vsub.s32 %v4830, %v4832
        %v4834 = vrot.slane %v4827, %v4833
        %v4835 = vcombine.low %v3833, %v3840
        %v4837 = vunpack.c.l.s4 1983009808
        %v4838 = vunpack.c.0.s8 %v4837
        %v4839 = vlaneseq
        %v4840 = vshrl.u32 %v4839, 7
        %v4841 = vsub.s32 %v4838, %v4840
        %v4842 = vrot.slane %v4835, %v4841
        %v4843 = vcombine.low %v3843, %v3844
        %v4845 = vunpack.c.l.s4 1983009808
        %v4846 = vunpack.c.0.s8 %v4845
        %v4847 = vlaneseq
        %v4848 = vshrl.u32 %v4847, 7
        %v4849 = vsub.s32 %v4846, %v4848
        %v4850 = vrot.slane %v4843, %v4849
        %v4851 = vcombine.low %v4826, %v4834
        %v4853 = vunpack.c.l.s4 1934713408
        %v4854 = vunpack.c.0.s8 %v4853
        %v4855 = vlaneseq
        %v4856 = vshrl.u32 %v4855, 7
        %v4857 = vsub.s32 %v4854, %v4856
        %v4858 = vrot.slane %v4851, %v4857
        %v4859 = vcombine.low %v4842, %v4850
        %v4861 = vunpack.c.l.s4 1934713408
        %v4862 = vunpack.c.0.s8 %v4861
        %v4863 = vlaneseq
        %v4864 = vshrl.u32 %v4863, 7
        %v4865 = vsub.s32 %v4862, %v4864
        %v4866 = vrot.slane %v4859, %v4865
        %v4867 = vcombine.low %v4858, %v4866
        %v4868 = vcombine.high %v4858, %v4866
        %v4869 = vcombine.low %v3883, %v3890
        %v4871 = vunpack.c.l.s4 1983009808
        %v4872 = vunpack.c.0.s8 %v4871
        %v4873 = vlaneseq
        %v4874 = vshrl.u32 %v4873, 7
        %v4875 = vsub.s32 %v4872, %v4874
        %v4876 = vrot.slane %v4869, %v4875
        %v4877 = vcombine.low %v3907, %v3908
        %v4879 = vunpack.c.l.s4 1983009808
        %v4880 = vunpack.c.0.s8 %v4879
        %v4881 = vlaneseq
        %v4882 = vshrl.u32 %v4881, 7
        %v4883 = vsub.s32 %v4880, %v4882
        %v4884 = vrot.slane %v4877, %v4883
        %v4885 = vcombine.low %v3899, %v3906
        %v4887 = vunpack.c.l.s4 1983009808
        %v4888 = vunpack.c.0.s8 %v4887
        %v4889 = vlaneseq
        %v4890 = vshrl.u32 %v4889, 7
        %v4891 = vsub.s32 %v4888, %v4890
        %v4892 = vrot.slane %v4885, %v4891
        %v4893 = vcombine.low %v3909, %v3910
        %v4895 = vunpack.c.l.s4 1983009808
        %v4896 = vunpack.c.0.s8 %v4895
        %v4897 = vlaneseq
        %v4898 = vshrl.u32 %v4897, 7
        %v4899 = vsub.s32 %v4896, %v4898
        %v4900 = vrot.slane %v4893, %v4899
        %v4901 = vcombine.low %v4876, %v4884
        %v4903 = vunpack.c.l.s4 1934713408
        %v4904 = vunpack.c.0.s8 %v4903
        %v4905 = vlaneseq
        %v4906 = vshrl.u32 %v4905, 7
        %v4907 = vsub.s32 %v4904, %v4906
        %v4908 = vrot.slane %v4901, %v4907
        %v4909 = vcombine.low %v4892, %v4900
        %v4911 = vunpack.c.l.s4 1934713408
        %v4912 = vunpack.c.0.s8 %v4911
        %v4913 = vlaneseq
        %v4914 = vshrl.u32 %v4913, 7
        %v4915 = vsub.s32 %v4912, %v4914
        %v4916 = vrot.slane %v4909, %v4915
        %v4917 = vcombine.low %v4908, %v4916
        %v4918 = vcombine.high %v4908, %v4916
        %v4919 = vcombine.low %v3949, %v3956
        %v4921 = vunpack.c.l.s4 1983009808
        %v4922 = vunpack.c.0.s8 %v4921
        %v4923 = vlaneseq
        %v4924 = vshrl.u32 %v4923, 7
        %v4925 = vsub.s32 %v4922, %v4924
        %v4926 = vrot.slane %v4919, %v4925
        %v4927 = vcombine.low %v3973, %v3974
        %v4929 = vunpack.c.l.s4 1983009808
        %v4930 = vunpack.c.0.s8 %v4929
        %v4931 = vlaneseq
        %v4932 = vshrl.u32 %v4931, 7
        %v4933 = vsub.s32 %v4930, %v4932
        %v4934 = vrot.slane %v4927, %v4933
        %v4935 = vcombine.low %v3965, %v3972
        %v4937 = vunpack.c.l.s4 1983009808
        %v4938 = vunpack.c.0.s8 %v4937
        %v4939 = vlaneseq
        %v4940 = vshrl.u32 %v4939, 7
        %v4941 = vsub.s32 %v4938, %v4940
        %v4942 = vrot.slane %v4935, %v4941
        %v4943 = vcombine.low %v3975, %v3976
        %v4945 = vunpack.c.l.s4 1983009808
        %v4946 = vunpack.c.0.s8 %v4945
        %v4947 = vlaneseq
        %v4948 = vshrl.u32 %v4947, 7
        %v4949 = vsub.s32 %v4946, %v4948
        %v4950 = vrot.slane %v4943, %v4949
        %v4951 = vcombine.low %v4926, %v4934
        %v4953 = vunpack.c.l.s4 1934713408
        %v4954 = vunpack.c.0.s8 %v4953
        %v4955 = vlaneseq
        %v4956 = vshrl.u32 %v4955, 7
        %v4957 = vsub.s32 %v4954, %v4956
        %v4958 = vrot.slane %v4951, %v4957
        %v4959 = vcombine.low %v4942, %v4950
        %v4961 = vunpack.c.l.s4 1934713408
        %v4962 = vunpack.c.0.s8 %v4961
        %v4963 = vlaneseq
        %v4964 = vshrl.u32 %v4963, 7
        %v4965 = vsub.s32 %v4962, %v4964
        %v4966 = vrot.slane %v4959, %v4965
        %v4967 = vcombine.low %v4958, %v4966
        %v4968 = vcombine.high %v4958, %v4966
        %v4969 = vcombine.low %v4015, %v4022
        %v4971 = vunpack.c.l.s4 1983009808
        %v4972 = vunpack.c.0.s8 %v4971
        %v4973 = vlaneseq
        %v4974 = vshrl.u32 %v4973, 7
        %v4975 = vsub.s32 %v4972, %v4974
        %v4976 = vrot.slane %v4969, %v4975
        %v4977 = vcombine.low %v4039, %v4040
        %v4979 = vunpack.c.l.s4 1983009808
        %v4980 = vunpack.c.0.s8 %v4979
        %v4981 = vlaneseq
        %v4982 = vshrl.u32 %v4981, 7
        %v4983 = vsub.s32 %v4980, %v4982
        %v4984 = vrot.slane %v4977, %v4983
        %v4985 = vcombine.low %v4031, %v4038
        %v4987 = vunpack.c.l.s4 1983009808
        %v4988 = vunpack.c.0.s8 %v4987
        %v4989 = vlaneseq
        %v4990 = vshrl.u32 %v4989, 7
        %v4991 = vsub.s32 %v4988, %v4990
        %v4992 = vrot.slane %v4985, %v4991
        %v4993 = vcombine.low %v4041, %v4042
        %v4995 = vunpack.c.l.s4 1983009808
        %v4996 = vunpack.c.0.s8 %v4995
        %v4997 = vlaneseq
        %v4998 = vshrl.u32 %v4997, 7
        %v4999 = vsub.s32 %v4996, %v4998
        %v5000 = vrot.slane %v4993, %v4999
        %v5001 = vcombine.low %v4976, %v4984
        %v5003 = vunpack.c.l.s4 1934713408
        %v5004 = vunpack.c.0.s8 %v5003
        %v5005 = vlaneseq
        %v5006 = vshrl.u32 %v5005, 7
        %v5007 = vsub.s32 %v5004, %v5006
        %v5008 = vrot.slane %v5001, %v5007
        %v5009 = vcombine.low %v4992, %v5000
        %v5011 = vunpack.c.l.s4 1934713408
        %v5012 = vunpack.c.0.s8 %v5011
        %v5013 = vlaneseq
        %v5014 = vshrl.u32 %v5013, 7
        %v5015 = vsub.s32 %v5012, %v5014
        %v5016 = vrot.slane %v5009, %v5015
        %v5017 = vcombine.low %v5008, %v5016
        %v5018 = vcombine.high %v5008, %v5016
        %v5019 = vcombine.low %v4081, %v4088
        %v5021 = vunpack.c.l.s4 1983009808
        %v5022 = vunpack.c.0.s8 %v5021
        %v5023 = vlaneseq
        %v5024 = vshrl.u32 %v5023, 7
        %v5025 = vsub.s32 %v5022, %v5024
        %v5026 = vrot.slane %v5019, %v5025
        %v5027 = vcombine.low %v4105, %v4106
        %v5029 = vunpack.c.l.s4 1983009808
        %v5030 = vunpack.c.0.s8 %v5029
        %v5031 = vlaneseq
        %v5032 = vshrl.u32 %v5031, 7
        %v5033 = vsub.s32 %v5030, %v5032
        %v5034 = vrot.slane %v5027, %v5033
        %v5035 = vcombine.low %v4097, %v4104
        %v5037 = vunpack.c.l.s4 1983009808
        %v5038 = vunpack.c.0.s8 %v5037
        %v5039 = vlaneseq
        %v5040 = vshrl.u32 %v5039, 7
        %v5041 = vsub.s32 %v5038, %v5040
        %v5042 = vrot.slane %v5035, %v5041
        %v5043 = vcombine.low %v4107, %v4108
        %v5045 = vunpack.c.l.s4 1983009808
        %v5046 = vunpack.c.0.s8 %v5045
        %v5047 = vlaneseq
        %v5048 = vshrl.u32 %v5047, 7
        %v5049 = vsub.s32 %v5046, %v5048
        %v5050 = vrot.slane %v5043, %v5049
        %v5051 = vcombine.low %v5026, %v5034
        %v5053 = vunpack.c.l.s4 1934713408
        %v5054 = vunpack.c.0.s8 %v5053
        %v5055 = vlaneseq
        %v5056 = vshrl.u32 %v5055, 7
        %v5057 = vsub.s32 %v5054, %v5056
        %v5058 = vrot.slane %v5051, %v5057
        %v5059 = vcombine.low %v5042, %v5050
        %v5061 = vunpack.c.l.s4 1934713408
        %v5062 = vunpack.c.0.s8 %v5061
        %v5063 = vlaneseq
        %v5064 = vshrl.u32 %v5063, 7
        %v5065 = vsub.s32 %v5062, %v5064
        %v5066 = vrot.slane %v5059, %v5065
        %v5067 = vcombine.low %v5058, %v5066
        %v5068 = vcombine.high %v5058, %v5066
        %v5069 = vcombine.low %v4147, %v4154
        %v5071 = vunpack.c.l.s4 1983009808
        %v5072 = vunpack.c.0.s8 %v5071
        %v5073 = vlaneseq
        %v5074 = vshrl.u32 %v5073, 7
        %v5075 = vsub.s32 %v5072, %v5074
        %v5076 = vrot.slane %v5069, %v5075
        %v5077 = vcombine.low %v4171, %v4172
        %v5079 = vunpack.c.l.s4 1983009808
        %v5080 = vunpack.c.0.s8 %v5079
        %v5081 = vlaneseq
        %v5082 = vshrl.u32 %v5081, 7
        %v5083 = vsub.s32 %v5080, %v5082
        %v5084 = vrot.slane %v5077, %v5083
        %v5085 = vcombine.low %v4163, %v4170
        %v5087 = vunpack.c.l.s4 1983009808
        %v5088 = vunpack.c.0.s8 %v5087
        %v5089 = vlaneseq
        %v5090 = vshrl.u32 %v5089, 7
        %v5091 = vsub.s32 %v5088, %v5090
        %v5092 = vrot.slane %v5085, %v5091
        %v5093 = vcombine.low %v4173, %v4174
        %v5095 = vunpack.c.l.s4 1983009808
        %v5096 = vunpack.c.0.s8 %v5095
        %v5097 = vlaneseq
        %v5098 = vshrl.u32 %v5097, 7
        %v5099 = vsub.s32 %v5096, %v5098
        %v5100 = vrot.slane %v5093, %v5099
        %v5101 = vcombine.low %v5076, %v5084
        %v5103 = vunpack.c.l.s4 1934713408
        %v5104 = vunpack.c.0.s8 %v5103
        %v5105 = vlaneseq
        %v5106 = vshrl.u32 %v5105, 7
        %v5107 = vsub.s32 %v5104, %v5106
        %v5108 = vrot.slane %v5101, %v5107
        %v5109 = vcombine.low %v5092, %v5100
        %v5111 = vunpack.c.l.s4 1934713408
        %v5112 = vunpack.c.0.s8 %v5111
        %v5113 = vlaneseq
        %v5114 = vshrl.u32 %v5113, 7
        %v5115 = vsub.s32 %v5112, %v5114
        %v5116 = vrot.slane %v5109, %v5115
        %v5117 = vcombine.low %v5108, %v5116
        %v5118 = vcombine.high %v5108, %v5116
        %v5119 = vcombine.low %v4213, %v4220
        %v5121 = vunpack.c.l.s4 1983009808
        %v5122 = vunpack.c.0.s8 %v5121
        %v5123 = vlaneseq
        %v5124 = vshrl.u32 %v5123, 7
        %v5125 = vsub.s32 %v5122, %v5124
        %v5126 = vrot.slane %v5119, %v5125
        %v5127 = vcombine.low %v4237, %v4238
        %v5129 = vunpack.c.l.s4 1983009808
        %v5130 = vunpack.c.0.s8 %v5129
        %v5131 = vlaneseq
        %v5132 = vshrl.u32 %v5131, 7
        %v5133 = vsub.s32 %v5130, %v5132
        %v5134 = vrot.slane %v5127, %v5133
        %v5135 = vcombine.low %v4229, %v4236
        %v5137 = vunpack.c.l.s4 1983009808
        %v5138 = vunpack.c.0.s8 %v5137
        %v5139 = vlaneseq
        %v5140 = vshrl.u32 %v5139, 7
        %v5141 = vsub.s32 %v5138, %v5140
        %v5142 = vrot.slane %v5135, %v5141
        %v5143 = vcombine.low %v4239, %v4240
        %v5145 = vunpack.c.l.s4 1983009808
        %v5146 = vunpack.c.0.s8 %v5145
        %v5147 = vlaneseq
        %v5148 = vshrl.u32 %v5147, 7
        %v5149 = vsub.s32 %v5146, %v5148
        %v5150 = vrot.slane %v5143, %v5149
        %v5151 = vcombine.low %v5126, %v5134
        %v5153 = vunpack.c.l.s4 1934713408
        %v5154 = vunpack.c.0.s8 %v5153
        %v5155 = vlaneseq
        %v5156 = vshrl.u32 %v5155, 7
        %v5157 = vsub.s32 %v5154, %v5156
        %v5158 = vrot.slane %v5151, %v5157
        %v5159 = vcombine.low %v5142, %v5150
        %v5161 = vunpack.c.l.s4 1934713408
        %v5162 = vunpack.c.0.s8 %v5161
        %v5163 = vlaneseq
        %v5164 = vshrl.u32 %v5163, 7
        %v5165 = vsub.s32 %v5162, %v5164
        %v5166 = vrot.slane %v5159, %v5165
        %v5167 = vcombine.low %v5158, %v5166
        %v5168 = vcombine.high %v5158, %v5166
        %v5169 = vcombine.low %v4279, %v4286
        %v5171 = vunpack.c.l.s4 1983009808
        %v5172 = vunpack.c.0.s8 %v5171
        %v5173 = vlaneseq
        %v5174 = vshrl.u32 %v5173, 7
        %v5175 = vsub.s32 %v5172, %v5174
        %v5176 = vrot.slane %v5169, %v5175
        %v5177 = vcombine.low %v4303, %v4304
        %v5179 = vunpack.c.l.s4 1983009808
        %v5180 = vunpack.c.0.s8 %v5179
        %v5181 = vlaneseq
        %v5182 = vshrl.u32 %v5181, 7
        %v5183 = vsub.s32 %v5180, %v5182
        %v5184 = vrot.slane %v5177, %v5183
        %v5185 = vcombine.low %v4295, %v4302
        %v5187 = vunpack.c.l.s4 1983009808
        %v5188 = vunpack.c.0.s8 %v5187
        %v5189 = vlaneseq
        %v5190 = vshrl.u32 %v5189, 7
        %v5191 = vsub.s32 %v5188, %v5190
        %v5192 = vrot.slane %v5185, %v5191
        %v5193 = vcombine.low %v4305, %v4306
        %v5195 = vunpack.c.l.s4 1983009808
        %v5196 = vunpack.c.0.s8 %v5195
        %v5197 = vlaneseq
        %v5198 = vshrl.u32 %v5197, 7
        %v5199 = vsub.s32 %v5196, %v5198
        %v5200 = vrot.slane %v5193, %v5199
        %v5201 = vcombine.low %v5176, %v5184
        %v5203 = vunpack.c.l.s4 1934713408
        %v5204 = vunpack.c.0.s8 %v5203
        %v5205 = vlaneseq
        %v5206 = vshrl.u32 %v5205, 7
        %v5207 = vsub.s32 %v5204, %v5206
        %v5208 = vrot.slane %v5201, %v5207
        %v5209 = vcombine.low %v5192, %v5200
        %v5211 = vunpack.c.l.s4 1934713408
        %v5212 = vunpack.c.0.s8 %v5211
        %v5213 = vlaneseq
        %v5214 = vshrl.u32 %v5213, 7
        %v5215 = vsub.s32 %v5212, %v5214
        %v5216 = vrot.slane %v5209, %v5215
        %v5217 = vcombine.low %v5208, %v5216
        %v5218 = vcombine.high %v5208, %v5216
        %v5219 = vcombine.low %v4345, %v4352
        %v5221 = vunpack.c.l.s4 1983009808
        %v5222 = vunpack.c.0.s8 %v5221
        %v5223 = vlaneseq
        %v5224 = vshrl.u32 %v5223, 7
        %v5225 = vsub.s32 %v5222, %v5224
        %v5226 = vrot.slane %v5219, %v5225
        %v5227 = vcombine.low %v4369, %v4370
        %v5229 = vunpack.c.l.s4 1983009808
        %v5230 = vunpack.c.0.s8 %v5229
        %v5231 = vlaneseq
        %v5232 = vshrl.u32 %v5231, 7
        %v5233 = vsub.s32 %v5230, %v5232
        %v5234 = vrot.slane %v5227, %v5233
        %v5235 = vcombine.low %v4361, %v4368
        %v5237 = vunpack.c.l.s4 1983009808
        %v5238 = vunpack.c.0.s8 %v5237
        %v5239 = vlaneseq
        %v5240 = vshrl.u32 %v5239, 7
        %v5241 = vsub.s32 %v5238, %v5240
        %v5242 = vrot.slane %v5235, %v5241
        %v5243 = vcombine.low %v4371, %v4372
        %v5245 = vunpack.c.l.s4 1983009808
        %v5246 = vunpack.c.0.s8 %v5245
        %v5247 = vlaneseq
        %v5248 = vshrl.u32 %v5247, 7
        %v5249 = vsub.s32 %v5246, %v5248
        %v5250 = vrot.slane %v5243, %v5249
        %v5251 = vcombine.low %v5226, %v5234
        %v5253 = vunpack.c.l.s4 1934713408
        %v5254 = vunpack.c.0.s8 %v5253
        %v5255 = vlaneseq
        %v5256 = vshrl.u32 %v5255, 7
        %v5257 = vsub.s32 %v5254, %v5256
        %v5258 = vrot.slane %v5251, %v5257
        %v5259 = vcombine.low %v5242, %v5250
        %v5261 = vunpack.c.l.s4 1934713408
        %v5262 = vunpack.c.0.s8 %v5261
        %v5263 = vlaneseq
        %v5264 = vshrl.u32 %v5263, 7
        %v5265 = vsub.s32 %v5262, %v5264
        %v5266 = vrot.slane %v5259, %v5265
        %v5267 = vcombine.low %v5258, %v5266
        %v5268 = vcombine.high %v5258, %v5266
        %v5269 = vcombine.low %v4411, %v4418
        %v5271 = vunpack.c.l.s4 1983009808
        %v5272 = vunpack.c.0.s8 %v5271
        %v5273 = vlaneseq
        %v5274 = vshrl.u32 %v5273, 7
        %v5275 = vsub.s32 %v5272, %v5274
        %v5276 = vrot.slane %v5269, %v5275
        %v5277 = vcombine.low %v4435, %v4436
        %v5279 = vunpack.c.l.s4 1983009808
        %v5280 = vunpack.c.0.s8 %v5279
        %v5281 = vlaneseq
        %v5282 = vshrl.u32 %v5281, 7
        %v5283 = vsub.s32 %v5280, %v5282
        %v5284 = vrot.slane %v5277, %v5283
        %v5285 = vcombine.low %v4427, %v4434
        %v5287 = vunpack.c.l.s4 1983009808
        %v5288 = vunpack.c.0.s8 %v5287
        %v5289 = vlaneseq
        %v5290 = vshrl.u32 %v5289, 7
        %v5291 = vsub.s32 %v5288, %v5290
        %v5292 = vrot.slane %v5285, %v5291
        %v5293 = vcombine.low %v4437, %v4438
        %v5295 = vunpack.c.l.s4 1983009808
        %v5296 = vunpack.c.0.s8 %v5295
        %v5297 = vlaneseq
        %v5298 = vshrl.u32 %v5297, 7
        %v5299 = vsub.s32 %v5296, %v5298
        %v5300 = vrot.slane %v5293, %v5299
        %v5301 = vcombine.low %v5276, %v5284
        %v5303 = vunpack.c.l.s4 1934713408
        %v5304 = vunpack.c.0.s8 %v5303
        %v5305 = vlaneseq
        %v5306 = vshrl.u32 %v5305, 7
        %v5307 = vsub.s32 %v5304, %v5306
        %v5308 = vrot.slane %v5301, %v5307
        %v5309 = vcombine.low %v5292, %v5300
        %v5311 = vunpack.c.l.s4 1934713408
        %v5312 = vunpack.c.0.s8 %v5311
        %v5313 = vlaneseq
        %v5314 = vshrl.u32 %v5313, 7
        %v5315 = vsub.s32 %v5312, %v5314
        %v5316 = vrot.slane %v5309, %v5315
        %v5317 = vcombine.low %v5308, %v5316
        %v5318 = vcombine.high %v5308, %v5316
        %v5319 = vcombine.low %v4477, %v4484
        %v5321 = vunpack.c.l.s4 1983009808
        %v5322 = vunpack.c.0.s8 %v5321
        %v5323 = vlaneseq
        %v5324 = vshrl.u32 %v5323, 7
        %v5325 = vsub.s32 %v5322, %v5324
        %v5326 = vrot.slane %v5319, %v5325
        %v5327 = vcombine.low %v4501, %v4502
        %v5329 = vunpack.c.l.s4 1983009808
        %v5330 = vunpack.c.0.s8 %v5329
        %v5331 = vlaneseq
        %v5332 = vshrl.u32 %v5331, 7
        %v5333 = vsub.s32 %v5330, %v5332
        %v5334 = vrot.slane %v5327, %v5333
        %v5335 = vcombine.low %v4493, %v4500
        %v5337 = vunpack.c.l.s4 1983009808
        %v5338 = vunpack.c.0.s8 %v5337
        %v5339 = vlaneseq
        %v5340 = vshrl.u32 %v5339, 7
        %v5341 = vsub.s32 %v5338, %v5340
        %v5342 = vrot.slane %v5335, %v5341
        %v5343 = vcombine.low %v4503, %v4504
        %v5345 = vunpack.c.l.s4 1983009808
        %v5346 = vunpack.c.0.s8 %v5345
        %v5347 = vlaneseq
        %v5348 = vshrl.u32 %v5347, 7
        %v5349 = vsub.s32 %v5346, %v5348
        %v5350 = vrot.slane %v5343, %v5349
        %v5351 = vcombine.low %v5326, %v5334
        %v5353 = vunpack.c.l.s4 1934713408
        %v5354 = vunpack.c.0.s8 %v5353
        %v5355 = vlaneseq
        %v5356 = vshrl.u32 %v5355, 7
        %v5357 = vsub.s32 %v5354, %v5356
        %v5358 = vrot.slane %v5351, %v5357
        %v5359 = vcombine.low %v5342, %v5350
        %v5361 = vunpack.c.l.s4 1934713408
        %v5362 = vunpack.c.0.s8 %v5361
        %v5363 = vlaneseq
        %v5364 = vshrl.u32 %v5363, 7
        %v5365 = vsub.s32 %v5362, %v5364
        %v5366 = vrot.slane %v5359, %v5365
        %v5367 = vcombine.low %v5358, %v5366
        %v5368 = vcombine.high %v5358, %v5366
        %v5369 = vcombine.low %v4543, %v4550
        %v5371 = vunpack.c.l.s4 1983009808
        %v5372 = vunpack.c.0.s8 %v5371
        %v5373 = vlaneseq
        %v5374 = vshrl.u32 %v5373, 7
        %v5375 = vsub.s32 %v5372, %v5374
        %v5376 = vrot.slane %v5369, %v5375
        %v5377 = vcombine.low %v4567, %v4568
        %v5379 = vunpack.c.l.s4 1983009808
        %v5380 = vunpack.c.0.s8 %v5379
        %v5381 = vlaneseq
        %v5382 = vshrl.u32 %v5381, 7
        %v5383 = vsub.s32 %v5380, %v5382
        %v5384 = vrot.slane %v5377, %v5383
        %v5385 = vcombine.low %v4559, %v4566
        %v5387 = vunpack.c.l.s4 1983009808
        %v5388 = vunpack.c.0.s8 %v5387
        %v5389 = vlaneseq
        %v5390 = vshrl.u32 %v5389, 7
        %v5391 = vsub.s32 %v5388, %v5390
        %v5392 = vrot.slane %v5385, %v5391
        %v5393 = vcombine.low %v4569, %v4570
        %v5395 = vunpack.c.l.s4 1983009808
        %v5396 = vunpack.c.0.s8 %v5395
        %v5397 = vlaneseq
        %v5398 = vshrl.u32 %v5397, 7
        %v5399 = vsub.s32 %v5396, %v5398
        %v5400 = vrot.slane %v5393, %v5399
        %v5401 = vcombine.low %v5376, %v5384
        %v5403 = vunpack.c.l.s4 1934713408
        %v5404 = vunpack.c.0.s8 %v5403
        %v5405 = vlaneseq
        %v5406 = vshrl.u32 %v5405, 7
        %v5407 = vsub.s32 %v5404, %v5406
        %v5408 = vrot.slane %v5401, %v5407
        %v5409 = vcombine.low %v5392, %v5400
        %v5411 = vunpack.c.l.s4 1934713408
        %v5412 = vunpack.c.0.s8 %v5411
        %v5413 = vlaneseq
        %v5414 = vshrl.u32 %v5413, 7
        %v5415 = vsub.s32 %v5412, %v5414
        %v5416 = vrot.slane %v5409, %v5415
        %v5417 = vcombine.low %v5408, %v5416
        %v5418 = vcombine.high %v5408, %v5416
        %v5419 = vcombine.low %v4609, %v4616
        %v5421 = vunpack.c.l.s4 1983009808
        %v5422 = vunpack.c.0.s8 %v5421
        %v5423 = vlaneseq
        %v5424 = vshrl.u32 %v5423, 7
        %v5425 = vsub.s32 %v5422, %v5424
        %v5426 = vrot.slane %v5419, %v5425
        %v5427 = vcombine.low %v4633, %v4634
        %v5429 = vunpack.c.l.s4 1983009808
        %v5430 = vunpack.c.0.s8 %v5429
        %v5431 = vlaneseq
        %v5432 = vshrl.u32 %v5431, 7
        %v5433 = vsub.s32 %v5430, %v5432
        %v5434 = vrot.slane %v5427, %v5433
        %v5435 = vcombine.low %v4625, %v4632
        %v5437 = vunpack.c.l.s4 1983009808
        %v5438 = vunpack.c.0.s8 %v5437
        %v5439 = vlaneseq
        %v5440 = vshrl.u32 %v5439, 7
        %v5441 = vsub.s32 %v5438, %v5440
        %v5442 = vrot.slane %v5435, %v5441
        %v5443 = vcombine.low %v4635, %v4636
        %v5445 = vunpack.c.l.s4 1983009808
        %v5446 = vunpack.c.0.s8 %v5445
        %v5447 = vlaneseq
        %v5448 = vshrl.u32 %v5447, 7
        %v5449 = vsub.s32 %v5446, %v5448
        %v5450 = vrot.slane %v5443, %v5449
        %v5451 = vcombine.low %v5426, %v5434
        %v5453 = vunpack.c.l.s4 1934713408
        %v5454 = vunpack.c.0.s8 %v5453
        %v5455 = vlaneseq
        %v5456 = vshrl.u32 %v5455, 7
        %v5457 = vsub.s32 %v5454, %v5456
        %v5458 = vrot.slane %v5451, %v5457
        %v5459 = vcombine.low %v5442, %v5450
        %v5461 = vunpack.c.l.s4 1934713408
        %v5462 = vunpack.c.0.s8 %v5461
        %v5463 = vlaneseq
        %v5464 = vshrl.u32 %v5463, 7
        %v5465 = vsub.s32 %v5462, %v5464
        %v5466 = vrot.slane %v5459, %v5465
        %v5467 = vcombine.low %v5458, %v5466
        %v5468 = vcombine.high %v5458, %v5466
        %v5469 = vcombine.low %v4675, %v4682
        %v5471 = vunpack.c.l.s4 1983009808
        %v5472 = vunpack.c.0.s8 %v5471
        %v5473 = vlaneseq
        %v5474 = vshrl.u32 %v5473, 7
        %v5475 = vsub.s32 %v5472, %v5474
        %v5476 = vrot.slane %v5469, %v5475
        %v5477 = vcombine.low %v4699, %v4700
        %v5479 = vunpack.c.l.s4 1983009808
        %v5480 = vunpack.c.0.s8 %v5479
        %v5481 = vlaneseq
        %v5482 = vshrl.u32 %v5481, 7
        %v5483 = vsub.s32 %v5480, %v5482
        %v5484 = vrot.slane %v5477, %v5483
        %v5485 = vcombine.low %v4691, %v4698
        %v5487 = vunpack.c.l.s4 1983009808
        %v5488 = vunpack.c.0.s8 %v5487
        %v5489 = vlaneseq
        %v5490 = vshrl.u32 %v5489, 7
        %v5491 = vsub.s32 %v5488, %v5490
        %v5492 = vrot.slane %v5485, %v5491
        %v5493 = vcombine.low %v4701, %v4702
        %v5495 = vunpack.c.l.s4 1983009808
        %v5496 = vunpack.c.0.s8 %v5495
        %v5497 = vlaneseq
        %v5498 = vshrl.u32 %v5497, 7
        %v5499 = vsub.s32 %v5496, %v5498
        %v5500 = vrot.slane %v5493, %v5499
        %v5501 = vcombine.low %v5476, %v5484
        %v5503 = vunpack.c.l.s4 1934713408
        %v5504 = vunpack.c.0.s8 %v5503
        %v5505 = vlaneseq
        %v5506 = vshrl.u32 %v5505, 7
        %v5507 = vsub.s32 %v5504, %v5506
        %v5508 = vrot.slane %v5501, %v5507
        %v5509 = vcombine.low %v5492, %v5500
        %v5511 = vunpack.c.l.s4 1934713408
        %v5512 = vunpack.c.0.s8 %v5511
        %v5513 = vlaneseq
        %v5514 = vshrl.u32 %v5513, 7
        %v5515 = vsub.s32 %v5512, %v5514
        %v5516 = vrot.slane %v5509, %v5515
        %v5517 = vcombine.low %v5508, %v5516
        %v5518 = vcombine.high %v5508, %v5516
        %v5519 = vcombine.low %v4741, %v4748
        %v5521 = vunpack.c.l.s4 1983009808
        %v5522 = vunpack.c.0.s8 %v5521
        %v5523 = vlaneseq
        %v5524 = vshrl.u32 %v5523, 7
        %v5525 = vsub.s32 %v5522, %v5524
        %v5526 = vrot.slane %v5519, %v5525
        %v5527 = vcombine.low %v4765, %v4766
        %v5529 = vunpack.c.l.s4 1983009808
        %v5530 = vunpack.c.0.s8 %v5529
        %v5531 = vlaneseq
        %v5532 = vshrl.u32 %v5531, 7
        %v5533 = vsub.s32 %v5530, %v5532
        %v5534 = vrot.slane %v5527, %v5533
        %v5535 = vcombine.low %v4757, %v4764
        %v5537 = vunpack.c.l.s4 1983009808
        %v5538 = vunpack.c.0.s8 %v5537
        %v5539 = vlaneseq
        %v5540 = vshrl.u32 %v5539, 7
        %v5541 = vsub.s32 %v5538, %v5540
        %v5542 = vrot.slane %v5535, %v5541
        %v5543 = vcombine.low %v4767, %v4768
        %v5545 = vunpack.c.l.s4 1983009808
        %v5546 = vunpack.c.0.s8 %v5545
        %v5547 = vlaneseq
        %v5548 = vshrl.u32 %v5547, 7
        %v5549 = vsub.s32 %v5546, %v5548
        %v5550 = vrot.slane %v5543, %v5549
        %v5551 = vcombine.low %v5526, %v5534
        %v5553 = vunpack.c.l.s4 1934713408
        %v5554 = vunpack.c.0.s8 %v5553
        %v5555 = vlaneseq
        %v5556 = vshrl.u32 %v5555, 7
        %v5557 = vsub.s32 %v5554, %v5556
        %v5558 = vrot.slane %v5551, %v5557
        %v5559 = vcombine.low %v5542, %v5550
        %v5561 = vunpack.c.l.s4 1934713408
        %v5562 = vunpack.c.0.s8 %v5561
        %v5563 = vlaneseq
        %v5564 = vshrl.u32 %v5563, 7
        %v5565 = vsub.s32 %v5562, %v5564
        %v5566 = vrot.slane %v5559, %v5565
        %v5567 = vcombine.low %v5558, %v5566
        %v5568 = vcombine.high %v5558, %v5566
        %v5569 = vpack.c.bf16 %v4867, %v4817
        %v5570 = vpack.c.bf16 %v4967, %v4917
        %v5571 = vpack.c.bf16 %v5067, %v5017
        %v5572 = vpack.c.bf16 %v5167, %v5117
        %v5573 = vpack.c.bf16 %v5267, %v5217
        %v5574 = vpack.c.bf16 %v5367, %v5317
        %v5575 = vpack.c.bf16 %v5467, %v5417
        %v5576 = vpack.c.bf16 %v5567, %v5517
        %v5577 = vpack.c.bf16 %v4868, %v4818
        %v5578 = vpack.c.bf16 %v4968, %v4918
        %v5579 = vpack.c.bf16 %v5068, %v5018
        %v5580 = vpack.c.bf16 %v5168, %v5118
        %v5581 = vpack.c.bf16 %v5268, %v5218
        %v5582 = vpack.c.bf16 %v5368, %v5318
        %v5583 = vpack.c.bf16 %v5468, %v5418
        %v5584 = vpack.c.bf16 %v5568, %v5518
        %v5601 = vunpack.c.l.b16 %v5569
        %v5602 = vunpack.c.h.b16 %v5569
        %v5603 = vunpack.c.l.b16 %v5570
        %v5604 = vunpack.c.h.b16 %v5570
        %v5605 = vunpack.c.l.b16 %v5571
        %v5606 = vunpack.c.h.b16 %v5571
        %v5607 = vunpack.c.l.b16 %v5572
        %v5608 = vunpack.c.h.b16 %v5572
        %v5609 = vunpack.c.l.b16 %v5573
        %v5610 = vunpack.c.h.b16 %v5573
        %v5611 = vunpack.c.l.b16 %v5574
        %v5612 = vunpack.c.h.b16 %v5574
        %v5613 = vunpack.c.l.b16 %v5575
        %v5614 = vunpack.c.h.b16 %v5575
        %v5615 = vunpack.c.l.b16 %v5576
        %v5616 = vunpack.c.h.b16 %v5576
        %v5617 = vunpack.c.l.b16 %v5577
        %v5618 = vunpack.c.h.b16 %v5577
        %v5619 = vunpack.c.l.b16 %v5578
        %v5620 = vunpack.c.h.b16 %v5578
        %v5621 = vunpack.c.l.b16 %v5579
        %v5622 = vunpack.c.h.b16 %v5579
        %v5623 = vunpack.c.l.b16 %v5580
        %v5624 = vunpack.c.h.b16 %v5580
        %v5625 = vunpack.c.l.b16 %v5581
        %v5626 = vunpack.c.h.b16 %v5581
        %v5627 = vunpack.c.l.b16 %v5582
        %v5628 = vunpack.c.h.b16 %v5582
        %v5629 = vunpack.c.l.b16 %v5583
        %v5630 = vunpack.c.h.b16 %v5583
        %v5631 = vunpack.c.l.b16 %v5584
        %v5632 = vunpack.c.h.b16 %v5584
        %v5633 = vpack.c.b16 %v5601, %v5601
        %v5634 = vpack.c.b16 %v5602, %v5602
        %v5635 = vpack.c.b16 %v5603, %v5603
        %v5636 = vpack.c.b16 %v5604, %v5604
        %v5637 = vpack.c.b16 %v5605, %v5605
        %v5638 = vpack.c.b16 %v5606, %v5606
        %v5639 = vpack.c.b16 %v5607, %v5607
        %v5640 = vpack.c.b16 %v5608, %v5608
        %v5641 = vpack.c.b16 %v5609, %v5609
        %v5642 = vpack.c.b16 %v5610, %v5610
        %v5643 = vpack.c.b16 %v5611, %v5611
        %v5644 = vpack.c.b16 %v5612, %v5612
        %v5645 = vpack.c.b16 %v5613, %v5613
        %v5646 = vpack.c.b16 %v5614, %v5614
        %v5647 = vpack.c.b16 %v5615, %v5615
        %v5648 = vpack.c.b16 %v5616, %v5616
        %v5649 = vpack.c.b16 %v5617, %v5617
        %v5650 = vpack.c.b16 %v5618, %v5618
        %v5651 = vpack.c.b16 %v5619, %v5619
        %v5652 = vpack.c.b16 %v5620, %v5620
        %v5653 = vpack.c.b16 %v5621, %v5621
        %v5654 = vpack.c.b16 %v5622, %v5622
        %v5655 = vpack.c.b16 %v5623, %v5623
        %v5656 = vpack.c.b16 %v5624, %v5624
        %v5657 = vpack.c.b16 %v5625, %v5625
        %v5658 = vpack.c.b16 %v5626, %v5626
        %v5659 = vpack.c.b16 %v5627, %v5627
        %v5660 = vpack.c.b16 %v5628, %v5628
        %v5661 = vpack.c.b16 %v5629, %v5629
        %v5662 = vpack.c.b16 %v5630, %v5630
        %v5663 = vpack.c.b16 %v5631, %v5631
        %v5664 = vpack.c.b16 %v5632, %v5632
        %5697 = vst [vmem:[%s345] sm:$0xf] %v5633
        %5698 = vst [vmem:[%s345 + $0x4] sm:$0xf] %v5634
        %5699 = vst [vmem:[%s345 + $0x8] sm:$0xf] %v5635
        %5700 = vst [vmem:[%s345 + $0xc] sm:$0xf] %v5636
        %5701 = vst [vmem:[%s345 + $0x10] sm:$0xf] %v5637
        %5702 = vst [vmem:[%s345 + $0x14] sm:$0xf] %v5638
        %5703 = vst [vmem:[%s345 + $0x18] sm:$0xf] %v5639
        %5704 = vst [vmem:[%s345 + $0x1c] sm:$0xf] %v5640
        %5705 = vst [vmem:[%s345 + $0x20] sm:$0xf] %v5641
        %5706 = vst [vmem:[%s345 + $0x24] sm:$0xf] %v5642
        %5707 = vst [vmem:[%s345 + $0x28] sm:$0xf] %v5643
        %5708 = vst [vmem:[%s345 + $0x2c] sm:$0xf] %v5644
        %5709 = vst [vmem:[%s345 + $0x30] sm:$0xf] %v5645
        %5710 = vst [vmem:[%s345 + $0x34] sm:$0xf] %v5646
        %5711 = vst [vmem:[%s345 + $0x38] sm:$0xf] %v5647
        %5712 = vst [vmem:[%s345 + $0x3c] sm:$0xf] %v5648
        %5713 = vst [vmem:[%s345 + $0x40] sm:$0xf] %v5649
        %5714 = vst [vmem:[%s345 + $0x44] sm:$0xf] %v5650
        %5715 = vst [vmem:[%s345 + $0x48] sm:$0xf] %v5651
        %5716 = vst [vmem:[%s345 + $0x4c] sm:$0xf] %v5652
        %5717 = vst [vmem:[%s345 + $0x50] sm:$0xf] %v5653
        %5718 = vst [vmem:[%s345 + $0x54] sm:$0xf] %v5654
        %5719 = vst [vmem:[%s345 + $0x58] sm:$0xf] %v5655
        %5720 = vst [vmem:[%s345 + $0x5c] sm:$0xf] %v5656
        %5721 = vst [vmem:[%s345 + $0x60] sm:$0xf] %v5657
        %5722 = vst [vmem:[%s345 + $0x64] sm:$0xf] %v5658
        %5723 = vst [vmem:[%s345 + $0x68] sm:$0xf] %v5659
        %5724 = vst [vmem:[%s345 + $0x6c] sm:$0xf] %v5660
        %5725 = vst [vmem:[%s345 + $0x70] sm:$0xf] %v5661
        %5726 = vst [vmem:[%s345 + $0x74] sm:$0xf] %v5662
        %5727 = vst [vmem:[%s345 + $0x78] sm:$0xf] %v5663
        %5728 = vst [vmem:[%s345 + $0x7c] sm:$0xf] %v5664
        %v5729 = vcombine.high %v1619, 0.0
        %v5731 = vunpack.c.l.s4 1983009808
        %v5732 = vunpack.c.0.s8 %v5731
        %v5733 = vlaneseq
        %v5734 = vshrl.u32 %v5733, 7
        %v5735 = vsub.s32 %v5732, %v5734
        %v5736 = vrot.slane %v1619, %v5735
        %v5738 = vunpack.c.l.s4 1983009808
        %v5739 = vunpack.c.0.s8 %v5738
        %v5740 = vlaneseq
        %v5741 = vshrl.u32 %v5740, 7
        %v5742 = vsub.s32 %v5739, %v5741
        %v5743 = vrot.slane %v5729, %v5742
        %v5744 = vcombine.high %v1621, 0.0
        %v5746 = vunpack.c.l.s4 1983009808
        %v5747 = vunpack.c.0.s8 %v5746
        %v5748 = vlaneseq
        %v5749 = vshrl.u32 %v5748, 7
        %v5750 = vsub.s32 %v5747, %v5749
        %v5751 = vrot.slane %v1621, %v5750
        %v5753 = vunpack.c.l.s4 1983009808
        %v5754 = vunpack.c.0.s8 %v5753
        %v5755 = vlaneseq
        %v5756 = vshrl.u32 %v5755, 7
        %v5757 = vsub.s32 %v5754, %v5756
        %v5758 = vrot.slane %v5744, %v5757
        %v5759 = vcombine.low %v5736, %v5751
        %v5760 = vcombine.high %v5736, %v5751
        %v5762 = vunpack.c.l.s4 1934713408
        %v5763 = vunpack.c.0.s8 %v5762
        %v5764 = vlaneseq
        %v5765 = vshrl.u32 %v5764, 7
        %v5766 = vsub.s32 %v5763, %v5765
        %v5767 = vrot.slane %v5759, %v5766
        %v5769 = vunpack.c.l.s4 1934713408
        %v5770 = vunpack.c.0.s8 %v5769
        %v5771 = vlaneseq
        %v5772 = vshrl.u32 %v5771, 7
        %v5773 = vsub.s32 %v5770, %v5772
        %v5774 = vrot.slane %v5760, %v5773
        %v5775 = vcombine.low %v5743, %v5758
        %v5776 = vcombine.high %v5743, %v5758
        %v5778 = vunpack.c.l.s4 1934713408
        %v5779 = vunpack.c.0.s8 %v5778
        %v5780 = vlaneseq
        %v5781 = vshrl.u32 %v5780, 7
        %v5782 = vsub.s32 %v5779, %v5781
        %v5783 = vrot.slane %v5775, %v5782
        %v5785 = vunpack.c.l.s4 1934713408
        %v5786 = vunpack.c.0.s8 %v5785
        %v5787 = vlaneseq
        %v5788 = vshrl.u32 %v5787, 7
        %v5789 = vsub.s32 %v5786, %v5788
        %v5790 = vrot.slane %v5776, %v5789
        %v5791 = vcombine.high %v5767, 0.0
        %v5792 = vcombine.high %v5774, 0.0
        %v5793 = vcombine.high %v5783, 0.0
        %v5794 = vcombine.high %v5790, 0.0
        %v5795 = vcombine.high %v1623, 0.0
        %v5797 = vunpack.c.l.s4 1983009808
        %v5798 = vunpack.c.0.s8 %v5797
        %v5799 = vlaneseq
        %v5800 = vshrl.u32 %v5799, 7
        %v5801 = vsub.s32 %v5798, %v5800
        %v5802 = vrot.slane %v1623, %v5801
        %v5804 = vunpack.c.l.s4 1983009808
        %v5805 = vunpack.c.0.s8 %v5804
        %v5806 = vlaneseq
        %v5807 = vshrl.u32 %v5806, 7
        %v5808 = vsub.s32 %v5805, %v5807
        %v5809 = vrot.slane %v5795, %v5808
        %v5810 = vcombine.high %v1625, 0.0
        %v5812 = vunpack.c.l.s4 1983009808
        %v5813 = vunpack.c.0.s8 %v5812
        %v5814 = vlaneseq
        %v5815 = vshrl.u32 %v5814, 7
        %v5816 = vsub.s32 %v5813, %v5815
        %v5817 = vrot.slane %v1625, %v5816
        %v5819 = vunpack.c.l.s4 1983009808
        %v5820 = vunpack.c.0.s8 %v5819
        %v5821 = vlaneseq
        %v5822 = vshrl.u32 %v5821, 7
        %v5823 = vsub.s32 %v5820, %v5822
        %v5824 = vrot.slane %v5810, %v5823
        %v5825 = vcombine.low %v5802, %v5817
        %v5826 = vcombine.high %v5802, %v5817
        %v5828 = vunpack.c.l.s4 1934713408
        %v5829 = vunpack.c.0.s8 %v5828
        %v5830 = vlaneseq
        %v5831 = vshrl.u32 %v5830, 7
        %v5832 = vsub.s32 %v5829, %v5831
        %v5833 = vrot.slane %v5825, %v5832
        %v5835 = vunpack.c.l.s4 1934713408
        %v5836 = vunpack.c.0.s8 %v5835
        %v5837 = vlaneseq
        %v5838 = vshrl.u32 %v5837, 7
        %v5839 = vsub.s32 %v5836, %v5838
        %v5840 = vrot.slane %v5826, %v5839
        %v5841 = vcombine.low %v5809, %v5824
        %v5842 = vcombine.high %v5809, %v5824
        %v5844 = vunpack.c.l.s4 1934713408
        %v5845 = vunpack.c.0.s8 %v5844
        %v5846 = vlaneseq
        %v5847 = vshrl.u32 %v5846, 7
        %v5848 = vsub.s32 %v5845, %v5847
        %v5849 = vrot.slane %v5841, %v5848
        %v5851 = vunpack.c.l.s4 1934713408
        %v5852 = vunpack.c.0.s8 %v5851
        %v5853 = vlaneseq
        %v5854 = vshrl.u32 %v5853, 7
        %v5855 = vsub.s32 %v5852, %v5854
        %v5856 = vrot.slane %v5842, %v5855
        %v5857 = vcombine.high %v5833, 0.0
        %v5858 = vcombine.high %v5840, 0.0
        %v5859 = vcombine.high %v5849, 0.0
        %v5860 = vcombine.high %v5856, 0.0
        %v5861 = vcombine.high %v1629, 0.0
        %v5863 = vunpack.c.l.s4 1983009808
        %v5864 = vunpack.c.0.s8 %v5863
        %v5865 = vlaneseq
        %v5866 = vshrl.u32 %v5865, 7
        %v5867 = vsub.s32 %v5864, %v5866
        %v5868 = vrot.slane %v1629, %v5867
        %v5870 = vunpack.c.l.s4 1983009808
        %v5871 = vunpack.c.0.s8 %v5870
        %v5872 = vlaneseq
        %v5873 = vshrl.u32 %v5872, 7
        %v5874 = vsub.s32 %v5871, %v5873
        %v5875 = vrot.slane %v5861, %v5874
        %v5876 = vcombine.high %v1631, 0.0
        %v5878 = vunpack.c.l.s4 1983009808
        %v5879 = vunpack.c.0.s8 %v5878
        %v5880 = vlaneseq
        %v5881 = vshrl.u32 %v5880, 7
        %v5882 = vsub.s32 %v5879, %v5881
        %v5883 = vrot.slane %v1631, %v5882
        %v5885 = vunpack.c.l.s4 1983009808
        %v5886 = vunpack.c.0.s8 %v5885
        %v5887 = vlaneseq
        %v5888 = vshrl.u32 %v5887, 7
        %v5889 = vsub.s32 %v5886, %v5888
        %v5890 = vrot.slane %v5876, %v5889
        %v5891 = vcombine.low %v5868, %v5883
        %v5892 = vcombine.high %v5868, %v5883
        %v5894 = vunpack.c.l.s4 1934713408
        %v5895 = vunpack.c.0.s8 %v5894
        %v5896 = vlaneseq
        %v5897 = vshrl.u32 %v5896, 7
        %v5898 = vsub.s32 %v5895, %v5897
        %v5899 = vrot.slane %v5891, %v5898
        %v5901 = vunpack.c.l.s4 1934713408
        %v5902 = vunpack.c.0.s8 %v5901
        %v5903 = vlaneseq
        %v5904 = vshrl.u32 %v5903, 7
        %v5905 = vsub.s32 %v5902, %v5904
        %v5906 = vrot.slane %v5892, %v5905
        %v5907 = vcombine.low %v5875, %v5890
        %v5908 = vcombine.high %v5875, %v5890
        %v5910 = vunpack.c.l.s4 1934713408
        %v5911 = vunpack.c.0.s8 %v5910
        %v5912 = vlaneseq
        %v5913 = vshrl.u32 %v5912, 7
        %v5914 = vsub.s32 %v5911, %v5913
        %v5915 = vrot.slane %v5907, %v5914
        %v5917 = vunpack.c.l.s4 1934713408
        %v5918 = vunpack.c.0.s8 %v5917
        %v5919 = vlaneseq
        %v5920 = vshrl.u32 %v5919, 7
        %v5921 = vsub.s32 %v5918, %v5920
        %v5922 = vrot.slane %v5908, %v5921
        %v5923 = vcombine.high %v5899, 0.0
        %v5924 = vcombine.high %v5906, 0.0
        %v5925 = vcombine.high %v5915, 0.0
        %v5926 = vcombine.high %v5922, 0.0
        %v5927 = vcombine.high %v1633, 0.0
        %v5929 = vunpack.c.l.s4 1983009808
        %v5930 = vunpack.c.0.s8 %v5929
        %v5931 = vlaneseq
        %v5932 = vshrl.u32 %v5931, 7
        %v5933 = vsub.s32 %v5930, %v5932
        %v5934 = vrot.slane %v1633, %v5933
        %v5936 = vunpack.c.l.s4 1983009808
        %v5937 = vunpack.c.0.s8 %v5936
        %v5938 = vlaneseq
        %v5939 = vshrl.u32 %v5938, 7
        %v5940 = vsub.s32 %v5937, %v5939
        %v5941 = vrot.slane %v5927, %v5940
        %v5942 = vcombine.high %v1635, 0.0
        %v5944 = vunpack.c.l.s4 1983009808
        %v5945 = vunpack.c.0.s8 %v5944
        %v5946 = vlaneseq
        %v5947 = vshrl.u32 %v5946, 7
        %v5948 = vsub.s32 %v5945, %v5947
        %v5949 = vrot.slane %v1635, %v5948
        %v5951 = vunpack.c.l.s4 1983009808
        %v5952 = vunpack.c.0.s8 %v5951
        %v5953 = vlaneseq
        %v5954 = vshrl.u32 %v5953, 7
        %v5955 = vsub.s32 %v5952, %v5954
        %v5956 = vrot.slane %v5942, %v5955
        %v5957 = vcombine.low %v5934, %v5949
        %v5958 = vcombine.high %v5934, %v5949
        %v5960 = vunpack.c.l.s4 1934713408
        %v5961 = vunpack.c.0.s8 %v5960
        %v5962 = vlaneseq
        %v5963 = vshrl.u32 %v5962, 7
        %v5964 = vsub.s32 %v5961, %v5963
        %v5965 = vrot.slane %v5957, %v5964
        %v5967 = vunpack.c.l.s4 1934713408
        %v5968 = vunpack.c.0.s8 %v5967
        %v5969 = vlaneseq
        %v5970 = vshrl.u32 %v5969, 7
        %v5971 = vsub.s32 %v5968, %v5970
        %v5972 = vrot.slane %v5958, %v5971
        %v5973 = vcombine.low %v5941, %v5956
        %v5974 = vcombine.high %v5941, %v5956
        %v5976 = vunpack.c.l.s4 1934713408
        %v5977 = vunpack.c.0.s8 %v5976
        %v5978 = vlaneseq
        %v5979 = vshrl.u32 %v5978, 7
        %v5980 = vsub.s32 %v5977, %v5979
        %v5981 = vrot.slane %v5973, %v5980
        %v5983 = vunpack.c.l.s4 1934713408
        %v5984 = vunpack.c.0.s8 %v5983
        %v5985 = vlaneseq
        %v5986 = vshrl.u32 %v5985, 7
        %v5987 = vsub.s32 %v5984, %v5986
        %v5988 = vrot.slane %v5974, %v5987
        %v5989 = vcombine.high %v5965, 0.0
        %v5990 = vcombine.high %v5972, 0.0
        %v5991 = vcombine.high %v5981, 0.0
        %v5992 = vcombine.high %v5988, 0.0
        %v5993 = vcombine.high %v1639, 0.0
        %v5995 = vunpack.c.l.s4 1983009808
        %v5996 = vunpack.c.0.s8 %v5995
        %v5997 = vlaneseq
        %v5998 = vshrl.u32 %v5997, 7
        %v5999 = vsub.s32 %v5996, %v5998
        %v6000 = vrot.slane %v1639, %v5999
        %v6002 = vunpack.c.l.s4 1983009808
        %v6003 = vunpack.c.0.s8 %v6002
        %v6004 = vlaneseq
        %v6005 = vshrl.u32 %v6004, 7
        %v6006 = vsub.s32 %v6003, %v6005
        %v6007 = vrot.slane %v5993, %v6006
        %v6008 = vcombine.high %v1641, 0.0
        %v6010 = vunpack.c.l.s4 1983009808
        %v6011 = vunpack.c.0.s8 %v6010
        %v6012 = vlaneseq
        %v6013 = vshrl.u32 %v6012, 7
        %v6014 = vsub.s32 %v6011, %v6013
        %v6015 = vrot.slane %v1641, %v6014
        %v6017 = vunpack.c.l.s4 1983009808
        %v6018 = vunpack.c.0.s8 %v6017
        %v6019 = vlaneseq
        %v6020 = vshrl.u32 %v6019, 7
        %v6021 = vsub.s32 %v6018, %v6020
        %v6022 = vrot.slane %v6008, %v6021
        %v6023 = vcombine.low %v6000, %v6015
        %v6024 = vcombine.high %v6000, %v6015
        %v6026 = vunpack.c.l.s4 1934713408
        %v6027 = vunpack.c.0.s8 %v6026
        %v6028 = vlaneseq
        %v6029 = vshrl.u32 %v6028, 7
        %v6030 = vsub.s32 %v6027, %v6029
        %v6031 = vrot.slane %v6023, %v6030
        %v6033 = vunpack.c.l.s4 1934713408
        %v6034 = vunpack.c.0.s8 %v6033
        %v6035 = vlaneseq
        %v6036 = vshrl.u32 %v6035, 7
        %v6037 = vsub.s32 %v6034, %v6036
        %v6038 = vrot.slane %v6024, %v6037
        %v6039 = vcombine.low %v6007, %v6022
        %v6040 = vcombine.high %v6007, %v6022
        %v6042 = vunpack.c.l.s4 1934713408
        %v6043 = vunpack.c.0.s8 %v6042
        %v6044 = vlaneseq
        %v6045 = vshrl.u32 %v6044, 7
        %v6046 = vsub.s32 %v6043, %v6045
        %v6047 = vrot.slane %v6039, %v6046
        %v6049 = vunpack.c.l.s4 1934713408
        %v6050 = vunpack.c.0.s8 %v6049
        %v6051 = vlaneseq
        %v6052 = vshrl.u32 %v6051, 7
        %v6053 = vsub.s32 %v6050, %v6052
        %v6054 = vrot.slane %v6040, %v6053
        %v6055 = vcombine.high %v6031, 0.0
        %v6056 = vcombine.high %v6038, 0.0
        %v6057 = vcombine.high %v6047, 0.0
        %v6058 = vcombine.high %v6054, 0.0
        %v6059 = vcombine.high %v1643, 0.0
        %v6061 = vunpack.c.l.s4 1983009808
        %v6062 = vunpack.c.0.s8 %v6061
        %v6063 = vlaneseq
        %v6064 = vshrl.u32 %v6063, 7
        %v6065 = vsub.s32 %v6062, %v6064
        %v6066 = vrot.slane %v1643, %v6065
        %v6068 = vunpack.c.l.s4 1983009808
        %v6069 = vunpack.c.0.s8 %v6068
        %v6070 = vlaneseq
        %v6071 = vshrl.u32 %v6070, 7
        %v6072 = vsub.s32 %v6069, %v6071
        %v6073 = vrot.slane %v6059, %v6072
        %v6074 = vcombine.high %v1645, 0.0
        %v6076 = vunpack.c.l.s4 1983009808
        %v6077 = vunpack.c.0.s8 %v6076
        %v6078 = vlaneseq
        %v6079 = vshrl.u32 %v6078, 7
        %v6080 = vsub.s32 %v6077, %v6079
        %v6081 = vrot.slane %v1645, %v6080
        %v6083 = vunpack.c.l.s4 1983009808
        %v6084 = vunpack.c.0.s8 %v6083
        %v6085 = vlaneseq
        %v6086 = vshrl.u32 %v6085, 7
        %v6087 = vsub.s32 %v6084, %v6086
        %v6088 = vrot.slane %v6074, %v6087
        %v6089 = vcombine.low %v6066, %v6081
        %v6090 = vcombine.high %v6066, %v6081
        %v6092 = vunpack.c.l.s4 1934713408
        %v6093 = vunpack.c.0.s8 %v6092
        %v6094 = vlaneseq
        %v6095 = vshrl.u32 %v6094, 7
        %v6096 = vsub.s32 %v6093, %v6095
        %v6097 = vrot.slane %v6089, %v6096
        %v6099 = vunpack.c.l.s4 1934713408
        %v6100 = vunpack.c.0.s8 %v6099
        %v6101 = vlaneseq
        %v6102 = vshrl.u32 %v6101, 7
        %v6103 = vsub.s32 %v6100, %v6102
        %v6104 = vrot.slane %v6090, %v6103
        %v6105 = vcombine.low %v6073, %v6088
        %v6106 = vcombine.high %v6073, %v6088
        %v6108 = vunpack.c.l.s4 1934713408
        %v6109 = vunpack.c.0.s8 %v6108
        %v6110 = vlaneseq
        %v6111 = vshrl.u32 %v6110, 7
        %v6112 = vsub.s32 %v6109, %v6111
        %v6113 = vrot.slane %v6105, %v6112
        %v6115 = vunpack.c.l.s4 1934713408
        %v6116 = vunpack.c.0.s8 %v6115
        %v6117 = vlaneseq
        %v6118 = vshrl.u32 %v6117, 7
        %v6119 = vsub.s32 %v6116, %v6118
        %v6120 = vrot.slane %v6106, %v6119
        %v6121 = vcombine.high %v6097, 0.0
        %v6122 = vcombine.high %v6104, 0.0
        %v6123 = vcombine.high %v6113, 0.0
        %v6124 = vcombine.high %v6120, 0.0
        %v6125 = vcombine.high %v1649, 0.0
        %v6127 = vunpack.c.l.s4 1983009808
        %v6128 = vunpack.c.0.s8 %v6127
        %v6129 = vlaneseq
        %v6130 = vshrl.u32 %v6129, 7
        %v6131 = vsub.s32 %v6128, %v6130
        %v6132 = vrot.slane %v1649, %v6131
        %v6134 = vunpack.c.l.s4 1983009808
        %v6135 = vunpack.c.0.s8 %v6134
        %v6136 = vlaneseq
        %v6137 = vshrl.u32 %v6136, 7
        %v6138 = vsub.s32 %v6135, %v6137
        %v6139 = vrot.slane %v6125, %v6138
        %v6140 = vcombine.high %v1651, 0.0
        %v6142 = vunpack.c.l.s4 1983009808
        %v6143 = vunpack.c.0.s8 %v6142
        %v6144 = vlaneseq
        %v6145 = vshrl.u32 %v6144, 7
        %v6146 = vsub.s32 %v6143, %v6145
        %v6147 = vrot.slane %v1651, %v6146
        %v6149 = vunpack.c.l.s4 1983009808
        %v6150 = vunpack.c.0.s8 %v6149
        %v6151 = vlaneseq
        %v6152 = vshrl.u32 %v6151, 7
        %v6153 = vsub.s32 %v6150, %v6152
        %v6154 = vrot.slane %v6140, %v6153
        %v6155 = vcombine.low %v6132, %v6147
        %v6156 = vcombine.high %v6132, %v6147
        %v6158 = vunpack.c.l.s4 1934713408
        %v6159 = vunpack.c.0.s8 %v6158
        %v6160 = vlaneseq
        %v6161 = vshrl.u32 %v6160, 7
        %v6162 = vsub.s32 %v6159, %v6161
        %v6163 = vrot.slane %v6155, %v6162
        %v6165 = vunpack.c.l.s4 1934713408
        %v6166 = vunpack.c.0.s8 %v6165
        %v6167 = vlaneseq
        %v6168 = vshrl.u32 %v6167, 7
        %v6169 = vsub.s32 %v6166, %v6168
        %v6170 = vrot.slane %v6156, %v6169
        %v6171 = vcombine.low %v6139, %v6154
        %v6172 = vcombine.high %v6139, %v6154
        %v6174 = vunpack.c.l.s4 1934713408
        %v6175 = vunpack.c.0.s8 %v6174
        %v6176 = vlaneseq
        %v6177 = vshrl.u32 %v6176, 7
        %v6178 = vsub.s32 %v6175, %v6177
        %v6179 = vrot.slane %v6171, %v6178
        %v6181 = vunpack.c.l.s4 1934713408
        %v6182 = vunpack.c.0.s8 %v6181
        %v6183 = vlaneseq
        %v6184 = vshrl.u32 %v6183, 7
        %v6185 = vsub.s32 %v6182, %v6184
        %v6186 = vrot.slane %v6172, %v6185
        %v6187 = vcombine.high %v6163, 0.0
        %v6188 = vcombine.high %v6170, 0.0
        %v6189 = vcombine.high %v6179, 0.0
        %v6190 = vcombine.high %v6186, 0.0
        %v6191 = vcombine.high %v1653, 0.0
        %v6193 = vunpack.c.l.s4 1983009808
        %v6194 = vunpack.c.0.s8 %v6193
        %v6195 = vlaneseq
        %v6196 = vshrl.u32 %v6195, 7
        %v6197 = vsub.s32 %v6194, %v6196
        %v6198 = vrot.slane %v1653, %v6197
        %v6200 = vunpack.c.l.s4 1983009808
        %v6201 = vunpack.c.0.s8 %v6200
        %v6202 = vlaneseq
        %v6203 = vshrl.u32 %v6202, 7
        %v6204 = vsub.s32 %v6201, %v6203
        %v6205 = vrot.slane %v6191, %v6204
        %v6206 = vcombine.high %v1655, 0.0
        %v6208 = vunpack.c.l.s4 1983009808
        %v6209 = vunpack.c.0.s8 %v6208
        %v6210 = vlaneseq
        %v6211 = vshrl.u32 %v6210, 7
        %v6212 = vsub.s32 %v6209, %v6211
        %v6213 = vrot.slane %v1655, %v6212
        %v6215 = vunpack.c.l.s4 1983009808
        %v6216 = vunpack.c.0.s8 %v6215
        %v6217 = vlaneseq
        %v6218 = vshrl.u32 %v6217, 7
        %v6219 = vsub.s32 %v6216, %v6218
        %v6220 = vrot.slane %v6206, %v6219
        %v6221 = vcombine.low %v6198, %v6213
        %v6222 = vcombine.high %v6198, %v6213
        %v6224 = vunpack.c.l.s4 1934713408
        %v6225 = vunpack.c.0.s8 %v6224
        %v6226 = vlaneseq
        %v6227 = vshrl.u32 %v6226, 7
        %v6228 = vsub.s32 %v6225, %v6227
        %v6229 = vrot.slane %v6221, %v6228
        %v6231 = vunpack.c.l.s4 1934713408
        %v6232 = vunpack.c.0.s8 %v6231
        %v6233 = vlaneseq
        %v6234 = vshrl.u32 %v6233, 7
        %v6235 = vsub.s32 %v6232, %v6234
        %v6236 = vrot.slane %v6222, %v6235
        %v6237 = vcombine.low %v6205, %v6220
        %v6238 = vcombine.high %v6205, %v6220
        %v6240 = vunpack.c.l.s4 1934713408
        %v6241 = vunpack.c.0.s8 %v6240
        %v6242 = vlaneseq
        %v6243 = vshrl.u32 %v6242, 7
        %v6244 = vsub.s32 %v6241, %v6243
        %v6245 = vrot.slane %v6237, %v6244
        %v6247 = vunpack.c.l.s4 1934713408
        %v6248 = vunpack.c.0.s8 %v6247
        %v6249 = vlaneseq
        %v6250 = vshrl.u32 %v6249, 7
        %v6251 = vsub.s32 %v6248, %v6250
        %v6252 = vrot.slane %v6238, %v6251
        %v6253 = vcombine.high %v6229, 0.0
        %v6254 = vcombine.high %v6236, 0.0
        %v6255 = vcombine.high %v6245, 0.0
        %v6256 = vcombine.high %v6252, 0.0
        %v6257 = vcombine.high %v1659, 0.0
        %v6259 = vunpack.c.l.s4 1983009808
        %v6260 = vunpack.c.0.s8 %v6259
        %v6261 = vlaneseq
        %v6262 = vshrl.u32 %v6261, 7
        %v6263 = vsub.s32 %v6260, %v6262
        %v6264 = vrot.slane %v1659, %v6263
        %v6266 = vunpack.c.l.s4 1983009808
        %v6267 = vunpack.c.0.s8 %v6266
        %v6268 = vlaneseq
        %v6269 = vshrl.u32 %v6268, 7
        %v6270 = vsub.s32 %v6267, %v6269
        %v6271 = vrot.slane %v6257, %v6270
        %v6272 = vcombine.high %v1661, 0.0
        %v6274 = vunpack.c.l.s4 1983009808
        %v6275 = vunpack.c.0.s8 %v6274
        %v6276 = vlaneseq
        %v6277 = vshrl.u32 %v6276, 7
        %v6278 = vsub.s32 %v6275, %v6277
        %v6279 = vrot.slane %v1661, %v6278
        %v6281 = vunpack.c.l.s4 1983009808
        %v6282 = vunpack.c.0.s8 %v6281
        %v6283 = vlaneseq
        %v6284 = vshrl.u32 %v6283, 7
        %v6285 = vsub.s32 %v6282, %v6284
        %v6286 = vrot.slane %v6272, %v6285
        %v6287 = vcombine.low %v6264, %v6279
        %v6288 = vcombine.high %v6264, %v6279
        %v6290 = vunpack.c.l.s4 1934713408
        %v6291 = vunpack.c.0.s8 %v6290
        %v6292 = vlaneseq
        %v6293 = vshrl.u32 %v6292, 7
        %v6294 = vsub.s32 %v6291, %v6293
        %v6295 = vrot.slane %v6287, %v6294
        %v6297 = vunpack.c.l.s4 1934713408
        %v6298 = vunpack.c.0.s8 %v6297
        %v6299 = vlaneseq
        %v6300 = vshrl.u32 %v6299, 7
        %v6301 = vsub.s32 %v6298, %v6300
        %v6302 = vrot.slane %v6288, %v6301
        %v6303 = vcombine.low %v6271, %v6286
        %v6304 = vcombine.high %v6271, %v6286
        %v6306 = vunpack.c.l.s4 1934713408
        %v6307 = vunpack.c.0.s8 %v6306
        %v6308 = vlaneseq
        %v6309 = vshrl.u32 %v6308, 7
        %v6310 = vsub.s32 %v6307, %v6309
        %v6311 = vrot.slane %v6303, %v6310
        %v6313 = vunpack.c.l.s4 1934713408
        %v6314 = vunpack.c.0.s8 %v6313
        %v6315 = vlaneseq
        %v6316 = vshrl.u32 %v6315, 7
        %v6317 = vsub.s32 %v6314, %v6316
        %v6318 = vrot.slane %v6304, %v6317
        %v6319 = vcombine.high %v6295, 0.0
        %v6320 = vcombine.high %v6302, 0.0
        %v6321 = vcombine.high %v6311, 0.0
        %v6322 = vcombine.high %v6318, 0.0
        %v6323 = vcombine.high %v1663, 0.0
        %v6325 = vunpack.c.l.s4 1983009808
        %v6326 = vunpack.c.0.s8 %v6325
        %v6327 = vlaneseq
        %v6328 = vshrl.u32 %v6327, 7
        %v6329 = vsub.s32 %v6326, %v6328
        %v6330 = vrot.slane %v1663, %v6329
        %v6332 = vunpack.c.l.s4 1983009808
        %v6333 = vunpack.c.0.s8 %v6332
        %v6334 = vlaneseq
        %v6335 = vshrl.u32 %v6334, 7
        %v6336 = vsub.s32 %v6333, %v6335
        %v6337 = vrot.slane %v6323, %v6336
        %v6338 = vcombine.high %v1665, 0.0
        %v6340 = vunpack.c.l.s4 1983009808
        %v6341 = vunpack.c.0.s8 %v6340
        %v6342 = vlaneseq
        %v6343 = vshrl.u32 %v6342, 7
        %v6344 = vsub.s32 %v6341, %v6343
        %v6345 = vrot.slane %v1665, %v6344
        %v6347 = vunpack.c.l.s4 1983009808
        %v6348 = vunpack.c.0.s8 %v6347
        %v6349 = vlaneseq
        %v6350 = vshrl.u32 %v6349, 7
        %v6351 = vsub.s32 %v6348, %v6350
        %v6352 = vrot.slane %v6338, %v6351
        %v6353 = vcombine.low %v6330, %v6345
        %v6354 = vcombine.high %v6330, %v6345
        %v6356 = vunpack.c.l.s4 1934713408
        %v6357 = vunpack.c.0.s8 %v6356
        %v6358 = vlaneseq
        %v6359 = vshrl.u32 %v6358, 7
        %v6360 = vsub.s32 %v6357, %v6359
        %v6361 = vrot.slane %v6353, %v6360
        %v6363 = vunpack.c.l.s4 1934713408
        %v6364 = vunpack.c.0.s8 %v6363
        %v6365 = vlaneseq
        %v6366 = vshrl.u32 %v6365, 7
        %v6367 = vsub.s32 %v6364, %v6366
        %v6368 = vrot.slane %v6354, %v6367
        %v6369 = vcombine.low %v6337, %v6352
        %v6370 = vcombine.high %v6337, %v6352
        %v6372 = vunpack.c.l.s4 1934713408
        %v6373 = vunpack.c.0.s8 %v6372
        %v6374 = vlaneseq
        %v6375 = vshrl.u32 %v6374, 7
        %v6376 = vsub.s32 %v6373, %v6375
        %v6377 = vrot.slane %v6369, %v6376
        %v6379 = vunpack.c.l.s4 1934713408
        %v6380 = vunpack.c.0.s8 %v6379
        %v6381 = vlaneseq
        %v6382 = vshrl.u32 %v6381, 7
        %v6383 = vsub.s32 %v6380, %v6382
        %v6384 = vrot.slane %v6370, %v6383
        %v6385 = vcombine.high %v6361, 0.0
        %v6386 = vcombine.high %v6368, 0.0
        %v6387 = vcombine.high %v6377, 0.0
        %v6388 = vcombine.high %v6384, 0.0
        %v6389 = vcombine.high %v1669, 0.0
        %v6391 = vunpack.c.l.s4 1983009808
        %v6392 = vunpack.c.0.s8 %v6391
        %v6393 = vlaneseq
        %v6394 = vshrl.u32 %v6393, 7
        %v6395 = vsub.s32 %v6392, %v6394
        %v6396 = vrot.slane %v1669, %v6395
        %v6398 = vunpack.c.l.s4 1983009808
        %v6399 = vunpack.c.0.s8 %v6398
        %v6400 = vlaneseq
        %v6401 = vshrl.u32 %v6400, 7
        %v6402 = vsub.s32 %v6399, %v6401
        %v6403 = vrot.slane %v6389, %v6402
        %v6404 = vcombine.high %v1671, 0.0
        %v6406 = vunpack.c.l.s4 1983009808
        %v6407 = vunpack.c.0.s8 %v6406
        %v6408 = vlaneseq
        %v6409 = vshrl.u32 %v6408, 7
        %v6410 = vsub.s32 %v6407, %v6409
        %v6411 = vrot.slane %v1671, %v6410
        %v6413 = vunpack.c.l.s4 1983009808
        %v6414 = vunpack.c.0.s8 %v6413
        %v6415 = vlaneseq
        %v6416 = vshrl.u32 %v6415, 7
        %v6417 = vsub.s32 %v6414, %v6416
        %v6418 = vrot.slane %v6404, %v6417
        %v6419 = vcombine.low %v6396, %v6411
        %v6420 = vcombine.high %v6396, %v6411
        %v6422 = vunpack.c.l.s4 1934713408
        %v6423 = vunpack.c.0.s8 %v6422
        %v6424 = vlaneseq
        %v6425 = vshrl.u32 %v6424, 7
        %v6426 = vsub.s32 %v6423, %v6425
        %v6427 = vrot.slane %v6419, %v6426
        %v6429 = vunpack.c.l.s4 1934713408
        %v6430 = vunpack.c.0.s8 %v6429
        %v6431 = vlaneseq
        %v6432 = vshrl.u32 %v6431, 7
        %v6433 = vsub.s32 %v6430, %v6432
        %v6434 = vrot.slane %v6420, %v6433
        %v6435 = vcombine.low %v6403, %v6418
        %v6436 = vcombine.high %v6403, %v6418
        %v6438 = vunpack.c.l.s4 1934713408
        %v6439 = vunpack.c.0.s8 %v6438
        %v6440 = vlaneseq
        %v6441 = vshrl.u32 %v6440, 7
        %v6442 = vsub.s32 %v6439, %v6441
        %v6443 = vrot.slane %v6435, %v6442
        %v6445 = vunpack.c.l.s4 1934713408
        %v6446 = vunpack.c.0.s8 %v6445
        %v6447 = vlaneseq
        %v6448 = vshrl.u32 %v6447, 7
        %v6449 = vsub.s32 %v6446, %v6448
        %v6450 = vrot.slane %v6436, %v6449
        %v6451 = vcombine.high %v6427, 0.0
        %v6452 = vcombine.high %v6434, 0.0
        %v6453 = vcombine.high %v6443, 0.0
        %v6454 = vcombine.high %v6450, 0.0
        %v6455 = vcombine.high %v1673, 0.0
        %v6457 = vunpack.c.l.s4 1983009808
        %v6458 = vunpack.c.0.s8 %v6457
        %v6459 = vlaneseq
        %v6460 = vshrl.u32 %v6459, 7
        %v6461 = vsub.s32 %v6458, %v6460
        %v6462 = vrot.slane %v1673, %v6461
        %v6464 = vunpack.c.l.s4 1983009808
        %v6465 = vunpack.c.0.s8 %v6464
        %v6466 = vlaneseq
        %v6467 = vshrl.u32 %v6466, 7
        %v6468 = vsub.s32 %v6465, %v6467
        %v6469 = vrot.slane %v6455, %v6468
        %v6470 = vcombine.high %v1675, 0.0
        %v6472 = vunpack.c.l.s4 1983009808
        %v6473 = vunpack.c.0.s8 %v6472
        %v6474 = vlaneseq
        %v6475 = vshrl.u32 %v6474, 7
        %v6476 = vsub.s32 %v6473, %v6475
        %v6477 = vrot.slane %v1675, %v6476
        %v6479 = vunpack.c.l.s4 1983009808
        %v6480 = vunpack.c.0.s8 %v6479
        %v6481 = vlaneseq
        %v6482 = vshrl.u32 %v6481, 7
        %v6483 = vsub.s32 %v6480, %v6482
        %v6484 = vrot.slane %v6470, %v6483
        %v6485 = vcombine.low %v6462, %v6477
        %v6486 = vcombine.high %v6462, %v6477
        %v6488 = vunpack.c.l.s4 1934713408
        %v6489 = vunpack.c.0.s8 %v6488
        %v6490 = vlaneseq
        %v6491 = vshrl.u32 %v6490, 7
        %v6492 = vsub.s32 %v6489, %v6491
        %v6493 = vrot.slane %v6485, %v6492
        %v6495 = vunpack.c.l.s4 1934713408
        %v6496 = vunpack.c.0.s8 %v6495
        %v6497 = vlaneseq
        %v6498 = vshrl.u32 %v6497, 7
        %v6499 = vsub.s32 %v6496, %v6498
        %v6500 = vrot.slane %v6486, %v6499
        %v6501 = vcombine.low %v6469, %v6484
        %v6502 = vcombine.high %v6469, %v6484
        %v6504 = vunpack.c.l.s4 1934713408
        %v6505 = vunpack.c.0.s8 %v6504
        %v6506 = vlaneseq
        %v6507 = vshrl.u32 %v6506, 7
        %v6508 = vsub.s32 %v6505, %v6507
        %v6509 = vrot.slane %v6501, %v6508
        %v6511 = vunpack.c.l.s4 1934713408
        %v6512 = vunpack.c.0.s8 %v6511
        %v6513 = vlaneseq
        %v6514 = vshrl.u32 %v6513, 7
        %v6515 = vsub.s32 %v6512, %v6514
        %v6516 = vrot.slane %v6502, %v6515
        %v6517 = vcombine.high %v6493, 0.0
        %v6518 = vcombine.high %v6500, 0.0
        %v6519 = vcombine.high %v6509, 0.0
        %v6520 = vcombine.high %v6516, 0.0
        %v6521 = vcombine.high %v1679, 0.0
        %v6523 = vunpack.c.l.s4 1983009808
        %v6524 = vunpack.c.0.s8 %v6523
        %v6525 = vlaneseq
        %v6526 = vshrl.u32 %v6525, 7
        %v6527 = vsub.s32 %v6524, %v6526
        %v6528 = vrot.slane %v1679, %v6527
        %v6530 = vunpack.c.l.s4 1983009808
        %v6531 = vunpack.c.0.s8 %v6530
        %v6532 = vlaneseq
        %v6533 = vshrl.u32 %v6532, 7
        %v6534 = vsub.s32 %v6531, %v6533
        %v6535 = vrot.slane %v6521, %v6534
        %v6536 = vcombine.high %v1681, 0.0
        %v6538 = vunpack.c.l.s4 1983009808
        %v6539 = vunpack.c.0.s8 %v6538
        %v6540 = vlaneseq
        %v6541 = vshrl.u32 %v6540, 7
        %v6542 = vsub.s32 %v6539, %v6541
        %v6543 = vrot.slane %v1681, %v6542
        %v6545 = vunpack.c.l.s4 1983009808
        %v6546 = vunpack.c.0.s8 %v6545
        %v6547 = vlaneseq
        %v6548 = vshrl.u32 %v6547, 7
        %v6549 = vsub.s32 %v6546, %v6548
        %v6550 = vrot.slane %v6536, %v6549
        %v6551 = vcombine.low %v6528, %v6543
        %v6552 = vcombine.high %v6528, %v6543
        %v6554 = vunpack.c.l.s4 1934713408
        %v6555 = vunpack.c.0.s8 %v6554
        %v6556 = vlaneseq
        %v6557 = vshrl.u32 %v6556, 7
        %v6558 = vsub.s32 %v6555, %v6557
        %v6559 = vrot.slane %v6551, %v6558
        %v6561 = vunpack.c.l.s4 1934713408
        %v6562 = vunpack.c.0.s8 %v6561
        %v6563 = vlaneseq
        %v6564 = vshrl.u32 %v6563, 7
        %v6565 = vsub.s32 %v6562, %v6564
        %v6566 = vrot.slane %v6552, %v6565
        %v6567 = vcombine.low %v6535, %v6550
        %v6568 = vcombine.high %v6535, %v6550
        %v6570 = vunpack.c.l.s4 1934713408
        %v6571 = vunpack.c.0.s8 %v6570
        %v6572 = vlaneseq
        %v6573 = vshrl.u32 %v6572, 7
        %v6574 = vsub.s32 %v6571, %v6573
        %v6575 = vrot.slane %v6567, %v6574
        %v6577 = vunpack.c.l.s4 1934713408
        %v6578 = vunpack.c.0.s8 %v6577
        %v6579 = vlaneseq
        %v6580 = vshrl.u32 %v6579, 7
        %v6581 = vsub.s32 %v6578, %v6580
        %v6582 = vrot.slane %v6568, %v6581
        %v6583 = vcombine.high %v6559, 0.0
        %v6584 = vcombine.high %v6566, 0.0
        %v6585 = vcombine.high %v6575, 0.0
        %v6586 = vcombine.high %v6582, 0.0
        %v6587 = vcombine.high %v1683, 0.0
        %v6589 = vunpack.c.l.s4 1983009808
        %v6590 = vunpack.c.0.s8 %v6589
        %v6591 = vlaneseq
        %v6592 = vshrl.u32 %v6591, 7
        %v6593 = vsub.s32 %v6590, %v6592
        %v6594 = vrot.slane %v1683, %v6593
        %v6596 = vunpack.c.l.s4 1983009808
        %v6597 = vunpack.c.0.s8 %v6596
        %v6598 = vlaneseq
        %v6599 = vshrl.u32 %v6598, 7
        %v6600 = vsub.s32 %v6597, %v6599
        %v6601 = vrot.slane %v6587, %v6600
        %v6602 = vcombine.high %v1685, 0.0
        %v6604 = vunpack.c.l.s4 1983009808
        %v6605 = vunpack.c.0.s8 %v6604
        %v6606 = vlaneseq
        %v6607 = vshrl.u32 %v6606, 7
        %v6608 = vsub.s32 %v6605, %v6607
        %v6609 = vrot.slane %v1685, %v6608
        %v6611 = vunpack.c.l.s4 1983009808
        %v6612 = vunpack.c.0.s8 %v6611
        %v6613 = vlaneseq
        %v6614 = vshrl.u32 %v6613, 7
        %v6615 = vsub.s32 %v6612, %v6614
        %v6616 = vrot.slane %v6602, %v6615
        %v6617 = vcombine.low %v6594, %v6609
        %v6618 = vcombine.high %v6594, %v6609
        %v6620 = vunpack.c.l.s4 1934713408
        %v6621 = vunpack.c.0.s8 %v6620
        %v6622 = vlaneseq
        %v6623 = vshrl.u32 %v6622, 7
        %v6624 = vsub.s32 %v6621, %v6623
        %v6625 = vrot.slane %v6617, %v6624
        %v6627 = vunpack.c.l.s4 1934713408
        %v6628 = vunpack.c.0.s8 %v6627
        %v6629 = vlaneseq
        %v6630 = vshrl.u32 %v6629, 7
        %v6631 = vsub.s32 %v6628, %v6630
        %v6632 = vrot.slane %v6618, %v6631
        %v6633 = vcombine.low %v6601, %v6616
        %v6634 = vcombine.high %v6601, %v6616
        %v6636 = vunpack.c.l.s4 1934713408
        %v6637 = vunpack.c.0.s8 %v6636
        %v6638 = vlaneseq
        %v6639 = vshrl.u32 %v6638, 7
        %v6640 = vsub.s32 %v6637, %v6639
        %v6641 = vrot.slane %v6633, %v6640
        %v6643 = vunpack.c.l.s4 1934713408
        %v6644 = vunpack.c.0.s8 %v6643
        %v6645 = vlaneseq
        %v6646 = vshrl.u32 %v6645, 7
        %v6647 = vsub.s32 %v6644, %v6646
        %v6648 = vrot.slane %v6634, %v6647
        %v6649 = vcombine.high %v6625, 0.0
        %v6650 = vcombine.high %v6632, 0.0
        %v6651 = vcombine.high %v6641, 0.0
        %v6652 = vcombine.high %v6648, 0.0
        %v6653 = vcombine.high %v1689, 0.0
        %v6655 = vunpack.c.l.s4 1983009808
        %v6656 = vunpack.c.0.s8 %v6655
        %v6657 = vlaneseq
        %v6658 = vshrl.u32 %v6657, 7
        %v6659 = vsub.s32 %v6656, %v6658
        %v6660 = vrot.slane %v1689, %v6659
        %v6662 = vunpack.c.l.s4 1983009808
        %v6663 = vunpack.c.0.s8 %v6662
        %v6664 = vlaneseq
        %v6665 = vshrl.u32 %v6664, 7
        %v6666 = vsub.s32 %v6663, %v6665
        %v6667 = vrot.slane %v6653, %v6666
        %v6668 = vcombine.high %v1691, 0.0
        %v6670 = vunpack.c.l.s4 1983009808
        %v6671 = vunpack.c.0.s8 %v6670
        %v6672 = vlaneseq
        %v6673 = vshrl.u32 %v6672, 7
        %v6674 = vsub.s32 %v6671, %v6673
        %v6675 = vrot.slane %v1691, %v6674
        %v6677 = vunpack.c.l.s4 1983009808
        %v6678 = vunpack.c.0.s8 %v6677
        %v6679 = vlaneseq
        %v6680 = vshrl.u32 %v6679, 7
        %v6681 = vsub.s32 %v6678, %v6680
        %v6682 = vrot.slane %v6668, %v6681
        %v6683 = vcombine.low %v6660, %v6675
        %v6684 = vcombine.high %v6660, %v6675
        %v6686 = vunpack.c.l.s4 1934713408
        %v6687 = vunpack.c.0.s8 %v6686
        %v6688 = vlaneseq
        %v6689 = vshrl.u32 %v6688, 7
        %v6690 = vsub.s32 %v6687, %v6689
        %v6691 = vrot.slane %v6683, %v6690
        %v6693 = vunpack.c.l.s4 1934713408
        %v6694 = vunpack.c.0.s8 %v6693
        %v6695 = vlaneseq
        %v6696 = vshrl.u32 %v6695, 7
        %v6697 = vsub.s32 %v6694, %v6696
        %v6698 = vrot.slane %v6684, %v6697
        %v6699 = vcombine.low %v6667, %v6682
        %v6700 = vcombine.high %v6667, %v6682
        %v6702 = vunpack.c.l.s4 1934713408
        %v6703 = vunpack.c.0.s8 %v6702
        %v6704 = vlaneseq
        %v6705 = vshrl.u32 %v6704, 7
        %v6706 = vsub.s32 %v6703, %v6705
        %v6707 = vrot.slane %v6699, %v6706
        %v6709 = vunpack.c.l.s4 1934713408
        %v6710 = vunpack.c.0.s8 %v6709
        %v6711 = vlaneseq
        %v6712 = vshrl.u32 %v6711, 7
        %v6713 = vsub.s32 %v6710, %v6712
        %v6714 = vrot.slane %v6700, %v6713
        %v6715 = vcombine.high %v6691, 0.0
        %v6716 = vcombine.high %v6698, 0.0
        %v6717 = vcombine.high %v6707, 0.0
        %v6718 = vcombine.high %v6714, 0.0
        %v6719 = vcombine.high %v1693, 0.0
        %v6721 = vunpack.c.l.s4 1983009808
        %v6722 = vunpack.c.0.s8 %v6721
        %v6723 = vlaneseq
        %v6724 = vshrl.u32 %v6723, 7
        %v6725 = vsub.s32 %v6722, %v6724
        %v6726 = vrot.slane %v1693, %v6725
        %v6728 = vunpack.c.l.s4 1983009808
        %v6729 = vunpack.c.0.s8 %v6728
        %v6730 = vlaneseq
        %v6731 = vshrl.u32 %v6730, 7
        %v6732 = vsub.s32 %v6729, %v6731
        %v6733 = vrot.slane %v6719, %v6732
        %v6734 = vcombine.high %v1695, 0.0
        %v6736 = vunpack.c.l.s4 1983009808
        %v6737 = vunpack.c.0.s8 %v6736
        %v6738 = vlaneseq
        %v6739 = vshrl.u32 %v6738, 7
        %v6740 = vsub.s32 %v6737, %v6739
        %v6741 = vrot.slane %v1695, %v6740
        %v6743 = vunpack.c.l.s4 1983009808
        %v6744 = vunpack.c.0.s8 %v6743
        %v6745 = vlaneseq
        %v6746 = vshrl.u32 %v6745, 7
        %v6747 = vsub.s32 %v6744, %v6746
        %v6748 = vrot.slane %v6734, %v6747
        %v6749 = vcombine.low %v6726, %v6741
        %v6750 = vcombine.high %v6726, %v6741
        %v6752 = vunpack.c.l.s4 1934713408
        %v6753 = vunpack.c.0.s8 %v6752
        %v6754 = vlaneseq
        %v6755 = vshrl.u32 %v6754, 7
        %v6756 = vsub.s32 %v6753, %v6755
        %v6757 = vrot.slane %v6749, %v6756
        %v6759 = vunpack.c.l.s4 1934713408
        %v6760 = vunpack.c.0.s8 %v6759
        %v6761 = vlaneseq
        %v6762 = vshrl.u32 %v6761, 7
        %v6763 = vsub.s32 %v6760, %v6762
        %v6764 = vrot.slane %v6750, %v6763
        %v6765 = vcombine.low %v6733, %v6748
        %v6766 = vcombine.high %v6733, %v6748
        %v6768 = vunpack.c.l.s4 1934713408
        %v6769 = vunpack.c.0.s8 %v6768
        %v6770 = vlaneseq
        %v6771 = vshrl.u32 %v6770, 7
        %v6772 = vsub.s32 %v6769, %v6771
        %v6773 = vrot.slane %v6765, %v6772
        %v6775 = vunpack.c.l.s4 1934713408
        %v6776 = vunpack.c.0.s8 %v6775
        %v6777 = vlaneseq
        %v6778 = vshrl.u32 %v6777, 7
        %v6779 = vsub.s32 %v6776, %v6778
        %v6780 = vrot.slane %v6766, %v6779
        %v6781 = vcombine.high %v6757, 0.0
        %v6782 = vcombine.high %v6764, 0.0
        %v6783 = vcombine.high %v6773, 0.0
        %v6784 = vcombine.high %v6780, 0.0
        %v6785 = vcombine.low %v5767, %v5774
        %v6787 = vunpack.c.l.s4 1983009808
        %v6788 = vunpack.c.0.s8 %v6787
        %v6789 = vlaneseq
        %v6790 = vshrl.u32 %v6789, 7
        %v6791 = vsub.s32 %v6788, %v6790
        %v6792 = vrot.slane %v6785, %v6791
        %v6793 = vcombine.low %v5791, %v5792
        %v6795 = vunpack.c.l.s4 1983009808
        %v6796 = vunpack.c.0.s8 %v6795
        %v6797 = vlaneseq
        %v6798 = vshrl.u32 %v6797, 7
        %v6799 = vsub.s32 %v6796, %v6798
        %v6800 = vrot.slane %v6793, %v6799
        %v6801 = vcombine.low %v5783, %v5790
        %v6803 = vunpack.c.l.s4 1983009808
        %v6804 = vunpack.c.0.s8 %v6803
        %v6805 = vlaneseq
        %v6806 = vshrl.u32 %v6805, 7
        %v6807 = vsub.s32 %v6804, %v6806
        %v6808 = vrot.slane %v6801, %v6807
        %v6809 = vcombine.low %v5793, %v5794
        %v6811 = vunpack.c.l.s4 1983009808
        %v6812 = vunpack.c.0.s8 %v6811
        %v6813 = vlaneseq
        %v6814 = vshrl.u32 %v6813, 7
        %v6815 = vsub.s32 %v6812, %v6814
        %v6816 = vrot.slane %v6809, %v6815
        %v6817 = vcombine.low %v6792, %v6800
        %v6819 = vunpack.c.l.s4 1934713408
        %v6820 = vunpack.c.0.s8 %v6819
        %v6821 = vlaneseq
        %v6822 = vshrl.u32 %v6821, 7
        %v6823 = vsub.s32 %v6820, %v6822
        %v6824 = vrot.slane %v6817, %v6823
        %v6825 = vcombine.low %v6808, %v6816
        %v6827 = vunpack.c.l.s4 1934713408
        %v6828 = vunpack.c.0.s8 %v6827
        %v6829 = vlaneseq
        %v6830 = vshrl.u32 %v6829, 7
        %v6831 = vsub.s32 %v6828, %v6830
        %v6832 = vrot.slane %v6825, %v6831
        %v6833 = vcombine.low %v6824, %v6832
        %v6834 = vcombine.high %v6824, %v6832
        %v6835 = vcombine.low %v5833, %v5840
        %v6837 = vunpack.c.l.s4 1983009808
        %v6838 = vunpack.c.0.s8 %v6837
        %v6839 = vlaneseq
        %v6840 = vshrl.u32 %v6839, 7
        %v6841 = vsub.s32 %v6838, %v6840
        %v6842 = vrot.slane %v6835, %v6841
        %v6843 = vcombine.low %v5857, %v5858
        %v6845 = vunpack.c.l.s4 1983009808
        %v6846 = vunpack.c.0.s8 %v6845
        %v6847 = vlaneseq
        %v6848 = vshrl.u32 %v6847, 7
        %v6849 = vsub.s32 %v6846, %v6848
        %v6850 = vrot.slane %v6843, %v6849
        %v6851 = vcombine.low %v5849, %v5856
        %v6853 = vunpack.c.l.s4 1983009808
        %v6854 = vunpack.c.0.s8 %v6853
        %v6855 = vlaneseq
        %v6856 = vshrl.u32 %v6855, 7
        %v6857 = vsub.s32 %v6854, %v6856
        %v6858 = vrot.slane %v6851, %v6857
        %v6859 = vcombine.low %v5859, %v5860
        %v6861 = vunpack.c.l.s4 1983009808
        %v6862 = vunpack.c.0.s8 %v6861
        %v6863 = vlaneseq
        %v6864 = vshrl.u32 %v6863, 7
        %v6865 = vsub.s32 %v6862, %v6864
        %v6866 = vrot.slane %v6859, %v6865
        %v6867 = vcombine.low %v6842, %v6850
        %v6869 = vunpack.c.l.s4 1934713408
        %v6870 = vunpack.c.0.s8 %v6869
        %v6871 = vlaneseq
        %v6872 = vshrl.u32 %v6871, 7
        %v6873 = vsub.s32 %v6870, %v6872
        %v6874 = vrot.slane %v6867, %v6873
        %v6875 = vcombine.low %v6858, %v6866
        %v6877 = vunpack.c.l.s4 1934713408
        %v6878 = vunpack.c.0.s8 %v6877
        %v6879 = vlaneseq
        %v6880 = vshrl.u32 %v6879, 7
        %v6881 = vsub.s32 %v6878, %v6880
        %v6882 = vrot.slane %v6875, %v6881
        %v6883 = vcombine.low %v6874, %v6882
        %v6884 = vcombine.high %v6874, %v6882
        %v6885 = vcombine.low %v5899, %v5906
        %v6887 = vunpack.c.l.s4 1983009808
        %v6888 = vunpack.c.0.s8 %v6887
        %v6889 = vlaneseq
        %v6890 = vshrl.u32 %v6889, 7
        %v6891 = vsub.s32 %v6888, %v6890
        %v6892 = vrot.slane %v6885, %v6891
        %v6893 = vcombine.low %v5923, %v5924
        %v6895 = vunpack.c.l.s4 1983009808
        %v6896 = vunpack.c.0.s8 %v6895
        %v6897 = vlaneseq
        %v6898 = vshrl.u32 %v6897, 7
        %v6899 = vsub.s32 %v6896, %v6898
        %v6900 = vrot.slane %v6893, %v6899
        %v6901 = vcombine.low %v5915, %v5922
        %v6903 = vunpack.c.l.s4 1983009808
        %v6904 = vunpack.c.0.s8 %v6903
        %v6905 = vlaneseq
        %v6906 = vshrl.u32 %v6905, 7
        %v6907 = vsub.s32 %v6904, %v6906
        %v6908 = vrot.slane %v6901, %v6907
        %v6909 = vcombine.low %v5925, %v5926
        %v6911 = vunpack.c.l.s4 1983009808
        %v6912 = vunpack.c.0.s8 %v6911
        %v6913 = vlaneseq
        %v6914 = vshrl.u32 %v6913, 7
        %v6915 = vsub.s32 %v6912, %v6914
        %v6916 = vrot.slane %v6909, %v6915
        %v6917 = vcombine.low %v6892, %v6900
        %v6919 = vunpack.c.l.s4 1934713408
        %v6920 = vunpack.c.0.s8 %v6919
        %v6921 = vlaneseq
        %v6922 = vshrl.u32 %v6921, 7
        %v6923 = vsub.s32 %v6920, %v6922
        %v6924 = vrot.slane %v6917, %v6923
        %v6925 = vcombine.low %v6908, %v6916
        %v6927 = vunpack.c.l.s4 1934713408
        %v6928 = vunpack.c.0.s8 %v6927
        %v6929 = vlaneseq
        %v6930 = vshrl.u32 %v6929, 7
        %v6931 = vsub.s32 %v6928, %v6930
        %v6932 = vrot.slane %v6925, %v6931
        %v6933 = vcombine.low %v6924, %v6932
        %v6934 = vcombine.high %v6924, %v6932
        %v6935 = vcombine.low %v5965, %v5972
        %v6937 = vunpack.c.l.s4 1983009808
        %v6938 = vunpack.c.0.s8 %v6937
        %v6939 = vlaneseq
        %v6940 = vshrl.u32 %v6939, 7
        %v6941 = vsub.s32 %v6938, %v6940
        %v6942 = vrot.slane %v6935, %v6941
        %v6943 = vcombine.low %v5989, %v5990
        %v6945 = vunpack.c.l.s4 1983009808
        %v6946 = vunpack.c.0.s8 %v6945
        %v6947 = vlaneseq
        %v6948 = vshrl.u32 %v6947, 7
        %v6949 = vsub.s32 %v6946, %v6948
        %v6950 = vrot.slane %v6943, %v6949
        %v6951 = vcombine.low %v5981, %v5988
        %v6953 = vunpack.c.l.s4 1983009808
        %v6954 = vunpack.c.0.s8 %v6953
        %v6955 = vlaneseq
        %v6956 = vshrl.u32 %v6955, 7
        %v6957 = vsub.s32 %v6954, %v6956
        %v6958 = vrot.slane %v6951, %v6957
        %v6959 = vcombine.low %v5991, %v5992
        %v6961 = vunpack.c.l.s4 1983009808
        %v6962 = vunpack.c.0.s8 %v6961
        %v6963 = vlaneseq
        %v6964 = vshrl.u32 %v6963, 7
        %v6965 = vsub.s32 %v6962, %v6964
        %v6966 = vrot.slane %v6959, %v6965
        %v6967 = vcombine.low %v6942, %v6950
        %v6969 = vunpack.c.l.s4 1934713408
        %v6970 = vunpack.c.0.s8 %v6969
        %v6971 = vlaneseq
        %v6972 = vshrl.u32 %v6971, 7
        %v6973 = vsub.s32 %v6970, %v6972
        %v6974 = vrot.slane %v6967, %v6973
        %v6975 = vcombine.low %v6958, %v6966
        %v6977 = vunpack.c.l.s4 1934713408
        %v6978 = vunpack.c.0.s8 %v6977
        %v6979 = vlaneseq
        %v6980 = vshrl.u32 %v6979, 7
        %v6981 = vsub.s32 %v6978, %v6980
        %v6982 = vrot.slane %v6975, %v6981
        %v6983 = vcombine.low %v6974, %v6982
        %v6984 = vcombine.high %v6974, %v6982
        %v6985 = vcombine.low %v6031, %v6038
        %v6987 = vunpack.c.l.s4 1983009808
        %v6988 = vunpack.c.0.s8 %v6987
        %v6989 = vlaneseq
        %v6990 = vshrl.u32 %v6989, 7
        %v6991 = vsub.s32 %v6988, %v6990
        %v6992 = vrot.slane %v6985, %v6991
        %v6993 = vcombine.low %v6055, %v6056
        %v6995 = vunpack.c.l.s4 1983009808
        %v6996 = vunpack.c.0.s8 %v6995
        %v6997 = vlaneseq
        %v6998 = vshrl.u32 %v6997, 7
        %v6999 = vsub.s32 %v6996, %v6998
        %v7000 = vrot.slane %v6993, %v6999
        %v7001 = vcombine.low %v6047, %v6054
        %v7003 = vunpack.c.l.s4 1983009808
        %v7004 = vunpack.c.0.s8 %v7003
        %v7005 = vlaneseq
        %v7006 = vshrl.u32 %v7005, 7
        %v7007 = vsub.s32 %v7004, %v7006
        %v7008 = vrot.slane %v7001, %v7007
        %v7009 = vcombine.low %v6057, %v6058
        %v7011 = vunpack.c.l.s4 1983009808
        %v7012 = vunpack.c.0.s8 %v7011
        %v7013 = vlaneseq
        %v7014 = vshrl.u32 %v7013, 7
        %v7015 = vsub.s32 %v7012, %v7014
        %v7016 = vrot.slane %v7009, %v7015
        %v7017 = vcombine.low %v6992, %v7000
        %v7019 = vunpack.c.l.s4 1934713408
        %v7020 = vunpack.c.0.s8 %v7019
        %v7021 = vlaneseq
        %v7022 = vshrl.u32 %v7021, 7
        %v7023 = vsub.s32 %v7020, %v7022
        %v7024 = vrot.slane %v7017, %v7023
        %v7025 = vcombine.low %v7008, %v7016
        %v7027 = vunpack.c.l.s4 1934713408
        %v7028 = vunpack.c.0.s8 %v7027
        %v7029 = vlaneseq
        %v7030 = vshrl.u32 %v7029, 7
        %v7031 = vsub.s32 %v7028, %v7030
        %v7032 = vrot.slane %v7025, %v7031
        %v7033 = vcombine.low %v7024, %v7032
        %v7034 = vcombine.high %v7024, %v7032
        %v7035 = vcombine.low %v6097, %v6104
        %v7037 = vunpack.c.l.s4 1983009808
        %v7038 = vunpack.c.0.s8 %v7037
        %v7039 = vlaneseq
        %v7040 = vshrl.u32 %v7039, 7
        %v7041 = vsub.s32 %v7038, %v7040
        %v7042 = vrot.slane %v7035, %v7041
        %v7043 = vcombine.low %v6121, %v6122
        %v7045 = vunpack.c.l.s4 1983009808
        %v7046 = vunpack.c.0.s8 %v7045
        %v7047 = vlaneseq
        %v7048 = vshrl.u32 %v7047, 7
        %v7049 = vsub.s32 %v7046, %v7048
        %v7050 = vrot.slane %v7043, %v7049
        %v7051 = vcombine.low %v6113, %v6120
        %v7053 = vunpack.c.l.s4 1983009808
        %v7054 = vunpack.c.0.s8 %v7053
        %v7055 = vlaneseq
        %v7056 = vshrl.u32 %v7055, 7
        %v7057 = vsub.s32 %v7054, %v7056
        %v7058 = vrot.slane %v7051, %v7057
        %v7059 = vcombine.low %v6123, %v6124
        %v7061 = vunpack.c.l.s4 1983009808
        %v7062 = vunpack.c.0.s8 %v7061
        %v7063 = vlaneseq
        %v7064 = vshrl.u32 %v7063, 7
        %v7065 = vsub.s32 %v7062, %v7064
        %v7066 = vrot.slane %v7059, %v7065
        %v7067 = vcombine.low %v7042, %v7050
        %v7069 = vunpack.c.l.s4 1934713408
        %v7070 = vunpack.c.0.s8 %v7069
        %v7071 = vlaneseq
        %v7072 = vshrl.u32 %v7071, 7
        %v7073 = vsub.s32 %v7070, %v7072
        %v7074 = vrot.slane %v7067, %v7073
        %v7075 = vcombine.low %v7058, %v7066
        %v7077 = vunpack.c.l.s4 1934713408
        %v7078 = vunpack.c.0.s8 %v7077
        %v7079 = vlaneseq
        %v7080 = vshrl.u32 %v7079, 7
        %v7081 = vsub.s32 %v7078, %v7080
        %v7082 = vrot.slane %v7075, %v7081
        %v7083 = vcombine.low %v7074, %v7082
        %v7084 = vcombine.high %v7074, %v7082
        %v7085 = vcombine.low %v6163, %v6170
        %v7087 = vunpack.c.l.s4 1983009808
        %v7088 = vunpack.c.0.s8 %v7087
        %v7089 = vlaneseq
        %v7090 = vshrl.u32 %v7089, 7
        %v7091 = vsub.s32 %v7088, %v7090
        %v7092 = vrot.slane %v7085, %v7091
        %v7093 = vcombine.low %v6187, %v6188
        %v7095 = vunpack.c.l.s4 1983009808
        %v7096 = vunpack.c.0.s8 %v7095
        %v7097 = vlaneseq
        %v7098 = vshrl.u32 %v7097, 7
        %v7099 = vsub.s32 %v7096, %v7098
        %v7100 = vrot.slane %v7093, %v7099
        %v7101 = vcombine.low %v6179, %v6186
        %v7103 = vunpack.c.l.s4 1983009808
        %v7104 = vunpack.c.0.s8 %v7103
        %v7105 = vlaneseq
        %v7106 = vshrl.u32 %v7105, 7
        %v7107 = vsub.s32 %v7104, %v7106
        %v7108 = vrot.slane %v7101, %v7107
        %v7109 = vcombine.low %v6189, %v6190
        %v7111 = vunpack.c.l.s4 1983009808
        %v7112 = vunpack.c.0.s8 %v7111
        %v7113 = vlaneseq
        %v7114 = vshrl.u32 %v7113, 7
        %v7115 = vsub.s32 %v7112, %v7114
        %v7116 = vrot.slane %v7109, %v7115
        %v7117 = vcombine.low %v7092, %v7100
        %v7119 = vunpack.c.l.s4 1934713408
        %v7120 = vunpack.c.0.s8 %v7119
        %v7121 = vlaneseq
        %v7122 = vshrl.u32 %v7121, 7
        %v7123 = vsub.s32 %v7120, %v7122
        %v7124 = vrot.slane %v7117, %v7123
        %v7125 = vcombine.low %v7108, %v7116
        %v7127 = vunpack.c.l.s4 1934713408
        %v7128 = vunpack.c.0.s8 %v7127
        %v7129 = vlaneseq
        %v7130 = vshrl.u32 %v7129, 7
        %v7131 = vsub.s32 %v7128, %v7130
        %v7132 = vrot.slane %v7125, %v7131
        %v7133 = vcombine.low %v7124, %v7132
        %v7134 = vcombine.high %v7124, %v7132
        %v7135 = vcombine.low %v6229, %v6236
        %v7137 = vunpack.c.l.s4 1983009808
        %v7138 = vunpack.c.0.s8 %v7137
        %v7139 = vlaneseq
        %v7140 = vshrl.u32 %v7139, 7
        %v7141 = vsub.s32 %v7138, %v7140
        %v7142 = vrot.slane %v7135, %v7141
        %v7143 = vcombine.low %v6253, %v6254
        %v7145 = vunpack.c.l.s4 1983009808
        %v7146 = vunpack.c.0.s8 %v7145
        %v7147 = vlaneseq
        %v7148 = vshrl.u32 %v7147, 7
        %v7149 = vsub.s32 %v7146, %v7148
        %v7150 = vrot.slane %v7143, %v7149
        %v7151 = vcombine.low %v6245, %v6252
        %v7153 = vunpack.c.l.s4 1983009808
        %v7154 = vunpack.c.0.s8 %v7153
        %v7155 = vlaneseq
        %v7156 = vshrl.u32 %v7155, 7
        %v7157 = vsub.s32 %v7154, %v7156
        %v7158 = vrot.slane %v7151, %v7157
        %v7159 = vcombine.low %v6255, %v6256
        %v7161 = vunpack.c.l.s4 1983009808
        %v7162 = vunpack.c.0.s8 %v7161
        %v7163 = vlaneseq
        %v7164 = vshrl.u32 %v7163, 7
        %v7165 = vsub.s32 %v7162, %v7164
        %v7166 = vrot.slane %v7159, %v7165
        %v7167 = vcombine.low %v7142, %v7150
        %v7169 = vunpack.c.l.s4 1934713408
        %v7170 = vunpack.c.0.s8 %v7169
        %v7171 = vlaneseq
        %v7172 = vshrl.u32 %v7171, 7
        %v7173 = vsub.s32 %v7170, %v7172
        %v7174 = vrot.slane %v7167, %v7173
        %v7175 = vcombine.low %v7158, %v7166
        %v7177 = vunpack.c.l.s4 1934713408
        %v7178 = vunpack.c.0.s8 %v7177
        %v7179 = vlaneseq
        %v7180 = vshrl.u32 %v7179, 7
        %v7181 = vsub.s32 %v7178, %v7180
        %v7182 = vrot.slane %v7175, %v7181
        %v7183 = vcombine.low %v7174, %v7182
        %v7184 = vcombine.high %v7174, %v7182
        %v7185 = vcombine.low %v6295, %v6302
        %v7187 = vunpack.c.l.s4 1983009808
        %v7188 = vunpack.c.0.s8 %v7187
        %v7189 = vlaneseq
        %v7190 = vshrl.u32 %v7189, 7
        %v7191 = vsub.s32 %v7188, %v7190
        %v7192 = vrot.slane %v7185, %v7191
        %v7193 = vcombine.low %v6319, %v6320
        %v7195 = vunpack.c.l.s4 1983009808
        %v7196 = vunpack.c.0.s8 %v7195
        %v7197 = vlaneseq
        %v7198 = vshrl.u32 %v7197, 7
        %v7199 = vsub.s32 %v7196, %v7198
        %v7200 = vrot.slane %v7193, %v7199
        %v7201 = vcombine.low %v6311, %v6318
        %v7203 = vunpack.c.l.s4 1983009808
        %v7204 = vunpack.c.0.s8 %v7203
        %v7205 = vlaneseq
        %v7206 = vshrl.u32 %v7205, 7
        %v7207 = vsub.s32 %v7204, %v7206
        %v7208 = vrot.slane %v7201, %v7207
        %v7209 = vcombine.low %v6321, %v6322
        %v7211 = vunpack.c.l.s4 1983009808
        %v7212 = vunpack.c.0.s8 %v7211
        %v7213 = vlaneseq
        %v7214 = vshrl.u32 %v7213, 7
        %v7215 = vsub.s32 %v7212, %v7214
        %v7216 = vrot.slane %v7209, %v7215
        %v7217 = vcombine.low %v7192, %v7200
        %v7219 = vunpack.c.l.s4 1934713408
        %v7220 = vunpack.c.0.s8 %v7219
        %v7221 = vlaneseq
        %v7222 = vshrl.u32 %v7221, 7
        %v7223 = vsub.s32 %v7220, %v7222
        %v7224 = vrot.slane %v7217, %v7223
        %v7225 = vcombine.low %v7208, %v7216
        %v7227 = vunpack.c.l.s4 1934713408
        %v7228 = vunpack.c.0.s8 %v7227
        %v7229 = vlaneseq
        %v7230 = vshrl.u32 %v7229, 7
        %v7231 = vsub.s32 %v7228, %v7230
        %v7232 = vrot.slane %v7225, %v7231
        %v7233 = vcombine.low %v7224, %v7232
        %v7234 = vcombine.high %v7224, %v7232
        %v7235 = vcombine.low %v6361, %v6368
        %v7237 = vunpack.c.l.s4 1983009808
        %v7238 = vunpack.c.0.s8 %v7237
        %v7239 = vlaneseq
        %v7240 = vshrl.u32 %v7239, 7
        %v7241 = vsub.s32 %v7238, %v7240
        %v7242 = vrot.slane %v7235, %v7241
        %v7243 = vcombine.low %v6385, %v6386
        %v7245 = vunpack.c.l.s4 1983009808
        %v7246 = vunpack.c.0.s8 %v7245
        %v7247 = vlaneseq
        %v7248 = vshrl.u32 %v7247, 7
        %v7249 = vsub.s32 %v7246, %v7248
        %v7250 = vrot.slane %v7243, %v7249
        %v7251 = vcombine.low %v6377, %v6384
        %v7253 = vunpack.c.l.s4 1983009808
        %v7254 = vunpack.c.0.s8 %v7253
        %v7255 = vlaneseq
        %v7256 = vshrl.u32 %v7255, 7
        %v7257 = vsub.s32 %v7254, %v7256
        %v7258 = vrot.slane %v7251, %v7257
        %v7259 = vcombine.low %v6387, %v6388
        %v7261 = vunpack.c.l.s4 1983009808
        %v7262 = vunpack.c.0.s8 %v7261
        %v7263 = vlaneseq
        %v7264 = vshrl.u32 %v7263, 7
        %v7265 = vsub.s32 %v7262, %v7264
        %v7266 = vrot.slane %v7259, %v7265
        %v7267 = vcombine.low %v7242, %v7250
        %v7269 = vunpack.c.l.s4 1934713408
        %v7270 = vunpack.c.0.s8 %v7269
        %v7271 = vlaneseq
        %v7272 = vshrl.u32 %v7271, 7
        %v7273 = vsub.s32 %v7270, %v7272
        %v7274 = vrot.slane %v7267, %v7273
        %v7275 = vcombine.low %v7258, %v7266
        %v7277 = vunpack.c.l.s4 1934713408
        %v7278 = vunpack.c.0.s8 %v7277
        %v7279 = vlaneseq
        %v7280 = vshrl.u32 %v7279, 7
        %v7281 = vsub.s32 %v7278, %v7280
        %v7282 = vrot.slane %v7275, %v7281
        %v7283 = vcombine.low %v7274, %v7282
        %v7284 = vcombine.high %v7274, %v7282
        %v7285 = vcombine.low %v6427, %v6434
        %v7287 = vunpack.c.l.s4 1983009808
        %v7288 = vunpack.c.0.s8 %v7287
        %v7289 = vlaneseq
        %v7290 = vshrl.u32 %v7289, 7
        %v7291 = vsub.s32 %v7288, %v7290
        %v7292 = vrot.slane %v7285, %v7291
        %v7293 = vcombine.low %v6451, %v6452
        %v7295 = vunpack.c.l.s4 1983009808
        %v7296 = vunpack.c.0.s8 %v7295
        %v7297 = vlaneseq
        %v7298 = vshrl.u32 %v7297, 7
        %v7299 = vsub.s32 %v7296, %v7298
        %v7300 = vrot.slane %v7293, %v7299
        %v7301 = vcombine.low %v6443, %v6450
        %v7303 = vunpack.c.l.s4 1983009808
        %v7304 = vunpack.c.0.s8 %v7303
        %v7305 = vlaneseq
        %v7306 = vshrl.u32 %v7305, 7
        %v7307 = vsub.s32 %v7304, %v7306
        %v7308 = vrot.slane %v7301, %v7307
        %v7309 = vcombine.low %v6453, %v6454
        %v7311 = vunpack.c.l.s4 1983009808
        %v7312 = vunpack.c.0.s8 %v7311
        %v7313 = vlaneseq
        %v7314 = vshrl.u32 %v7313, 7
        %v7315 = vsub.s32 %v7312, %v7314
        %v7316 = vrot.slane %v7309, %v7315
        %v7317 = vcombine.low %v7292, %v7300
        %v7319 = vunpack.c.l.s4 1934713408
        %v7320 = vunpack.c.0.s8 %v7319
        %v7321 = vlaneseq
        %v7322 = vshrl.u32 %v7321, 7
        %v7323 = vsub.s32 %v7320, %v7322
        %v7324 = vrot.slane %v7317, %v7323
        %v7325 = vcombine.low %v7308, %v7316
        %v7327 = vunpack.c.l.s4 1934713408
        %v7328 = vunpack.c.0.s8 %v7327
        %v7329 = vlaneseq
        %v7330 = vshrl.u32 %v7329, 7
        %v7331 = vsub.s32 %v7328, %v7330
        %v7332 = vrot.slane %v7325, %v7331
        %v7333 = vcombine.low %v7324, %v7332
        %v7334 = vcombine.high %v7324, %v7332
        %v7335 = vcombine.low %v6493, %v6500
        %v7337 = vunpack.c.l.s4 1983009808
        %v7338 = vunpack.c.0.s8 %v7337
        %v7339 = vlaneseq
        %v7340 = vshrl.u32 %v7339, 7
        %v7341 = vsub.s32 %v7338, %v7340
        %v7342 = vrot.slane %v7335, %v7341
        %v7343 = vcombine.low %v6517, %v6518
        %v7345 = vunpack.c.l.s4 1983009808
        %v7346 = vunpack.c.0.s8 %v7345
        %v7347 = vlaneseq
        %v7348 = vshrl.u32 %v7347, 7
        %v7349 = vsub.s32 %v7346, %v7348
        %v7350 = vrot.slane %v7343, %v7349
        %v7351 = vcombine.low %v6509, %v6516
        %v7353 = vunpack.c.l.s4 1983009808
        %v7354 = vunpack.c.0.s8 %v7353
        %v7355 = vlaneseq
        %v7356 = vshrl.u32 %v7355, 7
        %v7357 = vsub.s32 %v7354, %v7356
        %v7358 = vrot.slane %v7351, %v7357
        %v7359 = vcombine.low %v6519, %v6520
        %v7361 = vunpack.c.l.s4 1983009808
        %v7362 = vunpack.c.0.s8 %v7361
        %v7363 = vlaneseq
        %v7364 = vshrl.u32 %v7363, 7
        %v7365 = vsub.s32 %v7362, %v7364
        %v7366 = vrot.slane %v7359, %v7365
        %v7367 = vcombine.low %v7342, %v7350
        %v7369 = vunpack.c.l.s4 1934713408
        %v7370 = vunpack.c.0.s8 %v7369
        %v7371 = vlaneseq
        %v7372 = vshrl.u32 %v7371, 7
        %v7373 = vsub.s32 %v7370, %v7372
        %v7374 = vrot.slane %v7367, %v7373
        %v7375 = vcombine.low %v7358, %v7366
        %v7377 = vunpack.c.l.s4 1934713408
        %v7378 = vunpack.c.0.s8 %v7377
        %v7379 = vlaneseq
        %v7380 = vshrl.u32 %v7379, 7
        %v7381 = vsub.s32 %v7378, %v7380
        %v7382 = vrot.slane %v7375, %v7381
        %v7383 = vcombine.low %v7374, %v7382
        %v7384 = vcombine.high %v7374, %v7382
        %v7385 = vcombine.low %v6559, %v6566
        %v7387 = vunpack.c.l.s4 1983009808
        %v7388 = vunpack.c.0.s8 %v7387
        %v7389 = vlaneseq
        %v7390 = vshrl.u32 %v7389, 7
        %v7391 = vsub.s32 %v7388, %v7390
        %v7392 = vrot.slane %v7385, %v7391
        %v7393 = vcombine.low %v6583, %v6584
        %v7395 = vunpack.c.l.s4 1983009808
        %v7396 = vunpack.c.0.s8 %v7395
        %v7397 = vlaneseq
        %v7398 = vshrl.u32 %v7397, 7
        %v7399 = vsub.s32 %v7396, %v7398
        %v7400 = vrot.slane %v7393, %v7399
        %v7401 = vcombine.low %v6575, %v6582
        %v7403 = vunpack.c.l.s4 1983009808
        %v7404 = vunpack.c.0.s8 %v7403
        %v7405 = vlaneseq
        %v7406 = vshrl.u32 %v7405, 7
        %v7407 = vsub.s32 %v7404, %v7406
        %v7408 = vrot.slane %v7401, %v7407
        %v7409 = vcombine.low %v6585, %v6586
        %v7411 = vunpack.c.l.s4 1983009808
        %v7412 = vunpack.c.0.s8 %v7411
        %v7413 = vlaneseq
        %v7414 = vshrl.u32 %v7413, 7
        %v7415 = vsub.s32 %v7412, %v7414
        %v7416 = vrot.slane %v7409, %v7415
        %v7417 = vcombine.low %v7392, %v7400
        %v7419 = vunpack.c.l.s4 1934713408
        %v7420 = vunpack.c.0.s8 %v7419
        %v7421 = vlaneseq
        %v7422 = vshrl.u32 %v7421, 7
        %v7423 = vsub.s32 %v7420, %v7422
        %v7424 = vrot.slane %v7417, %v7423
        %v7425 = vcombine.low %v7408, %v7416
        %v7427 = vunpack.c.l.s4 1934713408
        %v7428 = vunpack.c.0.s8 %v7427
        %v7429 = vlaneseq
        %v7430 = vshrl.u32 %v7429, 7
        %v7431 = vsub.s32 %v7428, %v7430
        %v7432 = vrot.slane %v7425, %v7431
        %v7433 = vcombine.low %v7424, %v7432
        %v7434 = vcombine.high %v7424, %v7432
        %v7435 = vcombine.low %v6625, %v6632
        %v7437 = vunpack.c.l.s4 1983009808
        %v7438 = vunpack.c.0.s8 %v7437
        %v7439 = vlaneseq
        %v7440 = vshrl.u32 %v7439, 7
        %v7441 = vsub.s32 %v7438, %v7440
        %v7442 = vrot.slane %v7435, %v7441
        %v7443 = vcombine.low %v6649, %v6650
        %v7445 = vunpack.c.l.s4 1983009808
        %v7446 = vunpack.c.0.s8 %v7445
        %v7447 = vlaneseq
        %v7448 = vshrl.u32 %v7447, 7
        %v7449 = vsub.s32 %v7446, %v7448
        %v7450 = vrot.slane %v7443, %v7449
        %v7451 = vcombine.low %v6641, %v6648
        %v7453 = vunpack.c.l.s4 1983009808
        %v7454 = vunpack.c.0.s8 %v7453
        %v7455 = vlaneseq
        %v7456 = vshrl.u32 %v7455, 7
        %v7457 = vsub.s32 %v7454, %v7456
        %v7458 = vrot.slane %v7451, %v7457
        %v7459 = vcombine.low %v6651, %v6652
        %v7461 = vunpack.c.l.s4 1983009808
        %v7462 = vunpack.c.0.s8 %v7461
        %v7463 = vlaneseq
        %v7464 = vshrl.u32 %v7463, 7
        %v7465 = vsub.s32 %v7462, %v7464
        %v7466 = vrot.slane %v7459, %v7465
        %v7467 = vcombine.low %v7442, %v7450
        %v7469 = vunpack.c.l.s4 1934713408
        %v7470 = vunpack.c.0.s8 %v7469
        %v7471 = vlaneseq
        %v7472 = vshrl.u32 %v7471, 7
        %v7473 = vsub.s32 %v7470, %v7472
        %v7474 = vrot.slane %v7467, %v7473
        %v7475 = vcombine.low %v7458, %v7466
        %v7477 = vunpack.c.l.s4 1934713408
        %v7478 = vunpack.c.0.s8 %v7477
        %v7479 = vlaneseq
        %v7480 = vshrl.u32 %v7479, 7
        %v7481 = vsub.s32 %v7478, %v7480
        %v7482 = vrot.slane %v7475, %v7481
        %v7483 = vcombine.low %v7474, %v7482
        %v7484 = vcombine.high %v7474, %v7482
        %v7485 = vcombine.low %v6691, %v6698
        %v7487 = vunpack.c.l.s4 1983009808
        %v7488 = vunpack.c.0.s8 %v7487
        %v7489 = vlaneseq
        %v7490 = vshrl.u32 %v7489, 7
        %v7491 = vsub.s32 %v7488, %v7490
        %v7492 = vrot.slane %v7485, %v7491
        %v7493 = vcombine.low %v6715, %v6716
        %v7495 = vunpack.c.l.s4 1983009808
        %v7496 = vunpack.c.0.s8 %v7495
        %v7497 = vlaneseq
        %v7498 = vshrl.u32 %v7497, 7
        %v7499 = vsub.s32 %v7496, %v7498
        %v7500 = vrot.slane %v7493, %v7499
        %v7501 = vcombine.low %v6707, %v6714
        %v7503 = vunpack.c.l.s4 1983009808
        %v7504 = vunpack.c.0.s8 %v7503
        %v7505 = vlaneseq
        %v7506 = vshrl.u32 %v7505, 7
        %v7507 = vsub.s32 %v7504, %v7506
        %v7508 = vrot.slane %v7501, %v7507
        %v7509 = vcombine.low %v6717, %v6718
        %v7511 = vunpack.c.l.s4 1983009808
        %v7512 = vunpack.c.0.s8 %v7511
        %v7513 = vlaneseq
        %v7514 = vshrl.u32 %v7513, 7
        %v7515 = vsub.s32 %v7512, %v7514
        %v7516 = vrot.slane %v7509, %v7515
        %v7517 = vcombine.low %v7492, %v7500
        %v7519 = vunpack.c.l.s4 1934713408
        %v7520 = vunpack.c.0.s8 %v7519
        %v7521 = vlaneseq
        %v7522 = vshrl.u32 %v7521, 7
        %v7523 = vsub.s32 %v7520, %v7522
        %v7524 = vrot.slane %v7517, %v7523
        %v7525 = vcombine.low %v7508, %v7516
        %v7527 = vunpack.c.l.s4 1934713408
        %v7528 = vunpack.c.0.s8 %v7527
        %v7529 = vlaneseq
        %v7530 = vshrl.u32 %v7529, 7
        %v7531 = vsub.s32 %v7528, %v7530
        %v7532 = vrot.slane %v7525, %v7531
        %v7533 = vcombine.low %v7524, %v7532
        %v7534 = vcombine.high %v7524, %v7532
        %v7535 = vcombine.low %v6757, %v6764
        %v7537 = vunpack.c.l.s4 1983009808
        %v7538 = vunpack.c.0.s8 %v7537
        %v7539 = vlaneseq
        %v7540 = vshrl.u32 %v7539, 7
        %v7541 = vsub.s32 %v7538, %v7540
        %v7542 = vrot.slane %v7535, %v7541
        %v7543 = vcombine.low %v6781, %v6782
        %v7545 = vunpack.c.l.s4 1983009808
        %v7546 = vunpack.c.0.s8 %v7545
        %v7547 = vlaneseq
        %v7548 = vshrl.u32 %v7547, 7
        %v7549 = vsub.s32 %v7546, %v7548
        %v7550 = vrot.slane %v7543, %v7549
        %v7551 = vcombine.low %v6773, %v6780
        %v7553 = vunpack.c.l.s4 1983009808
        %v7554 = vunpack.c.0.s8 %v7553
        %v7555 = vlaneseq
        %v7556 = vshrl.u32 %v7555, 7
        %v7557 = vsub.s32 %v7554, %v7556
        %v7558 = vrot.slane %v7551, %v7557
        %v7559 = vcombine.low %v6783, %v6784
        %v7561 = vunpack.c.l.s4 1983009808
        %v7562 = vunpack.c.0.s8 %v7561
        %v7563 = vlaneseq
        %v7564 = vshrl.u32 %v7563, 7
        %v7565 = vsub.s32 %v7562, %v7564
        %v7566 = vrot.slane %v7559, %v7565
        %v7567 = vcombine.low %v7542, %v7550
        %v7569 = vunpack.c.l.s4 1934713408
        %v7570 = vunpack.c.0.s8 %v7569
        %v7571 = vlaneseq
        %v7572 = vshrl.u32 %v7571, 7
        %v7573 = vsub.s32 %v7570, %v7572
        %v7574 = vrot.slane %v7567, %v7573
        %v7575 = vcombine.low %v7558, %v7566
        %v7577 = vunpack.c.l.s4 1934713408
        %v7578 = vunpack.c.0.s8 %v7577
        %v7579 = vlaneseq
        %v7580 = vshrl.u32 %v7579, 7
        %v7581 = vsub.s32 %v7578, %v7580
        %v7582 = vrot.slane %v7575, %v7581
        %v7583 = vcombine.low %v7574, %v7582
        %v7584 = vcombine.high %v7574, %v7582
        %v7585 = vpack.c.bf16 %v6883, %v6833
        %v7586 = vpack.c.bf16 %v6983, %v6933
        %v7587 = vpack.c.bf16 %v7083, %v7033
        %v7588 = vpack.c.bf16 %v7183, %v7133
        %v7589 = vpack.c.bf16 %v7283, %v7233
        %v7590 = vpack.c.bf16 %v7383, %v7333
        %v7591 = vpack.c.bf16 %v7483, %v7433
        %v7592 = vpack.c.bf16 %v7583, %v7533
        %v7593 = vpack.c.bf16 %v6884, %v6834
        %v7594 = vpack.c.bf16 %v6984, %v6934
        %v7595 = vpack.c.bf16 %v7084, %v7034
        %v7596 = vpack.c.bf16 %v7184, %v7134
        %v7597 = vpack.c.bf16 %v7284, %v7234
        %v7598 = vpack.c.bf16 %v7384, %v7334
        %v7599 = vpack.c.bf16 %v7484, %v7434
        %v7600 = vpack.c.bf16 %v7584, %v7534
        %v7617 = vunpack.c.l.b16 %v7585
        %v7618 = vunpack.c.h.b16 %v7585
        %v7619 = vunpack.c.l.b16 %v7586
        %v7620 = vunpack.c.h.b16 %v7586
        %v7621 = vunpack.c.l.b16 %v7587
        %v7622 = vunpack.c.h.b16 %v7587
        %v7623 = vunpack.c.l.b16 %v7588
        %v7624 = vunpack.c.h.b16 %v7588
        %v7625 = vunpack.c.l.b16 %v7589
        %v7626 = vunpack.c.h.b16 %v7589
        %v7627 = vunpack.c.l.b16 %v7590
        %v7628 = vunpack.c.h.b16 %v7590
        %v7629 = vunpack.c.l.b16 %v7591
        %v7630 = vunpack.c.h.b16 %v7591
        %v7631 = vunpack.c.l.b16 %v7592
        %v7632 = vunpack.c.h.b16 %v7592
        %v7633 = vunpack.c.l.b16 %v7593
        %v7634 = vunpack.c.h.b16 %v7593
        %v7635 = vunpack.c.l.b16 %v7594
        %v7636 = vunpack.c.h.b16 %v7594
        %v7637 = vunpack.c.l.b16 %v7595
        %v7638 = vunpack.c.h.b16 %v7595
        %v7639 = vunpack.c.l.b16 %v7596
        %v7640 = vunpack.c.h.b16 %v7596
        %v7641 = vunpack.c.l.b16 %v7597
        %v7642 = vunpack.c.h.b16 %v7597
        %v7643 = vunpack.c.l.b16 %v7598
        %v7644 = vunpack.c.h.b16 %v7598
        %v7645 = vunpack.c.l.b16 %v7599
        %v7646 = vunpack.c.h.b16 %v7599
        %v7647 = vunpack.c.l.b16 %v7600
        %v7648 = vunpack.c.h.b16 %v7600
        %v7649 = vpack.c.b16 %v7617, %v7617
        %v7650 = vpack.c.b16 %v7618, %v7618
        %v7651 = vpack.c.b16 %v7619, %v7619
        %v7652 = vpack.c.b16 %v7620, %v7620
        %v7653 = vpack.c.b16 %v7621, %v7621
        %v7654 = vpack.c.b16 %v7622, %v7622
        %v7655 = vpack.c.b16 %v7623, %v7623
        %v7656 = vpack.c.b16 %v7624, %v7624
        %v7657 = vpack.c.b16 %v7625, %v7625
        %v7658 = vpack.c.b16 %v7626, %v7626
        %v7659 = vpack.c.b16 %v7627, %v7627
        %v7660 = vpack.c.b16 %v7628, %v7628
        %v7661 = vpack.c.b16 %v7629, %v7629
        %v7662 = vpack.c.b16 %v7630, %v7630
        %v7663 = vpack.c.b16 %v7631, %v7631
        %v7664 = vpack.c.b16 %v7632, %v7632
        %v7665 = vpack.c.b16 %v7633, %v7633
        %v7666 = vpack.c.b16 %v7634, %v7634
        %v7667 = vpack.c.b16 %v7635, %v7635
        %v7668 = vpack.c.b16 %v7636, %v7636
        %v7669 = vpack.c.b16 %v7637, %v7637
        %v7670 = vpack.c.b16 %v7638, %v7638
        %v7671 = vpack.c.b16 %v7639, %v7639
        %v7672 = vpack.c.b16 %v7640, %v7640
        %v7673 = vpack.c.b16 %v7641, %v7641
        %v7674 = vpack.c.b16 %v7642, %v7642
        %v7675 = vpack.c.b16 %v7643, %v7643
        %v7676 = vpack.c.b16 %v7644, %v7644
        %v7677 = vpack.c.b16 %v7645, %v7645
        %v7678 = vpack.c.b16 %v7646, %v7646
        %v7679 = vpack.c.b16 %v7647, %v7647
        %v7680 = vpack.c.b16 %v7648, %v7648
        %7713 = vst [vmem:[%s352] sm:$0xf] %v7649
        %7714 = vst [vmem:[%s352 + $0x4] sm:$0xf] %v7650
        %7715 = vst [vmem:[%s352 + $0x8] sm:$0xf] %v7651
        %7716 = vst [vmem:[%s352 + $0xc] sm:$0xf] %v7652
        %7717 = vst [vmem:[%s352 + $0x10] sm:$0xf] %v7653
        %7718 = vst [vmem:[%s352 + $0x14] sm:$0xf] %v7654
        %7719 = vst [vmem:[%s352 + $0x18] sm:$0xf] %v7655
        %7720 = vst [vmem:[%s352 + $0x1c] sm:$0xf] %v7656
        %7721 = vst [vmem:[%s352 + $0x20] sm:$0xf] %v7657
        %7722 = vst [vmem:[%s352 + $0x24] sm:$0xf] %v7658
        %7723 = vst [vmem:[%s352 + $0x28] sm:$0xf] %v7659
        %7724 = vst [vmem:[%s352 + $0x2c] sm:$0xf] %v7660
        %7725 = vst [vmem:[%s352 + $0x30] sm:$0xf] %v7661
        %7726 = vst [vmem:[%s352 + $0x34] sm:$0xf] %v7662
        %7727 = vst [vmem:[%s352 + $0x38] sm:$0xf] %v7663
        %7728 = vst [vmem:[%s352 + $0x3c] sm:$0xf] %v7664
        %7729 = vst [vmem:[%s352 + $0x40] sm:$0xf] %v7665
        %7730 = vst [vmem:[%s352 + $0x44] sm:$0xf] %v7666
        %7731 = vst [vmem:[%s352 + $0x48] sm:$0xf] %v7667
        %7732 = vst [vmem:[%s352 + $0x4c] sm:$0xf] %v7668
        %7733 = vst [vmem:[%s352 + $0x50] sm:$0xf] %v7669
        %7734 = vst [vmem:[%s352 + $0x54] sm:$0xf] %v7670
        %7735 = vst [vmem:[%s352 + $0x58] sm:$0xf] %v7671
        %7736 = vst [vmem:[%s352 + $0x5c] sm:$0xf] %v7672
        %7737 = vst [vmem:[%s352 + $0x60] sm:$0xf] %v7673
        %7738 = vst [vmem:[%s352 + $0x64] sm:$0xf] %v7674
        %7739 = vst [vmem:[%s352 + $0x68] sm:$0xf] %v7675
        %7740 = vst [vmem:[%s352 + $0x6c] sm:$0xf] %v7676
        %7741 = vst [vmem:[%s352 + $0x70] sm:$0xf] %v7677
        %7742 = vst [vmem:[%s352 + $0x74] sm:$0xf] %v7678
        %7743 = vst [vmem:[%s352 + $0x78] sm:$0xf] %v7679
        %7744 = vst [vmem:[%s352 + $0x7c] sm:$0xf] %v7680
        %s7745 = sand.u32 %s163, 1
        %s7746 = scalar_lea.sflag [#allocation4], %s7745
        %s7747 = sand.u32 %s163, 1
        %s7748 = smul.addr %s7747, 128
        %s7749 = scalar_lea.vmem [#allocation7], %s7748
        %s7750 = sand.u32 %s29, 1
        %s7751 = scalar_lea.sflag [#allocation9], %s7750
        %s7752 = sand.u32 %s191, 1
        %s7753 = smul.addr %s7752, 128
        %s7754 = scalar_lea.vmem [#allocation8], %s7753
        %s7755 = sand.u32 %s29, 1
        %s7756 = scalar_lea.sflag [#allocation9], %s7755
        %s7757 = sand.u32 %s219, 1
        %s7758 = smul.addr %s7757, 128
        %s7759 = scalar_lea.vmem [#allocation10], %s7758
        // Predicated region
        $region49: #{tpu_custom_call.1} parent=39 // pred_check
          %p7760 = pneg %p173
        $region50: #{tpu_custom_call.1} parent=39 // pred_check_branch
          %7762 = sbr.rel (%p7760) target = $region52
        $region51: #{tpu_custom_call.1} parent=39 // pred_region
          #allocation12 [shape = 'u32[6]{0}', space=smem, size = 0x18, scoped, tag = 'DMA stride descriptor']
          %s7763 = smul.u32 16, %s34
          %s7765 = ssub.s32 2048, 2048
          %7766 = vsyncadd %s7746, %s7765
          %s7767 = smul.addr %s33, 64
          %s7768 = sadd.s32 %s7763, %s7767
          %s7769 = smul.addr %s7768, 64
          %s7770 = scalar_lea.hbm %s5, %s7769
          %s7772 = sshll.u32 1, 14
          %s7773 = sxor.u32 4294967295, %s7772
          %s7776 = sshll.u32 7, 18
          %s7777 = sxor.u32 4294967295, %s7776
          %s7778 = sand.u32 0, %s7777
          %s7780 = sor.u32 %s7778, 0
          %s7782 = sshll.u32 3, 24
          %s7783 = sxor.u32 4294967295, %s7782
          %s7784 = sand.u32 %s7780, %s7783
          %s7786 = sor.u32 %s7784, 0
          %s7787 = sshll.u32 %s7749, 4
          %s7788 = int_to_ptr.vmem [resolvable:$true] %s7787
          %7794 = sst [smem:[#allocation12]] 1024
          %s7795 = scalar_lea.smem [#allocation12], 1
          %7796 = sst [smem:[%s7795]] 2048
          %s7797 = scalar_lea.smem [#allocation12], 2
          %7798 = sst [smem:[%s7797]] 16
          %s7799 = scalar_lea.smem [#allocation12], 3
          %7800 = sst [smem:[%s7799]] 64
          %s7801 = scalar_lea.smem [#allocation12], 4
          %7802 = sst [smem:[%s7801]] 64
          %s7803 = scalar_lea.smem [#allocation12], 5
          %7804 = sst [smem:[%s7803]] 4
          %7806 = dma.general %s7788, 2048, %s7770, %s7746, [#allocation11], [#allocation12], %s7786, 0
        $region52: #{tpu_custom_call.1} parent=39 // pred_fallthru
          _
        // Predicated region
        $region53: #{tpu_custom_call.1} parent=39 // pred_check
          %p7807 = pneg %p201
        $region54: #{tpu_custom_call.1} parent=39 // pred_check_branch
          %7809 = sbr.rel (%p7807) target = $region56
        $region55: #{tpu_custom_call.1} parent=39 // pred_region
          #allocation14 [shape = 'u32[6]{0}', space=smem, size = 0x18, scoped, tag = 'DMA stride descriptor']
          %s7810 = smul.u32 16, %s34
          %s7812 = ssub.s32 2048, 2048
          %7813 = vsyncadd %s7751, %s7812
          %s7814 = smul.addr %s33, 64
          %s7815 = sadd.s32 %s7810, %s7814
          %s7816 = smul.addr %s7815, 64
          %s7817 = scalar_lea.hbm %s6, %s7816
          %s7819 = sshll.u32 1, 14
          %s7820 = sxor.u32 4294967295, %s7819
          %s7823 = sshll.u32 7, 18
          %s7824 = sxor.u32 4294967295, %s7823
          %s7825 = sand.u32 0, %s7824
          %s7827 = sor.u32 %s7825, 0
          %s7829 = sshll.u32 3, 24
          %s7830 = sxor.u32 4294967295, %s7829
          %s7831 = sand.u32 %s7827, %s7830
          %s7833 = sor.u32 %s7831, 0
          %s7834 = sshll.u32 %s7754, 4
          %s7835 = int_to_ptr.vmem [resolvable:$true] %s7834
          %7841 = sst [smem:[#allocation14]] 1024
          %s7842 = scalar_lea.smem [#allocation14], 1
          %7843 = sst [smem:[%s7842]] 2048
          %s7844 = scalar_lea.smem [#allocation14], 2
          %7845 = sst [smem:[%s7844]] 16
          %s7846 = scalar_lea.smem [#allocation14], 3
          %7847 = sst [smem:[%s7846]] 64
          %s7848 = scalar_lea.smem [#allocation14], 4
          %7849 = sst [smem:[%s7848]] 64
          %s7850 = scalar_lea.smem [#allocation14], 5
          %7851 = sst [smem:[%s7850]] 4
          %7853 = dma.general %s7835, 2048, %s7817, %s7751, [#allocation13], [#allocation14], %s7833, 0
        $region56: #{tpu_custom_call.1} parent=39 // pred_fallthru
          _
        // Predicated region
        $region57: #{tpu_custom_call.1} parent=39 // pred_check
          %p7854 = pneg %p229
        $region58: #{tpu_custom_call.1} parent=39 // pred_check_branch
          %7856 = sbr.rel (%p7854) target = $region60
        $region59: #{tpu_custom_call.1} parent=39 // pred_region
          #allocation16 [shape = 'u32[6]{0}', space=smem, size = 0x18, scoped, tag = 'DMA stride descriptor']
          %s7857 = smul.u32 16, %s34
          %s7859 = ssub.s32 2048, 2048
          %7860 = vsyncadd %s7756, %s7859
          %s7861 = smul.addr %s33, 64
          %s7862 = sadd.s32 %s7857, %s7861
          %s7863 = smul.addr %s7862, 64
          %s7864 = scalar_lea.hbm %s7, %s7863
          %s7866 = sshll.u32 1, 14
          %s7867 = sxor.u32 4294967295, %s7866
          %s7870 = sshll.u32 7, 18
          %s7871 = sxor.u32 4294967295, %s7870
          %s7872 = sand.u32 0, %s7871
          %s7874 = sor.u32 %s7872, 0
          %s7876 = sshll.u32 3, 24
          %s7877 = sxor.u32 4294967295, %s7876
          %s7878 = sand.u32 %s7874, %s7877
          %s7880 = sor.u32 %s7878, 0
          %s7881 = sshll.u32 %s7759, 4
          %s7882 = int_to_ptr.vmem [resolvable:$true] %s7881
          %7888 = sst [smem:[#allocation16]] 1024
          %s7889 = scalar_lea.smem [#allocation16], 1
          %7890 = sst [smem:[%s7889]] 2048
          %s7891 = scalar_lea.smem [#allocation16], 2
          %7892 = sst [smem:[%s7891]] 16
          %s7893 = scalar_lea.smem [#allocation16], 3
          %7894 = sst [smem:[%s7893]] 64
          %s7895 = scalar_lea.smem [#allocation16], 4
          %7896 = sst [smem:[%s7895]] 64
          %s7897 = scalar_lea.smem [#allocation16], 5
          %7898 = sst [smem:[%s7897]] 4
          %7900 = dma.general %s7882, 2048, %s7864, %s7756, [#allocation15], [#allocation16], %s7880, 0
        $region60: #{tpu_custom_call.1} parent=39 // pred_fallthru
          _
      $region40: #{tpu_custom_call.1} parent=5 // pred_fallthru
        _
      %p7901 = scmp.le.s32.totalorder 2, %s24
      // Predicated region
      $region61: #{tpu_custom_call.1} parent=5 // pred_check
        %p7902 = pneg %p7901
      $region62: #{tpu_custom_call.1} parent=5 // pred_check_branch
        %7904 = sbr.rel (%p7902) target = $region64
      $region63: #{tpu_custom_call.1} parent=5 // pred_region
        %s7905 = ssub.s32 %s24, 2
        // Predicated region
        $region65: #{tpu_custom_call.1} parent=63 // pred_check
          %p7906 = pneg %p179
        $region66: #{tpu_custom_call.1} parent=63 // pred_check_branch
          %7908 = sbr.rel (%p7906) target = $region68
        $region67: #{tpu_custom_call.1} parent=63 // pred_region
          %s7909 = sand.u32 %s164, 1
          %s7910 = scalar_lea.sflag [#allocation4], %s7909
          %s7911 = sand.u32 %s164, 1
          %s7912 = smul.addr %s7911, 128
          %s7913 = scalar_lea.vmem [#allocation7], %s7912
          %7914 = dma.done %s7910, 2048
        $region68: #{tpu_custom_call.1} parent=63 // pred_fallthru
          _
        // Predicated region
        $region69: #{tpu_custom_call.1} parent=63 // pred_check
          %p7915 = pneg %p207
        $region70: #{tpu_custom_call.1} parent=63 // pred_check_branch
          %7917 = sbr.rel (%p7915) target = $region72
        $region71: #{tpu_custom_call.1} parent=63 // pred_region
          %s7918 = sand.u32 %s30, 1
          %s7919 = scalar_lea.sflag [#allocation9], %s7918
          %s7920 = sand.u32 %s192, 1
          %s7921 = smul.addr %s7920, 128
          %s7922 = scalar_lea.vmem [#allocation8], %s7921
          %7923 = dma.done %s7919, 2048
        $region72: #{tpu_custom_call.1} parent=63 // pred_fallthru
          _
        // Predicated region
        $region73: #{tpu_custom_call.1} parent=63 // pred_check
          %p7924 = pneg %p235
        $region74: #{tpu_custom_call.1} parent=63 // pred_check_branch
          %7926 = sbr.rel (%p7924) target = $region76
        $region75: #{tpu_custom_call.1} parent=63 // pred_region
          %s7927 = sand.u32 %s30, 1
          %s7928 = scalar_lea.sflag [#allocation9], %s7927
          %s7929 = sand.u32 %s220, 1
          %s7930 = smul.addr %s7929, 128
          %s7931 = scalar_lea.vmem [#allocation10], %s7930
          %7932 = dma.done %s7928, 2048
        $region76: #{tpu_custom_call.1} parent=63 // pred_fallthru
          _
      $region64: #{tpu_custom_call.1} parent=5 // pred_fallthru
        _
    $region6: #{tpu_custom_call.1} parent=1 // loop_footer
      %s28 = sadd.s32 1, %s24
    $region7: #{tpu_custom_call.1} parent=1 // loop_footer_branch
      %23 = sbr.rel target = $region3
    $region8: #{tpu_custom_call.1} parent=1 // loop_exit
      _
    %7933 = vsyncpa [#allocation3], 1
    %s7934 = scalar_lea.sflag [#allocation3], 1
    %7935 = vsyncpa %s7934, 1
    %7936 = vsyncpa [#allocation6], 1
    %7937 = vsyncpa [#allocation4], 1
    %s7938 = scalar_lea.sflag [#allocation4], 1
    %7939 = vsyncpa %s7938, 1
    %7940 = vsyncpa [#allocation9], 1
    %s7941 = scalar_lea.sflag [#allocation9], 1
    %7942 = vsyncpa %s7941, 1

</llo_original>
